<compile_context>
chip_gen: v7x
topology: tpu7x:2x2x1
jax: 0.10.0
libtpu: 0.0.40
codegen_flags: <defaults>
</compile_context>

<pallas_src>
import jax
import jax.numpy as jnp
from jax.experimental import pallas as pl
from jax.experimental.pallas import tpu as pltpu

# ---------------- config ----------------
VOCAB = 50
VPAD = 128          # lane-dense padded vocab for the output projection
EMB = 32
HID = 32
B = 2
S_ENC = 8           # encoder seq len
T_DEC = 8           # decoder (padded) seq len
IS_COVERAGE = True
IS_COPY = False


def _vmem_specs(n):
    return [pl.BlockSpec(memory_space=pltpu.MemorySpace.VMEM) for _ in range(n)]


# ---------------- single fused kernel ----------------
def _seq2seq_kernel(xg_cat_ref, enc_mask_ref, whh_blk_ref, trans_ref,
                    red_w_ref, red_b_ref,
                    cov0_ref, ypart_ih_ref, w_gates_ref,
                    att_dec_ref, ad_b_ref, attw_ref, covw_ref,
                    w_out_ref, b_out_ref, z1h_ref, tmask_ref,
                    nll_sum_ref, cove_sum_ref,
                    enc_out_scr):
    S, Bn, G2 = xg_cat_ref.shape
    H = G2 // 8
    T = ypart_ih_ref.shape[0]

    enc_mask = enc_mask_ref[...]                  # (B, S)
    whh_blk = whh_blk_ref[...]                    # (2H, 8H)

    # ---- encoder: paired fwd/bwd bi-LSTM with block-diagonal recurrence ----
    # state layout: [h_fwd | h_bwd], gates layout: [i_f,i_b,f_f,f_b,g_f,g_b,o_f,o_b]
    h_cat = jnp.zeros((Bn, 2 * H), jnp.float32)
    c_cat = jnp.zeros((Bn, 2 * H), jnp.float32)

    for p in range(S):
        q = S - 1 - p
        m_f = enc_mask[:, p:p + 1]                # (B, 1) fwd valid at time p
        m_b = enc_mask[:, q:q + 1]                # (B, 1) bwd valid at time q
        gates = xg_cat_ref[p] + jnp.dot(h_cat, whh_blk,
                                        preferred_element_type=jnp.float32)
        i = jax.nn.sigmoid(gates[:, 0 * H:2 * H])
        f = jax.nn.sigmoid(gates[:, 2 * H:4 * H])
        g = jnp.tanh(gates[:, 4 * H:6 * H])
        o = jax.nn.sigmoid(gates[:, 6 * H:8 * H])
        c_new = f * c_cat + i * g
        h_new = o * jnp.tanh(c_new)
        m_cat = jnp.concatenate([jnp.broadcast_to(m_f, (Bn, H)),
                                 jnp.broadcast_to(m_b, (Bn, H))], axis=-1) > 0.0
        h_cat = jnp.where(m_cat, h_new, h_cat)
        c_cat = jnp.where(m_cat, c_new, c_cat)
        # pad positions emit zeros (pad_packed_sequence semantics)
        out_f = jnp.where(m_f > 0.0, h_cat[:, :H], 0.0)
        out_b = jnp.where(m_b > 0.0, h_cat[:, H:], 0.0)
        enc_out_scr[:, p:p + 1, 0:H] = out_f[:, None, :]
        enc_out_scr[:, q:q + 1, H:2 * H] = out_b[:, None, :]

    # ReduceState: one MXU push for both h and c (NOTE: original module bug -
    # transformH weights applied to c as well).
    hc = jnp.concatenate([h_cat, c_cat], axis=0)                       # (2B, 2H)
    red = jnp.maximum(
        jnp.dot(hc, red_w_ref[...], preferred_element_type=jnp.float32)
        + red_b_ref[...], 0.0)                                         # (2B, H)
    s_h = red[:Bn, :]
    s_c = red[Bn:, :]

    enc_out = enc_out_scr[...]                                         # (B, S, 2H)
    enc_fea = jnp.dot(enc_out.reshape(Bn * S, 2 * H), trans_ref[...],
                      preferred_element_type=jnp.float32).reshape(Bn, S, 2 * H)

    # ---- decoder: all T steps fused ----
    # hoisted loop-invariant reads / broadcasts
    attw = jnp.broadcast_to(attw_ref[...].reshape(1, 1, 2 * H), (Bn, S, 2 * H))
    covw = jnp.broadcast_to(covw_ref[...].reshape(1, 1, 2 * H), (Bn, S, 2 * H))
    ad_b = jnp.broadcast_to(ad_b_ref[...], (Bn, 2 * H))
    b_out = jnp.broadcast_to(b_out_ref[...], (Bn, b_out_ref.shape[1]))
    w_gates = w_gates_ref[...]
    att_dec = att_dec_ref[...]
    w_out = w_out_ref[...]
    tmask = tmask_ref[...]

    cov = cov0_ref[...]                                                # (B, S)
    c_t = jnp.zeros((Bn, 2 * H), jnp.float32)
    nll_sum = jnp.zeros((Bn, 1), jnp.float32)
    cove_sum = jnp.zeros((Bn, 1), jnp.float32)

    for t in range(T):
        # transform + LSTM gates fused into a single MXU push
        gates = (jnp.dot(jnp.concatenate([c_t, s_h], axis=-1), w_gates,
                         preferred_element_type=jnp.float32)
                 + ypart_ih_ref[t])                                    # (B, 4H)
        i = jax.nn.sigmoid(gates[:, 0 * H:1 * H])
        f = jax.nn.sigmoid(gates[:, 1 * H:2 * H])
        g = jnp.tanh(gates[:, 2 * H:3 * H])
        o = jax.nn.sigmoid(gates[:, 3 * H:4 * H])
        s_c = f * s_c + i * g
        s_h = o * jnp.tanh(s_c)                                        # dec_out

        # attention with coverage: dec_fc as one matmul on concat([h, c])
        dec_fea = (jnp.dot(jnp.concatenate([s_h, s_c], axis=-1), att_dec,
                           preferred_element_type=jnp.float32) + ad_b)  # (B, 2H)
        att_fea = enc_fea + dec_fea[:, None, :] + cov[:, :, None] * covw
        scores = jnp.sum(jnp.tanh(att_fea) * attw, axis=-1)            # (B, S)
        scores = scores - jnp.max(scores, axis=-1, keepdims=True)
        e = jnp.exp(scores)
        sm = e * pl.reciprocal(jnp.sum(e, axis=-1, keepdims=True), approx=True)
        attn = sm * enc_mask
        attn = attn * pl.reciprocal(jnp.sum(attn, axis=-1, keepdims=True),
                                    approx=True)
        c_t = jnp.sum(attn[:, :, None] * enc_out, axis=1)              # (B, 2H)

        cove_t = jnp.sum(jnp.minimum(attn, cov), axis=-1, keepdims=True)  # (B,1)
        cov = cov + attn

        # fused fc1∘fc2 output projection + log-softmax NLL (padded vocab,
        # pad columns carry -1e30 bias so they drop out of the logsumexp)
        logits = (jnp.dot(jnp.concatenate([s_h, c_t], axis=-1), w_out,
                          preferred_element_type=jnp.float32) + b_out)  # (B, VPAD)
        mx = jnp.max(logits, axis=-1, keepdims=True)
        lse = mx + jnp.log(jnp.sum(jnp.exp(logits - mx), axis=-1, keepdims=True))
        tgt = jnp.sum(logits * z1h_ref[t], axis=-1, keepdims=True)
        nll_t = lse - tgt                                              # (B, 1)

        m = tmask[:, t:t + 1]
        nll_sum = nll_sum + nll_t * m
        cove_sum = cove_sum + cove_t * m

    nll_sum_ref[...] = nll_sum
    cove_sum_ref[...] = cove_sum


# ---------------- jitted forward (one pallas_call) ----------------
def seq2seq_forward(p, enc_inp, enc_len, enc_pad_mask, coverage,
                    dec_inp, dec_len, dec_pad_mask, dec_out_tgt,
                    cov_loss_wt, max_dec_step):
    f32 = jnp.float32
    H, E = HID, EMB
    Bn, S = enc_inp.shape
    T = dec_inp.shape[1]

    # ---- encoder weight prep ----
    wih_f_t = p["enc_wih_f"].T
    wih_b_t = p["enc_wih_b"].T
    whh_f_t = p["enc_whh_f"].T
    whh_b_t = p["enc_whh_b"].T
    b_f = (p["enc_bih_f"] + p["enc_bhh_f"]).reshape(1, 4 * H)
    b_b = (p["enc_bih_b"] + p["enc_bhh_b"]).reshape(1, 4 * H)
    trans_t = p["enc_trans_w"].T
    red_w = p["red_h_w"].T
    red_b = p["red_h_b"].reshape(1, H)

    # block-diagonal recurrence weights, per-gate interleaved columns
    # [i_f, i_b, f_f, f_b, g_f, g_b, o_f, o_b]
    zH = jnp.zeros((H, H), f32)
    cols = []
    for gi in range(4):
        cols.append(jnp.concatenate([whh_f_t[:, gi * H:(gi + 1) * H], zH], axis=0))
        cols.append(jnp.concatenate([zH, whh_b_t[:, gi * H:(gi + 1) * H]], axis=0))
    whh_blk = jnp.concatenate(cols, axis=1)                            # (2H, 8H)

    # encoder input-gate contributions: fwd at time p paired with bwd at S-1-p
    enc_emb = p["enc_emb"][enc_inp]                                    # (B, S, E)
    xg_f = jnp.einsum("bse,eg->bsg", enc_emb, wih_f_t) + b_f           # (B, S, 4H)
    xg_b = jnp.einsum("bse,eg->bsg", enc_emb, wih_b_t) + b_b
    xg_b_rev = xg_b[:, ::-1, :]
    parts = []
    for gi in range(4):
        parts.append(xg_f[..., gi * H:(gi + 1) * H])
        parts.append(xg_b_rev[..., gi * H:(gi + 1) * H])
    xg_cat = jnp.transpose(jnp.concatenate(parts, axis=-1), (1, 0, 2))  # (S, B, 8H)

    # ---- decoder weight prep (algebraic folds hoisted out of the recurrence) ----
    trc = p["dec_trans_w"][:, :2 * H].T                                # (2H, E)
    try_ = p["dec_trans_w"][:, 2 * H:].T                               # (E, E)
    tr_b = p["dec_trans_b"].reshape(1, E)
    dwih_t = p["dec_wih"].T                                            # (E, 4H)
    dwhh_t = p["dec_whh"].T                                            # (H, 4H)
    d_b = (p["dec_bih"] + p["dec_bhh"]).reshape(1, 4 * H)
    w_gates = jnp.concatenate([trc @ dwih_t, dwhh_t], axis=0)          # (3H, 4H)
    w_y = try_ @ dwih_t                                                # (E, 4H)
    b_y = tr_b @ dwih_t + d_b                                          # (1, 4H)

    y_emb = p["dec_emb"][dec_inp]                                      # (B, T, E)
    ypart_ih = jnp.transpose(
        jnp.einsum("bte,eg->btg", y_emb, w_y) + b_y, (1, 0, 2))        # (T, B, 4H)

    att_dec = p["att_dec_w"].T                                         # (2H, 2H)
    ad_b = p["att_dec_b"].reshape(1, 2 * H)
    attw = p["att_w"].reshape(1, 2 * H)
    covw = p["att_cov_w"].reshape(1, 2 * H)

    # fc1 ∘ fc2 collapsed; vocab padded lane-dense, pad bias -1e30 (kept in f32)
    f1h = p["dec_fc1_w"][:, :H].T                                      # (H, H)
    f1c = p["dec_fc1_w"][:, H:].T                                      # (2H, H)
    f1_b = p["dec_fc1_b"].reshape(1, H)
    f2w_pad = jnp.pad(p["dec_fc2_w"].T, ((0, 0), (0, VPAD - VOCAB)))   # (H, VPAD)
    f2b_pad = jnp.concatenate(
        [p["dec_fc2_b"], jnp.full((VPAD - VOCAB,), -1e30, f32)]).reshape(1, VPAD)
    w_out = jnp.concatenate([f1h, f1c], axis=0) @ f2w_pad              # (3H, VPAD)
    b_out = f1_b @ f2w_pad + f2b_pad                                   # (1, VPAD)

    z1h = jnp.transpose(jax.nn.one_hot(dec_out_tgt, VPAD, dtype=f32),
                        (1, 0, 2))                                     # (T, B, VPAD)
    tmask = dec_pad_mask * (jnp.arange(T)[None, :] < max_dec_step).astype(f32)

    nll_sum, cove_sum = pl.pallas_call(
        _seq2seq_kernel,
        out_shape=(jax.ShapeDtypeStruct((Bn, 1), f32),
                   jax.ShapeDtypeStruct((Bn, 1), f32)),
        in_specs=_vmem_specs(17),
        out_specs=tuple(_vmem_specs(2)),
        scratch_shapes=[pltpu.VMEM((Bn, S, 2 * H), f32)],
    )(xg_cat, enc_pad_mask, whh_blk, trans_t, red_w, red_b,
      coverage, ypart_ih, w_gates, att_dec, ad_b, attw, covw,
      w_out, b_out, z1h, tmask)

    # ---- loss reduction (fixed T, masked => identical to the dynamic loop) ----
    dl = dec_len.astype(f32)
    step_losses = nll_sum[:, 0] + cov_loss_wt * cove_sum[:, 0]
    batch_step_loss = jnp.mean(step_losses / dl)
    if IS_COVERAGE:
        batch_cove_loss = jnp.mean(cove_sum[:, 0] / dl)
        return batch_step_loss, batch_cove_loss
    return batch_step_loss, jnp.float32(0.0)


# ---------------- deterministic parameter init (uniform(-0.05, 0.05)) ----------------
def init_params(key):
    shapes = {
        # Encoder
        "enc_emb": (VOCAB, EMB),
        "enc_wih_f": (4 * HID, EMB), "enc_whh_f": (4 * HID, HID),
        "enc_bih_f": (4 * HID,), "enc_bhh_f": (4 * HID,),
        "enc_wih_b": (4 * HID, EMB), "enc_whh_b": (4 * HID, HID),
        "enc_bih_b": (4 * HID,), "enc_bhh_b": (4 * HID,),
        "enc_trans_w": (2 * HID, 2 * HID),
        # ReduceState
        "red_h_w": (HID, 2 * HID), "red_h_b": (HID,),
        "red_c_w": (HID, 2 * HID), "red_c_b": (HID,),   # present but unused (original bug)
        # Decoder
        "dec_emb": (VOCAB, EMB),
        "dec_trans_w": (EMB, 2 * HID + EMB), "dec_trans_b": (EMB,),
        "dec_wih": (4 * HID, EMB), "dec_whh": (4 * HID, HID),
        "dec_bih": (4 * HID,), "dec_bhh": (4 * HID,),
        "att_dec_w": (2 * HID, 2 * HID), "att_dec_b": (2 * HID,),
        "att_w": (1, 2 * HID),
        "att_cov_w": (2 * HID, 1),
        "dec_fc1_w": (HID, 3 * HID), "dec_fc1_b": (HID,),
        "dec_fc2_w": (VOCAB, HID), "dec_fc2_b": (VOCAB,),
    }
    params = {}
    keys = jax.random.split(key, len(shapes))
    for k, (name, shape) in zip(keys, sorted(shapes.items())):
        params[name] = jax.random.uniform(k, shape, jnp.float32, -0.05, 0.05)
    return params


# ---------------- main ----------------
if __name__ == "__main__":
    root = jax.random.PRNGKey(0)
    k_par, k_ei, k_di, k_do = jax.random.split(root, 4)

    params = init_params(k_par)

    enc_inp = jax.random.randint(k_ei, (B, S_ENC), 0, VOCAB, dtype=jnp.int32)
    enc_len = jnp.array([8, 6], dtype=jnp.int32)
    enc_pad_mask = (jnp.arange(S_ENC)[None, :] < enc_len[:, None]).astype(jnp.float32)
    coverage = jnp.zeros((B, S_ENC), jnp.float32)

    dec_inp = jax.random.randint(k_di, (B, T_DEC), 0, VOCAB, dtype=jnp.int32)
    dec_out_tgt = jax.random.randint(k_do, (B, T_DEC), 0, VOCAB, dtype=jnp.int32)
    dec_len = jnp.array([6, 5], dtype=jnp.int32)
    dec_pad_mask = (jnp.arange(T_DEC)[None, :] < dec_len[:, None]).astype(jnp.float32)

    fwd = jax.jit(seq2seq_forward)
    step_loss, cove_loss = fwd(
        params, enc_inp, enc_len, enc_pad_mask, coverage,
        dec_inp, dec_len, dec_pad_mask, dec_out_tgt,
        jnp.float32(1.0), jnp.int32(T_DEC))

    step_loss = jax.block_until_ready(step_loss)
    cove_loss = jax.block_until_ready(cove_loss)
    assert jnp.isfinite(step_loss) and jnp.isfinite(cove_loss)
    print("KERNEL_OK")
</pallas_src>

<mosaic_0001>
module attributes {stable_mosaic.version = 11 : i64} {
  func.func @_seq2seq_kernel(%arg0: memref<8x2x256xf32, #tpu.memory_space<vmem>>, %arg1: memref<2x8xf32, #tpu.memory_space<vmem>>, %arg2: memref<64x256xf32, #tpu.memory_space<vmem>>, %arg3: memref<64x64xf32, #tpu.memory_space<vmem>>, %arg4: memref<64x32xf32, #tpu.memory_space<vmem>>, %arg5: memref<1x32xf32, #tpu.memory_space<vmem>>, %arg6: memref<2x8xf32, #tpu.memory_space<vmem>>, %arg7: memref<8x2x128xf32, #tpu.memory_space<vmem>>, %arg8: memref<96x128xf32, #tpu.memory_space<vmem>>, %arg9: memref<64x64xf32, #tpu.memory_space<vmem>>, %arg10: memref<1x64xf32, #tpu.memory_space<vmem>>, %arg11: memref<1x64xf32, #tpu.memory_space<vmem>>, %arg12: memref<1x64xf32, #tpu.memory_space<vmem>>, %arg13: memref<96x128xf32, #tpu.memory_space<vmem>>, %arg14: memref<1x128xf32, #tpu.memory_space<vmem>>, %arg15: memref<8x2x128xf32, #tpu.memory_space<vmem>>, %arg16: memref<2x8xf32, #tpu.memory_space<vmem>>, %arg17: memref<2x1xf32, #tpu.memory_space<vmem>>, %arg18: memref<2x1xf32, #tpu.memory_space<vmem>>, %arg19: memref<2x8x64xf32, #tpu.memory_space<vmem>>) attributes {dimension_semantics = [], scalar_prefetch = 0 : i64, scratch_operands = 1 : i64, tpu.core_type = #tpu.core_type<tc>} {
    %c0 = arith.constant 0 : index
    %c0_0 = arith.constant 0 : index
    %0 = vector.load %arg1[%c0, %c0_0] : memref<2x8xf32, #tpu.memory_space<vmem>>, vector<2x8xf32>
    %c0_1 = arith.constant 0 : index
    %c0_2 = arith.constant 0 : index
    %1 = vector.load %arg2[%c0_1, %c0_2] : memref<64x256xf32, #tpu.memory_space<vmem>>, vector<64x256xf32>
    %cst = arith.constant 0.000000e+00 : f32
    %2 = vector.broadcast %cst : f32 to vector<2x64xf32>
    %cst_3 = arith.constant 0.000000e+00 : f32
    %3 = vector.broadcast %cst_3 : f32 to vector<2x64xf32>
    %4 = vector.extract_strided_slice %0 {offsets = [0, 0], sizes = [2, 1], strides = [1, 1]} : vector<2x8xf32> to vector<2x1xf32>
    %5 = vector.extract_strided_slice %0 {offsets = [0, 7], sizes = [2, 1], strides = [1, 1]} : vector<2x8xf32> to vector<2x1xf32>
    %c0_4 = arith.constant 0 : index
    %c0_5 = arith.constant 0 : index
    %c0_6 = arith.constant 0 : index
    %6 = vector.load %arg0[%c0_4, %c0_5, %c0_6] : memref<8x2x256xf32, #tpu.memory_space<vmem>>, vector<1x2x256xf32>
    %7 = vector.shape_cast %6 : vector<1x2x256xf32> to vector<2x256xf32>
    %cst_7 = arith.constant dense<0.000000e+00> : vector<2x256xf32>
    %8 = tpu.matmul %2, %1, %cst_7 {dimension_numbers = #tpu.dot_dimension_numbers<[1], [0], [0], [1], [0, 0, 1, 1], [], []>} : vector<2x64xf32>, vector<64x256xf32>, vector<2x256xf32> -> vector<2x256xf32>
    %9 = arith.addf %7, %8 : vector<2x256xf32>
    %10 = vector.extract_strided_slice %9 {offsets = [0, 0], sizes = [2, 64], strides = [1, 1]} : vector<2x256xf32> to vector<2x64xf32>
    %11 = arith.negf %10 : vector<2x64xf32>
    %12 = math.exp %11 : vector<2x64xf32>
    %cst_8 = arith.constant 1.000000e+00 : f32
    %13 = vector.broadcast %cst_8 : f32 to vector<2x64xf32>
    %14 = arith.addf %13, %12 : vector<2x64xf32>
    %15 = arith.divf %13, %14 : vector<2x64xf32>
    %16 = vector.extract_strided_slice %9 {offsets = [0, 64], sizes = [2, 64], strides = [1, 1]} : vector<2x256xf32> to vector<2x64xf32>
    %17 = arith.negf %16 : vector<2x64xf32>
    %18 = math.exp %17 : vector<2x64xf32>
    %cst_9 = arith.constant 1.000000e+00 : f32
    %19 = vector.broadcast %cst_9 : f32 to vector<2x64xf32>
    %20 = arith.addf %19, %18 : vector<2x64xf32>
    %21 = arith.divf %19, %20 : vector<2x64xf32>
    %22 = vector.extract_strided_slice %9 {offsets = [0, 128], sizes = [2, 64], strides = [1, 1]} : vector<2x256xf32> to vector<2x64xf32>
    %23 = math.tanh %22 : vector<2x64xf32>
    %24 = vector.extract_strided_slice %9 {offsets = [0, 192], sizes = [2, 64], strides = [1, 1]} : vector<2x256xf32> to vector<2x64xf32>
    %25 = arith.negf %24 : vector<2x64xf32>
    %26 = math.exp %25 : vector<2x64xf32>
    %cst_10 = arith.constant 1.000000e+00 : f32
    %27 = vector.broadcast %cst_10 : f32 to vector<2x64xf32>
    %28 = arith.addf %27, %26 : vector<2x64xf32>
    %29 = arith.divf %27, %28 : vector<2x64xf32>
    %30 = arith.mulf %21, %3 : vector<2x64xf32>
    %31 = arith.mulf %15, %23 : vector<2x64xf32>
    %32 = arith.addf %30, %31 : vector<2x64xf32>
    %33 = math.tanh %32 : vector<2x64xf32>
    %34 = arith.mulf %29, %33 : vector<2x64xf32>
    %35 = vector.shape_cast %4 : vector<2x1xf32> to vector<2x1xf32>
    %36 = vector.broadcast %35 : vector<2x1xf32> to vector<2x32xf32>
    %37 = vector.shape_cast %5 : vector<2x1xf32> to vector<2x1xf32>
    %38 = vector.broadcast %37 : vector<2x1xf32> to vector<2x32xf32>
    %39 = tpu.concatenate %36, %38 in 1 : vector<2x32xf32>, vector<2x32xf32> -> vector<2x64xf32>
    %cst_11 = arith.constant 0.000000e+00 : f32
    %40 = vector.broadcast %cst_11 : f32 to vector<2x64xf32>
    %41 = arith.cmpf ogt, %39, %40 : vector<2x64xf32>
    %42 = arith.select %41, %34, %2 : vector<2x64xi1>, vector<2x64xf32>
    %43 = arith.select %41, %32, %3 : vector<2x64xi1>, vector<2x64xf32>
    %cst_12 = arith.constant 0.000000e+00 : f32
    %44 = vector.broadcast %cst_12 : f32 to vector<2x1xf32>
    %45 = arith.cmpf ogt, %4, %44 : vector<2x1xf32>
    %46 = vector.extract_strided_slice %42 {offsets = [0, 0], sizes = [2, 32], strides = [1, 1]} : vector<2x64xf32> to vector<2x32xf32>
    %cst_13 = arith.constant 0.000000e+00 : f32
    %47 = vector.shape_cast %45 : vector<2x1xi1> to vector<2x1xi1>
    %48 = vector.broadcast %47 : vector<2x1xi1> to vector<2x32xi1>
    %49 = vector.broadcast %cst_13 : f32 to vector<2x32xf32>
    %50 = arith.select %48, %46, %49 : vector<2x32xi1>, vector<2x32xf32>
    %cst_14 = arith.constant 0.000000e+00 : f32
    %51 = vector.broadcast %cst_14 : f32 to vector<2x1xf32>
    %52 = arith.cmpf ogt, %5, %51 : vector<2x1xf32>
    %53 = vector.extract_strided_slice %42 {offsets = [0, 32], sizes = [2, 32], strides = [1, 1]} : vector<2x64xf32> to vector<2x32xf32>
    %cst_15 = arith.constant 0.000000e+00 : f32
    %54 = vector.shape_cast %52 : vector<2x1xi1> to vector<2x1xi1>
    %55 = vector.broadcast %54 : vector<2x1xi1> to vector<2x32xi1>
    %56 = vector.broadcast %cst_15 : f32 to vector<2x32xf32>
    %57 = arith.select %55, %53, %56 : vector<2x32xi1>, vector<2x32xf32>
    %58 = vector.shape_cast %50 : vector<2x32xf32> to vector<2x1x32xf32>
    %c0_16 = arith.constant 0 : index
    %c0_17 = arith.constant 0 : index
    %c0_18 = arith.constant 0 : index
    %59 = vector.load %arg19[%c0_16, %c0_17, %c0_18] : memref<2x8x64xf32, #tpu.memory_space<vmem>>, vector<2x1x32xf32>
    tpu.vector_store %arg19[%c0_16, %c0_17, %c0_18], %58 {strides = array<i32>} : memref<2x8x64xf32, #tpu.memory_space<vmem>>, vector<2x1x32xf32>,
    %60 = vector.shape_cast %57 : vector<2x32xf32> to vector<2x1x32xf32>
    %c0_19 = arith.constant 0 : index
    %c7 = arith.constant 7 : index
    %c32 = arith.constant 32 : index
    %61 = vector.load %arg19[%c0_19, %c7, %c32] : memref<2x8x64xf32, #tpu.memory_space<vmem>>, vector<2x1x32xf32>
    tpu.vector_store %arg19[%c0_19, %c7, %c32], %60 {strides = array<i32>} : memref<2x8x64xf32, #tpu.memory_space<vmem>>, vector<2x1x32xf32>,
    %62 = vector.extract_strided_slice %0 {offsets = [0, 1], sizes = [2, 1], strides = [1, 1]} : vector<2x8xf32> to vector<2x1xf32>
    %63 = vector.extract_strided_slice %0 {offsets = [0, 6], sizes = [2, 1], strides = [1, 1]} : vector<2x8xf32> to vector<2x1xf32>
    %c1 = arith.constant 1 : index
    %c0_20 = arith.constant 0 : index
    %c0_21 = arith.constant 0 : index
    %64 = vector.load %arg0[%c1, %c0_20, %c0_21] : memref<8x2x256xf32, #tpu.memory_space<vmem>>, vector<1x2x256xf32>
    %65 = vector.shape_cast %64 : vector<1x2x256xf32> to vector<2x256xf32>
    %cst_22 = arith.constant dense<0.000000e+00> : vector<2x256xf32>
    %66 = tpu.matmul %42, %1, %cst_22 {dimension_numbers = #tpu.dot_dimension_numbers<[1], [0], [0], [1], [0, 0, 1, 1], [], []>} : vector<2x64xf32>, vector<64x256xf32>, vector<2x256xf32> -> vector<2x256xf32>
    %67 = arith.addf %65, %66 : vector<2x256xf32>
    %68 = vector.extract_strided_slice %67 {offsets = [0, 0], sizes = [2, 64], strides = [1, 1]} : vector<2x256xf32> to vector<2x64xf32>
    %69 = arith.negf %68 : vector<2x64xf32>
    %70 = math.exp %69 : vector<2x64xf32>
    %cst_23 = arith.constant 1.000000e+00 : f32
    %71 = vector.broadcast %cst_23 : f32 to vector<2x64xf32>
    %72 = arith.addf %71, %70 : vector<2x64xf32>
    %73 = arith.divf %71, %72 : vector<2x64xf32>
    %74 = vector.extract_strided_slice %67 {offsets = [0, 64], sizes = [2, 64], strides = [1, 1]} : vector<2x256xf32> to vector<2x64xf32>
    %75 = arith.negf %74 : vector<2x64xf32>
    %76 = math.exp %75 : vector<2x64xf32>
    %cst_24 = arith.constant 1.000000e+00 : f32
    %77 = vector.broadcast %cst_24 : f32 to vector<2x64xf32>
    %78 = arith.addf %77, %76 : vector<2x64xf32>
    %79 = arith.divf %77, %78 : vector<2x64xf32>
    %80 = vector.extract_strided_slice %67 {offsets = [0, 128], sizes = [2, 64], strides = [1, 1]} : vector<2x256xf32> to vector<2x64xf32>
    %81 = math.tanh %80 : vector<2x64xf32>
    %82 = vector.extract_strided_slice %67 {offsets = [0, 192], sizes = [2, 64], strides = [1, 1]} : vector<2x256xf32> to vector<2x64xf32>
    %83 = arith.negf %82 : vector<2x64xf32>
    %84 = math.exp %83 : vector<2x64xf32>
    %cst_25 = arith.constant 1.000000e+00 : f32
    %85 = vector.broadcast %cst_25 : f32 to vector<2x64xf32>
    %86 = arith.addf %85, %84 : vector<2x64xf32>
    %87 = arith.divf %85, %86 : vector<2x64xf32>
    %88 = arith.mulf %79, %43 : vector<2x64xf32>
    %89 = arith.mulf %73, %81 : vector<2x64xf32>
    %90 = arith.addf %88, %89 : vector<2x64xf32>
    %91 = math.tanh %90 : vector<2x64xf32>
    %92 = arith.mulf %87, %91 : vector<2x64xf32>
    %93 = vector.shape_cast %62 : vector<2x1xf32> to vector<2x1xf32>
    %94 = vector.broadcast %93 : vector<2x1xf32> to vector<2x32xf32>
    %95 = vector.shape_cast %63 : vector<2x1xf32> to vector<2x1xf32>
    %96 = vector.broadcast %95 : vector<2x1xf32> to vector<2x32xf32>
    %97 = tpu.concatenate %94, %96 in 1 : vector<2x32xf32>, vector<2x32xf32> -> vector<2x64xf32>
    %cst_26 = arith.constant 0.000000e+00 : f32
    %98 = vector.broadcast %cst_26 : f32 to vector<2x64xf32>
    %99 = arith.cmpf ogt, %97, %98 : vector<2x64xf32>
    %100 = arith.select %99, %92, %42 : vector<2x64xi1>, vector<2x64xf32>
    %101 = arith.select %99, %90, %43 : vector<2x64xi1>, vector<2x64xf32>
    %cst_27 = arith.constant 0.000000e+00 : f32
    %102 = vector.broadcast %cst_27 : f32 to vector<2x1xf32>
    %103 = arith.cmpf ogt, %62, %102 : vector<2x1xf32>
    %104 = vector.extract_strided_slice %100 {offsets = [0, 0], sizes = [2, 32], strides = [1, 1]} : vector<2x64xf32> to vector<2x32xf32>
    %cst_28 = arith.constant 0.000000e+00 : f32
    %105 = vector.shape_cast %103 : vector<2x1xi1> to vector<2x1xi1>
    %106 = vector.broadcast %105 : vector<2x1xi1> to vector<2x32xi1>
    %107 = vector.broadcast %cst_28 : f32 to vector<2x32xf32>
    %108 = arith.select %106, %104, %107 : vector<2x32xi1>, vector<2x32xf32>
    %cst_29 = arith.constant 0.000000e+00 : f32
    %109 = vector.broadcast %cst_29 : f32 to vector<2x1xf32>
    %110 = arith.cmpf ogt, %63, %109 : vector<2x1xf32>
    %111 = vector.extract_strided_slice %100 {offsets = [0, 32], sizes = [2, 32], strides = [1, 1]} : vector<2x64xf32> to vector<2x32xf32>
    %cst_30 = arith.constant 0.000000e+00 : f32
    %112 = vector.shape_cast %110 : vector<2x1xi1> to vector<2x1xi1>
    %113 = vector.broadcast %112 : vector<2x1xi1> to vector<2x32xi1>
    %114 = vector.broadcast %cst_30 : f32 to vector<2x32xf32>
    %115 = arith.select %113, %111, %114 : vector<2x32xi1>, vector<2x32xf32>
    %116 = vector.shape_cast %108 : vector<2x32xf32> to vector<2x1x32xf32>
    %c0_31 = arith.constant 0 : index
    %c1_32 = arith.constant 1 : index
    %c0_33 = arith.constant 0 : index
    %117 = vector.load %arg19[%c0_31, %c1_32, %c0_33] : memref<2x8x64xf32, #tpu.memory_space<vmem>>, vector<2x1x32xf32>
    tpu.vector_store %arg19[%c0_31, %c1_32, %c0_33], %116 {strides = array<i32>} : memref<2x8x64xf32, #tpu.memory_space<vmem>>, vector<2x1x32xf32>,
    %118 = vector.shape_cast %115 : vector<2x32xf32> to vector<2x1x32xf32>
    %c0_34 = arith.constant 0 : index
    %c6 = arith.constant 6 : index
    %c32_35 = arith.constant 32 : index
    %119 = vector.load %arg19[%c0_34, %c6, %c32_35] : memref<2x8x64xf32, #tpu.memory_space<vmem>>, vector<2x1x32xf32>
    tpu.vector_store %arg19[%c0_34, %c6, %c32_35], %118 {strides = array<i32>} : memref<2x8x64xf32, #tpu.memory_space<vmem>>, vector<2x1x32xf32>,
    %120 = vector.extract_strided_slice %0 {offsets = [0, 2], sizes = [2, 1], strides = [1, 1]} : vector<2x8xf32> to vector<2x1xf32>
    %121 = vector.extract_strided_slice %0 {offsets = [0, 5], sizes = [2, 1], strides = [1, 1]} : vector<2x8xf32> to vector<2x1xf32>
    %c2 = arith.constant 2 : index
    %c0_36 = arith.constant 0 : index
    %c0_37 = arith.constant 0 : index
    %122 = vector.load %arg0[%c2, %c0_36, %c0_37] : memref<8x2x256xf32, #tpu.memory_space<vmem>>, vector<1x2x256xf32>
    %123 = vector.shape_cast %122 : vector<1x2x256xf32> to vector<2x256xf32>
    %cst_38 = arith.constant dense<0.000000e+00> : vector<2x256xf32>
    %124 = tpu.matmul %100, %1, %cst_38 {dimension_numbers = #tpu.dot_dimension_numbers<[1], [0], [0], [1], [0, 0, 1, 1], [], []>} : vector<2x64xf32>, vector<64x256xf32>, vector<2x256xf32> -> vector<2x256xf32>
    %125 = arith.addf %123, %124 : vector<2x256xf32>
    %126 = vector.extract_strided_slice %125 {offsets = [0, 0], sizes = [2, 64], strides = [1, 1]} : vector<2x256xf32> to vector<2x64xf32>
    %127 = arith.negf %126 : vector<2x64xf32>
    %128 = math.exp %127 : vector<2x64xf32>
    %cst_39 = arith.constant 1.000000e+00 : f32
    %129 = vector.broadcast %cst_39 : f32 to vector<2x64xf32>
    %130 = arith.addf %129, %128 : vector<2x64xf32>
    %131 = arith.divf %129, %130 : vector<2x64xf32>
    %132 = vector.extract_strided_slice %125 {offsets = [0, 64], sizes = [2, 64], strides = [1, 1]} : vector<2x256xf32> to vector<2x64xf32>
    %133 = arith.negf %132 : vector<2x64xf32>
    %134 = math.exp %133 : vector<2x64xf32>
    %cst_40 = arith.constant 1.000000e+00 : f32
    %135 = vector.broadcast %cst_40 : f32 to vector<2x64xf32>
    %136 = arith.addf %135, %134 : vector<2x64xf32>
    %137 = arith.divf %135, %136 : vector<2x64xf32>
    %138 = vector.extract_strided_slice %125 {offsets = [0, 128], sizes = [2, 64], strides = [1, 1]} : vector<2x256xf32> to vector<2x64xf32>
    %139 = math.tanh %138 : vector<2x64xf32>
    %140 = vector.extract_strided_slice %125 {offsets = [0, 192], sizes = [2, 64], strides = [1, 1]} : vector<2x256xf32> to vector<2x64xf32>
    %141 = arith.negf %140 : vector<2x64xf32>
    %142 = math.exp %141 : vector<2x64xf32>
    %cst_41 = arith.constant 1.000000e+00 : f32
    %143 = vector.broadcast %cst_41 : f32 to vector<2x64xf32>
    %144 = arith.addf %143, %142 : vector<2x64xf32>
    %145 = arith.divf %143, %144 : vector<2x64xf32>
    %146 = arith.mulf %137, %101 : vector<2x64xf32>
    %147 = arith.mulf %131, %139 : vector<2x64xf32>
    %148 = arith.addf %146, %147 : vector<2x64xf32>
    %149 = math.tanh %148 : vector<2x64xf32>
    %150 = arith.mulf %145, %149 : vector<2x64xf32>
    %151 = vector.shape_cast %120 : vector<2x1xf32> to vector<2x1xf32>
    %152 = vector.broadcast %151 : vector<2x1xf32> to vector<2x32xf32>
    %153 = vector.shape_cast %121 : vector<2x1xf32> to vector<2x1xf32>
    %154 = vector.broadcast %153 : vector<2x1xf32> to vector<2x32xf32>
    %155 = tpu.concatenate %152, %154 in 1 : vector<2x32xf32>, vector<2x32xf32> -> vector<2x64xf32>
    %cst_42 = arith.constant 0.000000e+00 : f32
    %156 = vector.broadcast %cst_42 : f32 to vector<2x64xf32>
    %157 = arith.cmpf ogt, %155, %156 : vector<2x64xf32>
    %158 = arith.select %157, %150, %100 : vector<2x64xi1>, vector<2x64xf32>
    %159 = arith.select %157, %148, %101 : vector<2x64xi1>, vector<2x64xf32>
    %cst_43 = arith.constant 0.000000e+00 : f32
    %160 = vector.broadcast %cst_43 : f32 to vector<2x1xf32>
    %161 = arith.cmpf ogt, %120, %160 : vector<2x1xf32>
    %162 = vector.extract_strided_slice %158 {offsets = [0, 0], sizes = [2, 32], strides = [1, 1]} : vector<2x64xf32> to vector<2x32xf32>
    %cst_44 = arith.constant 0.000000e+00 : f32
    %163 = vector.shape_cast %161 : vector<2x1xi1> to vector<2x1xi1>
    %164 = vector.broadcast %163 : vector<2x1xi1> to vector<2x32xi1>
    %165 = vector.broadcast %cst_44 : f32 to vector<2x32xf32>
    %166 = arith.select %164, %162, %165 : vector<2x32xi1>, vector<2x32xf32>
    %cst_45 = arith.constant 0.000000e+00 : f32
    %167 = vector.broadcast %cst_45 : f32 to vector<2x1xf32>
    %168 = arith.cmpf ogt, %121, %167 : vector<2x1xf32>
    %169 = vector.extract_strided_slice %158 {offsets = [0, 32], sizes = [2, 32], strides = [1, 1]} : vector<2x64xf32> to vector<2x32xf32>
    %cst_46 = arith.constant 0.000000e+00 : f32
    %170 = vector.shape_cast %168 : vector<2x1xi1> to vector<2x1xi1>
    %171 = vector.broadcast %170 : vector<2x1xi1> to vector<2x32xi1>
    %172 = vector.broadcast %cst_46 : f32 to vector<2x32xf32>
    %173 = arith.select %171, %169, %172 : vector<2x32xi1>, vector<2x32xf32>
    %174 = vector.shape_cast %166 : vector<2x32xf32> to vector<2x1x32xf32>
    %c0_47 = arith.constant 0 : index
    %c2_48 = arith.constant 2 : index
    %c0_49 = arith.constant 0 : index
    %175 = vector.load %arg19[%c0_47, %c2_48, %c0_49] : memref<2x8x64xf32, #tpu.memory_space<vmem>>, vector<2x1x32xf32>
    tpu.vector_store %arg19[%c0_47, %c2_48, %c0_49], %174 {strides = array<i32>} : memref<2x8x64xf32, #tpu.memory_space<vmem>>, vector<2x1x32xf32>,
    %176 = vector.shape_cast %173 : vector<2x32xf32> to vector<2x1x32xf32>
    %c0_50 = arith.constant 0 : index
    %c5 = arith.constant 5 : index
    %c32_51 = arith.constant 32 : index
    %177 = vector.load %arg19[%c0_50, %c5, %c32_51] : memref<2x8x64xf32, #tpu.memory_space<vmem>>, vector<2x1x32xf32>
    tpu.vector_store %arg19[%c0_50, %c5, %c32_51], %176 {strides = array<i32>} : memref<2x8x64xf32, #tpu.memory_space<vmem>>, vector<2x1x32xf32>,
    %178 = vector.extract_strided_slice %0 {offsets = [0, 3], sizes = [2, 1], strides = [1, 1]} : vector<2x8xf32> to vector<2x1xf32>
    %179 = vector.extract_strided_slice %0 {offsets = [0, 4], sizes = [2, 1], strides = [1, 1]} : vector<2x8xf32> to vector<2x1xf32>
    %c3 = arith.constant 3 : index
    %c0_52 = arith.constant 0 : index
    %c0_53 = arith.constant 0 : index
    %180 = vector.load %arg0[%c3, %c0_52, %c0_53] : memref<8x2x256xf32, #tpu.memory_space<vmem>>, vector<1x2x256xf32>
    %181 = vector.shape_cast %180 : vector<1x2x256xf32> to vector<2x256xf32>
    %cst_54 = arith.constant dense<0.000000e+00> : vector<2x256xf32>
    %182 = tpu.matmul %158, %1, %cst_54 {dimension_numbers = #tpu.dot_dimension_numbers<[1], [0], [0], [1], [0, 0, 1, 1], [], []>} : vector<2x64xf32>, vector<64x256xf32>, vector<2x256xf32> -> vector<2x256xf32>
    %183 = arith.addf %181, %182 : vector<2x256xf32>
    %184 = vector.extract_strided_slice %183 {offsets = [0, 0], sizes = [2, 64], strides = [1, 1]} : vector<2x256xf32> to vector<2x64xf32>
    %185 = arith.negf %184 : vector<2x64xf32>
    %186 = math.exp %185 : vector<2x64xf32>
    %cst_55 = arith.constant 1.000000e+00 : f32
    %187 = vector.broadcast %cst_55 : f32 to vector<2x64xf32>
    %188 = arith.addf %187, %186 : vector<2x64xf32>
    %189 = arith.divf %187, %188 : vector<2x64xf32>
    %190 = vector.extract_strided_slice %183 {offsets = [0, 64], sizes = [2, 64], strides = [1, 1]} : vector<2x256xf32> to vector<2x64xf32>
    %191 = arith.negf %190 : vector<2x64xf32>
    %192 = math.exp %191 : vector<2x64xf32>
    %cst_56 = arith.constant 1.000000e+00 : f32
    %193 = vector.broadcast %cst_56 : f32 to vector<2x64xf32>
    %194 = arith.addf %193, %192 : vector<2x64xf32>
    %195 = arith.divf %193, %194 : vector<2x64xf32>
    %196 = vector.extract_strided_slice %183 {offsets = [0, 128], sizes = [2, 64], strides = [1, 1]} : vector<2x256xf32> to vector<2x64xf32>
    %197 = math.tanh %196 : vector<2x64xf32>
    %198 = vector.extract_strided_slice %183 {offsets = [0, 192], sizes = [2, 64], strides = [1, 1]} : vector<2x256xf32> to vector<2x64xf32>
    %199 = arith.negf %198 : vector<2x64xf32>
    %200 = math.exp %199 : vector<2x64xf32>
    %cst_57 = arith.constant 1.000000e+00 : f32
    %201 = vector.broadcast %cst_57 : f32 to vector<2x64xf32>
    %202 = arith.addf %201, %200 : vector<2x64xf32>
    %203 = arith.divf %201, %202 : vector<2x64xf32>
    %204 = arith.mulf %195, %159 : vector<2x64xf32>
    %205 = arith.mulf %189, %197 : vector<2x64xf32>
    %206 = arith.addf %204, %205 : vector<2x64xf32>
    %207 = math.tanh %206 : vector<2x64xf32>
    %208 = arith.mulf %203, %207 : vector<2x64xf32>
    %209 = vector.shape_cast %178 : vector<2x1xf32> to vector<2x1xf32>
    %210 = vector.broadcast %209 : vector<2x1xf32> to vector<2x32xf32>
    %211 = vector.shape_cast %179 : vector<2x1xf32> to vector<2x1xf32>
    %212 = vector.broadcast %211 : vector<2x1xf32> to vector<2x32xf32>
    %213 = tpu.concatenate %210, %212 in 1 : vector<2x32xf32>, vector<2x32xf32> -> vector<2x64xf32>
    %cst_58 = arith.constant 0.000000e+00 : f32
    %214 = vector.broadcast %cst_58 : f32 to vector<2x64xf32>
    %215 = arith.cmpf ogt, %213, %214 : vector<2x64xf32>
    %216 = arith.select %215, %208, %158 : vector<2x64xi1>, vector<2x64xf32>
    %217 = arith.select %215, %206, %159 : vector<2x64xi1>, vector<2x64xf32>
    %cst_59 = arith.constant 0.000000e+00 : f32
    %218 = vector.broadcast %cst_59 : f32 to vector<2x1xf32>
    %219 = arith.cmpf ogt, %178, %218 : vector<2x1xf32>
    %220 = vector.extract_strided_slice %216 {offsets = [0, 0], sizes = [2, 32], strides = [1, 1]} : vector<2x64xf32> to vector<2x32xf32>
    %cst_60 = arith.constant 0.000000e+00 : f32
    %221 = vector.shape_cast %219 : vector<2x1xi1> to vector<2x1xi1>
    %222 = vector.broadcast %221 : vector<2x1xi1> to vector<2x32xi1>
    %223 = vector.broadcast %cst_60 : f32 to vector<2x32xf32>
    %224 = arith.select %222, %220, %223 : vector<2x32xi1>, vector<2x32xf32>
    %cst_61 = arith.constant 0.000000e+00 : f32
    %225 = vector.broadcast %cst_61 : f32 to vector<2x1xf32>
    %226 = arith.cmpf ogt, %179, %225 : vector<2x1xf32>
    %227 = vector.extract_strided_slice %216 {offsets = [0, 32], sizes = [2, 32], strides = [1, 1]} : vector<2x64xf32> to vector<2x32xf32>
    %cst_62 = arith.constant 0.000000e+00 : f32
    %228 = vector.shape_cast %226 : vector<2x1xi1> to vector<2x1xi1>
    %229 = vector.broadcast %228 : vector<2x1xi1> to vector<2x32xi1>
    %230 = vector.broadcast %cst_62 : f32 to vector<2x32xf32>
    %231 = arith.select %229, %227, %230 : vector<2x32xi1>, vector<2x32xf32>
    %232 = vector.shape_cast %224 : vector<2x32xf32> to vector<2x1x32xf32>
    %c0_63 = arith.constant 0 : index
    %c3_64 = arith.constant 3 : index
    %c0_65 = arith.constant 0 : index
    %233 = vector.load %arg19[%c0_63, %c3_64, %c0_65] : memref<2x8x64xf32, #tpu.memory_space<vmem>>, vector<2x1x32xf32>
    tpu.vector_store %arg19[%c0_63, %c3_64, %c0_65], %232 {strides = array<i32>} : memref<2x8x64xf32, #tpu.memory_space<vmem>>, vector<2x1x32xf32>,
    %234 = vector.shape_cast %231 : vector<2x32xf32> to vector<2x1x32xf32>
    %c0_66 = arith.constant 0 : index
    %c4 = arith.constant 4 : index
    %c32_67 = arith.constant 32 : index
    %235 = vector.load %arg19[%c0_66, %c4, %c32_67] : memref<2x8x64xf32, #tpu.memory_space<vmem>>, vector<2x1x32xf32>
    tpu.vector_store %arg19[%c0_66, %c4, %c32_67], %234 {strides = array<i32>} : memref<2x8x64xf32, #tpu.memory_space<vmem>>, vector<2x1x32xf32>,
    %236 = vector.extract_strided_slice %0 {offsets = [0, 4], sizes = [2, 1], strides = [1, 1]} : vector<2x8xf32> to vector<2x1xf32>
    %237 = vector.extract_strided_slice %0 {offsets = [0, 3], sizes = [2, 1], strides = [1, 1]} : vector<2x8xf32> to vector<2x1xf32>
    %c4_68 = arith.constant 4 : index
    %c0_69 = arith.constant 0 : index
    %c0_70 = arith.constant 0 : index
    %238 = vector.load %arg0[%c4_68, %c0_69, %c0_70] : memref<8x2x256xf32, #tpu.memory_space<vmem>>, vector<1x2x256xf32>
    %239 = vector.shape_cast %238 : vector<1x2x256xf32> to vector<2x256xf32>
    %cst_71 = arith.constant dense<0.000000e+00> : vector<2x256xf32>
    %240 = tpu.matmul %216, %1, %cst_71 {dimension_numbers = #tpu.dot_dimension_numbers<[1], [0], [0], [1], [0, 0, 1, 1], [], []>} : vector<2x64xf32>, vector<64x256xf32>, vector<2x256xf32> -> vector<2x256xf32>
    %241 = arith.addf %239, %240 : vector<2x256xf32>
    %242 = vector.extract_strided_slice %241 {offsets = [0, 0], sizes = [2, 64], strides = [1, 1]} : vector<2x256xf32> to vector<2x64xf32>
    %243 = arith.negf %242 : vector<2x64xf32>
    %244 = math.exp %243 : vector<2x64xf32>
    %cst_72 = arith.constant 1.000000e+00 : f32
    %245 = vector.broadcast %cst_72 : f32 to vector<2x64xf32>
    %246 = arith.addf %245, %244 : vector<2x64xf32>
    %247 = arith.divf %245, %246 : vector<2x64xf32>
    %248 = vector.extract_strided_slice %241 {offsets = [0, 64], sizes = [2, 64], strides = [1, 1]} : vector<2x256xf32> to vector<2x64xf32>
    %249 = arith.negf %248 : vector<2x64xf32>
    %250 = math.exp %249 : vector<2x64xf32>
    %cst_73 = arith.constant 1.000000e+00 : f32
    %251 = vector.broadcast %cst_73 : f32 to vector<2x64xf32>
    %252 = arith.addf %251, %250 : vector<2x64xf32>
    %253 = arith.divf %251, %252 : vector<2x64xf32>
    %254 = vector.extract_strided_slice %241 {offsets = [0, 128], sizes = [2, 64], strides = [1, 1]} : vector<2x256xf32> to vector<2x64xf32>
    %255 = math.tanh %254 : vector<2x64xf32>
    %256 = vector.extract_strided_slice %241 {offsets = [0, 192], sizes = [2, 64], strides = [1, 1]} : vector<2x256xf32> to vector<2x64xf32>
    %257 = arith.negf %256 : vector<2x64xf32>
    %258 = math.exp %257 : vector<2x64xf32>
    %cst_74 = arith.constant 1.000000e+00 : f32
    %259 = vector.broadcast %cst_74 : f32 to vector<2x64xf32>
    %260 = arith.addf %259, %258 : vector<2x64xf32>
    %261 = arith.divf %259, %260 : vector<2x64xf32>
    %262 = arith.mulf %253, %217 : vector<2x64xf32>
    %263 = arith.mulf %247, %255 : vector<2x64xf32>
    %264 = arith.addf %262, %263 : vector<2x64xf32>
    %265 = math.tanh %264 : vector<2x64xf32>
    %266 = arith.mulf %261, %265 : vector<2x64xf32>
    %267 = vector.shape_cast %236 : vector<2x1xf32> to vector<2x1xf32>
    %268 = vector.broadcast %267 : vector<2x1xf32> to vector<2x32xf32>
    %269 = vector.shape_cast %237 : vector<2x1xf32> to vector<2x1xf32>
    %270 = vector.broadcast %269 : vector<2x1xf32> to vector<2x32xf32>
    %271 = tpu.concatenate %268, %270 in 1 : vector<2x32xf32>, vector<2x32xf32> -> vector<2x64xf32>
    %cst_75 = arith.constant 0.000000e+00 : f32
    %272 = vector.broadcast %cst_75 : f32 to vector<2x64xf32>
    %273 = arith.cmpf ogt, %271, %272 : vector<2x64xf32>
    %274 = arith.select %273, %266, %216 : vector<2x64xi1>, vector<2x64xf32>
    %275 = arith.select %273, %264, %217 : vector<2x64xi1>, vector<2x64xf32>
    %cst_76 = arith.constant 0.000000e+00 : f32
    %276 = vector.broadcast %cst_76 : f32 to vector<2x1xf32>
    %277 = arith.cmpf ogt, %236, %276 : vector<2x1xf32>
    %278 = vector.extract_strided_slice %274 {offsets = [0, 0], sizes = [2, 32], strides = [1, 1]} : vector<2x64xf32> to vector<2x32xf32>
    %cst_77 = arith.constant 0.000000e+00 : f32
    %279 = vector.shape_cast %277 : vector<2x1xi1> to vector<2x1xi1>
    %280 = vector.broadcast %279 : vector<2x1xi1> to vector<2x32xi1>
    %281 = vector.broadcast %cst_77 : f32 to vector<2x32xf32>
    %282 = arith.select %280, %278, %281 : vector<2x32xi1>, vector<2x32xf32>
    %cst_78 = arith.constant 0.000000e+00 : f32
    %283 = vector.broadcast %cst_78 : f32 to vector<2x1xf32>
    %284 = arith.cmpf ogt, %237, %283 : vector<2x1xf32>
    %285 = vector.extract_strided_slice %274 {offsets = [0, 32], sizes = [2, 32], strides = [1, 1]} : vector<2x64xf32> to vector<2x32xf32>
    %cst_79 = arith.constant 0.000000e+00 : f32
    %286 = vector.shape_cast %284 : vector<2x1xi1> to vector<2x1xi1>
    %287 = vector.broadcast %286 : vector<2x1xi1> to vector<2x32xi1>
    %288 = vector.broadcast %cst_79 : f32 to vector<2x32xf32>
    %289 = arith.select %287, %285, %288 : vector<2x32xi1>, vector<2x32xf32>
    %290 = vector.shape_cast %282 : vector<2x32xf32> to vector<2x1x32xf32>
    %c0_80 = arith.constant 0 : index
    %c4_81 = arith.constant 4 : index
    %c0_82 = arith.constant 0 : index
    %291 = vector.load %arg19[%c0_80, %c4_81, %c0_82] : memref<2x8x64xf32, #tpu.memory_space<vmem>>, vector<2x1x32xf32>
    tpu.vector_store %arg19[%c0_80, %c4_81, %c0_82], %290 {strides = array<i32>} : memref<2x8x64xf32, #tpu.memory_space<vmem>>, vector<2x1x32xf32>,
    %292 = vector.shape_cast %289 : vector<2x32xf32> to vector<2x1x32xf32>
    %c0_83 = arith.constant 0 : index
    %c3_84 = arith.constant 3 : index
    %c32_85 = arith.constant 32 : index
    %293 = vector.load %arg19[%c0_83, %c3_84, %c32_85] : memref<2x8x64xf32, #tpu.memory_space<vmem>>, vector<2x1x32xf32>
    tpu.vector_store %arg19[%c0_83, %c3_84, %c32_85], %292 {strides = array<i32>} : memref<2x8x64xf32, #tpu.memory_space<vmem>>, vector<2x1x32xf32>,
    %294 = vector.extract_strided_slice %0 {offsets = [0, 5], sizes = [2, 1], strides = [1, 1]} : vector<2x8xf32> to vector<2x1xf32>
    %295 = vector.extract_strided_slice %0 {offsets = [0, 2], sizes = [2, 1], strides = [1, 1]} : vector<2x8xf32> to vector<2x1xf32>
    %c5_86 = arith.constant 5 : index
    %c0_87 = arith.constant 0 : index
    %c0_88 = arith.constant 0 : index
    %296 = vector.load %arg0[%c5_86, %c0_87, %c0_88] : memref<8x2x256xf32, #tpu.memory_space<vmem>>, vector<1x2x256xf32>
    %297 = vector.shape_cast %296 : vector<1x2x256xf32> to vector<2x256xf32>
    %cst_89 = arith.constant dense<0.000000e+00> : vector<2x256xf32>
    %298 = tpu.matmul %274, %1, %cst_89 {dimension_numbers = #tpu.dot_dimension_numbers<[1], [0], [0], [1], [0, 0, 1, 1], [], []>} : vector<2x64xf32>, vector<64x256xf32>, vector<2x256xf32> -> vector<2x256xf32>
    %299 = arith.addf %297, %298 : vector<2x256xf32>
    %300 = vector.extract_strided_slice %299 {offsets = [0, 0], sizes = [2, 64], strides = [1, 1]} : vector<2x256xf32> to vector<2x64xf32>
    %301 = arith.negf %300 : vector<2x64xf32>
    %302 = math.exp %301 : vector<2x64xf32>
    %cst_90 = arith.constant 1.000000e+00 : f32
    %303 = vector.broadcast %cst_90 : f32 to vector<2x64xf32>
    %304 = arith.addf %303, %302 : vector<2x64xf32>
    %305 = arith.divf %303, %304 : vector<2x64xf32>
    %306 = vector.extract_strided_slice %299 {offsets = [0, 64], sizes = [2, 64], strides = [1, 1]} : vector<2x256xf32> to vector<2x64xf32>
    %307 = arith.negf %306 : vector<2x64xf32>
    %308 = math.exp %307 : vector<2x64xf32>
    %cst_91 = arith.constant 1.000000e+00 : f32
    %309 = vector.broadcast %cst_91 : f32 to vector<2x64xf32>
    %310 = arith.addf %309, %308 : vector<2x64xf32>
    %311 = arith.divf %309, %310 : vector<2x64xf32>
    %312 = vector.extract_strided_slice %299 {offsets = [0, 128], sizes = [2, 64], strides = [1, 1]} : vector<2x256xf32> to vector<2x64xf32>
    %313 = math.tanh %312 : vector<2x64xf32>
    %314 = vector.extract_strided_slice %299 {offsets = [0, 192], sizes = [2, 64], strides = [1, 1]} : vector<2x256xf32> to vector<2x64xf32>
    %315 = arith.negf %314 : vector<2x64xf32>
    %316 = math.exp %315 : vector<2x64xf32>
    %cst_92 = arith.constant 1.000000e+00 : f32
    %317 = vector.broadcast %cst_92 : f32 to vector<2x64xf32>
    %318 = arith.addf %317, %316 : vector<2x64xf32>
    %319 = arith.divf %317, %318 : vector<2x64xf32>
    %320 = arith.mulf %311, %275 : vector<2x64xf32>
    %321 = arith.mulf %305, %313 : vector<2x64xf32>
    %322 = arith.addf %320, %321 : vector<2x64xf32>
    %323 = math.tanh %322 : vector<2x64xf32>
    %324 = arith.mulf %319, %323 : vector<2x64xf32>
    %325 = vector.shape_cast %294 : vector<2x1xf32> to vector<2x1xf32>
    %326 = vector.broadcast %325 : vector<2x1xf32> to vector<2x32xf32>
    %327 = vector.shape_cast %295 : vector<2x1xf32> to vector<2x1xf32>
    %328 = vector.broadcast %327 : vector<2x1xf32> to vector<2x32xf32>
    %329 = tpu.concatenate %326, %328 in 1 : vector<2x32xf32>, vector<2x32xf32> -> vector<2x64xf32>
    %cst_93 = arith.constant 0.000000e+00 : f32
    %330 = vector.broadcast %cst_93 : f32 to vector<2x64xf32>
    %331 = arith.cmpf ogt, %329, %330 : vector<2x64xf32>
    %332 = arith.select %331, %324, %274 : vector<2x64xi1>, vector<2x64xf32>
    %333 = arith.select %331, %322, %275 : vector<2x64xi1>, vector<2x64xf32>
    %cst_94 = arith.constant 0.000000e+00 : f32
    %334 = vector.broadcast %cst_94 : f32 to vector<2x1xf32>
    %335 = arith.cmpf ogt, %294, %334 : vector<2x1xf32>
    %336 = vector.extract_strided_slice %332 {offsets = [0, 0], sizes = [2, 32], strides = [1, 1]} : vector<2x64xf32> to vector<2x32xf32>
    %cst_95 = arith.constant 0.000000e+00 : f32
    %337 = vector.shape_cast %335 : vector<2x1xi1> to vector<2x1xi1>
    %338 = vector.broadcast %337 : vector<2x1xi1> to vector<2x32xi1>
    %339 = vector.broadcast %cst_95 : f32 to vector<2x32xf32>
    %340 = arith.select %338, %336, %339 : vector<2x32xi1>, vector<2x32xf32>
    %cst_96 = arith.constant 0.000000e+00 : f32
    %341 = vector.broadcast %cst_96 : f32 to vector<2x1xf32>
    %342 = arith.cmpf ogt, %295, %341 : vector<2x1xf32>
    %343 = vector.extract_strided_slice %332 {offsets = [0, 32], sizes = [2, 32], strides = [1, 1]} : vector<2x64xf32> to vector<2x32xf32>
    %cst_97 = arith.constant 0.000000e+00 : f32
    %344 = vector.shape_cast %342 : vector<2x1xi1> to vector<2x1xi1>
    %345 = vector.broadcast %344 : vector<2x1xi1> to vector<2x32xi1>
    %346 = vector.broadcast %cst_97 : f32 to vector<2x32xf32>
    %347 = arith.select %345, %343, %346 : vector<2x32xi1>, vector<2x32xf32>
    %348 = vector.shape_cast %340 : vector<2x32xf32> to vector<2x1x32xf32>
    %c0_98 = arith.constant 0 : index
    %c5_99 = arith.constant 5 : index
    %c0_100 = arith.constant 0 : index
    %349 = vector.load %arg19[%c0_98, %c5_99, %c0_100] : memref<2x8x64xf32, #tpu.memory_space<vmem>>, vector<2x1x32xf32>
    tpu.vector_store %arg19[%c0_98, %c5_99, %c0_100], %348 {strides = array<i32>} : memref<2x8x64xf32, #tpu.memory_space<vmem>>, vector<2x1x32xf32>,
    %350 = vector.shape_cast %347 : vector<2x32xf32> to vector<2x1x32xf32>
    %c0_101 = arith.constant 0 : index
    %c2_102 = arith.constant 2 : index
    %c32_103 = arith.constant 32 : index
    %351 = vector.load %arg19[%c0_101, %c2_102, %c32_103] : memref<2x8x64xf32, #tpu.memory_space<vmem>>, vector<2x1x32xf32>
    tpu.vector_store %arg19[%c0_101, %c2_102, %c32_103], %350 {strides = array<i32>} : memref<2x8x64xf32, #tpu.memory_space<vmem>>, vector<2x1x32xf32>,
    %352 = vector.extract_strided_slice %0 {offsets = [0, 6], sizes = [2, 1], strides = [1, 1]} : vector<2x8xf32> to vector<2x1xf32>
    %353 = vector.extract_strided_slice %0 {offsets = [0, 1], sizes = [2, 1], strides = [1, 1]} : vector<2x8xf32> to vector<2x1xf32>
    %c6_104 = arith.constant 6 : index
    %c0_105 = arith.constant 0 : index
    %c0_106 = arith.constant 0 : index
    %354 = vector.load %arg0[%c6_104, %c0_105, %c0_106] : memref<8x2x256xf32, #tpu.memory_space<vmem>>, vector<1x2x256xf32>
    %355 = vector.shape_cast %354 : vector<1x2x256xf32> to vector<2x256xf32>
    %cst_107 = arith.constant dense<0.000000e+00> : vector<2x256xf32>
    %356 = tpu.matmul %332, %1, %cst_107 {dimension_numbers = #tpu.dot_dimension_numbers<[1], [0], [0], [1], [0, 0, 1, 1], [], []>} : vector<2x64xf32>, vector<64x256xf32>, vector<2x256xf32> -> vector<2x256xf32>
    %357 = arith.addf %355, %356 : vector<2x256xf32>
    %358 = vector.extract_strided_slice %357 {offsets = [0, 0], sizes = [2, 64], strides = [1, 1]} : vector<2x256xf32> to vector<2x64xf32>
    %359 = arith.negf %358 : vector<2x64xf32>
    %360 = math.exp %359 : vector<2x64xf32>
    %cst_108 = arith.constant 1.000000e+00 : f32
    %361 = vector.broadcast %cst_108 : f32 to vector<2x64xf32>
    %362 = arith.addf %361, %360 : vector<2x64xf32>
    %363 = arith.divf %361, %362 : vector<2x64xf32>
    %364 = vector.extract_strided_slice %357 {offsets = [0, 64], sizes = [2, 64], strides = [1, 1]} : vector<2x256xf32> to vector<2x64xf32>
    %365 = arith.negf %364 : vector<2x64xf32>
    %366 = math.exp %365 : vector<2x64xf32>
    %cst_109 = arith.constant 1.000000e+00 : f32
    %367 = vector.broadcast %cst_109 : f32 to vector<2x64xf32>
    %368 = arith.addf %367, %366 : vector<2x64xf32>
    %369 = arith.divf %367, %368 : vector<2x64xf32>
    %370 = vector.extract_strided_slice %357 {offsets = [0, 128], sizes = [2, 64], strides = [1, 1]} : vector<2x256xf32> to vector<2x64xf32>
    %371 = math.tanh %370 : vector<2x64xf32>
    %372 = vector.extract_strided_slice %357 {offsets = [0, 192], sizes = [2, 64], strides = [1, 1]} : vector<2x256xf32> to vector<2x64xf32>
    %373 = arith.negf %372 : vector<2x64xf32>
    %374 = math.exp %373 : vector<2x64xf32>
    %cst_110 = arith.constant 1.000000e+00 : f32
    %375 = vector.broadcast %cst_110 : f32 to vector<2x64xf32>
    %376 = arith.addf %375, %374 : vector<2x64xf32>
    %377 = arith.divf %375, %376 : vector<2x64xf32>
    %378 = arith.mulf %369, %333 : vector<2x64xf32>
    %379 = arith.mulf %363, %371 : vector<2x64xf32>
    %380 = arith.addf %378, %379 : vector<2x64xf32>
    %381 = math.tanh %380 : vector<2x64xf32>
    %382 = arith.mulf %377, %381 : vector<2x64xf32>
    %383 = vector.shape_cast %352 : vector<2x1xf32> to vector<2x1xf32>
    %384 = vector.broadcast %383 : vector<2x1xf32> to vector<2x32xf32>
    %385 = vector.shape_cast %353 : vector<2x1xf32> to vector<2x1xf32>
    %386 = vector.broadcast %385 : vector<2x1xf32> to vector<2x32xf32>
    %387 = tpu.concatenate %384, %386 in 1 : vector<2x32xf32>, vector<2x32xf32> -> vector<2x64xf32>
    %cst_111 = arith.constant 0.000000e+00 : f32
    %388 = vector.broadcast %cst_111 : f32 to vector<2x64xf32>
    %389 = arith.cmpf ogt, %387, %388 : vector<2x64xf32>
    %390 = arith.select %389, %382, %332 : vector<2x64xi1>, vector<2x64xf32>
    %391 = arith.select %389, %380, %333 : vector<2x64xi1>, vector<2x64xf32>
    %cst_112 = arith.constant 0.000000e+00 : f32
    %392 = vector.broadcast %cst_112 : f32 to vector<2x1xf32>
    %393 = arith.cmpf ogt, %352, %392 : vector<2x1xf32>
    %394 = vector.extract_strided_slice %390 {offsets = [0, 0], sizes = [2, 32], strides = [1, 1]} : vector<2x64xf32> to vector<2x32xf32>
    %cst_113 = arith.constant 0.000000e+00 : f32
    %395 = vector.shape_cast %393 : vector<2x1xi1> to vector<2x1xi1>
    %396 = vector.broadcast %395 : vector<2x1xi1> to vector<2x32xi1>
    %397 = vector.broadcast %cst_113 : f32 to vector<2x32xf32>
    %398 = arith.select %396, %394, %397 : vector<2x32xi1>, vector<2x32xf32>
    %cst_114 = arith.constant 0.000000e+00 : f32
    %399 = vector.broadcast %cst_114 : f32 to vector<2x1xf32>
    %400 = arith.cmpf ogt, %353, %399 : vector<2x1xf32>
    %401 = vector.extract_strided_slice %390 {offsets = [0, 32], sizes = [2, 32], strides = [1, 1]} : vector<2x64xf32> to vector<2x32xf32>
    %cst_115 = arith.constant 0.000000e+00 : f32
    %402 = vector.shape_cast %400 : vector<2x1xi1> to vector<2x1xi1>
    %403 = vector.broadcast %402 : vector<2x1xi1> to vector<2x32xi1>
    %404 = vector.broadcast %cst_115 : f32 to vector<2x32xf32>
    %405 = arith.select %403, %401, %404 : vector<2x32xi1>, vector<2x32xf32>
    %406 = vector.shape_cast %398 : vector<2x32xf32> to vector<2x1x32xf32>
    %c0_116 = arith.constant 0 : index
    %c6_117 = arith.constant 6 : index
    %c0_118 = arith.constant 0 : index
    %407 = vector.load %arg19[%c0_116, %c6_117, %c0_118] : memref<2x8x64xf32, #tpu.memory_space<vmem>>, vector<2x1x32xf32>
    tpu.vector_store %arg19[%c0_116, %c6_117, %c0_118], %406 {strides = array<i32>} : memref<2x8x64xf32, #tpu.memory_space<vmem>>, vector<2x1x32xf32>,
    %408 = vector.shape_cast %405 : vector<2x32xf32> to vector<2x1x32xf32>
    %c0_119 = arith.constant 0 : index
    %c1_120 = arith.constant 1 : index
    %c32_121 = arith.constant 32 : index
    %409 = vector.load %arg19[%c0_119, %c1_120, %c32_121] : memref<2x8x64xf32, #tpu.memory_space<vmem>>, vector<2x1x32xf32>
    tpu.vector_store %arg19[%c0_119, %c1_120, %c32_121], %408 {strides = array<i32>} : memref<2x8x64xf32, #tpu.memory_space<vmem>>, vector<2x1x32xf32>,
    %410 = vector.extract_strided_slice %0 {offsets = [0, 7], sizes = [2, 1], strides = [1, 1]} : vector<2x8xf32> to vector<2x1xf32>
    %411 = vector.extract_strided_slice %0 {offsets = [0, 0], sizes = [2, 1], strides = [1, 1]} : vector<2x8xf32> to vector<2x1xf32>
    %c7_122 = arith.constant 7 : index
    %c0_123 = arith.constant 0 : index
    %c0_124 = arith.constant 0 : index
    %412 = vector.load %arg0[%c7_122, %c0_123, %c0_124] : memref<8x2x256xf32, #tpu.memory_space<vmem>>, vector<1x2x256xf32>
    %413 = vector.shape_cast %412 : vector<1x2x256xf32> to vector<2x256xf32>
    %cst_125 = arith.constant dense<0.000000e+00> : vector<2x256xf32>
    %414 = tpu.matmul %390, %1, %cst_125 {dimension_numbers = #tpu.dot_dimension_numbers<[1], [0], [0], [1], [0, 0, 1, 1], [], []>} : vector<2x64xf32>, vector<64x256xf32>, vector<2x256xf32> -> vector<2x256xf32>
    %415 = arith.addf %413, %414 : vector<2x256xf32>
    %416 = vector.extract_strided_slice %415 {offsets = [0, 0], sizes = [2, 64], strides = [1, 1]} : vector<2x256xf32> to vector<2x64xf32>
    %417 = arith.negf %416 : vector<2x64xf32>
    %418 = math.exp %417 : vector<2x64xf32>
    %cst_126 = arith.constant 1.000000e+00 : f32
    %419 = vector.broadcast %cst_126 : f32 to vector<2x64xf32>
    %420 = arith.addf %419, %418 : vector<2x64xf32>
    %421 = arith.divf %419, %420 : vector<2x64xf32>
    %422 = vector.extract_strided_slice %415 {offsets = [0, 64], sizes = [2, 64], strides = [1, 1]} : vector<2x256xf32> to vector<2x64xf32>
    %423 = arith.negf %422 : vector<2x64xf32>
    %424 = math.exp %423 : vector<2x64xf32>
    %cst_127 = arith.constant 1.000000e+00 : f32
    %425 = vector.broadcast %cst_127 : f32 to vector<2x64xf32>
    %426 = arith.addf %425, %424 : vector<2x64xf32>
    %427 = arith.divf %425, %426 : vector<2x64xf32>
    %428 = vector.extract_strided_slice %415 {offsets = [0, 128], sizes = [2, 64], strides = [1, 1]} : vector<2x256xf32> to vector<2x64xf32>
    %429 = math.tanh %428 : vector<2x64xf32>
    %430 = vector.extract_strided_slice %415 {offsets = [0, 192], sizes = [2, 64], strides = [1, 1]} : vector<2x256xf32> to vector<2x64xf32>
    %431 = arith.negf %430 : vector<2x64xf32>
    %432 = math.exp %431 : vector<2x64xf32>
    %cst_128 = arith.constant 1.000000e+00 : f32
    %433 = vector.broadcast %cst_128 : f32 to vector<2x64xf32>
    %434 = arith.addf %433, %432 : vector<2x64xf32>
    %435 = arith.divf %433, %434 : vector<2x64xf32>
    %436 = arith.mulf %427, %391 : vector<2x64xf32>
    %437 = arith.mulf %421, %429 : vector<2x64xf32>
    %438 = arith.addf %436, %437 : vector<2x64xf32>
    %439 = math.tanh %438 : vector<2x64xf32>
    %440 = arith.mulf %435, %439 : vector<2x64xf32>
    %441 = vector.shape_cast %410 : vector<2x1xf32> to vector<2x1xf32>
    %442 = vector.broadcast %441 : vector<2x1xf32> to vector<2x32xf32>
    %443 = vector.shape_cast %411 : vector<2x1xf32> to vector<2x1xf32>
    %444 = vector.broadcast %443 : vector<2x1xf32> to vector<2x32xf32>
    %445 = tpu.concatenate %442, %444 in 1 : vector<2x32xf32>, vector<2x32xf32> -> vector<2x64xf32>
    %cst_129 = arith.constant 0.000000e+00 : f32
    %446 = vector.broadcast %cst_129 : f32 to vector<2x64xf32>
    %447 = arith.cmpf ogt, %445, %446 : vector<2x64xf32>
    %448 = arith.select %447, %440, %390 : vector<2x64xi1>, vector<2x64xf32>
    %449 = arith.select %447, %438, %391 : vector<2x64xi1>, vector<2x64xf32>
    %cst_130 = arith.constant 0.000000e+00 : f32
    %450 = vector.broadcast %cst_130 : f32 to vector<2x1xf32>
    %451 = arith.cmpf ogt, %410, %450 : vector<2x1xf32>
    %452 = vector.extract_strided_slice %448 {offsets = [0, 0], sizes = [2, 32], strides = [1, 1]} : vector<2x64xf32> to vector<2x32xf32>
    %cst_131 = arith.constant 0.000000e+00 : f32
    %453 = vector.shape_cast %451 : vector<2x1xi1> to vector<2x1xi1>
    %454 = vector.broadcast %453 : vector<2x1xi1> to vector<2x32xi1>
    %455 = vector.broadcast %cst_131 : f32 to vector<2x32xf32>
    %456 = arith.select %454, %452, %455 : vector<2x32xi1>, vector<2x32xf32>
    %cst_132 = arith.constant 0.000000e+00 : f32
    %457 = vector.broadcast %cst_132 : f32 to vector<2x1xf32>
    %458 = arith.cmpf ogt, %411, %457 : vector<2x1xf32>
    %459 = vector.extract_strided_slice %448 {offsets = [0, 32], sizes = [2, 32], strides = [1, 1]} : vector<2x64xf32> to vector<2x32xf32>
    %cst_133 = arith.constant 0.000000e+00 : f32
    %460 = vector.shape_cast %458 : vector<2x1xi1> to vector<2x1xi1>
    %461 = vector.broadcast %460 : vector<2x1xi1> to vector<2x32xi1>
    %462 = vector.broadcast %cst_133 : f32 to vector<2x32xf32>
    %463 = arith.select %461, %459, %462 : vector<2x32xi1>, vector<2x32xf32>
    %464 = vector.shape_cast %456 : vector<2x32xf32> to vector<2x1x32xf32>
    %c0_134 = arith.constant 0 : index
    %c7_135 = arith.constant 7 : index
    %c0_136 = arith.constant 0 : index
    %465 = vector.load %arg19[%c0_134, %c7_135, %c0_136] : memref<2x8x64xf32, #tpu.memory_space<vmem>>, vector<2x1x32xf32>
    tpu.vector_store %arg19[%c0_134, %c7_135, %c0_136], %464 {strides = array<i32>} : memref<2x8x64xf32, #tpu.memory_space<vmem>>, vector<2x1x32xf32>,
    %466 = vector.shape_cast %463 : vector<2x32xf32> to vector<2x1x32xf32>
    %c0_137 = arith.constant 0 : index
    %c0_138 = arith.constant 0 : index
    %c32_139 = arith.constant 32 : index
    %467 = vector.load %arg19[%c0_137, %c0_138, %c32_139] : memref<2x8x64xf32, #tpu.memory_space<vmem>>, vector<2x1x32xf32>
    tpu.vector_store %arg19[%c0_137, %c0_138, %c32_139], %466 {strides = array<i32>} : memref<2x8x64xf32, #tpu.memory_space<vmem>>, vector<2x1x32xf32>,
    %468 = tpu.concatenate %448, %449 in 0 : vector<2x64xf32>, vector<2x64xf32> -> vector<4x64xf32>
    %c0_140 = arith.constant 0 : index
    %c0_141 = arith.constant 0 : index
    %469 = vector.load %arg4[%c0_140, %c0_141] : memref<64x32xf32, #tpu.memory_space<vmem>>, vector<64x32xf32>
    %cst_142 = arith.constant dense<0.000000e+00> : vector<4x32xf32>
    %470 = tpu.matmul %468, %469, %cst_142 {dimension_numbers = #tpu.dot_dimension_numbers<[1], [0], [0], [1], [0, 0, 1, 1], [], []>} : vector<4x64xf32>, vector<64x32xf32>, vector<4x32xf32> -> vector<4x32xf32>
    %c0_143 = arith.constant 0 : index
    %c0_144 = arith.constant 0 : index
    %471 = vector.load %arg5[%c0_143, %c0_144] : memref<1x32xf32, #tpu.memory_space<vmem>>, vector<1x32xf32>
    %472 = vector.broadcast %471 : vector<1x32xf32> to vector<4x32xf32>
    %473 = arith.addf %470, %472 : vector<4x32xf32>
    %cst_145 = arith.constant 0.000000e+00 : f32
    %474 = vector.broadcast %cst_145 : f32 to vector<4x32xf32>
    %475 = arith.maximumf %473, %474 : vector<4x32xf32>
    %476 = vector.extract_strided_slice %475 {offsets = [0, 0], sizes = [2, 32], strides = [1, 1]} : vector<4x32xf32> to vector<2x32xf32>
    %477 = vector.extract_strided_slice %475 {offsets = [2, 0], sizes = [2, 32], strides = [1, 1]} : vector<4x32xf32> to vector<2x32xf32>
    %c0_146 = arith.constant 0 : index
    %c0_147 = arith.constant 0 : index
    %c0_148 = arith.constant 0 : index
    %478 = vector.load %arg19[%c0_146, %c0_147, %c0_148] : memref<2x8x64xf32, #tpu.memory_space<vmem>>, vector<2x8x64xf32>
    %479 = vector.shape_cast %478 : vector<2x8x64xf32> to vector<16x64xf32>
    %c0_149 = arith.constant 0 : index
    %c0_150 = arith.constant 0 : index
    %480 = vector.load %arg3[%c0_149, %c0_150] : memref<64x64xf32, #tpu.memory_space<vmem>>, vector<64x64xf32>
    %cst_151 = arith.constant dense<0.000000e+00> : vector<16x64xf32>
    %481 = tpu.matmul %479, %480, %cst_151 {dimension_numbers = #tpu.dot_dimension_numbers<[1], [0], [0], [1], [0, 0, 1, 1], [], []>} : vector<16x64xf32>, vector<64x64xf32>, vector<16x64xf32> -> vector<16x64xf32>
    %482 = vector.shape_cast %481 : vector<16x64xf32> to vector<2x8x64xf32>
    %c0_152 = arith.constant 0 : index
    %c0_153 = arith.constant 0 : index
    %483 = vector.load %arg11[%c0_152, %c0_153] : memref<1x64xf32, #tpu.memory_space<vmem>>, vector<1x64xf32>
    %484 = vector.shape_cast %483 : vector<1x64xf32> to vector<1x1x64xf32>
    %485 = vector.shape_cast %484 : vector<1x1x64xf32> to vector<1x1x64xf32>
    %486 = vector.broadcast %485 : vector<1x1x64xf32> to vector<2x8x64xf32>
    %c0_154 = arith.constant 0 : index
    %c0_155 = arith.constant 0 : index
    %487 = vector.load %arg12[%c0_154, %c0_155] : memref<1x64xf32, #tpu.memory_space<vmem>>, vector<1x64xf32>
    %488 = vector.shape_cast %487 : vector<1x64xf32> to vector<1x1x64xf32>
    %489 = vector.shape_cast %488 : vector<1x1x64xf32> to vector<1x1x64xf32>
    %490 = vector.broadcast %489 : vector<1x1x64xf32> to vector<2x8x64xf32>
    %c0_156 = arith.constant 0 : index
    %c0_157 = arith.constant 0 : index
    %491 = vector.load %arg10[%c0_156, %c0_157] : memref<1x64xf32, #tpu.memory_space<vmem>>, vector<1x64xf32>
    %492 = vector.shape_cast %491 : vector<1x64xf32> to vector<1x64xf32>
    %493 = vector.broadcast %492 : vector<1x64xf32> to vector<2x64xf32>
    %c0_158 = arith.constant 0 : index
    %c0_159 = arith.constant 0 : index
    %494 = vector.load %arg14[%c0_158, %c0_159] : memref<1x128xf32, #tpu.memory_space<vmem>>, vector<1x128xf32>
    %495 = vector.shape_cast %494 : vector<1x128xf32> to vector<1x128xf32>
    %496 = vector.broadcast %495 : vector<1x128xf32> to vector<2x128xf32>
    %c0_160 = arith.constant 0 : index
    %c0_161 = arith.constant 0 : index
    %497 = vector.load %arg8[%c0_160, %c0_161] : memref<96x128xf32, #tpu.memory_space<vmem>>, vector<96x128xf32>
    %c0_162 = arith.constant 0 : index
    %c0_163 = arith.constant 0 : index
    %498 = vector.load %arg9[%c0_162, %c0_163] : memref<64x64xf32, #tpu.memory_space<vmem>>, vector<64x64xf32>
    %c0_164 = arith.constant 0 : index
    %c0_165 = arith.constant 0 : index
    %499 = vector.load %arg13[%c0_164, %c0_165] : memref<96x128xf32, #tpu.memory_space<vmem>>, vector<96x128xf32>
    %c0_166 = arith.constant 0 : index
    %c0_167 = arith.constant 0 : index
    %500 = vector.load %arg16[%c0_166, %c0_167] : memref<2x8xf32, #tpu.memory_space<vmem>>, vector<2x8xf32>
    %c0_168 = arith.constant 0 : index
    %c0_169 = arith.constant 0 : index
    %501 = vector.load %arg6[%c0_168, %c0_169] : memref<2x8xf32, #tpu.memory_space<vmem>>, vector<2x8xf32>
    %cst_170 = arith.constant 0.000000e+00 : f32
    %502 = vector.broadcast %cst_170 : f32 to vector<2x64xf32>
    %cst_171 = arith.constant 0.000000e+00 : f32
    %503 = vector.broadcast %cst_171 : f32 to vector<2x1xf32>
    %cst_172 = arith.constant 0.000000e+00 : f32
    %504 = vector.broadcast %cst_172 : f32 to vector<2x1xf32>
    %505 = tpu.concatenate %502, %476 in 1 : vector<2x64xf32>, vector<2x32xf32> -> vector<2x96xf32>
    %cst_173 = arith.constant dense<0.000000e+00> : vector<2x128xf32>
    %506 = tpu.matmul %505, %497, %cst_173 {dimension_numbers = #tpu.dot_dimension_numbers<[1], [0], [0], [1], [0, 0, 1, 1], [], []>} : vector<2x96xf32>, vector<96x128xf32>, vector<2x128xf32> -> vector<2x128xf32>
    %c0_174 = arith.constant 0 : index
    %c0_175 = arith.constant 0 : index
    %c0_176 = arith.constant 0 : index
    %507 = vector.load %arg7[%c0_174, %c0_175, %c0_176] : memref<8x2x128xf32, #tpu.memory_space<vmem>>, vector<1x2x128xf32>
    %508 = vector.shape_cast %507 : vector<1x2x128xf32> to vector<2x128xf32>
    %509 = arith.addf %506, %508 : vector<2x128xf32>
    %510 = vector.extract_strided_slice %509 {offsets = [0, 0], sizes = [2, 32], strides = [1, 1]} : vector<2x128xf32> to vector<2x32xf32>
    %511 = arith.negf %510 : vector<2x32xf32>
    %512 = math.exp %511 : vector<2x32xf32>
    %cst_177 = arith.constant 1.000000e+00 : f32
    %513 = vector.broadcast %cst_177 : f32 to vector<2x32xf32>
    %514 = arith.addf %513, %512 : vector<2x32xf32>
    %515 = arith.divf %513, %514 : vector<2x32xf32>
    %516 = vector.extract_strided_slice %509 {offsets = [0, 32], sizes = [2, 32], strides = [1, 1]} : vector<2x128xf32> to vector<2x32xf32>
    %517 = arith.negf %516 : vector<2x32xf32>
    %518 = math.exp %517 : vector<2x32xf32>
    %cst_178 = arith.constant 1.000000e+00 : f32
    %519 = vector.broadcast %cst_178 : f32 to vector<2x32xf32>
    %520 = arith.addf %519, %518 : vector<2x32xf32>
    %521 = arith.divf %519, %520 : vector<2x32xf32>
    %522 = vector.extract_strided_slice %509 {offsets = [0, 64], sizes = [2, 32], strides = [1, 1]} : vector<2x128xf32> to vector<2x32xf32>
    %523 = math.tanh %522 : vector<2x32xf32>
    %524 = vector.extract_strided_slice %509 {offsets = [0, 96], sizes = [2, 32], strides = [1, 1]} : vector<2x128xf32> to vector<2x32xf32>
    %525 = arith.negf %524 : vector<2x32xf32>
    %526 = math.exp %525 : vector<2x32xf32>
    %cst_179 = arith.constant 1.000000e+00 : f32
    %527 = vector.broadcast %cst_179 : f32 to vector<2x32xf32>
    %528 = arith.addf %527, %526 : vector<2x32xf32>
    %529 = arith.divf %527, %528 : vector<2x32xf32>
    %530 = arith.mulf %521, %477 : vector<2x32xf32>
    %531 = arith.mulf %515, %523 : vector<2x32xf32>
    %532 = arith.addf %530, %531 : vector<2x32xf32>
    %533 = math.tanh %532 : vector<2x32xf32>
    %534 = arith.mulf %529, %533 : vector<2x32xf32>
    %535 = tpu.concatenate %534, %532 in 1 : vector<2x32xf32>, vector<2x32xf32> -> vector<2x64xf32>
    %cst_180 = arith.constant dense<0.000000e+00> : vector<2x64xf32>
    %536 = tpu.matmul %535, %498, %cst_180 {dimension_numbers = #tpu.dot_dimension_numbers<[1], [0], [0], [1], [0, 0, 1, 1], [], []>} : vector<2x64xf32>, vector<64x64xf32>, vector<2x64xf32> -> vector<2x64xf32>
    %537 = arith.addf %536, %493 : vector<2x64xf32>
    %538 = vector.shape_cast %537 : vector<2x64xf32> to vector<2x1x64xf32>
    %539 = vector.broadcast %538 : vector<2x1x64xf32> to vector<2x8x64xf32>
    %540 = arith.addf %482, %539 : vector<2x8x64xf32>
    %541 = vector.shape_cast %501 : vector<2x8xf32> to vector<2x8x1xf32>
    %542 = vector.broadcast %541 : vector<2x8x1xf32> to vector<2x8x64xf32>
    %543 = arith.mulf %542, %490 : vector<2x8x64xf32>
    %544 = arith.addf %540, %543 : vector<2x8x64xf32>
    %545 = math.tanh %544 : vector<2x8x64xf32>
    %546 = arith.mulf %545, %486 : vector<2x8x64xf32>
    %cst_181 = arith.constant dense<0.000000e+00> : vector<2x8xf32>
    %547 = vector.multi_reduction <add>, %546, %cst_181 [2] : vector<2x8x64xf32> to vector<2x8xf32>
    %cst_182 = arith.constant dense<0xFF800000> : vector<2xf32>
    %548 = vector.multi_reduction <maximumf>, %547, %cst_182 [1] : vector<2x8xf32> to vector<2xf32>
    %549 = vector.shape_cast %548 : vector<2xf32> to vector<2x1xf32>
    %550 = vector.broadcast %549 : vector<2x1xf32> to vector<2x8xf32>
    %551 = arith.subf %547, %550 : vector<2x8xf32>
    %552 = math.exp %551 : vector<2x8xf32>
    %cst_183 = arith.constant dense<0.000000e+00> : vector<2xf32>
    %553 = vector.multi_reduction <add>, %552, %cst_183 [1] : vector<2x8xf32> to vector<2xf32>
    %554 = vector.shape_cast %553 : vector<2xf32> to vector<2x1xf32>
    %555 = tpu.reciprocal %554 {approx = true} : vector<2x1xf32> -> vector<2x1xf32>
    %556 = vector.broadcast %555 : vector<2x1xf32> to vector<2x8xf32>
    %557 = arith.mulf %552, %556 : vector<2x8xf32>
    %558 = arith.mulf %557, %0 : vector<2x8xf32>
    %cst_184 = arith.constant dense<0.000000e+00> : vector<2xf32>
    %559 = vector.multi_reduction <add>, %558, %cst_184 [1] : vector<2x8xf32> to vector<2xf32>
    %560 = vector.shape_cast %559 : vector<2xf32> to vector<2x1xf32>
    %561 = tpu.reciprocal %560 {approx = true} : vector<2x1xf32> -> vector<2x1xf32>
    %562 = vector.broadcast %561 : vector<2x1xf32> to vector<2x8xf32>
    %563 = arith.mulf %558, %562 : vector<2x8xf32>
    %564 = vector.shape_cast %563 : vector<2x8xf32> to vector<2x8x1xf32>
    %565 = vector.broadcast %564 : vector<2x8x1xf32> to vector<2x8x64xf32>
    %566 = arith.mulf %565, %478 : vector<2x8x64xf32>
    %cst_185 = arith.constant dense<0.000000e+00> : vector<2x64xf32>
    %567 = vector.multi_reduction <add>, %566, %cst_185 [1] : vector<2x8x64xf32> to vector<2x64xf32>
    %568 = arith.minimumf %563, %501 : vector<2x8xf32>
    %cst_186 = arith.constant dense<0.000000e+00> : vector<2xf32>
    %569 = vector.multi_reduction <add>, %568, %cst_186 [1] : vector<2x8xf32> to vector<2xf32>
    %570 = vector.shape_cast %569 : vector<2xf32> to vector<2x1xf32>
    %571 = arith.addf %501, %563 : vector<2x8xf32>
    %572 = tpu.concatenate %534, %567 in 1 : vector<2x32xf32>, vector<2x64xf32> -> vector<2x96xf32>
    %cst_187 = arith.constant dense<0.000000e+00> : vector<2x128xf32>
    %573 = tpu.matmul %572, %499, %cst_187 {dimension_numbers = #tpu.dot_dimension_numbers<[1], [0], [0], [1], [0, 0, 1, 1], [], []>} : vector<2x96xf32>, vector<96x128xf32>, vector<2x128xf32> -> vector<2x128xf32>
    %574 = arith.addf %573, %496 : vector<2x128xf32>
    %cst_188 = arith.constant dense<0xFF800000> : vector<2xf32>
    %575 = vector.multi_reduction <maximumf>, %574, %cst_188 [1] : vector<2x128xf32> to vector<2xf32>
    %576 = vector.shape_cast %575 : vector<2xf32> to vector<2x1xf32>
    %577 = vector.broadcast %576 : vector<2x1xf32> to vector<2x128xf32>
    %578 = arith.subf %574, %577 : vector<2x128xf32>
    %579 = math.exp %578 : vector<2x128xf32>
    %cst_189 = arith.constant dense<0.000000e+00> : vector<2xf32>
    %580 = vector.multi_reduction <add>, %579, %cst_189 [1] : vector<2x128xf32> to vector<2xf32>
    %581 = vector.shape_cast %580 : vector<2xf32> to vector<2x1xf32>
    %582 = math.log %581 : vector<2x1xf32>
    %583 = arith.addf %576, %582 : vector<2x1xf32>
    %c0_190 = arith.constant 0 : index
    %c0_191 = arith.constant 0 : index
    %c0_192 = arith.constant 0 : index
    %584 = vector.load %arg15[%c0_190, %c0_191, %c0_192] : memref<8x2x128xf32, #tpu.memory_space<vmem>>, vector<1x2x128xf32>
    %585 = vector.shape_cast %584 : vector<1x2x128xf32> to vector<2x128xf32>
    %586 = arith.mulf %574, %585 : vector<2x128xf32>
    %cst_193 = arith.constant dense<0.000000e+00> : vector<2xf32>
    %587 = vector.multi_reduction <add>, %586, %cst_193 [1] : vector<2x128xf32> to vector<2xf32>
    %588 = vector.shape_cast %587 : vector<2xf32> to vector<2x1xf32>
    %589 = arith.subf %583, %588 : vector<2x1xf32>
    %590 = vector.extract_strided_slice %500 {offsets = [0, 0], sizes = [2, 1], strides = [1, 1]} : vector<2x8xf32> to vector<2x1xf32>
    %591 = arith.mulf %589, %590 : vector<2x1xf32>
    %592 = arith.addf %503, %591 : vector<2x1xf32>
    %593 = arith.mulf %570, %590 : vector<2x1xf32>
    %594 = arith.addf %504, %593 : vector<2x1xf32>
    %595 = tpu.concatenate %567, %534 in 1 : vector<2x64xf32>, vector<2x32xf32> -> vector<2x96xf32>
    %cst_194 = arith.constant dense<0.000000e+00> : vector<2x128xf32>
    %596 = tpu.matmul %595, %497, %cst_194 {dimension_numbers = #tpu.dot_dimension_numbers<[1], [0], [0], [1], [0, 0, 1, 1], [], []>} : vector<2x96xf32>, vector<96x128xf32>, vector<2x128xf32> -> vector<2x128xf32>
    %c1_195 = arith.constant 1 : index
    %c0_196 = arith.constant 0 : index
    %c0_197 = arith.constant 0 : index
    %597 = vector.load %arg7[%c1_195, %c0_196, %c0_197] : memref<8x2x128xf32, #tpu.memory_space<vmem>>, vector<1x2x128xf32>
    %598 = vector.shape_cast %597 : vector<1x2x128xf32> to vector<2x128xf32>
    %599 = arith.addf %596, %598 : vector<2x128xf32>
    %600 = vector.extract_strided_slice %599 {offsets = [0, 0], sizes = [2, 32], strides = [1, 1]} : vector<2x128xf32> to vector<2x32xf32>
    %601 = arith.negf %600 : vector<2x32xf32>
    %602 = math.exp %601 : vector<2x32xf32>
    %cst_198 = arith.constant 1.000000e+00 : f32
    %603 = vector.broadcast %cst_198 : f32 to vector<2x32xf32>
    %604 = arith.addf %603, %602 : vector<2x32xf32>
    %605 = arith.divf %603, %604 : vector<2x32xf32>
    %606 = vector.extract_strided_slice %599 {offsets = [0, 32], sizes = [2, 32], strides = [1, 1]} : vector<2x128xf32> to vector<2x32xf32>
    %607 = arith.negf %606 : vector<2x32xf32>
    %608 = math.exp %607 : vector<2x32xf32>
    %cst_199 = arith.constant 1.000000e+00 : f32
    %609 = vector.broadcast %cst_199 : f32 to vector<2x32xf32>
    %610 = arith.addf %609, %608 : vector<2x32xf32>
    %611 = arith.divf %609, %610 : vector<2x32xf32>
    %612 = vector.extract_strided_slice %599 {offsets = [0, 64], sizes = [2, 32], strides = [1, 1]} : vector<2x128xf32> to vector<2x32xf32>
    %613 = math.tanh %612 : vector<2x32xf32>
    %614 = vector.extract_strided_slice %599 {offsets = [0, 96], sizes = [2, 32], strides = [1, 1]} : vector<2x128xf32> to vector<2x32xf32>
    %615 = arith.negf %614 : vector<2x32xf32>
    %616 = math.exp %615 : vector<2x32xf32>
    %cst_200 = arith.constant 1.000000e+00 : f32
    %617 = vector.broadcast %cst_200 : f32 to vector<2x32xf32>
    %618 = arith.addf %617, %616 : vector<2x32xf32>
    %619 = arith.divf %617, %618 : vector<2x32xf32>
    %620 = arith.mulf %611, %532 : vector<2x32xf32>
    %621 = arith.mulf %605, %613 : vector<2x32xf32>
    %622 = arith.addf %620, %621 : vector<2x32xf32>
    %623 = math.tanh %622 : vector<2x32xf32>
    %624 = arith.mulf %619, %623 : vector<2x32xf32>
    %625 = tpu.concatenate %624, %622 in 1 : vector<2x32xf32>, vector<2x32xf32> -> vector<2x64xf32>
    %cst_201 = arith.constant dense<0.000000e+00> : vector<2x64xf32>
    %626 = tpu.matmul %625, %498, %cst_201 {dimension_numbers = #tpu.dot_dimension_numbers<[1], [0], [0], [1], [0, 0, 1, 1], [], []>} : vector<2x64xf32>, vector<64x64xf32>, vector<2x64xf32> -> vector<2x64xf32>
    %627 = arith.addf %626, %493 : vector<2x64xf32>
    %628 = vector.shape_cast %627 : vector<2x64xf32> to vector<2x1x64xf32>
    %629 = vector.broadcast %628 : vector<2x1x64xf32> to vector<2x8x64xf32>
    %630 = arith.addf %482, %629 : vector<2x8x64xf32>
    %631 = vector.shape_cast %571 : vector<2x8xf32> to vector<2x8x1xf32>
    %632 = vector.broadcast %631 : vector<2x8x1xf32> to vector<2x8x64xf32>
    %633 = arith.mulf %632, %490 : vector<2x8x64xf32>
    %634 = arith.addf %630, %633 : vector<2x8x64xf32>
    %635 = math.tanh %634 : vector<2x8x64xf32>
    %636 = arith.mulf %635, %486 : vector<2x8x64xf32>
    %cst_202 = arith.constant dense<0.000000e+00> : vector<2x8xf32>
    %637 = vector.multi_reduction <add>, %636, %cst_202 [2] : vector<2x8x64xf32> to vector<2x8xf32>
    %cst_203 = arith.constant dense<0xFF800000> : vector<2xf32>
    %638 = vector.multi_reduction <maximumf>, %637, %cst_203 [1] : vector<2x8xf32> to vector<2xf32>
    %639 = vector.shape_cast %638 : vector<2xf32> to vector<2x1xf32>
    %640 = vector.broadcast %639 : vector<2x1xf32> to vector<2x8xf32>
    %641 = arith.subf %637, %640 : vector<2x8xf32>
    %642 = math.exp %641 : vector<2x8xf32>
    %cst_204 = arith.constant dense<0.000000e+00> : vector<2xf32>
    %643 = vector.multi_reduction <add>, %642, %cst_204 [1] : vector<2x8xf32> to vector<2xf32>
    %644 = vector.shape_cast %643 : vector<2xf32> to vector<2x1xf32>
    %645 = tpu.reciprocal %644 {approx = true} : vector<2x1xf32> -> vector<2x1xf32>
    %646 = vector.broadcast %645 : vector<2x1xf32> to vector<2x8xf32>
    %647 = arith.mulf %642, %646 : vector<2x8xf32>
    %648 = arith.mulf %647, %0 : vector<2x8xf32>
    %cst_205 = arith.constant dense<0.000000e+00> : vector<2xf32>
    %649 = vector.multi_reduction <add>, %648, %cst_205 [1] : vector<2x8xf32> to vector<2xf32>
    %650 = vector.shape_cast %649 : vector<2xf32> to vector<2x1xf32>
    %651 = tpu.reciprocal %650 {approx = true} : vector<2x1xf32> -> vector<2x1xf32>
    %652 = vector.broadcast %651 : vector<2x1xf32> to vector<2x8xf32>
    %653 = arith.mulf %648, %652 : vector<2x8xf32>
    %654 = vector.shape_cast %653 : vector<2x8xf32> to vector<2x8x1xf32>
    %655 = vector.broadcast %654 : vector<2x8x1xf32> to vector<2x8x64xf32>
    %656 = arith.mulf %655, %478 : vector<2x8x64xf32>
    %cst_206 = arith.constant dense<0.000000e+00> : vector<2x64xf32>
    %657 = vector.multi_reduction <add>, %656, %cst_206 [1] : vector<2x8x64xf32> to vector<2x64xf32>
    %658 = arith.minimumf %653, %571 : vector<2x8xf32>
    %cst_207 = arith.constant dense<0.000000e+00> : vector<2xf32>
    %659 = vector.multi_reduction <add>, %658, %cst_207 [1] : vector<2x8xf32> to vector<2xf32>
    %660 = vector.shape_cast %659 : vector<2xf32> to vector<2x1xf32>
    %661 = arith.addf %571, %653 : vector<2x8xf32>
    %662 = tpu.concatenate %624, %657 in 1 : vector<2x32xf32>, vector<2x64xf32> -> vector<2x96xf32>
    %cst_208 = arith.constant dense<0.000000e+00> : vector<2x128xf32>
    %663 = tpu.matmul %662, %499, %cst_208 {dimension_numbers = #tpu.dot_dimension_numbers<[1], [0], [0], [1], [0, 0, 1, 1], [], []>} : vector<2x96xf32>, vector<96x128xf32>, vector<2x128xf32> -> vector<2x128xf32>
    %664 = arith.addf %663, %496 : vector<2x128xf32>
    %cst_209 = arith.constant dense<0xFF800000> : vector<2xf32>
    %665 = vector.multi_reduction <maximumf>, %664, %cst_209 [1] : vector<2x128xf32> to vector<2xf32>
    %666 = vector.shape_cast %665 : vector<2xf32> to vector<2x1xf32>
    %667 = vector.broadcast %666 : vector<2x1xf32> to vector<2x128xf32>
    %668 = arith.subf %664, %667 : vector<2x128xf32>
    %669 = math.exp %668 : vector<2x128xf32>
    %cst_210 = arith.constant dense<0.000000e+00> : vector<2xf32>
    %670 = vector.multi_reduction <add>, %669, %cst_210 [1] : vector<2x128xf32> to vector<2xf32>
    %671 = vector.shape_cast %670 : vector<2xf32> to vector<2x1xf32>
    %672 = math.log %671 : vector<2x1xf32>
    %673 = arith.addf %666, %672 : vector<2x1xf32>
    %c1_211 = arith.constant 1 : index
    %c0_212 = arith.constant 0 : index
    %c0_213 = arith.constant 0 : index
    %674 = vector.load %arg15[%c1_211, %c0_212, %c0_213] : memref<8x2x128xf32, #tpu.memory_space<vmem>>, vector<1x2x128xf32>
    %675 = vector.shape_cast %674 : vector<1x2x128xf32> to vector<2x128xf32>
    %676 = arith.mulf %664, %675 : vector<2x128xf32>
    %cst_214 = arith.constant dense<0.000000e+00> : vector<2xf32>
    %677 = vector.multi_reduction <add>, %676, %cst_214 [1] : vector<2x128xf32> to vector<2xf32>
    %678 = vector.shape_cast %677 : vector<2xf32> to vector<2x1xf32>
    %679 = arith.subf %673, %678 : vector<2x1xf32>
    %680 = vector.extract_strided_slice %500 {offsets = [0, 1], sizes = [2, 1], strides = [1, 1]} : vector<2x8xf32> to vector<2x1xf32>
    %681 = arith.mulf %679, %680 : vector<2x1xf32>
    %682 = arith.addf %592, %681 : vector<2x1xf32>
    %683 = arith.mulf %660, %680 : vector<2x1xf32>
    %684 = arith.addf %594, %683 : vector<2x1xf32>
    %685 = tpu.concatenate %657, %624 in 1 : vector<2x64xf32>, vector<2x32xf32> -> vector<2x96xf32>
    %cst_215 = arith.constant dense<0.000000e+00> : vector<2x128xf32>
    %686 = tpu.matmul %685, %497, %cst_215 {dimension_numbers = #tpu.dot_dimension_numbers<[1], [0], [0], [1], [0, 0, 1, 1], [], []>} : vector<2x96xf32>, vector<96x128xf32>, vector<2x128xf32> -> vector<2x128xf32>
    %c2_216 = arith.constant 2 : index
    %c0_217 = arith.constant 0 : index
    %c0_218 = arith.constant 0 : index
    %687 = vector.load %arg7[%c2_216, %c0_217, %c0_218] : memref<8x2x128xf32, #tpu.memory_space<vmem>>, vector<1x2x128xf32>
    %688 = vector.shape_cast %687 : vector<1x2x128xf32> to vector<2x128xf32>
    %689 = arith.addf %686, %688 : vector<2x128xf32>
    %690 = vector.extract_strided_slice %689 {offsets = [0, 0], sizes = [2, 32], strides = [1, 1]} : vector<2x128xf32> to vector<2x32xf32>
    %691 = arith.negf %690 : vector<2x32xf32>
    %692 = math.exp %691 : vector<2x32xf32>
    %cst_219 = arith.constant 1.000000e+00 : f32
    %693 = vector.broadcast %cst_219 : f32 to vector<2x32xf32>
    %694 = arith.addf %693, %692 : vector<2x32xf32>
    %695 = arith.divf %693, %694 : vector<2x32xf32>
    %696 = vector.extract_strided_slice %689 {offsets = [0, 32], sizes = [2, 32], strides = [1, 1]} : vector<2x128xf32> to vector<2x32xf32>
    %697 = arith.negf %696 : vector<2x32xf32>
    %698 = math.exp %697 : vector<2x32xf32>
    %cst_220 = arith.constant 1.000000e+00 : f32
    %699 = vector.broadcast %cst_220 : f32 to vector<2x32xf32>
    %700 = arith.addf %699, %698 : vector<2x32xf32>
    %701 = arith.divf %699, %700 : vector<2x32xf32>
    %702 = vector.extract_strided_slice %689 {offsets = [0, 64], sizes = [2, 32], strides = [1, 1]} : vector<2x128xf32> to vector<2x32xf32>
    %703 = math.tanh %702 : vector<2x32xf32>
    %704 = vector.extract_strided_slice %689 {offsets = [0, 96], sizes = [2, 32], strides = [1, 1]} : vector<2x128xf32> to vector<2x32xf32>
    %705 = arith.negf %704 : vector<2x32xf32>
    %706 = math.exp %705 : vector<2x32xf32>
    %cst_221 = arith.constant 1.000000e+00 : f32
    %707 = vector.broadcast %cst_221 : f32 to vector<2x32xf32>
    %708 = arith.addf %707, %706 : vector<2x32xf32>
    %709 = arith.divf %707, %708 : vector<2x32xf32>
    %710 = arith.mulf %701, %622 : vector<2x32xf32>
    %711 = arith.mulf %695, %703 : vector<2x32xf32>
    %712 = arith.addf %710, %711 : vector<2x32xf32>
    %713 = math.tanh %712 : vector<2x32xf32>
    %714 = arith.mulf %709, %713 : vector<2x32xf32>
    %715 = tpu.concatenate %714, %712 in 1 : vector<2x32xf32>, vector<2x32xf32> -> vector<2x64xf32>
    %cst_222 = arith.constant dense<0.000000e+00> : vector<2x64xf32>
    %716 = tpu.matmul %715, %498, %cst_222 {dimension_numbers = #tpu.dot_dimension_numbers<[1], [0], [0], [1], [0, 0, 1, 1], [], []>} : vector<2x64xf32>, vector<64x64xf32>, vector<2x64xf32> -> vector<2x64xf32>
    %717 = arith.addf %716, %493 : vector<2x64xf32>
    %718 = vector.shape_cast %717 : vector<2x64xf32> to vector<2x1x64xf32>
    %719 = vector.broadcast %718 : vector<2x1x64xf32> to vector<2x8x64xf32>
    %720 = arith.addf %482, %719 : vector<2x8x64xf32>
    %721 = vector.shape_cast %661 : vector<2x8xf32> to vector<2x8x1xf32>
    %722 = vector.broadcast %721 : vector<2x8x1xf32> to vector<2x8x64xf32>
    %723 = arith.mulf %722, %490 : vector<2x8x64xf32>
    %724 = arith.addf %720, %723 : vector<2x8x64xf32>
    %725 = math.tanh %724 : vector<2x8x64xf32>
    %726 = arith.mulf %725, %486 : vector<2x8x64xf32>
    %cst_223 = arith.constant dense<0.000000e+00> : vector<2x8xf32>
    %727 = vector.multi_reduction <add>, %726, %cst_223 [2] : vector<2x8x64xf32> to vector<2x8xf32>
    %cst_224 = arith.constant dense<0xFF800000> : vector<2xf32>
    %728 = vector.multi_reduction <maximumf>, %727, %cst_224 [1] : vector<2x8xf32> to vector<2xf32>
    %729 = vector.shape_cast %728 : vector<2xf32> to vector<2x1xf32>
    %730 = vector.broadcast %729 : vector<2x1xf32> to vector<2x8xf32>
    %731 = arith.subf %727, %730 : vector<2x8xf32>
    %732 = math.exp %731 : vector<2x8xf32>
    %cst_225 = arith.constant dense<0.000000e+00> : vector<2xf32>
    %733 = vector.multi_reduction <add>, %732, %cst_225 [1] : vector<2x8xf32> to vector<2xf32>
    %734 = vector.shape_cast %733 : vector<2xf32> to vector<2x1xf32>
    %735 = tpu.reciprocal %734 {approx = true} : vector<2x1xf32> -> vector<2x1xf32>
    %736 = vector.broadcast %735 : vector<2x1xf32> to vector<2x8xf32>
    %737 = arith.mulf %732, %736 : vector<2x8xf32>
    %738 = arith.mulf %737, %0 : vector<2x8xf32>
    %cst_226 = arith.constant dense<0.000000e+00> : vector<2xf32>
    %739 = vector.multi_reduction <add>, %738, %cst_226 [1] : vector<2x8xf32> to vector<2xf32>
    %740 = vector.shape_cast %739 : vector<2xf32> to vector<2x1xf32>
    %741 = tpu.reciprocal %740 {approx = true} : vector<2x1xf32> -> vector<2x1xf32>
    %742 = vector.broadcast %741 : vector<2x1xf32> to vector<2x8xf32>
    %743 = arith.mulf %738, %742 : vector<2x8xf32>
    %744 = vector.shape_cast %743 : vector<2x8xf32> to vector<2x8x1xf32>
    %745 = vector.broadcast %744 : vector<2x8x1xf32> to vector<2x8x64xf32>
    %746 = arith.mulf %745, %478 : vector<2x8x64xf32>
    %cst_227 = arith.constant dense<0.000000e+00> : vector<2x64xf32>
    %747 = vector.multi_reduction <add>, %746, %cst_227 [1] : vector<2x8x64xf32> to vector<2x64xf32>
    %748 = arith.minimumf %743, %661 : vector<2x8xf32>
    %cst_228 = arith.constant dense<0.000000e+00> : vector<2xf32>
    %749 = vector.multi_reduction <add>, %748, %cst_228 [1] : vector<2x8xf32> to vector<2xf32>
    %750 = vector.shape_cast %749 : vector<2xf32> to vector<2x1xf32>
    %751 = arith.addf %661, %743 : vector<2x8xf32>
    %752 = tpu.concatenate %714, %747 in 1 : vector<2x32xf32>, vector<2x64xf32> -> vector<2x96xf32>
    %cst_229 = arith.constant dense<0.000000e+00> : vector<2x128xf32>
    %753 = tpu.matmul %752, %499, %cst_229 {dimension_numbers = #tpu.dot_dimension_numbers<[1], [0], [0], [1], [0, 0, 1, 1], [], []>} : vector<2x96xf32>, vector<96x128xf32>, vector<2x128xf32> -> vector<2x128xf32>
    %754 = arith.addf %753, %496 : vector<2x128xf32>
    %cst_230 = arith.constant dense<0xFF800000> : vector<2xf32>
    %755 = vector.multi_reduction <maximumf>, %754, %cst_230 [1] : vector<2x128xf32> to vector<2xf32>
    %756 = vector.shape_cast %755 : vector<2xf32> to vector<2x1xf32>
    %757 = vector.broadcast %756 : vector<2x1xf32> to vector<2x128xf32>
    %758 = arith.subf %754, %757 : vector<2x128xf32>
    %759 = math.exp %758 : vector<2x128xf32>
    %cst_231 = arith.constant dense<0.000000e+00> : vector<2xf32>
    %760 = vector.multi_reduction <add>, %759, %cst_231 [1] : vector<2x128xf32> to vector<2xf32>
    %761 = vector.shape_cast %760 : vector<2xf32> to vector<2x1xf32>
    %762 = math.log %761 : vector<2x1xf32>
    %763 = arith.addf %756, %762 : vector<2x1xf32>
    %c2_232 = arith.constant 2 : index
    %c0_233 = arith.constant 0 : index
    %c0_234 = arith.constant 0 : index
    %764 = vector.load %arg15[%c2_232, %c0_233, %c0_234] : memref<8x2x128xf32, #tpu.memory_space<vmem>>, vector<1x2x128xf32>
    %765 = vector.shape_cast %764 : vector<1x2x128xf32> to vector<2x128xf32>
    %766 = arith.mulf %754, %765 : vector<2x128xf32>
    %cst_235 = arith.constant dense<0.000000e+00> : vector<2xf32>
    %767 = vector.multi_reduction <add>, %766, %cst_235 [1] : vector<2x128xf32> to vector<2xf32>
    %768 = vector.shape_cast %767 : vector<2xf32> to vector<2x1xf32>
    %769 = arith.subf %763, %768 : vector<2x1xf32>
    %770 = vector.extract_strided_slice %500 {offsets = [0, 2], sizes = [2, 1], strides = [1, 1]} : vector<2x8xf32> to vector<2x1xf32>
    %771 = arith.mulf %769, %770 : vector<2x1xf32>
    %772 = arith.addf %682, %771 : vector<2x1xf32>
    %773 = arith.mulf %750, %770 : vector<2x1xf32>
    %774 = arith.addf %684, %773 : vector<2x1xf32>
    %775 = tpu.concatenate %747, %714 in 1 : vector<2x64xf32>, vector<2x32xf32> -> vector<2x96xf32>
    %cst_236 = arith.constant dense<0.000000e+00> : vector<2x128xf32>
    %776 = tpu.matmul %775, %497, %cst_236 {dimension_numbers = #tpu.dot_dimension_numbers<[1], [0], [0], [1], [0, 0, 1, 1], [], []>} : vector<2x96xf32>, vector<96x128xf32>, vector<2x128xf32> -> vector<2x128xf32>
    %c3_237 = arith.constant 3 : index
    %c0_238 = arith.constant 0 : index
    %c0_239 = arith.constant 0 : index
    %777 = vector.load %arg7[%c3_237, %c0_238, %c0_239] : memref<8x2x128xf32, #tpu.memory_space<vmem>>, vector<1x2x128xf32>
    %778 = vector.shape_cast %777 : vector<1x2x128xf32> to vector<2x128xf32>
    %779 = arith.addf %776, %778 : vector<2x128xf32>
    %780 = vector.extract_strided_slice %779 {offsets = [0, 0], sizes = [2, 32], strides = [1, 1]} : vector<2x128xf32> to vector<2x32xf32>
    %781 = arith.negf %780 : vector<2x32xf32>
    %782 = math.exp %781 : vector<2x32xf32>
    %cst_240 = arith.constant 1.000000e+00 : f32
    %783 = vector.broadcast %cst_240 : f32 to vector<2x32xf32>
    %784 = arith.addf %783, %782 : vector<2x32xf32>
    %785 = arith.divf %783, %784 : vector<2x32xf32>
    %786 = vector.extract_strided_slice %779 {offsets = [0, 32], sizes = [2, 32], strides = [1, 1]} : vector<2x128xf32> to vector<2x32xf32>
    %787 = arith.negf %786 : vector<2x32xf32>
    %788 = math.exp %787 : vector<2x32xf32>
    %cst_241 = arith.constant 1.000000e+00 : f32
    %789 = vector.broadcast %cst_241 : f32 to vector<2x32xf32>
    %790 = arith.addf %789, %788 : vector<2x32xf32>
    %791 = arith.divf %789, %790 : vector<2x32xf32>
    %792 = vector.extract_strided_slice %779 {offsets = [0, 64], sizes = [2, 32], strides = [1, 1]} : vector<2x128xf32> to vector<2x32xf32>
    %793 = math.tanh %792 : vector<2x32xf32>
    %794 = vector.extract_strided_slice %779 {offsets = [0, 96], sizes = [2, 32], strides = [1, 1]} : vector<2x128xf32> to vector<2x32xf32>
    %795 = arith.negf %794 : vector<2x32xf32>
    %796 = math.exp %795 : vector<2x32xf32>
    %cst_242 = arith.constant 1.000000e+00 : f32
    %797 = vector.broadcast %cst_242 : f32 to vector<2x32xf32>
    %798 = arith.addf %797, %796 : vector<2x32xf32>
    %799 = arith.divf %797, %798 : vector<2x32xf32>
    %800 = arith.mulf %791, %712 : vector<2x32xf32>
    %801 = arith.mulf %785, %793 : vector<2x32xf32>
    %802 = arith.addf %800, %801 : vector<2x32xf32>
    %803 = math.tanh %802 : vector<2x32xf32>
    %804 = arith.mulf %799, %803 : vector<2x32xf32>
    %805 = tpu.concatenate %804, %802 in 1 : vector<2x32xf32>, vector<2x32xf32> -> vector<2x64xf32>
    %cst_243 = arith.constant dense<0.000000e+00> : vector<2x64xf32>
    %806 = tpu.matmul %805, %498, %cst_243 {dimension_numbers = #tpu.dot_dimension_numbers<[1], [0], [0], [1], [0, 0, 1, 1], [], []>} : vector<2x64xf32>, vector<64x64xf32>, vector<2x64xf32> -> vector<2x64xf32>
    %807 = arith.addf %806, %493 : vector<2x64xf32>
    %808 = vector.shape_cast %807 : vector<2x64xf32> to vector<2x1x64xf32>
    %809 = vector.broadcast %808 : vector<2x1x64xf32> to vector<2x8x64xf32>
    %810 = arith.addf %482, %809 : vector<2x8x64xf32>
    %811 = vector.shape_cast %751 : vector<2x8xf32> to vector<2x8x1xf32>
    %812 = vector.broadcast %811 : vector<2x8x1xf32> to vector<2x8x64xf32>
    %813 = arith.mulf %812, %490 : vector<2x8x64xf32>
    %814 = arith.addf %810, %813 : vector<2x8x64xf32>
    %815 = math.tanh %814 : vector<2x8x64xf32>
    %816 = arith.mulf %815, %486 : vector<2x8x64xf32>
    %cst_244 = arith.constant dense<0.000000e+00> : vector<2x8xf32>
    %817 = vector.multi_reduction <add>, %816, %cst_244 [2] : vector<2x8x64xf32> to vector<2x8xf32>
    %cst_245 = arith.constant dense<0xFF800000> : vector<2xf32>
    %818 = vector.multi_reduction <maximumf>, %817, %cst_245 [1] : vector<2x8xf32> to vector<2xf32>
    %819 = vector.shape_cast %818 : vector<2xf32> to vector<2x1xf32>
    %820 = vector.broadcast %819 : vector<2x1xf32> to vector<2x8xf32>
    %821 = arith.subf %817, %820 : vector<2x8xf32>
    %822 = math.exp %821 : vector<2x8xf32>
    %cst_246 = arith.constant dense<0.000000e+00> : vector<2xf32>
    %823 = vector.multi_reduction <add>, %822, %cst_246 [1] : vector<2x8xf32> to vector<2xf32>
    %824 = vector.shape_cast %823 : vector<2xf32> to vector<2x1xf32>
    %825 = tpu.reciprocal %824 {approx = true} : vector<2x1xf32> -> vector<2x1xf32>
    %826 = vector.broadcast %825 : vector<2x1xf32> to vector<2x8xf32>
    %827 = arith.mulf %822, %826 : vector<2x8xf32>
    %828 = arith.mulf %827, %0 : vector<2x8xf32>
    %cst_247 = arith.constant dense<0.000000e+00> : vector<2xf32>
    %829 = vector.multi_reduction <add>, %828, %cst_247 [1] : vector<2x8xf32> to vector<2xf32>
    %830 = vector.shape_cast %829 : vector<2xf32> to vector<2x1xf32>
    %831 = tpu.reciprocal %830 {approx = true} : vector<2x1xf32> -> vector<2x1xf32>
    %832 = vector.broadcast %831 : vector<2x1xf32> to vector<2x8xf32>
    %833 = arith.mulf %828, %832 : vector<2x8xf32>
    %834 = vector.shape_cast %833 : vector<2x8xf32> to vector<2x8x1xf32>
    %835 = vector.broadcast %834 : vector<2x8x1xf32> to vector<2x8x64xf32>
    %836 = arith.mulf %835, %478 : vector<2x8x64xf32>
    %cst_248 = arith.constant dense<0.000000e+00> : vector<2x64xf32>
    %837 = vector.multi_reduction <add>, %836, %cst_248 [1] : vector<2x8x64xf32> to vector<2x64xf32>
    %838 = arith.minimumf %833, %751 : vector<2x8xf32>
    %cst_249 = arith.constant dense<0.000000e+00> : vector<2xf32>
    %839 = vector.multi_reduction <add>, %838, %cst_249 [1] : vector<2x8xf32> to vector<2xf32>
    %840 = vector.shape_cast %839 : vector<2xf32> to vector<2x1xf32>
    %841 = arith.addf %751, %833 : vector<2x8xf32>
    %842 = tpu.concatenate %804, %837 in 1 : vector<2x32xf32>, vector<2x64xf32> -> vector<2x96xf32>
    %cst_250 = arith.constant dense<0.000000e+00> : vector<2x128xf32>
    %843 = tpu.matmul %842, %499, %cst_250 {dimension_numbers = #tpu.dot_dimension_numbers<[1], [0], [0], [1], [0, 0, 1, 1], [], []>} : vector<2x96xf32>, vector<96x128xf32>, vector<2x128xf32> -> vector<2x128xf32>
    %844 = arith.addf %843, %496 : vector<2x128xf32>
    %cst_251 = arith.constant dense<0xFF800000> : vector<2xf32>
    %845 = vector.multi_reduction <maximumf>, %844, %cst_251 [1] : vector<2x128xf32> to vector<2xf32>
    %846 = vector.shape_cast %845 : vector<2xf32> to vector<2x1xf32>
    %847 = vector.broadcast %846 : vector<2x1xf32> to vector<2x128xf32>
    %848 = arith.subf %844, %847 : vector<2x128xf32>
    %849 = math.exp %848 : vector<2x128xf32>
    %cst_252 = arith.constant dense<0.000000e+00> : vector<2xf32>
    %850 = vector.multi_reduction <add>, %849, %cst_252 [1] : vector<2x128xf32> to vector<2xf32>
    %851 = vector.shape_cast %850 : vector<2xf32> to vector<2x1xf32>
    %852 = math.log %851 : vector<2x1xf32>
    %853 = arith.addf %846, %852 : vector<2x1xf32>
    %c3_253 = arith.constant 3 : index
    %c0_254 = arith.constant 0 : index
    %c0_255 = arith.constant 0 : index
    %854 = vector.load %arg15[%c3_253, %c0_254, %c0_255] : memref<8x2x128xf32, #tpu.memory_space<vmem>>, vector<1x2x128xf32>
    %855 = vector.shape_cast %854 : vector<1x2x128xf32> to vector<2x128xf32>
    %856 = arith.mulf %844, %855 : vector<2x128xf32>
    %cst_256 = arith.constant dense<0.000000e+00> : vector<2xf32>
    %857 = vector.multi_reduction <add>, %856, %cst_256 [1] : vector<2x128xf32> to vector<2xf32>
    %858 = vector.shape_cast %857 : vector<2xf32> to vector<2x1xf32>
    %859 = arith.subf %853, %858 : vector<2x1xf32>
    %860 = vector.extract_strided_slice %500 {offsets = [0, 3], sizes = [2, 1], strides = [1, 1]} : vector<2x8xf32> to vector<2x1xf32>
    %861 = arith.mulf %859, %860 : vector<2x1xf32>
    %862 = arith.addf %772, %861 : vector<2x1xf32>
    %863 = arith.mulf %840, %860 : vector<2x1xf32>
    %864 = arith.addf %774, %863 : vector<2x1xf32>
    %865 = tpu.concatenate %837, %804 in 1 : vector<2x64xf32>, vector<2x32xf32> -> vector<2x96xf32>
    %cst_257 = arith.constant dense<0.000000e+00> : vector<2x128xf32>
    %866 = tpu.matmul %865, %497, %cst_257 {dimension_numbers = #tpu.dot_dimension_numbers<[1], [0], [0], [1], [0, 0, 1, 1], [], []>} : vector<2x96xf32>, vector<96x128xf32>, vector<2x128xf32> -> vector<2x128xf32>
    %c4_258 = arith.constant 4 : index
    %c0_259 = arith.constant 0 : index
    %c0_260 = arith.constant 0 : index
    %867 = vector.load %arg7[%c4_258, %c0_259, %c0_260] : memref<8x2x128xf32, #tpu.memory_space<vmem>>, vector<1x2x128xf32>
    %868 = vector.shape_cast %867 : vector<1x2x128xf32> to vector<2x128xf32>
    %869 = arith.addf %866, %868 : vector<2x128xf32>
    %870 = vector.extract_strided_slice %869 {offsets = [0, 0], sizes = [2, 32], strides = [1, 1]} : vector<2x128xf32> to vector<2x32xf32>
    %871 = arith.negf %870 : vector<2x32xf32>
    %872 = math.exp %871 : vector<2x32xf32>
    %cst_261 = arith.constant 1.000000e+00 : f32
    %873 = vector.broadcast %cst_261 : f32 to vector<2x32xf32>
    %874 = arith.addf %873, %872 : vector<2x32xf32>
    %875 = arith.divf %873, %874 : vector<2x32xf32>
    %876 = vector.extract_strided_slice %869 {offsets = [0, 32], sizes = [2, 32], strides = [1, 1]} : vector<2x128xf32> to vector<2x32xf32>
    %877 = arith.negf %876 : vector<2x32xf32>
    %878 = math.exp %877 : vector<2x32xf32>
    %cst_262 = arith.constant 1.000000e+00 : f32
    %879 = vector.broadcast %cst_262 : f32 to vector<2x32xf32>
    %880 = arith.addf %879, %878 : vector<2x32xf32>
    %881 = arith.divf %879, %880 : vector<2x32xf32>
    %882 = vector.extract_strided_slice %869 {offsets = [0, 64], sizes = [2, 32], strides = [1, 1]} : vector<2x128xf32> to vector<2x32xf32>
    %883 = math.tanh %882 : vector<2x32xf32>
    %884 = vector.extract_strided_slice %869 {offsets = [0, 96], sizes = [2, 32], strides = [1, 1]} : vector<2x128xf32> to vector<2x32xf32>
    %885 = arith.negf %884 : vector<2x32xf32>
    %886 = math.exp %885 : vector<2x32xf32>
    %cst_263 = arith.constant 1.000000e+00 : f32
    %887 = vector.broadcast %cst_263 : f32 to vector<2x32xf32>
    %888 = arith.addf %887, %886 : vector<2x32xf32>
    %889 = arith.divf %887, %888 : vector<2x32xf32>
    %890 = arith.mulf %881, %802 : vector<2x32xf32>
    %891 = arith.mulf %875, %883 : vector<2x32xf32>
    %892 = arith.addf %890, %891 : vector<2x32xf32>
    %893 = math.tanh %892 : vector<2x32xf32>
    %894 = arith.mulf %889, %893 : vector<2x32xf32>
    %895 = tpu.concatenate %894, %892 in 1 : vector<2x32xf32>, vector<2x32xf32> -> vector<2x64xf32>
    %cst_264 = arith.constant dense<0.000000e+00> : vector<2x64xf32>
    %896 = tpu.matmul %895, %498, %cst_264 {dimension_numbers = #tpu.dot_dimension_numbers<[1], [0], [0], [1], [0, 0, 1, 1], [], []>} : vector<2x64xf32>, vector<64x64xf32>, vector<2x64xf32> -> vector<2x64xf32>
    %897 = arith.addf %896, %493 : vector<2x64xf32>
    %898 = vector.shape_cast %897 : vector<2x64xf32> to vector<2x1x64xf32>
    %899 = vector.broadcast %898 : vector<2x1x64xf32> to vector<2x8x64xf32>
    %900 = arith.addf %482, %899 : vector<2x8x64xf32>
    %901 = vector.shape_cast %841 : vector<2x8xf32> to vector<2x8x1xf32>
    %902 = vector.broadcast %901 : vector<2x8x1xf32> to vector<2x8x64xf32>
    %903 = arith.mulf %902, %490 : vector<2x8x64xf32>
    %904 = arith.addf %900, %903 : vector<2x8x64xf32>
    %905 = math.tanh %904 : vector<2x8x64xf32>
    %906 = arith.mulf %905, %486 : vector<2x8x64xf32>
    %cst_265 = arith.constant dense<0.000000e+00> : vector<2x8xf32>
    %907 = vector.multi_reduction <add>, %906, %cst_265 [2] : vector<2x8x64xf32> to vector<2x8xf32>
    %cst_266 = arith.constant dense<0xFF800000> : vector<2xf32>
    %908 = vector.multi_reduction <maximumf>, %907, %cst_266 [1] : vector<2x8xf32> to vector<2xf32>
    %909 = vector.shape_cast %908 : vector<2xf32> to vector<2x1xf32>
    %910 = vector.broadcast %909 : vector<2x1xf32> to vector<2x8xf32>
    %911 = arith.subf %907, %910 : vector<2x8xf32>
    %912 = math.exp %911 : vector<2x8xf32>
    %cst_267 = arith.constant dense<0.000000e+00> : vector<2xf32>
    %913 = vector.multi_reduction <add>, %912, %cst_267 [1] : vector<2x8xf32> to vector<2xf32>
    %914 = vector.shape_cast %913 : vector<2xf32> to vector<2x1xf32>
    %915 = tpu.reciprocal %914 {approx = true} : vector<2x1xf32> -> vector<2x1xf32>
    %916 = vector.broadcast %915 : vector<2x1xf32> to vector<2x8xf32>
    %917 = arith.mulf %912, %916 : vector<2x8xf32>
    %918 = arith.mulf %917, %0 : vector<2x8xf32>
    %cst_268 = arith.constant dense<0.000000e+00> : vector<2xf32>
    %919 = vector.multi_reduction <add>, %918, %cst_268 [1] : vector<2x8xf32> to vector<2xf32>
    %920 = vector.shape_cast %919 : vector<2xf32> to vector<2x1xf32>
    %921 = tpu.reciprocal %920 {approx = true} : vector<2x1xf32> -> vector<2x1xf32>
    %922 = vector.broadcast %921 : vector<2x1xf32> to vector<2x8xf32>
    %923 = arith.mulf %918, %922 : vector<2x8xf32>
    %924 = vector.shape_cast %923 : vector<2x8xf32> to vector<2x8x1xf32>
    %925 = vector.broadcast %924 : vector<2x8x1xf32> to vector<2x8x64xf32>
    %926 = arith.mulf %925, %478 : vector<2x8x64xf32>
    %cst_269 = arith.constant dense<0.000000e+00> : vector<2x64xf32>
    %927 = vector.multi_reduction <add>, %926, %cst_269 [1] : vector<2x8x64xf32> to vector<2x64xf32>
    %928 = arith.minimumf %923, %841 : vector<2x8xf32>
    %cst_270 = arith.constant dense<0.000000e+00> : vector<2xf32>
    %929 = vector.multi_reduction <add>, %928, %cst_270 [1] : vector<2x8xf32> to vector<2xf32>
    %930 = vector.shape_cast %929 : vector<2xf32> to vector<2x1xf32>
    %931 = arith.addf %841, %923 : vector<2x8xf32>
    %932 = tpu.concatenate %894, %927 in 1 : vector<2x32xf32>, vector<2x64xf32> -> vector<2x96xf32>
    %cst_271 = arith.constant dense<0.000000e+00> : vector<2x128xf32>
    %933 = tpu.matmul %932, %499, %cst_271 {dimension_numbers = #tpu.dot_dimension_numbers<[1], [0], [0], [1], [0, 0, 1, 1], [], []>} : vector<2x96xf32>, vector<96x128xf32>, vector<2x128xf32> -> vector<2x128xf32>
    %934 = arith.addf %933, %496 : vector<2x128xf32>
    %cst_272 = arith.constant dense<0xFF800000> : vector<2xf32>
    %935 = vector.multi_reduction <maximumf>, %934, %cst_272 [1] : vector<2x128xf32> to vector<2xf32>
    %936 = vector.shape_cast %935 : vector<2xf32> to vector<2x1xf32>
    %937 = vector.broadcast %936 : vector<2x1xf32> to vector<2x128xf32>
    %938 = arith.subf %934, %937 : vector<2x128xf32>
    %939 = math.exp %938 : vector<2x128xf32>
    %cst_273 = arith.constant dense<0.000000e+00> : vector<2xf32>
    %940 = vector.multi_reduction <add>, %939, %cst_273 [1] : vector<2x128xf32> to vector<2xf32>
    %941 = vector.shape_cast %940 : vector<2xf32> to vector<2x1xf32>
    %942 = math.log %941 : vector<2x1xf32>
    %943 = arith.addf %936, %942 : vector<2x1xf32>
    %c4_274 = arith.constant 4 : index
    %c0_275 = arith.constant 0 : index
    %c0_276 = arith.constant 0 : index
    %944 = vector.load %arg15[%c4_274, %c0_275, %c0_276] : memref<8x2x128xf32, #tpu.memory_space<vmem>>, vector<1x2x128xf32>
    %945 = vector.shape_cast %944 : vector<1x2x128xf32> to vector<2x128xf32>
    %946 = arith.mulf %934, %945 : vector<2x128xf32>
    %cst_277 = arith.constant dense<0.000000e+00> : vector<2xf32>
    %947 = vector.multi_reduction <add>, %946, %cst_277 [1] : vector<2x128xf32> to vector<2xf32>
    %948 = vector.shape_cast %947 : vector<2xf32> to vector<2x1xf32>
    %949 = arith.subf %943, %948 : vector<2x1xf32>
    %950 = vector.extract_strided_slice %500 {offsets = [0, 4], sizes = [2, 1], strides = [1, 1]} : vector<2x8xf32> to vector<2x1xf32>
    %951 = arith.mulf %949, %950 : vector<2x1xf32>
    %952 = arith.addf %862, %951 : vector<2x1xf32>
    %953 = arith.mulf %930, %950 : vector<2x1xf32>
    %954 = arith.addf %864, %953 : vector<2x1xf32>
    %955 = tpu.concatenate %927, %894 in 1 : vector<2x64xf32>, vector<2x32xf32> -> vector<2x96xf32>
    %cst_278 = arith.constant dense<0.000000e+00> : vector<2x128xf32>
    %956 = tpu.matmul %955, %497, %cst_278 {dimension_numbers = #tpu.dot_dimension_numbers<[1], [0], [0], [1], [0, 0, 1, 1], [], []>} : vector<2x96xf32>, vector<96x128xf32>, vector<2x128xf32> -> vector<2x128xf32>
    %c5_279 = arith.constant 5 : index
    %c0_280 = arith.constant 0 : index
    %c0_281 = arith.constant 0 : index
    %957 = vector.load %arg7[%c5_279, %c0_280, %c0_281] : memref<8x2x128xf32, #tpu.memory_space<vmem>>, vector<1x2x128xf32>
    %958 = vector.shape_cast %957 : vector<1x2x128xf32> to vector<2x128xf32>
    %959 = arith.addf %956, %958 : vector<2x128xf32>
    %960 = vector.extract_strided_slice %959 {offsets = [0, 0], sizes = [2, 32], strides = [1, 1]} : vector<2x128xf32> to vector<2x32xf32>
    %961 = arith.negf %960 : vector<2x32xf32>
    %962 = math.exp %961 : vector<2x32xf32>
    %cst_282 = arith.constant 1.000000e+00 : f32
    %963 = vector.broadcast %cst_282 : f32 to vector<2x32xf32>
    %964 = arith.addf %963, %962 : vector<2x32xf32>
    %965 = arith.divf %963, %964 : vector<2x32xf32>
    %966 = vector.extract_strided_slice %959 {offsets = [0, 32], sizes = [2, 32], strides = [1, 1]} : vector<2x128xf32> to vector<2x32xf32>
    %967 = arith.negf %966 : vector<2x32xf32>
    %968 = math.exp %967 : vector<2x32xf32>
    %cst_283 = arith.constant 1.000000e+00 : f32
    %969 = vector.broadcast %cst_283 : f32 to vector<2x32xf32>
    %970 = arith.addf %969, %968 : vector<2x32xf32>
    %971 = arith.divf %969, %970 : vector<2x32xf32>
    %972 = vector.extract_strided_slice %959 {offsets = [0, 64], sizes = [2, 32], strides = [1, 1]} : vector<2x128xf32> to vector<2x32xf32>
    %973 = math.tanh %972 : vector<2x32xf32>
    %974 = vector.extract_strided_slice %959 {offsets = [0, 96], sizes = [2, 32], strides = [1, 1]} : vector<2x128xf32> to vector<2x32xf32>
    %975 = arith.negf %974 : vector<2x32xf32>
    %976 = math.exp %975 : vector<2x32xf32>
    %cst_284 = arith.constant 1.000000e+00 : f32
    %977 = vector.broadcast %cst_284 : f32 to vector<2x32xf32>
    %978 = arith.addf %977, %976 : vector<2x32xf32>
    %979 = arith.divf %977, %978 : vector<2x32xf32>
    %980 = arith.mulf %971, %892 : vector<2x32xf32>
    %981 = arith.mulf %965, %973 : vector<2x32xf32>
    %982 = arith.addf %980, %981 : vector<2x32xf32>
    %983 = math.tanh %982 : vector<2x32xf32>
    %984 = arith.mulf %979, %983 : vector<2x32xf32>
    %985 = tpu.concatenate %984, %982 in 1 : vector<2x32xf32>, vector<2x32xf32> -> vector<2x64xf32>
    %cst_285 = arith.constant dense<0.000000e+00> : vector<2x64xf32>
    %986 = tpu.matmul %985, %498, %cst_285 {dimension_numbers = #tpu.dot_dimension_numbers<[1], [0], [0], [1], [0, 0, 1, 1], [], []>} : vector<2x64xf32>, vector<64x64xf32>, vector<2x64xf32> -> vector<2x64xf32>
    %987 = arith.addf %986, %493 : vector<2x64xf32>
    %988 = vector.shape_cast %987 : vector<2x64xf32> to vector<2x1x64xf32>
    %989 = vector.broadcast %988 : vector<2x1x64xf32> to vector<2x8x64xf32>
    %990 = arith.addf %482, %989 : vector<2x8x64xf32>
    %991 = vector.shape_cast %931 : vector<2x8xf32> to vector<2x8x1xf32>
    %992 = vector.broadcast %991 : vector<2x8x1xf32> to vector<2x8x64xf32>
    %993 = arith.mulf %992, %490 : vector<2x8x64xf32>
    %994 = arith.addf %990, %993 : vector<2x8x64xf32>
    %995 = math.tanh %994 : vector<2x8x64xf32>
    %996 = arith.mulf %995, %486 : vector<2x8x64xf32>
    %cst_286 = arith.constant dense<0.000000e+00> : vector<2x8xf32>
    %997 = vector.multi_reduction <add>, %996, %cst_286 [2] : vector<2x8x64xf32> to vector<2x8xf32>
    %cst_287 = arith.constant dense<0xFF800000> : vector<2xf32>
    %998 = vector.multi_reduction <maximumf>, %997, %cst_287 [1] : vector<2x8xf32> to vector<2xf32>
    %999 = vector.shape_cast %998 : vector<2xf32> to vector<2x1xf32>
    %1000 = vector.broadcast %999 : vector<2x1xf32> to vector<2x8xf32>
    %1001 = arith.subf %997, %1000 : vector<2x8xf32>
    %1002 = math.exp %1001 : vector<2x8xf32>
    %cst_288 = arith.constant dense<0.000000e+00> : vector<2xf32>
    %1003 = vector.multi_reduction <add>, %1002, %cst_288 [1] : vector<2x8xf32> to vector<2xf32>
    %1004 = vector.shape_cast %1003 : vector<2xf32> to vector<2x1xf32>
    %1005 = tpu.reciprocal %1004 {approx = true} : vector<2x1xf32> -> vector<2x1xf32>
    %1006 = vector.broadcast %1005 : vector<2x1xf32> to vector<2x8xf32>
    %1007 = arith.mulf %1002, %1006 : vector<2x8xf32>
    %1008 = arith.mulf %1007, %0 : vector<2x8xf32>
    %cst_289 = arith.constant dense<0.000000e+00> : vector<2xf32>
    %1009 = vector.multi_reduction <add>, %1008, %cst_289 [1] : vector<2x8xf32> to vector<2xf32>
    %1010 = vector.shape_cast %1009 : vector<2xf32> to vector<2x1xf32>
    %1011 = tpu.reciprocal %1010 {approx = true} : vector<2x1xf32> -> vector<2x1xf32>
    %1012 = vector.broadcast %1011 : vector<2x1xf32> to vector<2x8xf32>
    %1013 = arith.mulf %1008, %1012 : vector<2x8xf32>
    %1014 = vector.shape_cast %1013 : vector<2x8xf32> to vector<2x8x1xf32>
    %1015 = vector.broadcast %1014 : vector<2x8x1xf32> to vector<2x8x64xf32>
    %1016 = arith.mulf %1015, %478 : vector<2x8x64xf32>
    %cst_290 = arith.constant dense<0.000000e+00> : vector<2x64xf32>
    %1017 = vector.multi_reduction <add>, %1016, %cst_290 [1] : vector<2x8x64xf32> to vector<2x64xf32>
    %1018 = arith.minimumf %1013, %931 : vector<2x8xf32>
    %cst_291 = arith.constant dense<0.000000e+00> : vector<2xf32>
    %1019 = vector.multi_reduction <add>, %1018, %cst_291 [1] : vector<2x8xf32> to vector<2xf32>
    %1020 = vector.shape_cast %1019 : vector<2xf32> to vector<2x1xf32>
    %1021 = arith.addf %931, %1013 : vector<2x8xf32>
    %1022 = tpu.concatenate %984, %1017 in 1 : vector<2x32xf32>, vector<2x64xf32> -> vector<2x96xf32>
    %cst_292 = arith.constant dense<0.000000e+00> : vector<2x128xf32>
    %1023 = tpu.matmul %1022, %499, %cst_292 {dimension_numbers = #tpu.dot_dimension_numbers<[1], [0], [0], [1], [0, 0, 1, 1], [], []>} : vector<2x96xf32>, vector<96x128xf32>, vector<2x128xf32> -> vector<2x128xf32>
    %1024 = arith.addf %1023, %496 : vector<2x128xf32>
    %cst_293 = arith.constant dense<0xFF800000> : vector<2xf32>
    %1025 = vector.multi_reduction <maximumf>, %1024, %cst_293 [1] : vector<2x128xf32> to vector<2xf32>
    %1026 = vector.shape_cast %1025 : vector<2xf32> to vector<2x1xf32>
    %1027 = vector.broadcast %1026 : vector<2x1xf32> to vector<2x128xf32>
    %1028 = arith.subf %1024, %1027 : vector<2x128xf32>
    %1029 = math.exp %1028 : vector<2x128xf32>
    %cst_294 = arith.constant dense<0.000000e+00> : vector<2xf32>
    %1030 = vector.multi_reduction <add>, %1029, %cst_294 [1] : vector<2x128xf32> to vector<2xf32>
    %1031 = vector.shape_cast %1030 : vector<2xf32> to vector<2x1xf32>
    %1032 = math.log %1031 : vector<2x1xf32>
    %1033 = arith.addf %1026, %1032 : vector<2x1xf32>
    %c5_295 = arith.constant 5 : index
    %c0_296 = arith.constant 0 : index
    %c0_297 = arith.constant 0 : index
    %1034 = vector.load %arg15[%c5_295, %c0_296, %c0_297] : memref<8x2x128xf32, #tpu.memory_space<vmem>>, vector<1x2x128xf32>
    %1035 = vector.shape_cast %1034 : vector<1x2x128xf32> to vector<2x128xf32>
    %1036 = arith.mulf %1024, %1035 : vector<2x128xf32>
    %cst_298 = arith.constant dense<0.000000e+00> : vector<2xf32>
    %1037 = vector.multi_reduction <add>, %1036, %cst_298 [1] : vector<2x128xf32> to vector<2xf32>
    %1038 = vector.shape_cast %1037 : vector<2xf32> to vector<2x1xf32>
    %1039 = arith.subf %1033, %1038 : vector<2x1xf32>
    %1040 = vector.extract_strided_slice %500 {offsets = [0, 5], sizes = [2, 1], strides = [1, 1]} : vector<2x8xf32> to vector<2x1xf32>
    %1041 = arith.mulf %1039, %1040 : vector<2x1xf32>
    %1042 = arith.addf %952, %1041 : vector<2x1xf32>
    %1043 = arith.mulf %1020, %1040 : vector<2x1xf32>
    %1044 = arith.addf %954, %1043 : vector<2x1xf32>
    %1045 = tpu.concatenate %1017, %984 in 1 : vector<2x64xf32>, vector<2x32xf32> -> vector<2x96xf32>
    %cst_299 = arith.constant dense<0.000000e+00> : vector<2x128xf32>
    %1046 = tpu.matmul %1045, %497, %cst_299 {dimension_numbers = #tpu.dot_dimension_numbers<[1], [0], [0], [1], [0, 0, 1, 1], [], []>} : vector<2x96xf32>, vector<96x128xf32>, vector<2x128xf32> -> vector<2x128xf32>
    %c6_300 = arith.constant 6 : index
    %c0_301 = arith.constant 0 : index
    %c0_302 = arith.constant 0 : index
    %1047 = vector.load %arg7[%c6_300, %c0_301, %c0_302] : memref<8x2x128xf32, #tpu.memory_space<vmem>>, vector<1x2x128xf32>
    %1048 = vector.shape_cast %1047 : vector<1x2x128xf32> to vector<2x128xf32>
    %1049 = arith.addf %1046, %1048 : vector<2x128xf32>
    %1050 = vector.extract_strided_slice %1049 {offsets = [0, 0], sizes = [2, 32], strides = [1, 1]} : vector<2x128xf32> to vector<2x32xf32>
    %1051 = arith.negf %1050 : vector<2x32xf32>
    %1052 = math.exp %1051 : vector<2x32xf32>
    %cst_303 = arith.constant 1.000000e+00 : f32
    %1053 = vector.broadcast %cst_303 : f32 to vector<2x32xf32>
    %1054 = arith.addf %1053, %1052 : vector<2x32xf32>
    %1055 = arith.divf %1053, %1054 : vector<2x32xf32>
    %1056 = vector.extract_strided_slice %1049 {offsets = [0, 32], sizes = [2, 32], strides = [1, 1]} : vector<2x128xf32> to vector<2x32xf32>
    %1057 = arith.negf %1056 : vector<2x32xf32>
    %1058 = math.exp %1057 : vector<2x32xf32>
    %cst_304 = arith.constant 1.000000e+00 : f32
    %1059 = vector.broadcast %cst_304 : f32 to vector<2x32xf32>
    %1060 = arith.addf %1059, %1058 : vector<2x32xf32>
    %1061 = arith.divf %1059, %1060 : vector<2x32xf32>
    %1062 = vector.extract_strided_slice %1049 {offsets = [0, 64], sizes = [2, 32], strides = [1, 1]} : vector<2x128xf32> to vector<2x32xf32>
    %1063 = math.tanh %1062 : vector<2x32xf32>
    %1064 = vector.extract_strided_slice %1049 {offsets = [0, 96], sizes = [2, 32], strides = [1, 1]} : vector<2x128xf32> to vector<2x32xf32>
    %1065 = arith.negf %1064 : vector<2x32xf32>
    %1066 = math.exp %1065 : vector<2x32xf32>
    %cst_305 = arith.constant 1.000000e+00 : f32
    %1067 = vector.broadcast %cst_305 : f32 to vector<2x32xf32>
    %1068 = arith.addf %1067, %1066 : vector<2x32xf32>
    %1069 = arith.divf %1067, %1068 : vector<2x32xf32>
    %1070 = arith.mulf %1061, %982 : vector<2x32xf32>
    %1071 = arith.mulf %1055, %1063 : vector<2x32xf32>
    %1072 = arith.addf %1070, %1071 : vector<2x32xf32>
    %1073 = math.tanh %1072 : vector<2x32xf32>
    %1074 = arith.mulf %1069, %1073 : vector<2x32xf32>
    %1075 = tpu.concatenate %1074, %1072 in 1 : vector<2x32xf32>, vector<2x32xf32> -> vector<2x64xf32>
    %cst_306 = arith.constant dense<0.000000e+00> : vector<2x64xf32>
    %1076 = tpu.matmul %1075, %498, %cst_306 {dimension_numbers = #tpu.dot_dimension_numbers<[1], [0], [0], [1], [0, 0, 1, 1], [], []>} : vector<2x64xf32>, vector<64x64xf32>, vector<2x64xf32> -> vector<2x64xf32>
    %1077 = arith.addf %1076, %493 : vector<2x64xf32>
    %1078 = vector.shape_cast %1077 : vector<2x64xf32> to vector<2x1x64xf32>
    %1079 = vector.broadcast %1078 : vector<2x1x64xf32> to vector<2x8x64xf32>
    %1080 = arith.addf %482, %1079 : vector<2x8x64xf32>
    %1081 = vector.shape_cast %1021 : vector<2x8xf32> to vector<2x8x1xf32>
    %1082 = vector.broadcast %1081 : vector<2x8x1xf32> to vector<2x8x64xf32>
    %1083 = arith.mulf %1082, %490 : vector<2x8x64xf32>
    %1084 = arith.addf %1080, %1083 : vector<2x8x64xf32>
    %1085 = math.tanh %1084 : vector<2x8x64xf32>
    %1086 = arith.mulf %1085, %486 : vector<2x8x64xf32>
    %cst_307 = arith.constant dense<0.000000e+00> : vector<2x8xf32>
    %1087 = vector.multi_reduction <add>, %1086, %cst_307 [2] : vector<2x8x64xf32> to vector<2x8xf32>
    %cst_308 = arith.constant dense<0xFF800000> : vector<2xf32>
    %1088 = vector.multi_reduction <maximumf>, %1087, %cst_308 [1] : vector<2x8xf32> to vector<2xf32>
    %1089 = vector.shape_cast %1088 : vector<2xf32> to vector<2x1xf32>
    %1090 = vector.broadcast %1089 : vector<2x1xf32> to vector<2x8xf32>
    %1091 = arith.subf %1087, %1090 : vector<2x8xf32>
    %1092 = math.exp %1091 : vector<2x8xf32>
    %cst_309 = arith.constant dense<0.000000e+00> : vector<2xf32>
    %1093 = vector.multi_reduction <add>, %1092, %cst_309 [1] : vector<2x8xf32> to vector<2xf32>
    %1094 = vector.shape_cast %1093 : vector<2xf32> to vector<2x1xf32>
    %1095 = tpu.reciprocal %1094 {approx = true} : vector<2x1xf32> -> vector<2x1xf32>
    %1096 = vector.broadcast %1095 : vector<2x1xf32> to vector<2x8xf32>
    %1097 = arith.mulf %1092, %1096 : vector<2x8xf32>
    %1098 = arith.mulf %1097, %0 : vector<2x8xf32>
    %cst_310 = arith.constant dense<0.000000e+00> : vector<2xf32>
    %1099 = vector.multi_reduction <add>, %1098, %cst_310 [1] : vector<2x8xf32> to vector<2xf32>
    %1100 = vector.shape_cast %1099 : vector<2xf32> to vector<2x1xf32>
    %1101 = tpu.reciprocal %1100 {approx = true} : vector<2x1xf32> -> vector<2x1xf32>
    %1102 = vector.broadcast %1101 : vector<2x1xf32> to vector<2x8xf32>
    %1103 = arith.mulf %1098, %1102 : vector<2x8xf32>
    %1104 = vector.shape_cast %1103 : vector<2x8xf32> to vector<2x8x1xf32>
    %1105 = vector.broadcast %1104 : vector<2x8x1xf32> to vector<2x8x64xf32>
    %1106 = arith.mulf %1105, %478 : vector<2x8x64xf32>
    %cst_311 = arith.constant dense<0.000000e+00> : vector<2x64xf32>
    %1107 = vector.multi_reduction <add>, %1106, %cst_311 [1] : vector<2x8x64xf32> to vector<2x64xf32>
    %1108 = arith.minimumf %1103, %1021 : vector<2x8xf32>
    %cst_312 = arith.constant dense<0.000000e+00> : vector<2xf32>
    %1109 = vector.multi_reduction <add>, %1108, %cst_312 [1] : vector<2x8xf32> to vector<2xf32>
    %1110 = vector.shape_cast %1109 : vector<2xf32> to vector<2x1xf32>
    %1111 = arith.addf %1021, %1103 : vector<2x8xf32>
    %1112 = tpu.concatenate %1074, %1107 in 1 : vector<2x32xf32>, vector<2x64xf32> -> vector<2x96xf32>
    %cst_313 = arith.constant dense<0.000000e+00> : vector<2x128xf32>
    %1113 = tpu.matmul %1112, %499, %cst_313 {dimension_numbers = #tpu.dot_dimension_numbers<[1], [0], [0], [1], [0, 0, 1, 1], [], []>} : vector<2x96xf32>, vector<96x128xf32>, vector<2x128xf32> -> vector<2x128xf32>
    %1114 = arith.addf %1113, %496 : vector<2x128xf32>
    %cst_314 = arith.constant dense<0xFF800000> : vector<2xf32>
    %1115 = vector.multi_reduction <maximumf>, %1114, %cst_314 [1] : vector<2x128xf32> to vector<2xf32>
    %1116 = vector.shape_cast %1115 : vector<2xf32> to vector<2x1xf32>
    %1117 = vector.broadcast %1116 : vector<2x1xf32> to vector<2x128xf32>
    %1118 = arith.subf %1114, %1117 : vector<2x128xf32>
    %1119 = math.exp %1118 : vector<2x128xf32>
    %cst_315 = arith.constant dense<0.000000e+00> : vector<2xf32>
    %1120 = vector.multi_reduction <add>, %1119, %cst_315 [1] : vector<2x128xf32> to vector<2xf32>
    %1121 = vector.shape_cast %1120 : vector<2xf32> to vector<2x1xf32>
    %1122 = math.log %1121 : vector<2x1xf32>
    %1123 = arith.addf %1116, %1122 : vector<2x1xf32>
    %c6_316 = arith.constant 6 : index
    %c0_317 = arith.constant 0 : index
    %c0_318 = arith.constant 0 : index
    %1124 = vector.load %arg15[%c6_316, %c0_317, %c0_318] : memref<8x2x128xf32, #tpu.memory_space<vmem>>, vector<1x2x128xf32>
    %1125 = vector.shape_cast %1124 : vector<1x2x128xf32> to vector<2x128xf32>
    %1126 = arith.mulf %1114, %1125 : vector<2x128xf32>
    %cst_319 = arith.constant dense<0.000000e+00> : vector<2xf32>
    %1127 = vector.multi_reduction <add>, %1126, %cst_319 [1] : vector<2x128xf32> to vector<2xf32>
    %1128 = vector.shape_cast %1127 : vector<2xf32> to vector<2x1xf32>
    %1129 = arith.subf %1123, %1128 : vector<2x1xf32>
    %1130 = vector.extract_strided_slice %500 {offsets = [0, 6], sizes = [2, 1], strides = [1, 1]} : vector<2x8xf32> to vector<2x1xf32>
    %1131 = arith.mulf %1129, %1130 : vector<2x1xf32>
    %1132 = arith.addf %1042, %1131 : vector<2x1xf32>
    %1133 = arith.mulf %1110, %1130 : vector<2x1xf32>
    %1134 = arith.addf %1044, %1133 : vector<2x1xf32>
    %1135 = tpu.concatenate %1107, %1074 in 1 : vector<2x64xf32>, vector<2x32xf32> -> vector<2x96xf32>
    %cst_320 = arith.constant dense<0.000000e+00> : vector<2x128xf32>
    %1136 = tpu.matmul %1135, %497, %cst_320 {dimension_numbers = #tpu.dot_dimension_numbers<[1], [0], [0], [1], [0, 0, 1, 1], [], []>} : vector<2x96xf32>, vector<96x128xf32>, vector<2x128xf32> -> vector<2x128xf32>
    %c7_321 = arith.constant 7 : index
    %c0_322 = arith.constant 0 : index
    %c0_323 = arith.constant 0 : index
    %1137 = vector.load %arg7[%c7_321, %c0_322, %c0_323] : memref<8x2x128xf32, #tpu.memory_space<vmem>>, vector<1x2x128xf32>
    %1138 = vector.shape_cast %1137 : vector<1x2x128xf32> to vector<2x128xf32>
    %1139 = arith.addf %1136, %1138 : vector<2x128xf32>
    %1140 = vector.extract_strided_slice %1139 {offsets = [0, 0], sizes = [2, 32], strides = [1, 1]} : vector<2x128xf32> to vector<2x32xf32>
    %1141 = arith.negf %1140 : vector<2x32xf32>
    %1142 = math.exp %1141 : vector<2x32xf32>
    %cst_324 = arith.constant 1.000000e+00 : f32
    %1143 = vector.broadcast %cst_324 : f32 to vector<2x32xf32>
    %1144 = arith.addf %1143, %1142 : vector<2x32xf32>
    %1145 = arith.divf %1143, %1144 : vector<2x32xf32>
    %1146 = vector.extract_strided_slice %1139 {offsets = [0, 32], sizes = [2, 32], strides = [1, 1]} : vector<2x128xf32> to vector<2x32xf32>
    %1147 = arith.negf %1146 : vector<2x32xf32>
    %1148 = math.exp %1147 : vector<2x32xf32>
    %cst_325 = arith.constant 1.000000e+00 : f32
    %1149 = vector.broadcast %cst_325 : f32 to vector<2x32xf32>
    %1150 = arith.addf %1149, %1148 : vector<2x32xf32>
    %1151 = arith.divf %1149, %1150 : vector<2x32xf32>
    %1152 = vector.extract_strided_slice %1139 {offsets = [0, 64], sizes = [2, 32], strides = [1, 1]} : vector<2x128xf32> to vector<2x32xf32>
    %1153 = math.tanh %1152 : vector<2x32xf32>
    %1154 = vector.extract_strided_slice %1139 {offsets = [0, 96], sizes = [2, 32], strides = [1, 1]} : vector<2x128xf32> to vector<2x32xf32>
    %1155 = arith.negf %1154 : vector<2x32xf32>
    %1156 = math.exp %1155 : vector<2x32xf32>
    %cst_326 = arith.constant 1.000000e+00 : f32
    %1157 = vector.broadcast %cst_326 : f32 to vector<2x32xf32>
    %1158 = arith.addf %1157, %1156 : vector<2x32xf32>
    %1159 = arith.divf %1157, %1158 : vector<2x32xf32>
    %1160 = arith.mulf %1151, %1072 : vector<2x32xf32>
    %1161 = arith.mulf %1145, %1153 : vector<2x32xf32>
    %1162 = arith.addf %1160, %1161 : vector<2x32xf32>
    %1163 = math.tanh %1162 : vector<2x32xf32>
    %1164 = arith.mulf %1159, %1163 : vector<2x32xf32>
    %1165 = tpu.concatenate %1164, %1162 in 1 : vector<2x32xf32>, vector<2x32xf32> -> vector<2x64xf32>
    %cst_327 = arith.constant dense<0.000000e+00> : vector<2x64xf32>
    %1166 = tpu.matmul %1165, %498, %cst_327 {dimension_numbers = #tpu.dot_dimension_numbers<[1], [0], [0], [1], [0, 0, 1, 1], [], []>} : vector<2x64xf32>, vector<64x64xf32>, vector<2x64xf32> -> vector<2x64xf32>
    %1167 = arith.addf %1166, %493 : vector<2x64xf32>
    %1168 = vector.shape_cast %1167 : vector<2x64xf32> to vector<2x1x64xf32>
    %1169 = vector.broadcast %1168 : vector<2x1x64xf32> to vector<2x8x64xf32>
    %1170 = arith.addf %482, %1169 : vector<2x8x64xf32>
    %1171 = vector.shape_cast %1111 : vector<2x8xf32> to vector<2x8x1xf32>
    %1172 = vector.broadcast %1171 : vector<2x8x1xf32> to vector<2x8x64xf32>
    %1173 = arith.mulf %1172, %490 : vector<2x8x64xf32>
    %1174 = arith.addf %1170, %1173 : vector<2x8x64xf32>
    %1175 = math.tanh %1174 : vector<2x8x64xf32>
    %1176 = arith.mulf %1175, %486 : vector<2x8x64xf32>
    %cst_328 = arith.constant dense<0.000000e+00> : vector<2x8xf32>
    %1177 = vector.multi_reduction <add>, %1176, %cst_328 [2] : vector<2x8x64xf32> to vector<2x8xf32>
    %cst_329 = arith.constant dense<0xFF800000> : vector<2xf32>
    %1178 = vector.multi_reduction <maximumf>, %1177, %cst_329 [1] : vector<2x8xf32> to vector<2xf32>
    %1179 = vector.shape_cast %1178 : vector<2xf32> to vector<2x1xf32>
    %1180 = vector.broadcast %1179 : vector<2x1xf32> to vector<2x8xf32>
    %1181 = arith.subf %1177, %1180 : vector<2x8xf32>
    %1182 = math.exp %1181 : vector<2x8xf32>
    %cst_330 = arith.constant dense<0.000000e+00> : vector<2xf32>
    %1183 = vector.multi_reduction <add>, %1182, %cst_330 [1] : vector<2x8xf32> to vector<2xf32>
    %1184 = vector.shape_cast %1183 : vector<2xf32> to vector<2x1xf32>
    %1185 = tpu.reciprocal %1184 {approx = true} : vector<2x1xf32> -> vector<2x1xf32>
    %1186 = vector.broadcast %1185 : vector<2x1xf32> to vector<2x8xf32>
    %1187 = arith.mulf %1182, %1186 : vector<2x8xf32>
    %1188 = arith.mulf %1187, %0 : vector<2x8xf32>
    %cst_331 = arith.constant dense<0.000000e+00> : vector<2xf32>
    %1189 = vector.multi_reduction <add>, %1188, %cst_331 [1] : vector<2x8xf32> to vector<2xf32>
    %1190 = vector.shape_cast %1189 : vector<2xf32> to vector<2x1xf32>
    %1191 = tpu.reciprocal %1190 {approx = true} : vector<2x1xf32> -> vector<2x1xf32>
    %1192 = vector.broadcast %1191 : vector<2x1xf32> to vector<2x8xf32>
    %1193 = arith.mulf %1188, %1192 : vector<2x8xf32>
    %1194 = vector.shape_cast %1193 : vector<2x8xf32> to vector<2x8x1xf32>
    %1195 = vector.broadcast %1194 : vector<2x8x1xf32> to vector<2x8x64xf32>
    %1196 = arith.mulf %1195, %478 : vector<2x8x64xf32>
    %cst_332 = arith.constant dense<0.000000e+00> : vector<2x64xf32>
    %1197 = vector.multi_reduction <add>, %1196, %cst_332 [1] : vector<2x8x64xf32> to vector<2x64xf32>
    %1198 = arith.minimumf %1193, %1111 : vector<2x8xf32>
    %cst_333 = arith.constant dense<0.000000e+00> : vector<2xf32>
    %1199 = vector.multi_reduction <add>, %1198, %cst_333 [1] : vector<2x8xf32> to vector<2xf32>
    %1200 = vector.shape_cast %1199 : vector<2xf32> to vector<2x1xf32>
    %1201 = tpu.concatenate %1164, %1197 in 1 : vector<2x32xf32>, vector<2x64xf32> -> vector<2x96xf32>
    %cst_334 = arith.constant dense<0.000000e+00> : vector<2x128xf32>
    %1202 = tpu.matmul %1201, %499, %cst_334 {dimension_numbers = #tpu.dot_dimension_numbers<[1], [0], [0], [1], [0, 0, 1, 1], [], []>} : vector<2x96xf32>, vector<96x128xf32>, vector<2x128xf32> -> vector<2x128xf32>
    %1203 = arith.addf %1202, %496 : vector<2x128xf32>
    %cst_335 = arith.constant dense<0xFF800000> : vector<2xf32>
    %1204 = vector.multi_reduction <maximumf>, %1203, %cst_335 [1] : vector<2x128xf32> to vector<2xf32>
    %1205 = vector.shape_cast %1204 : vector<2xf32> to vector<2x1xf32>
    %1206 = vector.broadcast %1205 : vector<2x1xf32> to vector<2x128xf32>
    %1207 = arith.subf %1203, %1206 : vector<2x128xf32>
    %1208 = math.exp %1207 : vector<2x128xf32>
    %cst_336 = arith.constant dense<0.000000e+00> : vector<2xf32>
    %1209 = vector.multi_reduction <add>, %1208, %cst_336 [1] : vector<2x128xf32> to vector<2xf32>
    %1210 = vector.shape_cast %1209 : vector<2xf32> to vector<2x1xf32>
    %1211 = math.log %1210 : vector<2x1xf32>
    %1212 = arith.addf %1205, %1211 : vector<2x1xf32>
    %c7_337 = arith.constant 7 : index
    %c0_338 = arith.constant 0 : index
    %c0_339 = arith.constant 0 : index
    %1213 = vector.load %arg15[%c7_337, %c0_338, %c0_339] : memref<8x2x128xf32, #tpu.memory_space<vmem>>, vector<1x2x128xf32>
    %1214 = vector.shape_cast %1213 : vector<1x2x128xf32> to vector<2x128xf32>
    %1215 = arith.mulf %1203, %1214 : vector<2x128xf32>
    %cst_340 = arith.constant dense<0.000000e+00> : vector<2xf32>
    %1216 = vector.multi_reduction <add>, %1215, %cst_340 [1] : vector<2x128xf32> to vector<2xf32>
    %1217 = vector.shape_cast %1216 : vector<2xf32> to vector<2x1xf32>
    %1218 = arith.subf %1212, %1217 : vector<2x1xf32>
    %1219 = vector.extract_strided_slice %500 {offsets = [0, 7], sizes = [2, 1], strides = [1, 1]} : vector<2x8xf32> to vector<2x1xf32>
    %1220 = arith.mulf %1218, %1219 : vector<2x1xf32>
    %1221 = arith.addf %1132, %1220 : vector<2x1xf32>
    %1222 = arith.mulf %1200, %1219 : vector<2x1xf32>
    %1223 = arith.addf %1134, %1222 : vector<2x1xf32>
    %c0_341 = arith.constant 0 : index
    %c0_342 = arith.constant 0 : index
    %1224 = vector.load %arg17[%c0_341, %c0_342] : memref<2x1xf32, #tpu.memory_space<vmem>>, vector<2x1xf32>
    tpu.vector_store %arg17[%c0_341, %c0_342], %1221 {strides = array<i32>} : memref<2x1xf32, #tpu.memory_space<vmem>>, vector<2x1xf32>,
    %c0_343 = arith.constant 0 : index
    %c0_344 = arith.constant 0 : index
    %1225 = vector.load %arg18[%c0_343, %c0_344] : memref<2x1xf32, #tpu.memory_space<vmem>>, vector<2x1xf32>
    tpu.vector_store %arg18[%c0_343, %c0_344], %1223 {strides = array<i32>} : memref<2x1xf32, #tpu.memory_space<vmem>>, vector<2x1xf32>,
    return
  }
}

</mosaic_0001>

<llo_original>
// kernel: reverse
$region0: #{reverse}
  #allocation0 [shape = 's32[1]{0}', space=sflag, size = 0x4, scoped, tag = 'scoped memory for reverse']
  %s0 = inlined_call_operand.vmem [shape: f32[2,8,32], index: 0, kind: input, shape index: {}]
  %s1 = inlined_call_operand.vmem [shape: f32[2,8,32], index: 1, kind: output, shape index: {}]
  %s2 = scalar_lea.vmem %s0, 14
  %v3 = vld [vmem:[%s2] sm:$0x3]
  %4 = vst [vmem:[%s1] sm:$0x3] %v3
  %s5 = scalar_lea.vmem %s0, 12
  %v6 = vld [vmem:[%s5] sm:$0x3]
  %s7 = scalar_lea.vmem %s1, 2
  %8 = vst [vmem:[%s7] sm:$0x3] %v6
  %s9 = scalar_lea.vmem %s0, 10
  %v10 = vld [vmem:[%s9] sm:$0x3]
  %s11 = scalar_lea.vmem %s1, 4
  %12 = vst [vmem:[%s11] sm:$0x3] %v10
  %s13 = scalar_lea.vmem %s0, 8
  %v14 = vld [vmem:[%s13] sm:$0x3]
  %s15 = scalar_lea.vmem %s1, 6
  %16 = vst [vmem:[%s15] sm:$0x3] %v14
  %s17 = scalar_lea.vmem %s0, 6
  %v18 = vld [vmem:[%s17] sm:$0x3]
  %s19 = scalar_lea.vmem %s1, 8
  %20 = vst [vmem:[%s19] sm:$0x3] %v18
  %s21 = scalar_lea.vmem %s0, 4
  %v22 = vld [vmem:[%s21] sm:$0x3]
  %s23 = scalar_lea.vmem %s1, 10
  %24 = vst [vmem:[%s23] sm:$0x3] %v22
  %s25 = scalar_lea.vmem %s0, 2
  %v26 = vld [vmem:[%s25] sm:$0x3]
  %s27 = scalar_lea.vmem %s1, 12
  %28 = vst [vmem:[%s27] sm:$0x3] %v26
  %v29 = vld [vmem:[%s0] sm:$0x3]
  %s30 = scalar_lea.vmem %s1, 14
  %31 = vst [vmem:[%s30] sm:$0x3] %v29

// kernel: seq2seq_forward.1
$region0: #{seq2seq_forward.1}
  #allocation0 [shape = 'u32[]', space=smem, size = 0x4, offset = 0x4, fixed_abs, tag = 'smem constant byte address 0x4 - core index']
  #allocation1 [shape = 'u32[144,128]{1,0:T(1,128)}', space=vmem, size = 0x12000, scoped, tag = 'internal scratch']
  #allocation2 [shape = 'f32[2,8,64]{2,1,0:T(8,128)}', space=vmem, size = 0x2000, scoped, tag = 'scratch operand']
  %s0 = inlined_call_operand.vmem [shape: f32[8,2,256], index: 0, kind: input, shape index: {}]
  %s1 = inlined_call_operand.vmem [shape: f32[2,8], index: 1, kind: input, shape index: {}]
  %s2 = inlined_call_operand.vmem [shape: f32[64,256], index: 2, kind: input, shape index: {}]
  %s3 = inlined_call_operand.vmem [shape: f32[64,64], index: 3, kind: input, shape index: {}]
  %s4 = inlined_call_operand.vmem [shape: f32[64,32], index: 4, kind: input, shape index: {}]
  %s5 = inlined_call_operand.vmem [shape: f32[1,32], index: 5, kind: input, shape index: {}]
  %s6 = inlined_call_operand.vmem [shape: f32[2,8], index: 6, kind: input, shape index: {}]
  %s7 = inlined_call_operand.vmem [shape: f32[8,2,128], index: 7, kind: input, shape index: {}]
  %s8 = inlined_call_operand.vmem [shape: f32[96,128], index: 8, kind: input, shape index: {}]
  %s9 = inlined_call_operand.vmem [shape: f32[64,64], index: 9, kind: input, shape index: {}]
  %s10 = inlined_call_operand.vmem [shape: f32[1,64], index: 10, kind: input, shape index: {}]
  %s11 = inlined_call_operand.vmem [shape: f32[1,64], index: 11, kind: input, shape index: {}]
  %s12 = inlined_call_operand.vmem [shape: f32[1,64], index: 12, kind: input, shape index: {}]
  %s13 = inlined_call_operand.vmem [shape: f32[96,128], index: 13, kind: input, shape index: {}]
  %s14 = inlined_call_operand.vmem [shape: f32[1,128], index: 14, kind: input, shape index: {}]
  %s15 = inlined_call_operand.vmem [shape: f32[8,2,128], index: 15, kind: input, shape index: {}]
  %s16 = inlined_call_operand.vmem [shape: f32[2,8], index: 16, kind: input, shape index: {}]
  %s17 = inlined_call_operand.vmem [shape: f32[2,1], index: 17, kind: output, shape index: {0}]
  %s18 = inlined_call_operand.vmem [shape: f32[2,1], index: 18, kind: output, shape index: {1}]
  %19 = xla_tuple %s17, %s18
  %s20 = sld [smem:[#allocation0]]
  $region86: #{seq2seq_forward.1} parent=0
    _
  %s22 = ssub.s32 1, %s20
  %s23 = scalar_select 0, %s22, %s20
  // Predicated region
  $region2: #{seq2seq_forward.1} parent=0 // pred_check
    _
  $region3: #{seq2seq_forward.1} parent=0 // pred_check_branch
    %25 = sbr.rel (0) target = $region5
  $region4: #{seq2seq_forward.1} parent=0 // pred_region
    _
  $region5: #{seq2seq_forward.1} parent=0 // pred_fallthru
    _
  // Predicated region
  $region6: #{seq2seq_forward.1} parent=0 // pred_check
    _
  $region7: #{seq2seq_forward.1} parent=0 // pred_check_branch
    %27 = sbr.rel (0) target = $region9
  $region8: #{seq2seq_forward.1} parent=0 // pred_region
    _
  $region9: #{seq2seq_forward.1} parent=0 // pred_fallthru
    _
  // Predicated region
  $region10: #{seq2seq_forward.1} parent=0 // pred_check
    _
  $region11: #{seq2seq_forward.1} parent=0 // pred_check_branch
    %29 = sbr.rel (0) target = $region13
  $region12: #{seq2seq_forward.1} parent=0 // pred_region
    _
  $region13: #{seq2seq_forward.1} parent=0 // pred_fallthru
    _
  // Predicated region
  $region14: #{seq2seq_forward.1} parent=0 // pred_check
    _
  $region15: #{seq2seq_forward.1} parent=0 // pred_check_branch
    %31 = sbr.rel (0) target = $region17
  $region16: #{seq2seq_forward.1} parent=0 // pred_region
    _
  $region17: #{seq2seq_forward.1} parent=0 // pred_fallthru
    _
  // Predicated region
  $region18: #{seq2seq_forward.1} parent=0 // pred_check
    _
  $region19: #{seq2seq_forward.1} parent=0 // pred_check_branch
    %33 = sbr.rel (0) target = $region21
  $region20: #{seq2seq_forward.1} parent=0 // pred_region
    _
  $region21: #{seq2seq_forward.1} parent=0 // pred_fallthru
    _
  // Predicated region
  $region22: #{seq2seq_forward.1} parent=0 // pred_check
    _
  $region23: #{seq2seq_forward.1} parent=0 // pred_check_branch
    %35 = sbr.rel (0) target = $region25
  $region24: #{seq2seq_forward.1} parent=0 // pred_region
    _
  $region25: #{seq2seq_forward.1} parent=0 // pred_fallthru
    _
  // Predicated region
  $region26: #{seq2seq_forward.1} parent=0 // pred_check
    _
  $region27: #{seq2seq_forward.1} parent=0 // pred_check_branch
    %37 = sbr.rel (0) target = $region29
  $region28: #{seq2seq_forward.1} parent=0 // pred_region
    _
  $region29: #{seq2seq_forward.1} parent=0 // pred_fallthru
    _
  // Predicated region
  $region30: #{seq2seq_forward.1} parent=0 // pred_check
    _
  $region31: #{seq2seq_forward.1} parent=0 // pred_check_branch
    %39 = sbr.rel (0) target = $region33
  $region32: #{seq2seq_forward.1} parent=0 // pred_region
    _
  $region33: #{seq2seq_forward.1} parent=0 // pred_fallthru
    _
  // Predicated region
  $region34: #{seq2seq_forward.1} parent=0 // pred_check
    _
  $region35: #{seq2seq_forward.1} parent=0 // pred_check_branch
    %41 = sbr.rel (0) target = $region37
  $region36: #{seq2seq_forward.1} parent=0 // pred_region
    _
  $region37: #{seq2seq_forward.1} parent=0 // pred_fallthru
    _
  // Predicated region
  $region38: #{seq2seq_forward.1} parent=0 // pred_check
    _
  $region39: #{seq2seq_forward.1} parent=0 // pred_check_branch
    %43 = sbr.rel (0) target = $region41
  $region40: #{seq2seq_forward.1} parent=0 // pred_region
    _
  $region41: #{seq2seq_forward.1} parent=0 // pred_fallthru
    _
  // Predicated region
  $region42: #{seq2seq_forward.1} parent=0 // pred_check
    _
  $region43: #{seq2seq_forward.1} parent=0 // pred_check_branch
    %45 = sbr.rel (0) target = $region45
  $region44: #{seq2seq_forward.1} parent=0 // pred_region
    _
  $region45: #{seq2seq_forward.1} parent=0 // pred_fallthru
    _
  // Predicated region
  $region46: #{seq2seq_forward.1} parent=0 // pred_check
    _
  $region47: #{seq2seq_forward.1} parent=0 // pred_check_branch
    %47 = sbr.rel (0) target = $region49
  $region48: #{seq2seq_forward.1} parent=0 // pred_region
    _
  $region49: #{seq2seq_forward.1} parent=0 // pred_fallthru
    _
  // Predicated region
  $region50: #{seq2seq_forward.1} parent=0 // pred_check
    _
  $region51: #{seq2seq_forward.1} parent=0 // pred_check_branch
    %49 = sbr.rel (0) target = $region53
  $region52: #{seq2seq_forward.1} parent=0 // pred_region
    _
  $region53: #{seq2seq_forward.1} parent=0 // pred_fallthru
    _
  // Predicated region
  $region54: #{seq2seq_forward.1} parent=0 // pred_check
    _
  $region55: #{seq2seq_forward.1} parent=0 // pred_check_branch
    %51 = sbr.rel (0) target = $region57
  $region56: #{seq2seq_forward.1} parent=0 // pred_region
    _
  $region57: #{seq2seq_forward.1} parent=0 // pred_fallthru
    _
  // Predicated region
  $region58: #{seq2seq_forward.1} parent=0 // pred_check
    _
  $region59: #{seq2seq_forward.1} parent=0 // pred_check_branch
    %53 = sbr.rel (0) target = $region61
  $region60: #{seq2seq_forward.1} parent=0 // pred_region
    _
  $region61: #{seq2seq_forward.1} parent=0 // pred_fallthru
    _
  // Predicated region
  $region62: #{seq2seq_forward.1} parent=0 // pred_check
    _
  $region63: #{seq2seq_forward.1} parent=0 // pred_check_branch
    %55 = sbr.rel (0) target = $region65
  $region64: #{seq2seq_forward.1} parent=0 // pred_region
    _
  $region65: #{seq2seq_forward.1} parent=0 // pred_fallthru
    _
  // Predicated region
  $region66: #{seq2seq_forward.1} parent=0 // pred_check
    _
  $region67: #{seq2seq_forward.1} parent=0 // pred_check_branch
    %57 = sbr.rel (0) target = $region69
  $region68: #{seq2seq_forward.1} parent=0 // pred_region
    _
  $region69: #{seq2seq_forward.1} parent=0 // pred_fallthru
    _
  %v58 = vld [vmem:[%s1] sm:$0x3]
  %v59 = vld [vmem:[%s2] sm:$0xff]
  %v60 = vld [vmem:[%s2 + $0x8] sm:$0xff]
  %v61 = vld [vmem:[%s2 + $0x10] sm:$0xff]
  %v62 = vld [vmem:[%s2 + $0x18] sm:$0xff]
  %v63 = vld [vmem:[%s2 + $0x20] sm:$0xff]
  %v64 = vld [vmem:[%s2 + $0x28] sm:$0xff]
  %v65 = vld [vmem:[%s2 + $0x30] sm:$0xff]
  %v66 = vld [vmem:[%s2 + $0x38] sm:$0xff]
  %v67 = vld [vmem:[%s2 + $0x40] sm:$0xff]
  %v68 = vld [vmem:[%s2 + $0x48] sm:$0xff]
  %v69 = vld [vmem:[%s2 + $0x50] sm:$0xff]
  %v70 = vld [vmem:[%s2 + $0x58] sm:$0xff]
  %v71 = vld [vmem:[%s2 + $0x60] sm:$0xff]
  %v72 = vld [vmem:[%s2 + $0x68] sm:$0xff]
  %v73 = vld [vmem:[%s2 + $0x70] sm:$0xff]
  %v74 = vld [vmem:[%s2 + $0x78] sm:$0xff]
  %v75 = vld [vmem:[%s0] sm:$0xf]
  %vm76 = vcmask 523264
  %v78 = vsel %vm76, 0.0, 0
  %80 = vmatprep.subr.mxu0 %v60
  %81 = vmatpush1.msra.mxu0 %v59
  %82 = vmatprep.subr.mxu0 %v62
  %83 = vmatpush1.msra.mxu0 %v61
  %84 = vmatprep.subr.mxu0 %v64
  %85 = vmatpush1.msra.mxu0 %v63
  %86 = vmatprep.subr.mxu0 %v66
  %87 = vmatpush1.msra.mxu0 %v65
  %88 = vmatprep.subr.mxu0 %v68
  %89 = vmatpush1.msra.mxu0 %v67
  %90 = vmatprep.subr.mxu0 %v70
  %91 = vmatpush1.msra.mxu0 %v69
  %92 = vmatprep.subr.mxu0 %v72
  %93 = vmatpush1.msra.mxu0 %v71
  %94 = vmatprep.subr.mxu0 %v74
  %95 = vmatpush1.msra.mxu0 %v73
  %96 = vmatprep.subr.mxu0 0.0
  %97 = vmatpush1.msra.mxu0 0.0
  %98 = vmatprep.subr.mxu0 0.0
  %99 = vmatpush1.msra.mxu0 0.0
  %100 = vmatprep.subr.mxu0 0.0
  %101 = vmatpush1.msra.mxu0 0.0
  %102 = vmatprep.subr.mxu0 0.0
  %103 = vmatpush1.msra.mxu0 0.0
  %104 = vmatprep.subr.mxu0 0.0
  %105 = vmatpush1.msra.mxu0 0.0
  %106 = vmatprep.subr.mxu0 0.0
  %107 = vmatpush1.msra.mxu0 0.0
  %108 = vmatprep.subr.mxu0 0.0
  %109 = vmatpush1.msra.mxu0 0.0
  %110 = vmatprep.subr.mxu0 0.0
  %111 = vmatpush1.msra.mxu0 0.0
  %112 = vmatprep.subr.mxu0 0.0
  %113 = vmatpush1.msra.mxu0 0.0
  %114 = vmatprep.subr.mxu0 0.0
  %115 = vmatpush1.msra.mxu0 0.0
  %116 = vmatprep.subr.mxu0 0.0
  %117 = vmatpush1.msra.mxu0 0.0
  %118 = vmatprep.subr.mxu0 0.0
  %119 = vmatpush1.msra.mxu0 0.0
  %120 = vmatprep.subr.mxu0 0.0
  %121 = vmatpush1.msra.mxu0 0.0
  %122 = vmatprep.subr.mxu0 0.0
  %123 = vmatpush1.msra.mxu0 0.0
  %124 = vmatprep.subr.mxu0 0.0
  %125 = vmatpush1.msra.mxu0 0.0
  %126 = vmatprep.subr.mxu0 0.0
  %127 = vmatpush1.msra.mxu0 0.0
  %128 = vmatprep.subr.mxu0 0.0
  %129 = vmatpush1.msra.mxu0 0.0
  %130 = vmatprep.subr.mxu0 0.0
  %131 = vmatpush1.msra.mxu0 0.0
  %132 = vmatprep.subr.mxu0 0.0
  %133 = vmatpush1.msra.mxu0 0.0
  %134 = vmatprep.subr.mxu0 0.0
  %135 = vmatpush1.msra.mxu0 0.0
  %136 = vmatprep.subr.mxu0 0.0
  %137 = vmatpush1.msra.mxu0 0.0
  %138 = vmatprep.subr.mxu0 0.0
  %139 = vmatpush1.msra.mxu0 0.0
  %140 = vmatprep.subr.mxu0 0.0
  %141 = vmatpush1.msra.mxu0 0.0
  %142 = vmatprep.subr.mxu0 0.0
  %143 = vmatpush1.msra.mxu0 0.0
  %144 = vmatprep.mubr.f32.mxu0 0.0
  %145 = vmatmul.mubr.f32.gmra.mrb[0].mxu0 %v78
  %v146 = vpop.f32.mrb[0].mxu0
  %v147 = vadd.f32 0.0, %v146
  %v148 = vpop.f32.mrb[0].mxu0
  %v149 = vadd.f32 0.0, %v148
  %150 = vdwg.mxu0
  %v153 = vcombine.low %v147, %v149
  %v155 = vunpack.c.l.s4 1983009808
  %v156 = vunpack.c.0.s8 %v155
  %v157 = vlaneseq
  %v158 = vshrl.u32 %v157, 7
  %v159 = vsub.s32 %v156, %v158
  %v160 = vrot.slane %v153, %v159
  %v162 = vadd.f32 %v75, %v160
  %v163 = vxor.u32 %v162, 2147483648
  %v164 = vmul.f32 %v163, 1.442695
  %v165 = vpow.pop %v164
  %v166 = vadd.f32 %v165, 1.0
  %v167 = vrcp.pop %v166
  %v168 = vmul.f32 1.0, %v167
  %v170 = vrot.slane %v162, 2
  %v172 = vtanh.pop %v170
  %173 = vrot.lane.b32.xlu0 %v162, 64
  %v174 = vpop.permute.xlu0 %173
  %v175 = vrot.slane %v174, 2
  %v177 = vxor.u32 %v175, 2147483648
  %v178 = vmul.f32 %v177, 1.442695
  %v179 = vpow.pop %v178
  %v180 = vadd.f32 %v179, 1.0
  %v181 = vrcp.pop %v180
  %v182 = vmul.f32 1.0, %v181
  %v183 = vmul.f32 %v168, 0.0
  %v184 = vmul.f32 %v168, %v172
  %186 = vrot.lane.b32.xlu0 %v184, 64
  %v187 = vpop.permute.xlu0 %186
  %v189 = vadd.f32 %v183, %v187
  %v190 = vtanh.pop %v189
  %192 = vrot.lane.b32.xlu0 %v190, 64
  %v193 = vpop.permute.xlu0 %192
  %v195 = vmul.f32 %v182, %v193
  %197 = vset.pattern.permute.xlu0 0
  %198 = vperm.xlu0 %197, %v58
  %v199 = vpop.permute.xlu0 %198
  %201 = vset.pattern.permute.xlu0 7
  %202 = vperm.xlu0 %201, %v58
  %v203 = vpop.permute.xlu0 %202
  %vm205 = vcmask 261120
  %v206 = vsel %vm205, %v199, %v203
  %vm207 = vcmp.gt.f32.partialorder %v206, 0.0
  %v208 = vsel %vm207, %v195, 0.0
  %v211 = vunpack.c.l.s4 1983009808
  %v212 = vunpack.c.0.s8 %v211
  %v213 = vlaneseq
  %v214 = vshrl.u32 %v213, 7
  %v215 = vsub.s32 %v212, %v214
  %v216 = vrot.slane %v189, %v215
  %217 = vrot.lane.b32.xlu0 %v216, 64
  %v218 = vpop.permute.xlu0 %217
  %v220 = vsel %vm207, %v218, 0.0
  %vm221 = vcmp.gt.f32.partialorder %v58, 0.0
  %v222 = vsel %vm221, 1, 0
  %223 = vset.pattern.permute.xlu0 0
  %224 = vperm.xlu0 %223, %v222
  %v225 = vpop.permute.xlu0 %224
  %vm226 = vcmp.eq.s32.totalorder %v225, 1
  %v227 = vsel %vm226, %v208, 0.0
  %228 = vset.pattern.permute.xlu0 7
  %229 = vperm.xlu0 %228, %v222
  %v230 = vpop.permute.xlu0 %229
  %vm231 = vcmp.eq.s32.totalorder %v230, 1
  %v232 = vsel %vm231, %v208, 0.0
  %v235 = vunpack.c.l.s4 1966171168
  %v236 = vunpack.c.0.s8 %v235
  %v237 = vlaneseq
  %v238 = vshrl.u32 %v237, 7
  %v239 = vsub.s32 %v236, %v238
  %v240 = vrot.slane %v227, %v239
  %v241 = vcombine.high %v240, %v240
  %v243 = vunpack.c.l.s4 1966171168
  %v244 = vunpack.c.0.s8 %v243
  %v245 = vlaneseq
  %v246 = vshrl.u32 %v245, 7
  %v247 = vsub.s32 %v244, %v246
  %v248 = vrot.slane %v240, %v247
  %v250 = vunpack.c.l.s4 1966171168
  %v251 = vunpack.c.0.s8 %v250
  %v252 = vlaneseq
  %v253 = vshrl.u32 %v252, 7
  %v254 = vsub.s32 %v251, %v253
  %v255 = vrot.slane %v241, %v254
  %vm258 = vcmask 253952
  %259 = vst.msk [vmem:[#allocation2] sm:$0x1] %vm258, %v248
  %260 = vst.msk [vmem:[#allocation2 + $0x8] sm:$0x1] %vm258, %v255
  %v263 = vunpack.c.l.s4 1966171168
  %v264 = vunpack.c.0.s8 %v263
  %v265 = vlaneseq
  %v266 = vshrl.u32 %v265, 7
  %v267 = vsub.s32 %v264, %v266
  %v268 = vrot.slane %v232, %v267
  %v269 = vcombine.high %v268, %v268
  %v271 = vunpack.c.l.s4 1966171168
  %v272 = vunpack.c.0.s8 %v271
  %v273 = vlaneseq
  %v274 = vshrl.u32 %v273, 7
  %v275 = vsub.s32 %v272, %v274
  %v276 = vrot.slane %v268, %v275
  %v278 = vunpack.c.l.s4 1966171168
  %v279 = vunpack.c.0.s8 %v278
  %v280 = vlaneseq
  %v281 = vshrl.u32 %v280, 7
  %v282 = vsub.s32 %v279, %v281
  %v283 = vrot.slane %v269, %v282
  %vm286 = vcmask 516352
  %287 = vst.msk [vmem:[#allocation2 + $0x7] sm:$0x1] %vm286, %v276
  %288 = vst.msk [vmem:[#allocation2 + $0xf] sm:$0x1] %vm286, %v283
  %s289 = scalar_lea.vmem %s0, 4
  %v290 = vld [vmem:[%s289] sm:$0xf]
  %v292 = vsel %vm76, %v208, 0
  %294 = vmatprep.subr.mxu0 %v60
  %295 = vmatpush1.msra.mxu0 %v59
  %296 = vmatprep.subr.mxu0 %v62
  %297 = vmatpush1.msra.mxu0 %v61
  %298 = vmatprep.subr.mxu0 %v64
  %299 = vmatpush1.msra.mxu0 %v63
  %300 = vmatprep.subr.mxu0 %v66
  %301 = vmatpush1.msra.mxu0 %v65
  %302 = vmatprep.subr.mxu0 %v68
  %303 = vmatpush1.msra.mxu0 %v67
  %304 = vmatprep.subr.mxu0 %v70
  %305 = vmatpush1.msra.mxu0 %v69
  %306 = vmatprep.subr.mxu0 %v72
  %307 = vmatpush1.msra.mxu0 %v71
  %308 = vmatprep.subr.mxu0 %v74
  %309 = vmatpush1.msra.mxu0 %v73
  %310 = vmatprep.subr.mxu0 0.0
  %311 = vmatpush1.msra.mxu0 0.0
  %312 = vmatprep.subr.mxu0 0.0
  %313 = vmatpush1.msra.mxu0 0.0
  %314 = vmatprep.subr.mxu0 0.0
  %315 = vmatpush1.msra.mxu0 0.0
  %316 = vmatprep.subr.mxu0 0.0
  %317 = vmatpush1.msra.mxu0 0.0
  %318 = vmatprep.subr.mxu0 0.0
  %319 = vmatpush1.msra.mxu0 0.0
  %320 = vmatprep.subr.mxu0 0.0
  %321 = vmatpush1.msra.mxu0 0.0
  %322 = vmatprep.subr.mxu0 0.0
  %323 = vmatpush1.msra.mxu0 0.0
  %324 = vmatprep.subr.mxu0 0.0
  %325 = vmatpush1.msra.mxu0 0.0
  %326 = vmatprep.subr.mxu0 0.0
  %327 = vmatpush1.msra.mxu0 0.0
  %328 = vmatprep.subr.mxu0 0.0
  %329 = vmatpush1.msra.mxu0 0.0
  %330 = vmatprep.subr.mxu0 0.0
  %331 = vmatpush1.msra.mxu0 0.0
  %332 = vmatprep.subr.mxu0 0.0
  %333 = vmatpush1.msra.mxu0 0.0
  %334 = vmatprep.subr.mxu0 0.0
  %335 = vmatpush1.msra.mxu0 0.0
  %336 = vmatprep.subr.mxu0 0.0
  %337 = vmatpush1.msra.mxu0 0.0
  %338 = vmatprep.subr.mxu0 0.0
  %339 = vmatpush1.msra.mxu0 0.0
  %340 = vmatprep.subr.mxu0 0.0
  %341 = vmatpush1.msra.mxu0 0.0
  %342 = vmatprep.subr.mxu0 0.0
  %343 = vmatpush1.msra.mxu0 0.0
  %344 = vmatprep.subr.mxu0 0.0
  %345 = vmatpush1.msra.mxu0 0.0
  %346 = vmatprep.subr.mxu0 0.0
  %347 = vmatpush1.msra.mxu0 0.0
  %348 = vmatprep.subr.mxu0 0.0
  %349 = vmatpush1.msra.mxu0 0.0
  %350 = vmatprep.subr.mxu0 0.0
  %351 = vmatpush1.msra.mxu0 0.0
  %352 = vmatprep.subr.mxu0 0.0
  %353 = vmatpush1.msra.mxu0 0.0
  %354 = vmatprep.subr.mxu0 0.0
  %355 = vmatpush1.msra.mxu0 0.0
  %356 = vmatprep.subr.mxu0 0.0
  %357 = vmatpush1.msra.mxu0 0.0
  %358 = vmatprep.mubr.f32.mxu0 0.0
  %359 = vmatmul.mubr.f32.gmra.mrb[0].mxu0 %v292
  %v360 = vpop.f32.mrb[0].mxu0
  %v361 = vadd.f32 0.0, %v360
  %v362 = vpop.f32.mrb[0].mxu0
  %v363 = vadd.f32 0.0, %v362
  %364 = vdwg.mxu0
  %v367 = vcombine.low %v361, %v363
  %v369 = vunpack.c.l.s4 1983009808
  %v370 = vunpack.c.0.s8 %v369
  %v371 = vlaneseq
  %v372 = vshrl.u32 %v371, 7
  %v373 = vsub.s32 %v370, %v372
  %v374 = vrot.slane %v367, %v373
  %v376 = vadd.f32 %v290, %v374
  %v377 = vxor.u32 %v376, 2147483648
  %v378 = vmul.f32 %v377, 1.442695
  %v379 = vpow.pop %v378
  %v380 = vadd.f32 %v379, 1.0
  %v381 = vrcp.pop %v380
  %v382 = vmul.f32 1.0, %v381
  %v384 = vrot.slane %v376, 2
  %v386 = vtanh.pop %v384
  %387 = vrot.lane.b32.xlu0 %v376, 64
  %v388 = vpop.permute.xlu0 %387
  %v389 = vrot.slane %v388, 2
  %v391 = vxor.u32 %v389, 2147483648
  %v392 = vmul.f32 %v391, 1.442695
  %v393 = vpow.pop %v392
  %v394 = vadd.f32 %v393, 1.0
  %v395 = vrcp.pop %v394
  %v396 = vmul.f32 1.0, %v395
  %v399 = vunpack.c.l.s4 1983009808
  %v400 = vunpack.c.0.s8 %v399
  %v401 = vlaneseq
  %v402 = vshrl.u32 %v401, 7
  %v403 = vsub.s32 %v400, %v402
  %v404 = vrot.slane %v220, %v403
  %405 = vrot.lane.b32.xlu0 %v404, 64
  %v406 = vpop.permute.xlu0 %405
  %v408 = vmul.f32 %v382, %v406
  %v409 = vmul.f32 %v382, %v386
  %411 = vrot.lane.b32.xlu0 %v409, 64
  %v412 = vpop.permute.xlu0 %411
  %v414 = vadd.f32 %v408, %v412
  %v415 = vtanh.pop %v414
  %417 = vrot.lane.b32.xlu0 %v415, 64
  %v418 = vpop.permute.xlu0 %417
  %v420 = vmul.f32 %v396, %v418
  %421 = vset.pattern.permute.xlu0 1
  %422 = vperm.xlu0 %421, %v58
  %v423 = vpop.permute.xlu0 %422
  %425 = vset.pattern.permute.xlu0 6
  %426 = vperm.xlu0 %425, %v58
  %v427 = vpop.permute.xlu0 %426
  %v429 = vsel %vm205, %v423, %v427
  %vm430 = vcmp.gt.f32.partialorder %v429, 0.0
  %v431 = vsel %vm430, %v420, %v208
  %v434 = vunpack.c.l.s4 1983009808
  %v435 = vunpack.c.0.s8 %v434
  %v436 = vlaneseq
  %v437 = vshrl.u32 %v436, 7
  %v438 = vsub.s32 %v435, %v437
  %v439 = vrot.slane %v414, %v438
  %440 = vrot.lane.b32.xlu0 %v439, 64
  %v441 = vpop.permute.xlu0 %440
  %v443 = vsel %vm430, %v441, %v220
  %444 = vset.pattern.permute.xlu0 1
  %445 = vperm.xlu0 %444, %v222
  %v446 = vpop.permute.xlu0 %445
  %vm447 = vcmp.eq.s32.totalorder %v446, 1
  %v448 = vsel %vm447, %v431, 0.0
  %449 = vset.pattern.permute.xlu0 6
  %450 = vperm.xlu0 %449, %v222
  %v451 = vpop.permute.xlu0 %450
  %vm452 = vcmp.eq.s32.totalorder %v451, 1
  %v453 = vsel %vm452, %v431, 0.0
  %v456 = vunpack.c.l.s4 1966171168
  %v457 = vunpack.c.0.s8 %v456
  %v458 = vlaneseq
  %v459 = vshrl.u32 %v458, 7
  %v460 = vsub.s32 %v457, %v459
  %v461 = vrot.slane %v448, %v460
  %v462 = vcombine.high %v461, %v461
  %v464 = vunpack.c.l.s4 1966171168
  %v465 = vunpack.c.0.s8 %v464
  %v466 = vlaneseq
  %v467 = vshrl.u32 %v466, 7
  %v468 = vsub.s32 %v465, %v467
  %v469 = vrot.slane %v461, %v468
  %v471 = vunpack.c.l.s4 1966171168
  %v472 = vunpack.c.0.s8 %v471
  %v473 = vlaneseq
  %v474 = vshrl.u32 %v473, 7
  %v475 = vsub.s32 %v472, %v474
  %v476 = vrot.slane %v462, %v475
  %479 = vst.msk [vmem:[#allocation2 + $0x1] sm:$0x1] %vm258, %v469
  %480 = vst.msk [vmem:[#allocation2 + $0x9] sm:$0x1] %vm258, %v476
  %v483 = vunpack.c.l.s4 1966171168
  %v484 = vunpack.c.0.s8 %v483
  %v485 = vlaneseq
  %v486 = vshrl.u32 %v485, 7
  %v487 = vsub.s32 %v484, %v486
  %v488 = vrot.slane %v453, %v487
  %v489 = vcombine.high %v488, %v488
  %v491 = vunpack.c.l.s4 1966171168
  %v492 = vunpack.c.0.s8 %v491
  %v493 = vlaneseq
  %v494 = vshrl.u32 %v493, 7
  %v495 = vsub.s32 %v492, %v494
  %v496 = vrot.slane %v488, %v495
  %v498 = vunpack.c.l.s4 1966171168
  %v499 = vunpack.c.0.s8 %v498
  %v500 = vlaneseq
  %v501 = vshrl.u32 %v500, 7
  %v502 = vsub.s32 %v499, %v501
  %v503 = vrot.slane %v489, %v502
  %506 = vst.msk [vmem:[#allocation2 + $0x6] sm:$0x1] %vm286, %v496
  %507 = vst.msk [vmem:[#allocation2 + $0xe] sm:$0x1] %vm286, %v503
  %s508 = scalar_lea.vmem %s0, 8
  %v509 = vld [vmem:[%s508] sm:$0xf]
  %v511 = vsel %vm76, %v431, 0
  %513 = vmatprep.subr.mxu0 %v60
  %514 = vmatpush1.msra.mxu0 %v59
  %515 = vmatprep.subr.mxu0 %v62
  %516 = vmatpush1.msra.mxu0 %v61
  %517 = vmatprep.subr.mxu0 %v64
  %518 = vmatpush1.msra.mxu0 %v63
  %519 = vmatprep.subr.mxu0 %v66
  %520 = vmatpush1.msra.mxu0 %v65
  %521 = vmatprep.subr.mxu0 %v68
  %522 = vmatpush1.msra.mxu0 %v67
  %523 = vmatprep.subr.mxu0 %v70
  %524 = vmatpush1.msra.mxu0 %v69
  %525 = vmatprep.subr.mxu0 %v72
  %526 = vmatpush1.msra.mxu0 %v71
  %527 = vmatprep.subr.mxu0 %v74
  %528 = vmatpush1.msra.mxu0 %v73
  %529 = vmatprep.subr.mxu0 0.0
  %530 = vmatpush1.msra.mxu0 0.0
  %531 = vmatprep.subr.mxu0 0.0
  %532 = vmatpush1.msra.mxu0 0.0
  %533 = vmatprep.subr.mxu0 0.0
  %534 = vmatpush1.msra.mxu0 0.0
  %535 = vmatprep.subr.mxu0 0.0
  %536 = vmatpush1.msra.mxu0 0.0
  %537 = vmatprep.subr.mxu0 0.0
  %538 = vmatpush1.msra.mxu0 0.0
  %539 = vmatprep.subr.mxu0 0.0
  %540 = vmatpush1.msra.mxu0 0.0
  %541 = vmatprep.subr.mxu0 0.0
  %542 = vmatpush1.msra.mxu0 0.0
  %543 = vmatprep.subr.mxu0 0.0
  %544 = vmatpush1.msra.mxu0 0.0
  %545 = vmatprep.subr.mxu0 0.0
  %546 = vmatpush1.msra.mxu0 0.0
  %547 = vmatprep.subr.mxu0 0.0
  %548 = vmatpush1.msra.mxu0 0.0
  %549 = vmatprep.subr.mxu0 0.0
  %550 = vmatpush1.msra.mxu0 0.0
  %551 = vmatprep.subr.mxu0 0.0
  %552 = vmatpush1.msra.mxu0 0.0
  %553 = vmatprep.subr.mxu0 0.0
  %554 = vmatpush1.msra.mxu0 0.0
  %555 = vmatprep.subr.mxu0 0.0
  %556 = vmatpush1.msra.mxu0 0.0
  %557 = vmatprep.subr.mxu0 0.0
  %558 = vmatpush1.msra.mxu0 0.0
  %559 = vmatprep.subr.mxu0 0.0
  %560 = vmatpush1.msra.mxu0 0.0
  %561 = vmatprep.subr.mxu0 0.0
  %562 = vmatpush1.msra.mxu0 0.0
  %563 = vmatprep.subr.mxu0 0.0
  %564 = vmatpush1.msra.mxu0 0.0
  %565 = vmatprep.subr.mxu0 0.0
  %566 = vmatpush1.msra.mxu0 0.0
  %567 = vmatprep.subr.mxu0 0.0
  %568 = vmatpush1.msra.mxu0 0.0
  %569 = vmatprep.subr.mxu0 0.0
  %570 = vmatpush1.msra.mxu0 0.0
  %571 = vmatprep.subr.mxu0 0.0
  %572 = vmatpush1.msra.mxu0 0.0
  %573 = vmatprep.subr.mxu0 0.0
  %574 = vmatpush1.msra.mxu0 0.0
  %575 = vmatprep.subr.mxu0 0.0
  %576 = vmatpush1.msra.mxu0 0.0
  %577 = vmatprep.mubr.f32.mxu0 0.0
  %578 = vmatmul.mubr.f32.gmra.mrb[0].mxu0 %v511
  %v579 = vpop.f32.mrb[0].mxu0
  %v580 = vadd.f32 0.0, %v579
  %v581 = vpop.f32.mrb[0].mxu0
  %v582 = vadd.f32 0.0, %v581
  %583 = vdwg.mxu0
  %v586 = vcombine.low %v580, %v582
  %v588 = vunpack.c.l.s4 1983009808
  %v589 = vunpack.c.0.s8 %v588
  %v590 = vlaneseq
  %v591 = vshrl.u32 %v590, 7
  %v592 = vsub.s32 %v589, %v591
  %v593 = vrot.slane %v586, %v592
  %v595 = vadd.f32 %v509, %v593
  %v596 = vxor.u32 %v595, 2147483648
  %v597 = vmul.f32 %v596, 1.442695
  %v598 = vpow.pop %v597
  %v599 = vadd.f32 %v598, 1.0
  %v600 = vrcp.pop %v599
  %v601 = vmul.f32 1.0, %v600
  %v603 = vrot.slane %v595, 2
  %v605 = vtanh.pop %v603
  %606 = vrot.lane.b32.xlu0 %v595, 64
  %v607 = vpop.permute.xlu0 %606
  %v608 = vrot.slane %v607, 2
  %v610 = vxor.u32 %v608, 2147483648
  %v611 = vmul.f32 %v610, 1.442695
  %v612 = vpow.pop %v611
  %v613 = vadd.f32 %v612, 1.0
  %v614 = vrcp.pop %v613
  %v615 = vmul.f32 1.0, %v614
  %v618 = vunpack.c.l.s4 1983009808
  %v619 = vunpack.c.0.s8 %v618
  %v620 = vlaneseq
  %v621 = vshrl.u32 %v620, 7
  %v622 = vsub.s32 %v619, %v621
  %v623 = vrot.slane %v443, %v622
  %624 = vrot.lane.b32.xlu0 %v623, 64
  %v625 = vpop.permute.xlu0 %624
  %v627 = vmul.f32 %v601, %v625
  %v628 = vmul.f32 %v601, %v605
  %630 = vrot.lane.b32.xlu0 %v628, 64
  %v631 = vpop.permute.xlu0 %630
  %v633 = vadd.f32 %v627, %v631
  %v634 = vtanh.pop %v633
  %636 = vrot.lane.b32.xlu0 %v634, 64
  %v637 = vpop.permute.xlu0 %636
  %v639 = vmul.f32 %v615, %v637
  %640 = vset.pattern.permute.xlu0 2
  %641 = vperm.xlu0 %640, %v58
  %v642 = vpop.permute.xlu0 %641
  %644 = vset.pattern.permute.xlu0 5
  %645 = vperm.xlu0 %644, %v58
  %v646 = vpop.permute.xlu0 %645
  %v648 = vsel %vm205, %v642, %v646
  %vm649 = vcmp.gt.f32.partialorder %v648, 0.0
  %v650 = vsel %vm649, %v639, %v431
  %v653 = vunpack.c.l.s4 1983009808
  %v654 = vunpack.c.0.s8 %v653
  %v655 = vlaneseq
  %v656 = vshrl.u32 %v655, 7
  %v657 = vsub.s32 %v654, %v656
  %v658 = vrot.slane %v633, %v657
  %659 = vrot.lane.b32.xlu0 %v658, 64
  %v660 = vpop.permute.xlu0 %659
  %v662 = vsel %vm649, %v660, %v443
  %663 = vset.pattern.permute.xlu0 2
  %664 = vperm.xlu0 %663, %v222
  %v665 = vpop.permute.xlu0 %664
  %vm666 = vcmp.eq.s32.totalorder %v665, 1
  %v667 = vsel %vm666, %v650, 0.0
  %668 = vset.pattern.permute.xlu0 5
  %669 = vperm.xlu0 %668, %v222
  %v670 = vpop.permute.xlu0 %669
  %vm671 = vcmp.eq.s32.totalorder %v670, 1
  %v672 = vsel %vm671, %v650, 0.0
  %v675 = vunpack.c.l.s4 1966171168
  %v676 = vunpack.c.0.s8 %v675
  %v677 = vlaneseq
  %v678 = vshrl.u32 %v677, 7
  %v679 = vsub.s32 %v676, %v678
  %v680 = vrot.slane %v667, %v679
  %v681 = vcombine.high %v680, %v680
  %v683 = vunpack.c.l.s4 1966171168
  %v684 = vunpack.c.0.s8 %v683
  %v685 = vlaneseq
  %v686 = vshrl.u32 %v685, 7
  %v687 = vsub.s32 %v684, %v686
  %v688 = vrot.slane %v680, %v687
  %v690 = vunpack.c.l.s4 1966171168
  %v691 = vunpack.c.0.s8 %v690
  %v692 = vlaneseq
  %v693 = vshrl.u32 %v692, 7
  %v694 = vsub.s32 %v691, %v693
  %v695 = vrot.slane %v681, %v694
  %698 = vst.msk [vmem:[#allocation2 + $0x2] sm:$0x1] %vm258, %v688
  %699 = vst.msk [vmem:[#allocation2 + $0xa] sm:$0x1] %vm258, %v695
  %v702 = vunpack.c.l.s4 1966171168
  %v703 = vunpack.c.0.s8 %v702
  %v704 = vlaneseq
  %v705 = vshrl.u32 %v704, 7
  %v706 = vsub.s32 %v703, %v705
  %v707 = vrot.slane %v672, %v706
  %v708 = vcombine.high %v707, %v707
  %v710 = vunpack.c.l.s4 1966171168
  %v711 = vunpack.c.0.s8 %v710
  %v712 = vlaneseq
  %v713 = vshrl.u32 %v712, 7
  %v714 = vsub.s32 %v711, %v713
  %v715 = vrot.slane %v707, %v714
  %v717 = vunpack.c.l.s4 1966171168
  %v718 = vunpack.c.0.s8 %v717
  %v719 = vlaneseq
  %v720 = vshrl.u32 %v719, 7
  %v721 = vsub.s32 %v718, %v720
  %v722 = vrot.slane %v708, %v721
  %725 = vst.msk [vmem:[#allocation2 + $0x5] sm:$0x1] %vm286, %v715
  %726 = vst.msk [vmem:[#allocation2 + $0xd] sm:$0x1] %vm286, %v722
  %s727 = scalar_lea.vmem %s0, 12
  %v728 = vld [vmem:[%s727] sm:$0xf]
  %v730 = vsel %vm76, %v650, 0
  %732 = vmatprep.subr.mxu0 %v60
  %733 = vmatpush1.msra.mxu0 %v59
  %734 = vmatprep.subr.mxu0 %v62
  %735 = vmatpush1.msra.mxu0 %v61
  %736 = vmatprep.subr.mxu0 %v64
  %737 = vmatpush1.msra.mxu0 %v63
  %738 = vmatprep.subr.mxu0 %v66
  %739 = vmatpush1.msra.mxu0 %v65
  %740 = vmatprep.subr.mxu0 %v68
  %741 = vmatpush1.msra.mxu0 %v67
  %742 = vmatprep.subr.mxu0 %v70
  %743 = vmatpush1.msra.mxu0 %v69
  %744 = vmatprep.subr.mxu0 %v72
  %745 = vmatpush1.msra.mxu0 %v71
  %746 = vmatprep.subr.mxu0 %v74
  %747 = vmatpush1.msra.mxu0 %v73
  %748 = vmatprep.subr.mxu0 0.0
  %749 = vmatpush1.msra.mxu0 0.0
  %750 = vmatprep.subr.mxu0 0.0
  %751 = vmatpush1.msra.mxu0 0.0
  %752 = vmatprep.subr.mxu0 0.0
  %753 = vmatpush1.msra.mxu0 0.0
  %754 = vmatprep.subr.mxu0 0.0
  %755 = vmatpush1.msra.mxu0 0.0
  %756 = vmatprep.subr.mxu0 0.0
  %757 = vmatpush1.msra.mxu0 0.0
  %758 = vmatprep.subr.mxu0 0.0
  %759 = vmatpush1.msra.mxu0 0.0
  %760 = vmatprep.subr.mxu0 0.0
  %761 = vmatpush1.msra.mxu0 0.0
  %762 = vmatprep.subr.mxu0 0.0
  %763 = vmatpush1.msra.mxu0 0.0
  %764 = vmatprep.subr.mxu0 0.0
  %765 = vmatpush1.msra.mxu0 0.0
  %766 = vmatprep.subr.mxu0 0.0
  %767 = vmatpush1.msra.mxu0 0.0
  %768 = vmatprep.subr.mxu0 0.0
  %769 = vmatpush1.msra.mxu0 0.0
  %770 = vmatprep.subr.mxu0 0.0
  %771 = vmatpush1.msra.mxu0 0.0
  %772 = vmatprep.subr.mxu0 0.0
  %773 = vmatpush1.msra.mxu0 0.0
  %774 = vmatprep.subr.mxu0 0.0
  %775 = vmatpush1.msra.mxu0 0.0
  %776 = vmatprep.subr.mxu0 0.0
  %777 = vmatpush1.msra.mxu0 0.0
  %778 = vmatprep.subr.mxu0 0.0
  %779 = vmatpush1.msra.mxu0 0.0
  %780 = vmatprep.subr.mxu0 0.0
  %781 = vmatpush1.msra.mxu0 0.0
  %782 = vmatprep.subr.mxu0 0.0
  %783 = vmatpush1.msra.mxu0 0.0
  %784 = vmatprep.subr.mxu0 0.0
  %785 = vmatpush1.msra.mxu0 0.0
  %786 = vmatprep.subr.mxu0 0.0
  %787 = vmatpush1.msra.mxu0 0.0
  %788 = vmatprep.subr.mxu0 0.0
  %789 = vmatpush1.msra.mxu0 0.0
  %790 = vmatprep.subr.mxu0 0.0
  %791 = vmatpush1.msra.mxu0 0.0
  %792 = vmatprep.subr.mxu0 0.0
  %793 = vmatpush1.msra.mxu0 0.0
  %794 = vmatprep.subr.mxu0 0.0
  %795 = vmatpush1.msra.mxu0 0.0
  %796 = vmatprep.mubr.f32.mxu0 0.0
  %797 = vmatmul.mubr.f32.gmra.mrb[0].mxu0 %v730
  %v798 = vpop.f32.mrb[0].mxu0
  %v799 = vadd.f32 0.0, %v798
  %v800 = vpop.f32.mrb[0].mxu0
  %v801 = vadd.f32 0.0, %v800
  %802 = vdwg.mxu0
  %v805 = vcombine.low %v799, %v801
  %v807 = vunpack.c.l.s4 1983009808
  %v808 = vunpack.c.0.s8 %v807
  %v809 = vlaneseq
  %v810 = vshrl.u32 %v809, 7
  %v811 = vsub.s32 %v808, %v810
  %v812 = vrot.slane %v805, %v811
  %v814 = vadd.f32 %v728, %v812
  %v815 = vxor.u32 %v814, 2147483648
  %v816 = vmul.f32 %v815, 1.442695
  %v817 = vpow.pop %v816
  %v818 = vadd.f32 %v817, 1.0
  %v819 = vrcp.pop %v818
  %v820 = vmul.f32 1.0, %v819
  %v822 = vrot.slane %v814, 2
  %v824 = vtanh.pop %v822
  %825 = vrot.lane.b32.xlu0 %v814, 64
  %v826 = vpop.permute.xlu0 %825
  %v827 = vrot.slane %v826, 2
  %v829 = vxor.u32 %v827, 2147483648
  %v830 = vmul.f32 %v829, 1.442695
  %v831 = vpow.pop %v830
  %v832 = vadd.f32 %v831, 1.0
  %v833 = vrcp.pop %v832
  %v834 = vmul.f32 1.0, %v833
  %v837 = vunpack.c.l.s4 1983009808
  %v838 = vunpack.c.0.s8 %v837
  %v839 = vlaneseq
  %v840 = vshrl.u32 %v839, 7
  %v841 = vsub.s32 %v838, %v840
  %v842 = vrot.slane %v662, %v841
  %843 = vrot.lane.b32.xlu0 %v842, 64
  %v844 = vpop.permute.xlu0 %843
  %v846 = vmul.f32 %v820, %v844
  %v847 = vmul.f32 %v820, %v824
  %849 = vrot.lane.b32.xlu0 %v847, 64
  %v850 = vpop.permute.xlu0 %849
  %v852 = vadd.f32 %v846, %v850
  %v853 = vtanh.pop %v852
  %855 = vrot.lane.b32.xlu0 %v853, 64
  %v856 = vpop.permute.xlu0 %855
  %v858 = vmul.f32 %v834, %v856
  %859 = vset.pattern.permute.xlu0 3
  %860 = vperm.xlu0 %859, %v58
  %v861 = vpop.permute.xlu0 %860
  %863 = vset.pattern.permute.xlu0 4
  %864 = vperm.xlu0 %863, %v58
  %v865 = vpop.permute.xlu0 %864
  %v867 = vsel %vm205, %v861, %v865
  %vm868 = vcmp.gt.f32.partialorder %v867, 0.0
  %v869 = vsel %vm868, %v858, %v650
  %v872 = vunpack.c.l.s4 1983009808
  %v873 = vunpack.c.0.s8 %v872
  %v874 = vlaneseq
  %v875 = vshrl.u32 %v874, 7
  %v876 = vsub.s32 %v873, %v875
  %v877 = vrot.slane %v852, %v876
  %878 = vrot.lane.b32.xlu0 %v877, 64
  %v879 = vpop.permute.xlu0 %878
  %v881 = vsel %vm868, %v879, %v662
  %882 = vset.pattern.permute.xlu0 3
  %883 = vperm.xlu0 %882, %v222
  %v884 = vpop.permute.xlu0 %883
  %vm885 = vcmp.eq.s32.totalorder %v884, 1
  %v886 = vsel %vm885, %v869, 0.0
  %887 = vset.pattern.permute.xlu0 4
  %888 = vperm.xlu0 %887, %v222
  %v889 = vpop.permute.xlu0 %888
  %vm890 = vcmp.eq.s32.totalorder %v889, 1
  %v891 = vsel %vm890, %v869, 0.0
  %v894 = vunpack.c.l.s4 1966171168
  %v895 = vunpack.c.0.s8 %v894
  %v896 = vlaneseq
  %v897 = vshrl.u32 %v896, 7
  %v898 = vsub.s32 %v895, %v897
  %v899 = vrot.slane %v886, %v898
  %v900 = vcombine.high %v899, %v899
  %v902 = vunpack.c.l.s4 1966171168
  %v903 = vunpack.c.0.s8 %v902
  %v904 = vlaneseq
  %v905 = vshrl.u32 %v904, 7
  %v906 = vsub.s32 %v903, %v905
  %v907 = vrot.slane %v899, %v906
  %v909 = vunpack.c.l.s4 1966171168
  %v910 = vunpack.c.0.s8 %v909
  %v911 = vlaneseq
  %v912 = vshrl.u32 %v911, 7
  %v913 = vsub.s32 %v910, %v912
  %v914 = vrot.slane %v900, %v913
  %917 = vst.msk [vmem:[#allocation2 + $0x3] sm:$0x1] %vm258, %v907
  %918 = vst.msk [vmem:[#allocation2 + $0xb] sm:$0x1] %vm258, %v914
  %v921 = vunpack.c.l.s4 1966171168
  %v922 = vunpack.c.0.s8 %v921
  %v923 = vlaneseq
  %v924 = vshrl.u32 %v923, 7
  %v925 = vsub.s32 %v922, %v924
  %v926 = vrot.slane %v891, %v925
  %v927 = vcombine.high %v926, %v926
  %v929 = vunpack.c.l.s4 1966171168
  %v930 = vunpack.c.0.s8 %v929
  %v931 = vlaneseq
  %v932 = vshrl.u32 %v931, 7
  %v933 = vsub.s32 %v930, %v932
  %v934 = vrot.slane %v926, %v933
  %v936 = vunpack.c.l.s4 1966171168
  %v937 = vunpack.c.0.s8 %v936
  %v938 = vlaneseq
  %v939 = vshrl.u32 %v938, 7
  %v940 = vsub.s32 %v937, %v939
  %v941 = vrot.slane %v927, %v940
  %944 = vst.msk [vmem:[#allocation2 + $0x4] sm:$0x1] %vm286, %v934
  %945 = vst.msk [vmem:[#allocation2 + $0xc] sm:$0x1] %vm286, %v941
  %s946 = scalar_lea.vmem %s0, 16
  %v947 = vld [vmem:[%s946] sm:$0xf]
  %v949 = vsel %vm76, %v869, 0
  %951 = vmatprep.subr.mxu0 %v60
  %952 = vmatpush1.msra.mxu0 %v59
  %953 = vmatprep.subr.mxu0 %v62
  %954 = vmatpush1.msra.mxu0 %v61
  %955 = vmatprep.subr.mxu0 %v64
  %956 = vmatpush1.msra.mxu0 %v63
  %957 = vmatprep.subr.mxu0 %v66
  %958 = vmatpush1.msra.mxu0 %v65
  %959 = vmatprep.subr.mxu0 %v68
  %960 = vmatpush1.msra.mxu0 %v67
  %961 = vmatprep.subr.mxu0 %v70
  %962 = vmatpush1.msra.mxu0 %v69
  %963 = vmatprep.subr.mxu0 %v72
  %964 = vmatpush1.msra.mxu0 %v71
  %965 = vmatprep.subr.mxu0 %v74
  %966 = vmatpush1.msra.mxu0 %v73
  %967 = vmatprep.subr.mxu0 0.0
  %968 = vmatpush1.msra.mxu0 0.0
  %969 = vmatprep.subr.mxu0 0.0
  %970 = vmatpush1.msra.mxu0 0.0
  %971 = vmatprep.subr.mxu0 0.0
  %972 = vmatpush1.msra.mxu0 0.0
  %973 = vmatprep.subr.mxu0 0.0
  %974 = vmatpush1.msra.mxu0 0.0
  %975 = vmatprep.subr.mxu0 0.0
  %976 = vmatpush1.msra.mxu0 0.0
  %977 = vmatprep.subr.mxu0 0.0
  %978 = vmatpush1.msra.mxu0 0.0
  %979 = vmatprep.subr.mxu0 0.0
  %980 = vmatpush1.msra.mxu0 0.0
  %981 = vmatprep.subr.mxu0 0.0
  %982 = vmatpush1.msra.mxu0 0.0
  %983 = vmatprep.subr.mxu0 0.0
  %984 = vmatpush1.msra.mxu0 0.0
  %985 = vmatprep.subr.mxu0 0.0
  %986 = vmatpush1.msra.mxu0 0.0
  %987 = vmatprep.subr.mxu0 0.0
  %988 = vmatpush1.msra.mxu0 0.0
  %989 = vmatprep.subr.mxu0 0.0
  %990 = vmatpush1.msra.mxu0 0.0
  %991 = vmatprep.subr.mxu0 0.0
  %992 = vmatpush1.msra.mxu0 0.0
  %993 = vmatprep.subr.mxu0 0.0
  %994 = vmatpush1.msra.mxu0 0.0
  %995 = vmatprep.subr.mxu0 0.0
  %996 = vmatpush1.msra.mxu0 0.0
  %997 = vmatprep.subr.mxu0 0.0
  %998 = vmatpush1.msra.mxu0 0.0
  %999 = vmatprep.subr.mxu0 0.0
  %1000 = vmatpush1.msra.mxu0 0.0
  %1001 = vmatprep.subr.mxu0 0.0
  %1002 = vmatpush1.msra.mxu0 0.0
  %1003 = vmatprep.subr.mxu0 0.0
  %1004 = vmatpush1.msra.mxu0 0.0
  %1005 = vmatprep.subr.mxu0 0.0
  %1006 = vmatpush1.msra.mxu0 0.0
  %1007 = vmatprep.subr.mxu0 0.0
  %1008 = vmatpush1.msra.mxu0 0.0
  %1009 = vmatprep.subr.mxu0 0.0
  %1010 = vmatpush1.msra.mxu0 0.0
  %1011 = vmatprep.subr.mxu0 0.0
  %1012 = vmatpush1.msra.mxu0 0.0
  %1013 = vmatprep.subr.mxu0 0.0
  %1014 = vmatpush1.msra.mxu0 0.0
  %1015 = vmatprep.mubr.f32.mxu0 0.0
  %1016 = vmatmul.mubr.f32.gmra.mrb[0].mxu0 %v949
  %v1017 = vpop.f32.mrb[0].mxu0
  %v1018 = vadd.f32 0.0, %v1017
  %v1019 = vpop.f32.mrb[0].mxu0
  %v1020 = vadd.f32 0.0, %v1019
  %1021 = vdwg.mxu0
  %v1024 = vcombine.low %v1018, %v1020
  %v1026 = vunpack.c.l.s4 1983009808
  %v1027 = vunpack.c.0.s8 %v1026
  %v1028 = vlaneseq
  %v1029 = vshrl.u32 %v1028, 7
  %v1030 = vsub.s32 %v1027, %v1029
  %v1031 = vrot.slane %v1024, %v1030
  %v1033 = vadd.f32 %v947, %v1031
  %v1034 = vxor.u32 %v1033, 2147483648
  %v1035 = vmul.f32 %v1034, 1.442695
  %v1036 = vpow.pop %v1035
  %v1037 = vadd.f32 %v1036, 1.0
  %v1038 = vrcp.pop %v1037
  %v1039 = vmul.f32 1.0, %v1038
  %v1041 = vrot.slane %v1033, 2
  %v1043 = vtanh.pop %v1041
  %1044 = vrot.lane.b32.xlu0 %v1033, 64
  %v1045 = vpop.permute.xlu0 %1044
  %v1046 = vrot.slane %v1045, 2
  %v1048 = vxor.u32 %v1046, 2147483648
  %v1049 = vmul.f32 %v1048, 1.442695
  %v1050 = vpow.pop %v1049
  %v1051 = vadd.f32 %v1050, 1.0
  %v1052 = vrcp.pop %v1051
  %v1053 = vmul.f32 1.0, %v1052
  %v1056 = vunpack.c.l.s4 1983009808
  %v1057 = vunpack.c.0.s8 %v1056
  %v1058 = vlaneseq
  %v1059 = vshrl.u32 %v1058, 7
  %v1060 = vsub.s32 %v1057, %v1059
  %v1061 = vrot.slane %v881, %v1060
  %1062 = vrot.lane.b32.xlu0 %v1061, 64
  %v1063 = vpop.permute.xlu0 %1062
  %v1065 = vmul.f32 %v1039, %v1063
  %v1066 = vmul.f32 %v1039, %v1043
  %1068 = vrot.lane.b32.xlu0 %v1066, 64
  %v1069 = vpop.permute.xlu0 %1068
  %v1071 = vadd.f32 %v1065, %v1069
  %v1072 = vtanh.pop %v1071
  %1074 = vrot.lane.b32.xlu0 %v1072, 64
  %v1075 = vpop.permute.xlu0 %1074
  %v1077 = vmul.f32 %v1053, %v1075
  %v1078 = vsel %vm205, %v865, %v861
  %vm1079 = vcmp.gt.f32.partialorder %v1078, 0.0
  %v1080 = vsel %vm1079, %v1077, %v869
  %v1083 = vunpack.c.l.s4 1983009808
  %v1084 = vunpack.c.0.s8 %v1083
  %v1085 = vlaneseq
  %v1086 = vshrl.u32 %v1085, 7
  %v1087 = vsub.s32 %v1084, %v1086
  %v1088 = vrot.slane %v1071, %v1087
  %1089 = vrot.lane.b32.xlu0 %v1088, 64
  %v1090 = vpop.permute.xlu0 %1089
  %v1092 = vsel %vm1079, %v1090, %v881
  %v1093 = vsel %vm890, %v1080, 0.0
  %v1094 = vsel %vm885, %v1080, 0.0
  %v1097 = vunpack.c.l.s4 1966171168
  %v1098 = vunpack.c.0.s8 %v1097
  %v1099 = vlaneseq
  %v1100 = vshrl.u32 %v1099, 7
  %v1101 = vsub.s32 %v1098, %v1100
  %v1102 = vrot.slane %v1093, %v1101
  %v1103 = vcombine.high %v1102, %v1102
  %v1105 = vunpack.c.l.s4 1966171168
  %v1106 = vunpack.c.0.s8 %v1105
  %v1107 = vlaneseq
  %v1108 = vshrl.u32 %v1107, 7
  %v1109 = vsub.s32 %v1106, %v1108
  %v1110 = vrot.slane %v1102, %v1109
  %v1112 = vunpack.c.l.s4 1966171168
  %v1113 = vunpack.c.0.s8 %v1112
  %v1114 = vlaneseq
  %v1115 = vshrl.u32 %v1114, 7
  %v1116 = vsub.s32 %v1113, %v1115
  %v1117 = vrot.slane %v1103, %v1116
  %1120 = vst.msk [vmem:[#allocation2 + $0x4] sm:$0x1] %vm258, %v1110
  %1121 = vst.msk [vmem:[#allocation2 + $0xc] sm:$0x1] %vm258, %v1117
  %v1124 = vunpack.c.l.s4 1966171168
  %v1125 = vunpack.c.0.s8 %v1124
  %v1126 = vlaneseq
  %v1127 = vshrl.u32 %v1126, 7
  %v1128 = vsub.s32 %v1125, %v1127
  %v1129 = vrot.slane %v1094, %v1128
  %v1130 = vcombine.high %v1129, %v1129
  %v1132 = vunpack.c.l.s4 1966171168
  %v1133 = vunpack.c.0.s8 %v1132
  %v1134 = vlaneseq
  %v1135 = vshrl.u32 %v1134, 7
  %v1136 = vsub.s32 %v1133, %v1135
  %v1137 = vrot.slane %v1129, %v1136
  %v1139 = vunpack.c.l.s4 1966171168
  %v1140 = vunpack.c.0.s8 %v1139
  %v1141 = vlaneseq
  %v1142 = vshrl.u32 %v1141, 7
  %v1143 = vsub.s32 %v1140, %v1142
  %v1144 = vrot.slane %v1130, %v1143
  %1147 = vst.msk [vmem:[#allocation2 + $0x3] sm:$0x1] %vm286, %v1137
  %1148 = vst.msk [vmem:[#allocation2 + $0xb] sm:$0x1] %vm286, %v1144
  %s1149 = scalar_lea.vmem %s0, 20
  %v1150 = vld [vmem:[%s1149] sm:$0xf]
  %v1152 = vsel %vm76, %v1080, 0
  %1154 = vmatprep.subr.mxu0 %v60
  %1155 = vmatpush1.msra.mxu0 %v59
  %1156 = vmatprep.subr.mxu0 %v62
  %1157 = vmatpush1.msra.mxu0 %v61
  %1158 = vmatprep.subr.mxu0 %v64
  %1159 = vmatpush1.msra.mxu0 %v63
  %1160 = vmatprep.subr.mxu0 %v66
  %1161 = vmatpush1.msra.mxu0 %v65
  %1162 = vmatprep.subr.mxu0 %v68
  %1163 = vmatpush1.msra.mxu0 %v67
  %1164 = vmatprep.subr.mxu0 %v70
  %1165 = vmatpush1.msra.mxu0 %v69
  %1166 = vmatprep.subr.mxu0 %v72
  %1167 = vmatpush1.msra.mxu0 %v71
  %1168 = vmatprep.subr.mxu0 %v74
  %1169 = vmatpush1.msra.mxu0 %v73
  %1170 = vmatprep.subr.mxu0 0.0
  %1171 = vmatpush1.msra.mxu0 0.0
  %1172 = vmatprep.subr.mxu0 0.0
  %1173 = vmatpush1.msra.mxu0 0.0
  %1174 = vmatprep.subr.mxu0 0.0
  %1175 = vmatpush1.msra.mxu0 0.0
  %1176 = vmatprep.subr.mxu0 0.0
  %1177 = vmatpush1.msra.mxu0 0.0
  %1178 = vmatprep.subr.mxu0 0.0
  %1179 = vmatpush1.msra.mxu0 0.0
  %1180 = vmatprep.subr.mxu0 0.0
  %1181 = vmatpush1.msra.mxu0 0.0
  %1182 = vmatprep.subr.mxu0 0.0
  %1183 = vmatpush1.msra.mxu0 0.0
  %1184 = vmatprep.subr.mxu0 0.0
  %1185 = vmatpush1.msra.mxu0 0.0
  %1186 = vmatprep.subr.mxu0 0.0
  %1187 = vmatpush1.msra.mxu0 0.0
  %1188 = vmatprep.subr.mxu0 0.0
  %1189 = vmatpush1.msra.mxu0 0.0
  %1190 = vmatprep.subr.mxu0 0.0
  %1191 = vmatpush1.msra.mxu0 0.0
  %1192 = vmatprep.subr.mxu0 0.0
  %1193 = vmatpush1.msra.mxu0 0.0
  %1194 = vmatprep.subr.mxu0 0.0
  %1195 = vmatpush1.msra.mxu0 0.0
  %1196 = vmatprep.subr.mxu0 0.0
  %1197 = vmatpush1.msra.mxu0 0.0
  %1198 = vmatprep.subr.mxu0 0.0
  %1199 = vmatpush1.msra.mxu0 0.0
  %1200 = vmatprep.subr.mxu0 0.0
  %1201 = vmatpush1.msra.mxu0 0.0
  %1202 = vmatprep.subr.mxu0 0.0
  %1203 = vmatpush1.msra.mxu0 0.0
  %1204 = vmatprep.subr.mxu0 0.0
  %1205 = vmatpush1.msra.mxu0 0.0
  %1206 = vmatprep.subr.mxu0 0.0
  %1207 = vmatpush1.msra.mxu0 0.0
  %1208 = vmatprep.subr.mxu0 0.0
  %1209 = vmatpush1.msra.mxu0 0.0
  %1210 = vmatprep.subr.mxu0 0.0
  %1211 = vmatpush1.msra.mxu0 0.0
  %1212 = vmatprep.subr.mxu0 0.0
  %1213 = vmatpush1.msra.mxu0 0.0
  %1214 = vmatprep.subr.mxu0 0.0
  %1215 = vmatpush1.msra.mxu0 0.0
  %1216 = vmatprep.subr.mxu0 0.0
  %1217 = vmatpush1.msra.mxu0 0.0
  %1218 = vmatprep.mubr.f32.mxu0 0.0
  %1219 = vmatmul.mubr.f32.gmra.mrb[0].mxu0 %v1152
  %v1220 = vpop.f32.mrb[0].mxu0
  %v1221 = vadd.f32 0.0, %v1220
  %v1222 = vpop.f32.mrb[0].mxu0
  %v1223 = vadd.f32 0.0, %v1222
  %1224 = vdwg.mxu0
  %v1227 = vcombine.low %v1221, %v1223
  %v1229 = vunpack.c.l.s4 1983009808
  %v1230 = vunpack.c.0.s8 %v1229
  %v1231 = vlaneseq
  %v1232 = vshrl.u32 %v1231, 7
  %v1233 = vsub.s32 %v1230, %v1232
  %v1234 = vrot.slane %v1227, %v1233
  %v1236 = vadd.f32 %v1150, %v1234
  %v1237 = vxor.u32 %v1236, 2147483648
  %v1238 = vmul.f32 %v1237, 1.442695
  %v1239 = vpow.pop %v1238
  %v1240 = vadd.f32 %v1239, 1.0
  %v1241 = vrcp.pop %v1240
  %v1242 = vmul.f32 1.0, %v1241
  %v1244 = vrot.slane %v1236, 2
  %v1246 = vtanh.pop %v1244
  %1247 = vrot.lane.b32.xlu0 %v1236, 64
  %v1248 = vpop.permute.xlu0 %1247
  %v1249 = vrot.slane %v1248, 2
  %v1251 = vxor.u32 %v1249, 2147483648
  %v1252 = vmul.f32 %v1251, 1.442695
  %v1253 = vpow.pop %v1252
  %v1254 = vadd.f32 %v1253, 1.0
  %v1255 = vrcp.pop %v1254
  %v1256 = vmul.f32 1.0, %v1255
  %v1259 = vunpack.c.l.s4 1983009808
  %v1260 = vunpack.c.0.s8 %v1259
  %v1261 = vlaneseq
  %v1262 = vshrl.u32 %v1261, 7
  %v1263 = vsub.s32 %v1260, %v1262
  %v1264 = vrot.slane %v1092, %v1263
  %1265 = vrot.lane.b32.xlu0 %v1264, 64
  %v1266 = vpop.permute.xlu0 %1265
  %v1268 = vmul.f32 %v1242, %v1266
  %v1269 = vmul.f32 %v1242, %v1246
  %1271 = vrot.lane.b32.xlu0 %v1269, 64
  %v1272 = vpop.permute.xlu0 %1271
  %v1274 = vadd.f32 %v1268, %v1272
  %v1275 = vtanh.pop %v1274
  %1277 = vrot.lane.b32.xlu0 %v1275, 64
  %v1278 = vpop.permute.xlu0 %1277
  %v1280 = vmul.f32 %v1256, %v1278
  %v1281 = vsel %vm205, %v646, %v642
  %vm1282 = vcmp.gt.f32.partialorder %v1281, 0.0
  %v1283 = vsel %vm1282, %v1280, %v1080
  %v1286 = vunpack.c.l.s4 1983009808
  %v1287 = vunpack.c.0.s8 %v1286
  %v1288 = vlaneseq
  %v1289 = vshrl.u32 %v1288, 7
  %v1290 = vsub.s32 %v1287, %v1289
  %v1291 = vrot.slane %v1274, %v1290
  %1292 = vrot.lane.b32.xlu0 %v1291, 64
  %v1293 = vpop.permute.xlu0 %1292
  %v1295 = vsel %vm1282, %v1293, %v1092
  %v1296 = vsel %vm671, %v1283, 0.0
  %v1297 = vsel %vm666, %v1283, 0.0
  %v1300 = vunpack.c.l.s4 1966171168
  %v1301 = vunpack.c.0.s8 %v1300
  %v1302 = vlaneseq
  %v1303 = vshrl.u32 %v1302, 7
  %v1304 = vsub.s32 %v1301, %v1303
  %v1305 = vrot.slane %v1296, %v1304
  %v1306 = vcombine.high %v1305, %v1305
  %v1308 = vunpack.c.l.s4 1966171168
  %v1309 = vunpack.c.0.s8 %v1308
  %v1310 = vlaneseq
  %v1311 = vshrl.u32 %v1310, 7
  %v1312 = vsub.s32 %v1309, %v1311
  %v1313 = vrot.slane %v1305, %v1312
  %v1315 = vunpack.c.l.s4 1966171168
  %v1316 = vunpack.c.0.s8 %v1315
  %v1317 = vlaneseq
  %v1318 = vshrl.u32 %v1317, 7
  %v1319 = vsub.s32 %v1316, %v1318
  %v1320 = vrot.slane %v1306, %v1319
  %1323 = vst.msk [vmem:[#allocation2 + $0x5] sm:$0x1] %vm258, %v1313
  %1324 = vst.msk [vmem:[#allocation2 + $0xd] sm:$0x1] %vm258, %v1320
  %v1327 = vunpack.c.l.s4 1966171168
  %v1328 = vunpack.c.0.s8 %v1327
  %v1329 = vlaneseq
  %v1330 = vshrl.u32 %v1329, 7
  %v1331 = vsub.s32 %v1328, %v1330
  %v1332 = vrot.slane %v1297, %v1331
  %v1333 = vcombine.high %v1332, %v1332
  %v1335 = vunpack.c.l.s4 1966171168
  %v1336 = vunpack.c.0.s8 %v1335
  %v1337 = vlaneseq
  %v1338 = vshrl.u32 %v1337, 7
  %v1339 = vsub.s32 %v1336, %v1338
  %v1340 = vrot.slane %v1332, %v1339
  %v1342 = vunpack.c.l.s4 1966171168
  %v1343 = vunpack.c.0.s8 %v1342
  %v1344 = vlaneseq
  %v1345 = vshrl.u32 %v1344, 7
  %v1346 = vsub.s32 %v1343, %v1345
  %v1347 = vrot.slane %v1333, %v1346
  %1350 = vst.msk [vmem:[#allocation2 + $0x2] sm:$0x1] %vm286, %v1340
  %1351 = vst.msk [vmem:[#allocation2 + $0xa] sm:$0x1] %vm286, %v1347
  %s1352 = scalar_lea.vmem %s0, 24
  %v1353 = vld [vmem:[%s1352] sm:$0xf]
  %v1355 = vsel %vm76, %v1283, 0
  %1357 = vmatprep.subr.mxu0 %v60
  %1358 = vmatpush1.msra.mxu0 %v59
  %1359 = vmatprep.subr.mxu0 %v62
  %1360 = vmatpush1.msra.mxu0 %v61
  %1361 = vmatprep.subr.mxu0 %v64
  %1362 = vmatpush1.msra.mxu0 %v63
  %1363 = vmatprep.subr.mxu0 %v66
  %1364 = vmatpush1.msra.mxu0 %v65
  %1365 = vmatprep.subr.mxu0 %v68
  %1366 = vmatpush1.msra.mxu0 %v67
  %1367 = vmatprep.subr.mxu0 %v70
  %1368 = vmatpush1.msra.mxu0 %v69
  %1369 = vmatprep.subr.mxu0 %v72
  %1370 = vmatpush1.msra.mxu0 %v71
  %1371 = vmatprep.subr.mxu0 %v74
  %1372 = vmatpush1.msra.mxu0 %v73
  %1373 = vmatprep.subr.mxu0 0.0
  %1374 = vmatpush1.msra.mxu0 0.0
  %1375 = vmatprep.subr.mxu0 0.0
  %1376 = vmatpush1.msra.mxu0 0.0
  %1377 = vmatprep.subr.mxu0 0.0
  %1378 = vmatpush1.msra.mxu0 0.0
  %1379 = vmatprep.subr.mxu0 0.0
  %1380 = vmatpush1.msra.mxu0 0.0
  %1381 = vmatprep.subr.mxu0 0.0
  %1382 = vmatpush1.msra.mxu0 0.0
  %1383 = vmatprep.subr.mxu0 0.0
  %1384 = vmatpush1.msra.mxu0 0.0
  %1385 = vmatprep.subr.mxu0 0.0
  %1386 = vmatpush1.msra.mxu0 0.0
  %1387 = vmatprep.subr.mxu0 0.0
  %1388 = vmatpush1.msra.mxu0 0.0
  %1389 = vmatprep.subr.mxu0 0.0
  %1390 = vmatpush1.msra.mxu0 0.0
  %1391 = vmatprep.subr.mxu0 0.0
  %1392 = vmatpush1.msra.mxu0 0.0
  %1393 = vmatprep.subr.mxu0 0.0
  %1394 = vmatpush1.msra.mxu0 0.0
  %1395 = vmatprep.subr.mxu0 0.0
  %1396 = vmatpush1.msra.mxu0 0.0
  %1397 = vmatprep.subr.mxu0 0.0
  %1398 = vmatpush1.msra.mxu0 0.0
  %1399 = vmatprep.subr.mxu0 0.0
  %1400 = vmatpush1.msra.mxu0 0.0
  %1401 = vmatprep.subr.mxu0 0.0
  %1402 = vmatpush1.msra.mxu0 0.0
  %1403 = vmatprep.subr.mxu0 0.0
  %1404 = vmatpush1.msra.mxu0 0.0
  %1405 = vmatprep.subr.mxu0 0.0
  %1406 = vmatpush1.msra.mxu0 0.0
  %1407 = vmatprep.subr.mxu0 0.0
  %1408 = vmatpush1.msra.mxu0 0.0
  %1409 = vmatprep.subr.mxu0 0.0
  %1410 = vmatpush1.msra.mxu0 0.0
  %1411 = vmatprep.subr.mxu0 0.0
  %1412 = vmatpush1.msra.mxu0 0.0
  %1413 = vmatprep.subr.mxu0 0.0
  %1414 = vmatpush1.msra.mxu0 0.0
  %1415 = vmatprep.subr.mxu0 0.0
  %1416 = vmatpush1.msra.mxu0 0.0
  %1417 = vmatprep.subr.mxu0 0.0
  %1418 = vmatpush1.msra.mxu0 0.0
  %1419 = vmatprep.subr.mxu0 0.0
  %1420 = vmatpush1.msra.mxu0 0.0
  %1421 = vmatprep.mubr.f32.mxu0 0.0
  %1422 = vmatmul.mubr.f32.gmra.mrb[0].mxu0 %v1355
  %v1423 = vpop.f32.mrb[0].mxu0
  %v1424 = vadd.f32 0.0, %v1423
  %v1425 = vpop.f32.mrb[0].mxu0
  %v1426 = vadd.f32 0.0, %v1425
  %1427 = vdwg.mxu0
  %v1430 = vcombine.low %v1424, %v1426
  %v1432 = vunpack.c.l.s4 1983009808
  %v1433 = vunpack.c.0.s8 %v1432
  %v1434 = vlaneseq
  %v1435 = vshrl.u32 %v1434, 7
  %v1436 = vsub.s32 %v1433, %v1435
  %v1437 = vrot.slane %v1430, %v1436
  %v1439 = vadd.f32 %v1353, %v1437
  %v1440 = vxor.u32 %v1439, 2147483648
  %v1441 = vmul.f32 %v1440, 1.442695
  %v1442 = vpow.pop %v1441
  %v1443 = vadd.f32 %v1442, 1.0
  %v1444 = vrcp.pop %v1443
  %v1445 = vmul.f32 1.0, %v1444
  %v1447 = vrot.slane %v1439, 2
  %v1449 = vtanh.pop %v1447
  %1450 = vrot.lane.b32.xlu0 %v1439, 64
  %v1451 = vpop.permute.xlu0 %1450
  %v1452 = vrot.slane %v1451, 2
  %v1454 = vxor.u32 %v1452, 2147483648
  %v1455 = vmul.f32 %v1454, 1.442695
  %v1456 = vpow.pop %v1455
  %v1457 = vadd.f32 %v1456, 1.0
  %v1458 = vrcp.pop %v1457
  %v1459 = vmul.f32 1.0, %v1458
  %v1462 = vunpack.c.l.s4 1983009808
  %v1463 = vunpack.c.0.s8 %v1462
  %v1464 = vlaneseq
  %v1465 = vshrl.u32 %v1464, 7
  %v1466 = vsub.s32 %v1463, %v1465
  %v1467 = vrot.slane %v1295, %v1466
  %1468 = vrot.lane.b32.xlu0 %v1467, 64
  %v1469 = vpop.permute.xlu0 %1468
  %v1471 = vmul.f32 %v1445, %v1469
  %v1472 = vmul.f32 %v1445, %v1449
  %1474 = vrot.lane.b32.xlu0 %v1472, 64
  %v1475 = vpop.permute.xlu0 %1474
  %v1477 = vadd.f32 %v1471, %v1475
  %v1478 = vtanh.pop %v1477
  %1480 = vrot.lane.b32.xlu0 %v1478, 64
  %v1481 = vpop.permute.xlu0 %1480
  %v1483 = vmul.f32 %v1459, %v1481
  %v1484 = vsel %vm205, %v427, %v423
  %vm1485 = vcmp.gt.f32.partialorder %v1484, 0.0
  %v1486 = vsel %vm1485, %v1483, %v1283
  %v1489 = vunpack.c.l.s4 1983009808
  %v1490 = vunpack.c.0.s8 %v1489
  %v1491 = vlaneseq
  %v1492 = vshrl.u32 %v1491, 7
  %v1493 = vsub.s32 %v1490, %v1492
  %v1494 = vrot.slane %v1477, %v1493
  %1495 = vrot.lane.b32.xlu0 %v1494, 64
  %v1496 = vpop.permute.xlu0 %1495
  %v1498 = vsel %vm1485, %v1496, %v1295
  %v1499 = vsel %vm452, %v1486, 0.0
  %v1500 = vsel %vm447, %v1486, 0.0
  %v1503 = vunpack.c.l.s4 1966171168
  %v1504 = vunpack.c.0.s8 %v1503
  %v1505 = vlaneseq
  %v1506 = vshrl.u32 %v1505, 7
  %v1507 = vsub.s32 %v1504, %v1506
  %v1508 = vrot.slane %v1499, %v1507
  %v1509 = vcombine.high %v1508, %v1508
  %v1511 = vunpack.c.l.s4 1966171168
  %v1512 = vunpack.c.0.s8 %v1511
  %v1513 = vlaneseq
  %v1514 = vshrl.u32 %v1513, 7
  %v1515 = vsub.s32 %v1512, %v1514
  %v1516 = vrot.slane %v1508, %v1515
  %v1518 = vunpack.c.l.s4 1966171168
  %v1519 = vunpack.c.0.s8 %v1518
  %v1520 = vlaneseq
  %v1521 = vshrl.u32 %v1520, 7
  %v1522 = vsub.s32 %v1519, %v1521
  %v1523 = vrot.slane %v1509, %v1522
  %1526 = vst.msk [vmem:[#allocation2 + $0x6] sm:$0x1] %vm258, %v1516
  %1527 = vst.msk [vmem:[#allocation2 + $0xe] sm:$0x1] %vm258, %v1523
  %v1530 = vunpack.c.l.s4 1966171168
  %v1531 = vunpack.c.0.s8 %v1530
  %v1532 = vlaneseq
  %v1533 = vshrl.u32 %v1532, 7
  %v1534 = vsub.s32 %v1531, %v1533
  %v1535 = vrot.slane %v1500, %v1534
  %v1536 = vcombine.high %v1535, %v1535
  %v1538 = vunpack.c.l.s4 1966171168
  %v1539 = vunpack.c.0.s8 %v1538
  %v1540 = vlaneseq
  %v1541 = vshrl.u32 %v1540, 7
  %v1542 = vsub.s32 %v1539, %v1541
  %v1543 = vrot.slane %v1535, %v1542
  %v1545 = vunpack.c.l.s4 1966171168
  %v1546 = vunpack.c.0.s8 %v1545
  %v1547 = vlaneseq
  %v1548 = vshrl.u32 %v1547, 7
  %v1549 = vsub.s32 %v1546, %v1548
  %v1550 = vrot.slane %v1536, %v1549
  %1553 = vst.msk [vmem:[#allocation2 + $0x1] sm:$0x1] %vm286, %v1543
  %1554 = vst.msk [vmem:[#allocation2 + $0x9] sm:$0x1] %vm286, %v1550
  %s1555 = scalar_lea.vmem %s0, 28
  %v1556 = vld [vmem:[%s1555] sm:$0xf]
  %v1558 = vsel %vm76, %v1486, 0
  %1560 = vmatprep.subr.mxu0 %v60
  %1561 = vmatpush1.msra.mxu0 %v59
  %1562 = vmatprep.subr.mxu0 %v62
  %1563 = vmatpush1.msra.mxu0 %v61
  %1564 = vmatprep.subr.mxu0 %v64
  %1565 = vmatpush1.msra.mxu0 %v63
  %1566 = vmatprep.subr.mxu0 %v66
  %1567 = vmatpush1.msra.mxu0 %v65
  %1568 = vmatprep.subr.mxu0 %v68
  %1569 = vmatpush1.msra.mxu0 %v67
  %1570 = vmatprep.subr.mxu0 %v70
  %1571 = vmatpush1.msra.mxu0 %v69
  %1572 = vmatprep.subr.mxu0 %v72
  %1573 = vmatpush1.msra.mxu0 %v71
  %1574 = vmatprep.subr.mxu0 %v74
  %1575 = vmatpush1.msra.mxu0 %v73
  %1576 = vmatprep.subr.mxu0 0.0
  %1577 = vmatpush1.msra.mxu0 0.0
  %1578 = vmatprep.subr.mxu0 0.0
  %1579 = vmatpush1.msra.mxu0 0.0
  %1580 = vmatprep.subr.mxu0 0.0
  %1581 = vmatpush1.msra.mxu0 0.0
  %1582 = vmatprep.subr.mxu0 0.0
  %1583 = vmatpush1.msra.mxu0 0.0
  %1584 = vmatprep.subr.mxu0 0.0
  %1585 = vmatpush1.msra.mxu0 0.0
  %1586 = vmatprep.subr.mxu0 0.0
  %1587 = vmatpush1.msra.mxu0 0.0
  %1588 = vmatprep.subr.mxu0 0.0
  %1589 = vmatpush1.msra.mxu0 0.0
  %1590 = vmatprep.subr.mxu0 0.0
  %1591 = vmatpush1.msra.mxu0 0.0
  %1592 = vmatprep.subr.mxu0 0.0
  %1593 = vmatpush1.msra.mxu0 0.0
  %1594 = vmatprep.subr.mxu0 0.0
  %1595 = vmatpush1.msra.mxu0 0.0
  %1596 = vmatprep.subr.mxu0 0.0
  %1597 = vmatpush1.msra.mxu0 0.0
  %1598 = vmatprep.subr.mxu0 0.0
  %1599 = vmatpush1.msra.mxu0 0.0
  %1600 = vmatprep.subr.mxu0 0.0
  %1601 = vmatpush1.msra.mxu0 0.0
  %1602 = vmatprep.subr.mxu0 0.0
  %1603 = vmatpush1.msra.mxu0 0.0
  %1604 = vmatprep.subr.mxu0 0.0
  %1605 = vmatpush1.msra.mxu0 0.0
  %1606 = vmatprep.subr.mxu0 0.0
  %1607 = vmatpush1.msra.mxu0 0.0
  %1608 = vmatprep.subr.mxu0 0.0
  %1609 = vmatpush1.msra.mxu0 0.0
  %1610 = vmatprep.subr.mxu0 0.0
  %1611 = vmatpush1.msra.mxu0 0.0
  %1612 = vmatprep.subr.mxu0 0.0
  %1613 = vmatpush1.msra.mxu0 0.0
  %1614 = vmatprep.subr.mxu0 0.0
  %1615 = vmatpush1.msra.mxu0 0.0
  %1616 = vmatprep.subr.mxu0 0.0
  %1617 = vmatpush1.msra.mxu0 0.0
  %1618 = vmatprep.subr.mxu0 0.0
  %1619 = vmatpush1.msra.mxu0 0.0
  %1620 = vmatprep.subr.mxu0 0.0
  %1621 = vmatpush1.msra.mxu0 0.0
  %1622 = vmatprep.subr.mxu0 0.0
  %1623 = vmatpush1.msra.mxu0 0.0
  %1624 = vmatprep.mubr.f32.mxu0 0.0
  %1625 = vmatmul.mubr.f32.gmra.mrb[0].mxu0 %v1558
  %v1626 = vpop.f32.mrb[0].mxu0
  %v1627 = vadd.f32 0.0, %v1626
  %v1628 = vpop.f32.mrb[0].mxu0
  %v1629 = vadd.f32 0.0, %v1628
  %1630 = vdwg.mxu0
  %v1633 = vcombine.low %v1627, %v1629
  %v1635 = vunpack.c.l.s4 1983009808
  %v1636 = vunpack.c.0.s8 %v1635
  %v1637 = vlaneseq
  %v1638 = vshrl.u32 %v1637, 7
  %v1639 = vsub.s32 %v1636, %v1638
  %v1640 = vrot.slane %v1633, %v1639
  %v1642 = vadd.f32 %v1556, %v1640
  %v1643 = vxor.u32 %v1642, 2147483648
  %v1644 = vmul.f32 %v1643, 1.442695
  %v1645 = vpow.pop %v1644
  %v1646 = vadd.f32 %v1645, 1.0
  %v1647 = vrcp.pop %v1646
  %v1648 = vmul.f32 1.0, %v1647
  %v1650 = vrot.slane %v1642, 2
  %v1652 = vtanh.pop %v1650
  %1653 = vrot.lane.b32.xlu0 %v1642, 64
  %v1654 = vpop.permute.xlu0 %1653
  %v1655 = vrot.slane %v1654, 2
  %v1657 = vxor.u32 %v1655, 2147483648
  %v1658 = vmul.f32 %v1657, 1.442695
  %v1659 = vpow.pop %v1658
  %v1660 = vadd.f32 %v1659, 1.0
  %v1661 = vrcp.pop %v1660
  %v1662 = vmul.f32 1.0, %v1661
  %v1665 = vunpack.c.l.s4 1983009808
  %v1666 = vunpack.c.0.s8 %v1665
  %v1667 = vlaneseq
  %v1668 = vshrl.u32 %v1667, 7
  %v1669 = vsub.s32 %v1666, %v1668
  %v1670 = vrot.slane %v1498, %v1669
  %1671 = vrot.lane.b32.xlu0 %v1670, 64
  %v1672 = vpop.permute.xlu0 %1671
  %v1674 = vmul.f32 %v1648, %v1672
  %v1675 = vmul.f32 %v1648, %v1652
  %1677 = vrot.lane.b32.xlu0 %v1675, 64
  %v1678 = vpop.permute.xlu0 %1677
  %v1680 = vadd.f32 %v1674, %v1678
  %v1681 = vtanh.pop %v1680
  %1683 = vrot.lane.b32.xlu0 %v1681, 64
  %v1684 = vpop.permute.xlu0 %1683
  %v1686 = vmul.f32 %v1662, %v1684
  %v1687 = vsel %vm205, %v203, %v199
  %vm1688 = vcmp.gt.f32.partialorder %v1687, 0.0
  %v1689 = vsel %vm1688, %v1686, %v1486
  %v1692 = vunpack.c.l.s4 1983009808
  %v1693 = vunpack.c.0.s8 %v1692
  %v1694 = vlaneseq
  %v1695 = vshrl.u32 %v1694, 7
  %v1696 = vsub.s32 %v1693, %v1695
  %v1697 = vrot.slane %v1680, %v1696
  %1698 = vrot.lane.b32.xlu0 %v1697, 64
  %v1699 = vpop.permute.xlu0 %1698
  %v1701 = vsel %vm1688, %v1699, %v1498
  %v1702 = vsel %vm231, %v1689, 0.0
  %v1703 = vsel %vm226, %v1689, 0.0
  %v1706 = vunpack.c.l.s4 1966171168
  %v1707 = vunpack.c.0.s8 %v1706
  %v1708 = vlaneseq
  %v1709 = vshrl.u32 %v1708, 7
  %v1710 = vsub.s32 %v1707, %v1709
  %v1711 = vrot.slane %v1702, %v1710
  %v1712 = vcombine.high %v1711, %v1711
  %v1714 = vunpack.c.l.s4 1966171168
  %v1715 = vunpack.c.0.s8 %v1714
  %v1716 = vlaneseq
  %v1717 = vshrl.u32 %v1716, 7
  %v1718 = vsub.s32 %v1715, %v1717
  %v1719 = vrot.slane %v1711, %v1718
  %v1721 = vunpack.c.l.s4 1966171168
  %v1722 = vunpack.c.0.s8 %v1721
  %v1723 = vlaneseq
  %v1724 = vshrl.u32 %v1723, 7
  %v1725 = vsub.s32 %v1722, %v1724
  %v1726 = vrot.slane %v1712, %v1725
  %1729 = vst.msk [vmem:[#allocation2 + $0x7] sm:$0x1] %vm258, %v1719
  %1730 = vst.msk [vmem:[#allocation2 + $0xf] sm:$0x1] %vm258, %v1726
  %v1733 = vunpack.c.l.s4 1966171168
  %v1734 = vunpack.c.0.s8 %v1733
  %v1735 = vlaneseq
  %v1736 = vshrl.u32 %v1735, 7
  %v1737 = vsub.s32 %v1734, %v1736
  %v1738 = vrot.slane %v1703, %v1737
  %v1739 = vcombine.high %v1738, %v1738
  %v1741 = vunpack.c.l.s4 1966171168
  %v1742 = vunpack.c.0.s8 %v1741
  %v1743 = vlaneseq
  %v1744 = vshrl.u32 %v1743, 7
  %v1745 = vsub.s32 %v1742, %v1744
  %v1746 = vrot.slane %v1738, %v1745
  %v1748 = vunpack.c.l.s4 1966171168
  %v1749 = vunpack.c.0.s8 %v1748
  %v1750 = vlaneseq
  %v1751 = vshrl.u32 %v1750, 7
  %v1752 = vsub.s32 %v1749, %v1751
  %v1753 = vrot.slane %v1739, %v1752
  %1756 = vst.msk [vmem:[#allocation2] sm:$0x1] %vm286, %v1746
  %1757 = vst.msk [vmem:[#allocation2 + $0x8] sm:$0x1] %vm286, %v1753
  %v1759 = vrot.slane %v1701, 6
  %vm1761 = vcmask 1041408
  %v1762 = vsel %vm1761, %v1689, %v1759
  %v1763 = vld [vmem:[%s4] sm:$0xff]
  %v1764 = vld [vmem:[%s4 + $0x8] sm:$0xff]
  %v1765 = vld [vmem:[%s4 + $0x10] sm:$0xff]
  %v1766 = vld [vmem:[%s4 + $0x18] sm:$0xff]
  %v1767 = vld [vmem:[%s4 + $0x20] sm:$0xff]
  %v1768 = vld [vmem:[%s4 + $0x28] sm:$0xff]
  %v1769 = vld [vmem:[%s4 + $0x30] sm:$0xff]
  %v1770 = vld [vmem:[%s4 + $0x38] sm:$0xff]
  %v1771 = vld [vmem:[%s5] sm:$0x1]
  %v1773 = vlaneseq
  %v1774 = vshrl.u32 %v1773, 7
  %v1775 = vsub.s32 0, %v1774
  %v1776 = vrot.slane %v1771, %v1775
  %v1779 = vsel %vm76, %v1762, 0
  %1781 = vmatprep.subr.mxu0 0.0
  %1782 = vmatpush1.msra.mxu0 %v1763
  %1783 = vmatprep.subr.mxu0 0.0
  %1784 = vmatpush1.msra.mxu0 %v1764
  %1785 = vmatprep.subr.mxu0 0.0
  %1786 = vmatpush1.msra.mxu0 %v1765
  %1787 = vmatprep.subr.mxu0 0.0
  %1788 = vmatpush1.msra.mxu0 %v1766
  %1789 = vmatprep.subr.mxu0 0.0
  %1790 = vmatpush1.msra.mxu0 %v1767
  %1791 = vmatprep.subr.mxu0 0.0
  %1792 = vmatpush1.msra.mxu0 %v1768
  %1793 = vmatprep.subr.mxu0 0.0
  %1794 = vmatpush1.msra.mxu0 %v1769
  %1795 = vmatprep.subr.mxu0 0.0
  %1796 = vmatpush1.msra.mxu0 %v1770
  %1797 = vmatprep.subr.mxu0 0.0
  %1798 = vmatpush1.msra.mxu0 0.0
  %1799 = vmatprep.subr.mxu0 0.0
  %1800 = vmatpush1.msra.mxu0 0.0
  %1801 = vmatprep.subr.mxu0 0.0
  %1802 = vmatpush1.msra.mxu0 0.0
  %1803 = vmatprep.subr.mxu0 0.0
  %1804 = vmatpush1.msra.mxu0 0.0
  %1805 = vmatprep.subr.mxu0 0.0
  %1806 = vmatpush1.msra.mxu0 0.0
  %1807 = vmatprep.subr.mxu0 0.0
  %1808 = vmatpush1.msra.mxu0 0.0
  %1809 = vmatprep.subr.mxu0 0.0
  %1810 = vmatpush1.msra.mxu0 0.0
  %1811 = vmatprep.subr.mxu0 0.0
  %1812 = vmatpush1.msra.mxu0 0.0
  %1813 = vmatprep.subr.mxu0 0.0
  %1814 = vmatpush1.msra.mxu0 0.0
  %1815 = vmatprep.subr.mxu0 0.0
  %1816 = vmatpush1.msra.mxu0 0.0
  %1817 = vmatprep.subr.mxu0 0.0
  %1818 = vmatpush1.msra.mxu0 0.0
  %1819 = vmatprep.subr.mxu0 0.0
  %1820 = vmatpush1.msra.mxu0 0.0
  %1821 = vmatprep.subr.mxu0 0.0
  %1822 = vmatpush1.msra.mxu0 0.0
  %1823 = vmatprep.subr.mxu0 0.0
  %1824 = vmatpush1.msra.mxu0 0.0
  %1825 = vmatprep.subr.mxu0 0.0
  %1826 = vmatpush1.msra.mxu0 0.0
  %1827 = vmatprep.subr.mxu0 0.0
  %1828 = vmatpush1.msra.mxu0 0.0
  %1829 = vmatprep.subr.mxu0 0.0
  %1830 = vmatpush1.msra.mxu0 0.0
  %1831 = vmatprep.subr.mxu0 0.0
  %1832 = vmatpush1.msra.mxu0 0.0
  %1833 = vmatprep.subr.mxu0 0.0
  %1834 = vmatpush1.msra.mxu0 0.0
  %1835 = vmatprep.subr.mxu0 0.0
  %1836 = vmatpush1.msra.mxu0 0.0
  %1837 = vmatprep.subr.mxu0 0.0
  %1838 = vmatpush1.msra.mxu0 0.0
  %1839 = vmatprep.subr.mxu0 0.0
  %1840 = vmatpush1.msra.mxu0 0.0
  %1841 = vmatprep.subr.mxu0 0.0
  %1842 = vmatpush1.msra.mxu0 0.0
  %1843 = vmatprep.subr.mxu0 0.0
  %1844 = vmatpush1.msra.mxu0 0.0
  %1845 = vmatprep.mubr.f32.mxu0 0.0
  %1846 = vmatmul.mubr.f32.gmra.mrb[0].mxu0 %v1779
  %v1847 = vpop.f32.mrb[0].mxu0
  %v1848 = vadd.f32 %v1776, %v1847
  %v1849 = vpop.f32.mrb[0].mxu0
  %1850 = vdwg.mxu0
  %v1851 = vmax.f32 %v1848, 0.0
  %v1852 = vld [vmem:[#allocation2] sm:$0xff]
  %v1853 = vld [vmem:[#allocation2 + $0x8] sm:$0xff]
  %v1854 = vld [vmem:[%s3] sm:$0xff]
  %v1855 = vld [vmem:[%s3 + $0x8] sm:$0xff]
  %v1856 = vld [vmem:[%s3 + $0x10] sm:$0xff]
  %v1857 = vld [vmem:[%s3 + $0x18] sm:$0xff]
  %v1858 = vld [vmem:[%s3 + $0x20] sm:$0xff]
  %v1859 = vld [vmem:[%s3 + $0x28] sm:$0xff]
  %v1860 = vld [vmem:[%s3 + $0x30] sm:$0xff]
  %v1861 = vld [vmem:[%s3 + $0x38] sm:$0xff]
  %v1863 = vsel %vm76, %v1852, 0
  %v1866 = vsel %vm76, %v1853, 0
  %1868 = vmatprep.subr.mxu0 0.0
  %1869 = vmatpush1.msra.mxu0 %v1854
  %1870 = vmatprep.subr.mxu0 0.0
  %1871 = vmatpush1.msra.mxu0 %v1855
  %1872 = vmatprep.subr.mxu0 0.0
  %1873 = vmatpush1.msra.mxu0 %v1856
  %1874 = vmatprep.subr.mxu0 0.0
  %1875 = vmatpush1.msra.mxu0 %v1857
  %1876 = vmatprep.subr.mxu0 0.0
  %1877 = vmatpush1.msra.mxu0 %v1858
  %1878 = vmatprep.subr.mxu0 0.0
  %1879 = vmatpush1.msra.mxu0 %v1859
  %1880 = vmatprep.subr.mxu0 0.0
  %1881 = vmatpush1.msra.mxu0 %v1860
  %1882 = vmatprep.subr.mxu0 0.0
  %1883 = vmatpush1.msra.mxu0 %v1861
  %1884 = vmatprep.subr.mxu0 0.0
  %1885 = vmatpush1.msra.mxu0 0.0
  %1886 = vmatprep.subr.mxu0 0.0
  %1887 = vmatpush1.msra.mxu0 0.0
  %1888 = vmatprep.subr.mxu0 0.0
  %1889 = vmatpush1.msra.mxu0 0.0
  %1890 = vmatprep.subr.mxu0 0.0
  %1891 = vmatpush1.msra.mxu0 0.0
  %1892 = vmatprep.subr.mxu0 0.0
  %1893 = vmatpush1.msra.mxu0 0.0
  %1894 = vmatprep.subr.mxu0 0.0
  %1895 = vmatpush1.msra.mxu0 0.0
  %1896 = vmatprep.subr.mxu0 0.0
  %1897 = vmatpush1.msra.mxu0 0.0
  %1898 = vmatprep.subr.mxu0 0.0
  %1899 = vmatpush1.msra.mxu0 0.0
  %1900 = vmatprep.subr.mxu0 0.0
  %1901 = vmatpush1.msra.mxu0 0.0
  %1902 = vmatprep.subr.mxu0 0.0
  %1903 = vmatpush1.msra.mxu0 0.0
  %1904 = vmatprep.subr.mxu0 0.0
  %1905 = vmatpush1.msra.mxu0 0.0
  %1906 = vmatprep.subr.mxu0 0.0
  %1907 = vmatpush1.msra.mxu0 0.0
  %1908 = vmatprep.subr.mxu0 0.0
  %1909 = vmatpush1.msra.mxu0 0.0
  %1910 = vmatprep.subr.mxu0 0.0
  %1911 = vmatpush1.msra.mxu0 0.0
  %1912 = vmatprep.subr.mxu0 0.0
  %1913 = vmatpush1.msra.mxu0 0.0
  %1914 = vmatprep.subr.mxu0 0.0
  %1915 = vmatpush1.msra.mxu0 0.0
  %1916 = vmatprep.subr.mxu0 0.0
  %1917 = vmatpush1.msra.mxu0 0.0
  %1918 = vmatprep.subr.mxu0 0.0
  %1919 = vmatpush1.msra.mxu0 0.0
  %1920 = vmatprep.subr.mxu0 0.0
  %1921 = vmatpush1.msra.mxu0 0.0
  %1922 = vmatprep.subr.mxu0 0.0
  %1923 = vmatpush1.msra.mxu0 0.0
  %1924 = vmatprep.subr.mxu0 0.0
  %1925 = vmatpush1.msra.mxu0 0.0
  %1926 = vmatprep.subr.mxu0 0.0
  %1927 = vmatpush1.msra.mxu0 0.0
  %1928 = vmatprep.subr.mxu0 0.0
  %1929 = vmatpush1.msra.mxu0 0.0
  %1930 = vmatprep.subr.mxu0 0.0
  %1931 = vmatpush1.msra.mxu0 0.0
  %1932 = vmatprep.mubr.f32.mxu0 0.0
  %1933 = vmatmul.mubr.f32.gmra.mrb[0].mxu0 %v1863
  %v1934 = vpop.f32.mrb[0].mxu0
  %v1935 = vadd.f32 0.0, %v1934
  %v1936 = vpop.f32.mrb[0].mxu0
  %1937 = vmatprep.mubr.f32.mxu0 0.0
  %1938 = vmatmul.mubr.f32.gmra.mrb[0].mxu0 %v1866
  %v1939 = vpop.f32.mrb[0].mxu0
  %v1940 = vadd.f32 0.0, %v1939
  %v1941 = vpop.f32.mrb[0].mxu0
  %1942 = vdwg.mxu0
  %v1943 = vld [vmem:[%s11] sm:$0x1]
  %v1945 = vlaneseq
  %v1946 = vshrl.u32 %v1945, 7
  %v1947 = vsub.s32 0, %v1946
  %v1948 = vrot.slane %v1943, %v1947
  %v1950 = vld [vmem:[%s12] sm:$0x1]
  %v1952 = vlaneseq
  %v1953 = vshrl.u32 %v1952, 7
  %v1954 = vsub.s32 0, %v1953
  %v1955 = vrot.slane %v1950, %v1954
  %v1957 = vld [vmem:[%s10] sm:$0x1]
  %v1959 = vlaneseq
  %v1960 = vshrl.u32 %v1959, 7
  %v1961 = vsub.s32 0, %v1960
  %v1962 = vrot.slane %v1957, %v1961
  %v1964 = vld [vmem:[%s14] sm:$0x1]
  %v1966 = vlaneseq
  %v1967 = vshrl.u32 %v1966, 7
  %v1968 = vsub.s32 0, %v1967
  %v1969 = vrot.slane %v1964, %v1968
  %v1971 = vld [vmem:[%s8] sm:$0xff]
  %v1972 = vld [vmem:[%s8 + $0x8] sm:$0xff]
  %v1973 = vld [vmem:[%s8 + $0x10] sm:$0xff]
  %v1974 = vld [vmem:[%s8 + $0x18] sm:$0xff]
  %v1975 = vld [vmem:[%s8 + $0x20] sm:$0xff]
  %v1976 = vld [vmem:[%s8 + $0x28] sm:$0xff]
  %v1977 = vld [vmem:[%s8 + $0x30] sm:$0xff]
  %v1978 = vld [vmem:[%s8 + $0x38] sm:$0xff]
  %v1979 = vld [vmem:[%s8 + $0x40] sm:$0xff]
  %v1980 = vld [vmem:[%s8 + $0x48] sm:$0xff]
  %v1981 = vld [vmem:[%s8 + $0x50] sm:$0xff]
  %v1982 = vld [vmem:[%s8 + $0x58] sm:$0xff]
  %v1983 = vld [vmem:[%s9] sm:$0xff]
  %v1984 = vld [vmem:[%s9 + $0x8] sm:$0xff]
  %v1985 = vld [vmem:[%s9 + $0x10] sm:$0xff]
  %v1986 = vld [vmem:[%s9 + $0x18] sm:$0xff]
  %v1987 = vld [vmem:[%s9 + $0x20] sm:$0xff]
  %v1988 = vld [vmem:[%s9 + $0x28] sm:$0xff]
  %v1989 = vld [vmem:[%s9 + $0x30] sm:$0xff]
  %v1990 = vld [vmem:[%s9 + $0x38] sm:$0xff]
  %v1991 = vld [vmem:[%s13] sm:$0xff]
  %v1992 = vld [vmem:[%s13 + $0x8] sm:$0xff]
  %v1993 = vld [vmem:[%s13 + $0x10] sm:$0xff]
  %v1994 = vld [vmem:[%s13 + $0x18] sm:$0xff]
  %v1995 = vld [vmem:[%s13 + $0x20] sm:$0xff]
  %v1996 = vld [vmem:[%s13 + $0x28] sm:$0xff]
  %v1997 = vld [vmem:[%s13 + $0x30] sm:$0xff]
  %v1998 = vld [vmem:[%s13 + $0x38] sm:$0xff]
  %v1999 = vld [vmem:[%s13 + $0x40] sm:$0xff]
  %v2000 = vld [vmem:[%s13 + $0x48] sm:$0xff]
  %v2001 = vld [vmem:[%s13 + $0x50] sm:$0xff]
  %v2002 = vld [vmem:[%s13 + $0x58] sm:$0xff]
  %v2003 = vld [vmem:[%s16] sm:$0x3]
  %v2004 = vld [vmem:[%s6] sm:$0x3]
  %2006 = vrot.lane.b32.xlu0 %v1851, 64
  %v2007 = vpop.permute.xlu0 %2006
  %v2009 = vsel %vm76, 0.0, %v2007
  %v2010 = vld [vmem:[%s7] sm:$0x3]
  %vm2011 = vcmask 785408
  %v2013 = vsel %vm2011, %v2009, 0
  %2015 = vmatprep.subr.mxu0 0.0
  %2016 = vmatpush1.msra.mxu0 %v1971
  %2017 = vmatprep.subr.mxu0 0.0
  %2018 = vmatpush1.msra.mxu0 %v1972
  %2019 = vmatprep.subr.mxu0 0.0
  %2020 = vmatpush1.msra.mxu0 %v1973
  %2021 = vmatprep.subr.mxu0 0.0
  %2022 = vmatpush1.msra.mxu0 %v1974
  %2023 = vmatprep.subr.mxu0 0.0
  %2024 = vmatpush1.msra.mxu0 %v1975
  %2025 = vmatprep.subr.mxu0 0.0
  %2026 = vmatpush1.msra.mxu0 %v1976
  %2027 = vmatprep.subr.mxu0 0.0
  %2028 = vmatpush1.msra.mxu0 %v1977
  %2029 = vmatprep.subr.mxu0 0.0
  %2030 = vmatpush1.msra.mxu0 %v1978
  %2031 = vmatprep.subr.mxu0 0.0
  %2032 = vmatpush1.msra.mxu0 %v1979
  %2033 = vmatprep.subr.mxu0 0.0
  %2034 = vmatpush1.msra.mxu0 %v1980
  %2035 = vmatprep.subr.mxu0 0.0
  %2036 = vmatpush1.msra.mxu0 %v1981
  %2037 = vmatprep.subr.mxu0 0.0
  %2038 = vmatpush1.msra.mxu0 %v1982
  %2039 = vmatprep.subr.mxu0 0.0
  %2040 = vmatpush1.msra.mxu0 0.0
  %2041 = vmatprep.subr.mxu0 0.0
  %2042 = vmatpush1.msra.mxu0 0.0
  %2043 = vmatprep.subr.mxu0 0.0
  %2044 = vmatpush1.msra.mxu0 0.0
  %2045 = vmatprep.subr.mxu0 0.0
  %2046 = vmatpush1.msra.mxu0 0.0
  %2047 = vmatprep.subr.mxu0 0.0
  %2048 = vmatpush1.msra.mxu0 0.0
  %2049 = vmatprep.subr.mxu0 0.0
  %2050 = vmatpush1.msra.mxu0 0.0
  %2051 = vmatprep.subr.mxu0 0.0
  %2052 = vmatpush1.msra.mxu0 0.0
  %2053 = vmatprep.subr.mxu0 0.0
  %2054 = vmatpush1.msra.mxu0 0.0
  %2055 = vmatprep.subr.mxu0 0.0
  %2056 = vmatpush1.msra.mxu0 0.0
  %2057 = vmatprep.subr.mxu0 0.0
  %2058 = vmatpush1.msra.mxu0 0.0
  %2059 = vmatprep.subr.mxu0 0.0
  %2060 = vmatpush1.msra.mxu0 0.0
  %2061 = vmatprep.subr.mxu0 0.0
  %2062 = vmatpush1.msra.mxu0 0.0
  %2063 = vmatprep.subr.mxu0 0.0
  %2064 = vmatpush1.msra.mxu0 0.0
  %2065 = vmatprep.subr.mxu0 0.0
  %2066 = vmatpush1.msra.mxu0 0.0
  %2067 = vmatprep.subr.mxu0 0.0
  %2068 = vmatpush1.msra.mxu0 0.0
  %2069 = vmatprep.subr.mxu0 0.0
  %2070 = vmatpush1.msra.mxu0 0.0
  %2071 = vmatprep.subr.mxu0 0.0
  %2072 = vmatpush1.msra.mxu0 0.0
  %2073 = vmatprep.subr.mxu0 0.0
  %2074 = vmatpush1.msra.mxu0 0.0
  %2075 = vmatprep.subr.mxu0 0.0
  %2076 = vmatpush1.msra.mxu0 0.0
  %2077 = vmatprep.subr.mxu0 0.0
  %2078 = vmatpush1.msra.mxu0 0.0
  %2079 = vmatprep.mubr.f32.mxu0 0.0
  %2080 = vmatmul.mubr.f32.gmra.mrb[0].mxu0 %v2013
  %v2081 = vpop.f32.mrb[0].mxu0
  %v2082 = vadd.f32 %v2010, %v2081
  %v2083 = vpop.f32.mrb[0].mxu0
  %2084 = vdwg.mxu0
  %v2085 = vxor.u32 %v2082, 2147483648
  %v2086 = vmul.f32 %v2085, 1.442695
  %v2087 = vpow.pop %v2086
  %v2088 = vadd.f32 %v2087, 1.0
  %v2089 = vrcp.pop %v2088
  %v2090 = vmul.f32 1.0, %v2089
  %v2091 = vtanh.pop %v2082
  %v2092 = vrot.slane %v1851, 2
  %2093 = vrot.lane.b32.xlu0 %v2092, 32
  %v2094 = vpop.permute.xlu0 %2093
  %v2096 = vmul.f32 %v2090, %v2094
  %2098 = vrot.lane.b32.xlu0 %v2091, 64
  %v2099 = vpop.permute.xlu0 %2098
  %v2101 = vmul.f32 %v2090, %v2099
  %2103 = vrot.lane.b32.xlu0 %v2101, 32
  %v2104 = vpop.permute.xlu0 %2103
  %v2106 = vadd.f32 %v2096, %v2104
  %v2107 = vtanh.pop %v2106
  %2109 = vrot.lane.b32.xlu0 %v2107, 64
  %v2110 = vpop.permute.xlu0 %2109
  %v2112 = vmul.f32 %v2090, %v2110
  %2114 = vrot.lane.b32.xlu0 %v2112, 32
  %v2115 = vpop.permute.xlu0 %2114
  %v2117 = vsel %vm205, %v2115, %v2106
  %v2119 = vsel %vm76, %v2117, 0
  %2121 = vmatprep.subr.mxu0 0.0
  %2122 = vmatpush1.msra.mxu0 %v1983
  %2123 = vmatprep.subr.mxu0 0.0
  %2124 = vmatpush1.msra.mxu0 %v1984
  %2125 = vmatprep.subr.mxu0 0.0
  %2126 = vmatpush1.msra.mxu0 %v1985
  %2127 = vmatprep.subr.mxu0 0.0
  %2128 = vmatpush1.msra.mxu0 %v1986
  %2129 = vmatprep.subr.mxu0 0.0
  %2130 = vmatpush1.msra.mxu0 %v1987
  %2131 = vmatprep.subr.mxu0 0.0
  %2132 = vmatpush1.msra.mxu0 %v1988
  %2133 = vmatprep.subr.mxu0 0.0
  %2134 = vmatpush1.msra.mxu0 %v1989
  %2135 = vmatprep.subr.mxu0 0.0
  %2136 = vmatpush1.msra.mxu0 %v1990
  %2137 = vmatprep.subr.mxu0 0.0
  %2138 = vmatpush1.msra.mxu0 0.0
  %2139 = vmatprep.subr.mxu0 0.0
  %2140 = vmatpush1.msra.mxu0 0.0
  %2141 = vmatprep.subr.mxu0 0.0
  %2142 = vmatpush1.msra.mxu0 0.0
  %2143 = vmatprep.subr.mxu0 0.0
  %2144 = vmatpush1.msra.mxu0 0.0
  %2145 = vmatprep.subr.mxu0 0.0
  %2146 = vmatpush1.msra.mxu0 0.0
  %2147 = vmatprep.subr.mxu0 0.0
  %2148 = vmatpush1.msra.mxu0 0.0
  %2149 = vmatprep.subr.mxu0 0.0
  %2150 = vmatpush1.msra.mxu0 0.0
  %2151 = vmatprep.subr.mxu0 0.0
  %2152 = vmatpush1.msra.mxu0 0.0
  %2153 = vmatprep.subr.mxu0 0.0
  %2154 = vmatpush1.msra.mxu0 0.0
  %2155 = vmatprep.subr.mxu0 0.0
  %2156 = vmatpush1.msra.mxu0 0.0
  %2157 = vmatprep.subr.mxu0 0.0
  %2158 = vmatpush1.msra.mxu0 0.0
  %2159 = vmatprep.subr.mxu0 0.0
  %2160 = vmatpush1.msra.mxu0 0.0
  %2161 = vmatprep.subr.mxu0 0.0
  %2162 = vmatpush1.msra.mxu0 0.0
  %2163 = vmatprep.subr.mxu0 0.0
  %2164 = vmatpush1.msra.mxu0 0.0
  %2165 = vmatprep.subr.mxu0 0.0
  %2166 = vmatpush1.msra.mxu0 0.0
  %2167 = vmatprep.subr.mxu0 0.0
  %2168 = vmatpush1.msra.mxu0 0.0
  %2169 = vmatprep.subr.mxu0 0.0
  %2170 = vmatpush1.msra.mxu0 0.0
  %2171 = vmatprep.subr.mxu0 0.0
  %2172 = vmatpush1.msra.mxu0 0.0
  %2173 = vmatprep.subr.mxu0 0.0
  %2174 = vmatpush1.msra.mxu0 0.0
  %2175 = vmatprep.subr.mxu0 0.0
  %2176 = vmatpush1.msra.mxu0 0.0
  %2177 = vmatprep.subr.mxu0 0.0
  %2178 = vmatpush1.msra.mxu0 0.0
  %2179 = vmatprep.subr.mxu0 0.0
  %2180 = vmatpush1.msra.mxu0 0.0
  %2181 = vmatprep.subr.mxu0 0.0
  %2182 = vmatpush1.msra.mxu0 0.0
  %2183 = vmatprep.subr.mxu0 0.0
  %2184 = vmatpush1.msra.mxu0 0.0
  %2185 = vmatprep.mubr.f32.mxu0 0.0
  %2186 = vmatmul.mubr.f32.gmra.mrb[0].mxu0 %v2119
  %v2187 = vpop.f32.mrb[0].mxu0
  %v2188 = vadd.f32 %v1962, %v2187
  %v2189 = vpop.f32.mrb[0].mxu0
  %2190 = vdwg.mxu0
  %v2193 = vunpack.c.l.s4 1966171168
  %v2194 = vunpack.c.0.s8 %v2193
  %v2195 = vlaneseq
  %v2196 = vshrl.u32 %v2195, 7
  %v2197 = vsub.s32 %v2194, %v2196
  %v2198 = vrot.slane %v2188, %v2197
  %v2199 = vcombine.high %v2198, %v2198
  %v2201 = vunpack.c.l.s4 1966171168
  %v2202 = vunpack.c.0.s8 %v2201
  %v2203 = vlaneseq
  %v2204 = vshrl.u32 %v2203, 7
  %v2205 = vsub.s32 %v2202, %v2204
  %v2206 = vrot.slane %v2198, %v2205
  %v2208 = vunpack.c.l.s4 1966171168
  %v2209 = vunpack.c.0.s8 %v2208
  %v2210 = vlaneseq
  %v2211 = vshrl.u32 %v2210, 7
  %v2212 = vsub.s32 %v2209, %v2211
  %v2213 = vrot.slane %v2199, %v2212
  %v2214 = vlaneseq
  %v2215 = vshrl.u32 %v2214, 7
  %v2216 = vsub.s32 0, %v2215
  %v2217 = vrot.slane %v2206, %v2216
  %v2218 = vlaneseq
  %v2219 = vshrl.u32 %v2218, 7
  %v2220 = vsub.s32 0, %v2219
  %v2221 = vrot.slane %v2213, %v2220
  %v2224 = vadd.f32 %v1935, %v2217
  %v2225 = vadd.f32 %v1940, %v2221
  %v2226 = vlaneseq
  %v2227 = vshrl.u32 %v2226, 7
  %v2228 = vsub.s32 0, %v2227
  %v2229 = vrot.slane %v2004, %v2228
  %2231 = vbcast.lane.b32.xlu0 %v2229, 256
  %v2232 = vpop.permute.xlu0 %2231
  %v2233 = vlaneseq
  %v2234 = vshrl.u32 %v2233, 7
  %v2235 = vsub.s32 1, %v2234
  %v2236 = vrot.slane %v2004, %v2235
  %2238 = vbcast.lane.b32.xlu0 %v2236, 256
  %v2239 = vpop.permute.xlu0 %2238
  %v2240 = vmul.f32 %v2232, %v1955
  %v2241 = vmul.f32 %v2239, %v1955
  %v2242 = vadd.f32 %v2224, %v2240
  %v2243 = vadd.f32 %v2225, %v2241
  %v2244 = vtanh.pop %v2242
  %v2245 = vtanh.pop %v2243
  %v2246 = vmul.f32 %v2244, %v1948
  %v2247 = vmul.f32 %v2245, %v1948
  %v2248 = vsel %vm76, %v2246, 0.0
  %2249 = vadd.xlane.f32.xlu0 %v2248
  %v2250 = vpop.xlane.xlu0 %2249
  %v2251 = vsel %vm76, %v2247, 0.0
  %2252 = vadd.xlane.f32.xlu0 %v2251
  %v2253 = vpop.xlane.xlu0 %2252
  %v2256 = vlaneseq
  %v2257 = vand.u32 %v2256, 127
  %v2258 = vlaneseq
  %v2259 = vshrl.u32 %v2258, 7
  %v2260 = vsub.s32 %v2257, %v2259
  %v2261 = vrot.slane %v2250, %v2260
  %v2262 = vlaneseq
  %v2263 = vshrl.u32 %v2262, 7
  %v2264 = vsub.s32 %v2257, %v2263
  %v2265 = vrot.slane %v2253, %v2264
  %vm2266 = vcmask 1041409
  %v2267 = vsel %vm2266, %v2265, %v2261
  %vm2269 = vcmask 58368
  %v2270 = vsel %vm2269, %v2267, -inf
  %2271 = vmax.xlane.f32.xlu0 %v2270
  %v2272 = vpop.xlane.xlu0 %2271
  %v2274 = vlaneseq
  %v2275 = vshrl.u32 %v2274, 7
  %v2276 = vsub.s32 0, %v2275
  %v2277 = vrot.slane %v2272, %v2276
  %v2278 = vlaneseq
  %v2279 = vshrl.u32 %v2278, 7
  %v2280 = vsub.s32 1, %v2279
  %v2281 = vrot.slane %v2272, %v2280
  %v2284 = vsub.f32 %v2250, %v2277
  %v2285 = vsub.f32 %v2253, %v2281
  %v2286 = vmul.f32 %v2284, 1.442695
  %v2287 = vpow.pop %v2286
  %v2288 = vmul.f32 %v2285, 1.442695
  %v2289 = vpow.pop %v2288
  %2292 = vset.pattern.permute.xlu0 0
  %2293 = vperm.xlu0 %2292, %v2287
  %v2294 = vpop.permute.xlu0 %2293
  %2295 = vset.pattern.permute.xlu0 0
  %2296 = vperm.xlu0 %2295, %v2289
  %v2297 = vpop.permute.xlu0 %2296
  %v2298 = vlaneseq
  %v2299 = vshrl.u32 %v2298, 7
  %v2300 = vsub.s32 %v2257, %v2299
  %v2301 = vrot.slane %v2294, %v2300
  %v2302 = vlaneseq
  %v2303 = vshrl.u32 %v2302, 7
  %v2304 = vsub.s32 %v2257, %v2303
  %v2305 = vrot.slane %v2297, %v2304
  %v2306 = vsel %vm2266, %v2305, %v2301
  %v2308 = vsel %vm2269, %v2306, 0.0
  %2309 = vadd.xlane.f32.xlu0 %v2308
  %v2310 = vpop.xlane.xlu0 %2309
  %v2311 = vrcp.pop %v2310
  %v2313 = vlaneseq
  %v2314 = vshrl.u32 %v2313, 7
  %v2315 = vsub.s32 0, %v2314
  %v2316 = vrot.slane %v2311, %v2315
  %v2317 = vlaneseq
  %v2318 = vshrl.u32 %v2317, 7
  %v2319 = vsub.s32 1, %v2318
  %v2320 = vrot.slane %v2311, %v2319
  %v2323 = vmul.f32 %v2287, %v2316
  %v2324 = vmul.f32 %v2289, %v2320
  %v2325 = vlaneseq
  %v2326 = vshrl.u32 %v2325, 7
  %v2327 = vsub.s32 0, %v2326
  %v2328 = vrot.slane %v58, %v2327
  %2330 = vbcast.lane.b32.xlu0 %v2328, 256
  %v2331 = vpop.permute.xlu0 %2330
  %v2332 = vlaneseq
  %v2333 = vshrl.u32 %v2332, 7
  %v2334 = vsub.s32 1, %v2333
  %v2335 = vrot.slane %v58, %v2334
  %2337 = vbcast.lane.b32.xlu0 %v2335, 256
  %v2338 = vpop.permute.xlu0 %2337
  %v2341 = vmul.f32 %v2323, %v2331
  %v2342 = vmul.f32 %v2324, %v2338
  %2345 = vset.pattern.permute.xlu0 0
  %2346 = vperm.xlu0 %2345, %v2341
  %v2347 = vpop.permute.xlu0 %2346
  %2348 = vset.pattern.permute.xlu0 0
  %2349 = vperm.xlu0 %2348, %v2342
  %v2350 = vpop.permute.xlu0 %2349
  %v2351 = vlaneseq
  %v2352 = vshrl.u32 %v2351, 7
  %v2353 = vsub.s32 %v2257, %v2352
  %v2354 = vrot.slane %v2347, %v2353
  %v2355 = vlaneseq
  %v2356 = vshrl.u32 %v2355, 7
  %v2357 = vsub.s32 %v2257, %v2356
  %v2358 = vrot.slane %v2350, %v2357
  %v2359 = vsel %vm2266, %v2358, %v2354
  %v2361 = vsel %vm2269, %v2359, 0.0
  %2362 = vadd.xlane.f32.xlu0 %v2361
  %v2363 = vpop.xlane.xlu0 %2362
  %v2364 = vrcp.pop %v2363
  %v2366 = vlaneseq
  %v2367 = vshrl.u32 %v2366, 7
  %v2368 = vsub.s32 0, %v2367
  %v2369 = vrot.slane %v2364, %v2368
  %v2370 = vlaneseq
  %v2371 = vshrl.u32 %v2370, 7
  %v2372 = vsub.s32 1, %v2371
  %v2373 = vrot.slane %v2364, %v2372
  %v2376 = vmul.f32 %v2341, %v2369
  %v2377 = vmul.f32 %v2342, %v2373
  %2379 = vset.pattern.permute.xlu0 0
  %2380 = vperm.xlu0 %2379, %v2376
  %v2381 = vpop.permute.xlu0 %2380
  %2384 = vset.pattern.permute.xlu0 0
  %2385 = vperm.xlu0 %2384, %v2377
  %v2386 = vpop.permute.xlu0 %2385
  %v2388 = vmul.f32 %v2381, %v1852
  %v2389 = vmul.f32 %v2386, %v1853
  %v2390 = vsel %vm76, %v2388, 0.0
  %v2391 = vrot.slane %v2390, 4
  %v2392 = vadd.f32 %v2390, %v2391
  %v2393 = vrot.slane %v2392, 2
  %v2394 = vadd.f32 %v2392, %v2393
  %v2395 = vrot.slane %v2394, 1
  %v2396 = vadd.f32 %v2394, %v2395
  %v2397 = vsel %vm76, %v2389, 0.0
  %v2398 = vrot.slane %v2397, 4
  %v2399 = vadd.f32 %v2397, %v2398
  %v2400 = vrot.slane %v2399, 2
  %v2401 = vadd.f32 %v2399, %v2400
  %v2402 = vrot.slane %v2401, 1
  %v2403 = vadd.f32 %v2401, %v2402
  %v2405 = vlaneseq
  %v2406 = vshrl.u32 %v2405, 7
  %v2407 = vsub.s32 0, %v2406
  %v2408 = vrot.slane %v2004, %v2407
  %2410 = vbcast.lane.b32.xlu0 %v2408, 256
  %v2411 = vpop.permute.xlu0 %2410
  %v2412 = vlaneseq
  %v2413 = vshrl.u32 %v2412, 7
  %v2414 = vsub.s32 1, %v2413
  %v2415 = vrot.slane %v2004, %v2414
  %2417 = vbcast.lane.b32.xlu0 %v2415, 256
  %v2418 = vpop.permute.xlu0 %2417
  %v2421 = vmin.f32 %v2376, %v2411
  %v2422 = vmin.f32 %v2377, %v2418
  %2425 = vset.pattern.permute.xlu0 0
  %2426 = vperm.xlu0 %2425, %v2421
  %v2427 = vpop.permute.xlu0 %2426
  %2428 = vset.pattern.permute.xlu0 0
  %2429 = vperm.xlu0 %2428, %v2422
  %v2430 = vpop.permute.xlu0 %2429
  %v2431 = vlaneseq
  %v2432 = vshrl.u32 %v2431, 7
  %v2433 = vsub.s32 %v2257, %v2432
  %v2434 = vrot.slane %v2427, %v2433
  %v2435 = vlaneseq
  %v2436 = vshrl.u32 %v2435, 7
  %v2437 = vsub.s32 %v2257, %v2436
  %v2438 = vrot.slane %v2430, %v2437
  %v2439 = vsel %vm2266, %v2438, %v2434
  %v2441 = vsel %vm2269, %v2439, 0.0
  %2442 = vadd.xlane.f32.xlu0 %v2441
  %v2443 = vpop.xlane.xlu0 %2442
  %v2444 = vlaneseq
  %v2445 = vshrl.u32 %v2444, 7
  %v2446 = vsub.s32 %v2257, %v2445
  %v2447 = vrot.slane %v2381, %v2446
  %v2448 = vlaneseq
  %v2449 = vshrl.u32 %v2448, 7
  %v2450 = vsub.s32 %v2257, %v2449
  %v2451 = vrot.slane %v2386, %v2450
  %v2452 = vsel %vm2266, %v2451, %v2447
  %v2454 = vadd.f32 %v2004, %v2452
  %v2457 = vsel %vm2266, %v2403, %v2396
  %2458 = vrot.lane.b32.xlu0 %v2457, 32
  %v2459 = vpop.permute.xlu0 %2458
  %v2461 = vsel %vm205, %v2115, %v2459
  %v2463 = vsel %vm2011, %v2461, 0
  %2465 = vmatprep.subr.mxu0 0.0
  %2466 = vmatpush1.msra.mxu0 %v1991
  %2467 = vmatprep.subr.mxu0 0.0
  %2468 = vmatpush1.msra.mxu0 %v1992
  %2469 = vmatprep.subr.mxu0 0.0
  %2470 = vmatpush1.msra.mxu0 %v1993
  %2471 = vmatprep.subr.mxu0 0.0
  %2472 = vmatpush1.msra.mxu0 %v1994
  %2473 = vmatprep.subr.mxu0 0.0
  %2474 = vmatpush1.msra.mxu0 %v1995
  %2475 = vmatprep.subr.mxu0 0.0
  %2476 = vmatpush1.msra.mxu0 %v1996
  %2477 = vmatprep.subr.mxu0 0.0
  %2478 = vmatpush1.msra.mxu0 %v1997
  %2479 = vmatprep.subr.mxu0 0.0
  %2480 = vmatpush1.msra.mxu0 %v1998
  %2481 = vmatprep.subr.mxu0 0.0
  %2482 = vmatpush1.msra.mxu0 %v1999
  %2483 = vmatprep.subr.mxu0 0.0
  %2484 = vmatpush1.msra.mxu0 %v2000
  %2485 = vmatprep.subr.mxu0 0.0
  %2486 = vmatpush1.msra.mxu0 %v2001
  %2487 = vmatprep.subr.mxu0 0.0
  %2488 = vmatpush1.msra.mxu0 %v2002
  %2489 = vmatprep.subr.mxu0 0.0
  %2490 = vmatpush1.msra.mxu0 0.0
  %2491 = vmatprep.subr.mxu0 0.0
  %2492 = vmatpush1.msra.mxu0 0.0
  %2493 = vmatprep.subr.mxu0 0.0
  %2494 = vmatpush1.msra.mxu0 0.0
  %2495 = vmatprep.subr.mxu0 0.0
  %2496 = vmatpush1.msra.mxu0 0.0
  %2497 = vmatprep.subr.mxu0 0.0
  %2498 = vmatpush1.msra.mxu0 0.0
  %2499 = vmatprep.subr.mxu0 0.0
  %2500 = vmatpush1.msra.mxu0 0.0
  %2501 = vmatprep.subr.mxu0 0.0
  %2502 = vmatpush1.msra.mxu0 0.0
  %2503 = vmatprep.subr.mxu0 0.0
  %2504 = vmatpush1.msra.mxu0 0.0
  %2505 = vmatprep.subr.mxu0 0.0
  %2506 = vmatpush1.msra.mxu0 0.0
  %2507 = vmatprep.subr.mxu0 0.0
  %2508 = vmatpush1.msra.mxu0 0.0
  %2509 = vmatprep.subr.mxu0 0.0
  %2510 = vmatpush1.msra.mxu0 0.0
  %2511 = vmatprep.subr.mxu0 0.0
  %2512 = vmatpush1.msra.mxu0 0.0
  %2513 = vmatprep.subr.mxu0 0.0
  %2514 = vmatpush1.msra.mxu0 0.0
  %2515 = vmatprep.subr.mxu0 0.0
  %2516 = vmatpush1.msra.mxu0 0.0
  %2517 = vmatprep.subr.mxu0 0.0
  %2518 = vmatpush1.msra.mxu0 0.0
  %2519 = vmatprep.subr.mxu0 0.0
  %2520 = vmatpush1.msra.mxu0 0.0
  %2521 = vmatprep.subr.mxu0 0.0
  %2522 = vmatpush1.msra.mxu0 0.0
  %2523 = vmatprep.subr.mxu0 0.0
  %2524 = vmatpush1.msra.mxu0 0.0
  %2525 = vmatprep.subr.mxu0 0.0
  %2526 = vmatpush1.msra.mxu0 0.0
  %2527 = vmatprep.subr.mxu0 0.0
  %2528 = vmatpush1.msra.mxu0 0.0
  %2529 = vmatprep.mubr.f32.mxu0 0.0
  %2530 = vmatmul.mubr.f32.gmra.mrb[0].mxu0 %v2463
  %v2531 = vpop.f32.mrb[0].mxu0
  %v2532 = vadd.f32 %v1969, %v2531
  %v2533 = vpop.f32.mrb[0].mxu0
  %2534 = vdwg.mxu0
  %v2535 = vsel %vm1761, %v2532, -inf
  %2536 = vmax.xlane.f32.xlu0 %v2535
  %v2537 = vpop.xlane.xlu0 %2536
  %v2538 = vsub.f32 %v2532, %v2537
  %v2539 = vmul.f32 %v2538, 1.442695
  %v2540 = vpow.pop %v2539
  %v2541 = vsel %vm1761, %v2540, 0.0
  %2542 = vadd.xlane.f32.xlu0 %v2541
  %v2543 = vpop.xlane.xlu0 %2542
  %v2544 = vlog2.pop %v2543
  %v2545 = vmul.f32 %v2544, 0.6931472
  %v2546 = vadd.f32 %v2537, %v2545
  %v2547 = vld [vmem:[%s15] sm:$0x3]
  %v2548 = vmul.f32 %v2532, %v2547
  %v2549 = vsel %vm1761, %v2548, 0.0
  %2550 = vadd.xlane.f32.xlu0 %v2549
  %v2551 = vpop.xlane.xlu0 %2550
  %v2552 = vsub.f32 %v2546, %v2551
  %v2553 = vmul.f32 %v2552, %v2003
  %v2554 = vadd.f32 %v2553, 0.0
  %v2555 = vmul.f32 %v2443, %v2003
  %v2556 = vadd.f32 %v2555, 0.0
  %2558 = vrot.lane.b32.xlu0 %v2112, 96
  %v2559 = vpop.permute.xlu0 %2558
  %v2561 = vsel %vm76, %v2457, %v2559
  %s2562 = scalar_lea.vmem %s7, 2
  %v2563 = vld [vmem:[%s2562] sm:$0x3]
  %v2565 = vsel %vm2011, %v2561, 0
  %2567 = vmatprep.subr.mxu0 0.0
  %2568 = vmatpush1.msra.mxu0 %v1971
  %2569 = vmatprep.subr.mxu0 0.0
  %2570 = vmatpush1.msra.mxu0 %v1972
  %2571 = vmatprep.subr.mxu0 0.0
  %2572 = vmatpush1.msra.mxu0 %v1973
  %2573 = vmatprep.subr.mxu0 0.0
  %2574 = vmatpush1.msra.mxu0 %v1974
  %2575 = vmatprep.subr.mxu0 0.0
  %2576 = vmatpush1.msra.mxu0 %v1975
  %2577 = vmatprep.subr.mxu0 0.0
  %2578 = vmatpush1.msra.mxu0 %v1976
  %2579 = vmatprep.subr.mxu0 0.0
  %2580 = vmatpush1.msra.mxu0 %v1977
  %2581 = vmatprep.subr.mxu0 0.0
  %2582 = vmatpush1.msra.mxu0 %v1978
  %2583 = vmatprep.subr.mxu0 0.0
  %2584 = vmatpush1.msra.mxu0 %v1979
  %2585 = vmatprep.subr.mxu0 0.0
  %2586 = vmatpush1.msra.mxu0 %v1980
  %2587 = vmatprep.subr.mxu0 0.0
  %2588 = vmatpush1.msra.mxu0 %v1981
  %2589 = vmatprep.subr.mxu0 0.0
  %2590 = vmatpush1.msra.mxu0 %v1982
  %2591 = vmatprep.subr.mxu0 0.0
  %2592 = vmatpush1.msra.mxu0 0.0
  %2593 = vmatprep.subr.mxu0 0.0
  %2594 = vmatpush1.msra.mxu0 0.0
  %2595 = vmatprep.subr.mxu0 0.0
  %2596 = vmatpush1.msra.mxu0 0.0
  %2597 = vmatprep.subr.mxu0 0.0
  %2598 = vmatpush1.msra.mxu0 0.0
  %2599 = vmatprep.subr.mxu0 0.0
  %2600 = vmatpush1.msra.mxu0 0.0
  %2601 = vmatprep.subr.mxu0 0.0
  %2602 = vmatpush1.msra.mxu0 0.0
  %2603 = vmatprep.subr.mxu0 0.0
  %2604 = vmatpush1.msra.mxu0 0.0
  %2605 = vmatprep.subr.mxu0 0.0
  %2606 = vmatpush1.msra.mxu0 0.0
  %2607 = vmatprep.subr.mxu0 0.0
  %2608 = vmatpush1.msra.mxu0 0.0
  %2609 = vmatprep.subr.mxu0 0.0
  %2610 = vmatpush1.msra.mxu0 0.0
  %2611 = vmatprep.subr.mxu0 0.0
  %2612 = vmatpush1.msra.mxu0 0.0
  %2613 = vmatprep.subr.mxu0 0.0
  %2614 = vmatpush1.msra.mxu0 0.0
  %2615 = vmatprep.subr.mxu0 0.0
  %2616 = vmatpush1.msra.mxu0 0.0
  %2617 = vmatprep.subr.mxu0 0.0
  %2618 = vmatpush1.msra.mxu0 0.0
  %2619 = vmatprep.subr.mxu0 0.0
  %2620 = vmatpush1.msra.mxu0 0.0
  %2621 = vmatprep.subr.mxu0 0.0
  %2622 = vmatpush1.msra.mxu0 0.0
  %2623 = vmatprep.subr.mxu0 0.0
  %2624 = vmatpush1.msra.mxu0 0.0
  %2625 = vmatprep.subr.mxu0 0.0
  %2626 = vmatpush1.msra.mxu0 0.0
  %2627 = vmatprep.subr.mxu0 0.0
  %2628 = vmatpush1.msra.mxu0 0.0
  %2629 = vmatprep.subr.mxu0 0.0
  %2630 = vmatpush1.msra.mxu0 0.0
  %2631 = vmatprep.mubr.f32.mxu0 0.0
  %2632 = vmatmul.mubr.f32.gmra.mrb[0].mxu0 %v2565
  %v2633 = vpop.f32.mrb[0].mxu0
  %v2634 = vadd.f32 %v2563, %v2633
  %v2635 = vpop.f32.mrb[0].mxu0
  %2636 = vdwg.mxu0
  %v2637 = vxor.u32 %v2634, 2147483648
  %v2638 = vmul.f32 %v2637, 1.442695
  %v2639 = vpow.pop %v2638
  %v2640 = vadd.f32 %v2639, 1.0
  %v2641 = vrcp.pop %v2640
  %v2642 = vmul.f32 1.0, %v2641
  %v2643 = vtanh.pop %v2634
  %v2644 = vmul.f32 %v2642, %v2106
  %2646 = vrot.lane.b32.xlu0 %v2643, 64
  %v2647 = vpop.permute.xlu0 %2646
  %v2649 = vmul.f32 %v2642, %v2647
  %2651 = vrot.lane.b32.xlu0 %v2649, 32
  %v2652 = vpop.permute.xlu0 %2651
  %v2654 = vadd.f32 %v2644, %v2652
  %v2655 = vtanh.pop %v2654
  %2657 = vrot.lane.b32.xlu0 %v2655, 64
  %v2658 = vpop.permute.xlu0 %2657
  %v2660 = vmul.f32 %v2642, %v2658
  %2662 = vrot.lane.b32.xlu0 %v2660, 32
  %v2663 = vpop.permute.xlu0 %2662
  %v2665 = vsel %vm205, %v2663, %v2654
  %v2667 = vsel %vm76, %v2665, 0
  %2669 = vmatprep.subr.mxu0 0.0
  %2670 = vmatpush1.msra.mxu0 %v1983
  %2671 = vmatprep.subr.mxu0 0.0
  %2672 = vmatpush1.msra.mxu0 %v1984
  %2673 = vmatprep.subr.mxu0 0.0
  %2674 = vmatpush1.msra.mxu0 %v1985
  %2675 = vmatprep.subr.mxu0 0.0
  %2676 = vmatpush1.msra.mxu0 %v1986
  %2677 = vmatprep.subr.mxu0 0.0
  %2678 = vmatpush1.msra.mxu0 %v1987
  %2679 = vmatprep.subr.mxu0 0.0
  %2680 = vmatpush1.msra.mxu0 %v1988
  %2681 = vmatprep.subr.mxu0 0.0
  %2682 = vmatpush1.msra.mxu0 %v1989
  %2683 = vmatprep.subr.mxu0 0.0
  %2684 = vmatpush1.msra.mxu0 %v1990
  %2685 = vmatprep.subr.mxu0 0.0
  %2686 = vmatpush1.msra.mxu0 0.0
  %2687 = vmatprep.subr.mxu0 0.0
  %2688 = vmatpush1.msra.mxu0 0.0
  %2689 = vmatprep.subr.mxu0 0.0
  %2690 = vmatpush1.msra.mxu0 0.0
  %2691 = vmatprep.subr.mxu0 0.0
  %2692 = vmatpush1.msra.mxu0 0.0
  %2693 = vmatprep.subr.mxu0 0.0
  %2694 = vmatpush1.msra.mxu0 0.0
  %2695 = vmatprep.subr.mxu0 0.0
  %2696 = vmatpush1.msra.mxu0 0.0
  %2697 = vmatprep.subr.mxu0 0.0
  %2698 = vmatpush1.msra.mxu0 0.0
  %2699 = vmatprep.subr.mxu0 0.0
  %2700 = vmatpush1.msra.mxu0 0.0
  %2701 = vmatprep.subr.mxu0 0.0
  %2702 = vmatpush1.msra.mxu0 0.0
  %2703 = vmatprep.subr.mxu0 0.0
  %2704 = vmatpush1.msra.mxu0 0.0
  %2705 = vmatprep.subr.mxu0 0.0
  %2706 = vmatpush1.msra.mxu0 0.0
  %2707 = vmatprep.subr.mxu0 0.0
  %2708 = vmatpush1.msra.mxu0 0.0
  %2709 = vmatprep.subr.mxu0 0.0
  %2710 = vmatpush1.msra.mxu0 0.0
  %2711 = vmatprep.subr.mxu0 0.0
  %2712 = vmatpush1.msra.mxu0 0.0
  %2713 = vmatprep.subr.mxu0 0.0
  %2714 = vmatpush1.msra.mxu0 0.0
  %2715 = vmatprep.subr.mxu0 0.0
  %2716 = vmatpush1.msra.mxu0 0.0
  %2717 = vmatprep.subr.mxu0 0.0
  %2718 = vmatpush1.msra.mxu0 0.0
  %2719 = vmatprep.subr.mxu0 0.0
  %2720 = vmatpush1.msra.mxu0 0.0
  %2721 = vmatprep.subr.mxu0 0.0
  %2722 = vmatpush1.msra.mxu0 0.0
  %2723 = vmatprep.subr.mxu0 0.0
  %2724 = vmatpush1.msra.mxu0 0.0
  %2725 = vmatprep.subr.mxu0 0.0
  %2726 = vmatpush1.msra.mxu0 0.0
  %2727 = vmatprep.subr.mxu0 0.0
  %2728 = vmatpush1.msra.mxu0 0.0
  %2729 = vmatprep.subr.mxu0 0.0
  %2730 = vmatpush1.msra.mxu0 0.0
  %2731 = vmatprep.subr.mxu0 0.0
  %2732 = vmatpush1.msra.mxu0 0.0
  %2733 = vmatprep.mubr.f32.mxu0 0.0
  %2734 = vmatmul.mubr.f32.gmra.mrb[0].mxu0 %v2667
  %v2735 = vpop.f32.mrb[0].mxu0
  %v2736 = vadd.f32 %v1962, %v2735
  %v2737 = vpop.f32.mrb[0].mxu0
  %2738 = vdwg.mxu0
  %v2741 = vunpack.c.l.s4 1966171168
  %v2742 = vunpack.c.0.s8 %v2741
  %v2743 = vlaneseq
  %v2744 = vshrl.u32 %v2743, 7
  %v2745 = vsub.s32 %v2742, %v2744
  %v2746 = vrot.slane %v2736, %v2745
  %v2747 = vcombine.high %v2746, %v2746
  %v2749 = vunpack.c.l.s4 1966171168
  %v2750 = vunpack.c.0.s8 %v2749
  %v2751 = vlaneseq
  %v2752 = vshrl.u32 %v2751, 7
  %v2753 = vsub.s32 %v2750, %v2752
  %v2754 = vrot.slane %v2746, %v2753
  %v2756 = vunpack.c.l.s4 1966171168
  %v2757 = vunpack.c.0.s8 %v2756
  %v2758 = vlaneseq
  %v2759 = vshrl.u32 %v2758, 7
  %v2760 = vsub.s32 %v2757, %v2759
  %v2761 = vrot.slane %v2747, %v2760
  %v2762 = vlaneseq
  %v2763 = vshrl.u32 %v2762, 7
  %v2764 = vsub.s32 0, %v2763
  %v2765 = vrot.slane %v2754, %v2764
  %v2766 = vlaneseq
  %v2767 = vshrl.u32 %v2766, 7
  %v2768 = vsub.s32 0, %v2767
  %v2769 = vrot.slane %v2761, %v2768
  %v2772 = vadd.f32 %v1935, %v2765
  %v2773 = vadd.f32 %v1940, %v2769
  %v2774 = vlaneseq
  %v2775 = vshrl.u32 %v2774, 7
  %v2776 = vsub.s32 0, %v2775
  %v2777 = vrot.slane %v2454, %v2776
  %2779 = vbcast.lane.b32.xlu0 %v2777, 256
  %v2780 = vpop.permute.xlu0 %2779
  %v2781 = vlaneseq
  %v2782 = vshrl.u32 %v2781, 7
  %v2783 = vsub.s32 1, %v2782
  %v2784 = vrot.slane %v2454, %v2783
  %2786 = vbcast.lane.b32.xlu0 %v2784, 256
  %v2787 = vpop.permute.xlu0 %2786
  %v2788 = vmul.f32 %v2780, %v1955
  %v2789 = vmul.f32 %v2787, %v1955
  %v2790 = vadd.f32 %v2772, %v2788
  %v2791 = vadd.f32 %v2773, %v2789
  %v2792 = vtanh.pop %v2790
  %v2793 = vtanh.pop %v2791
  %v2794 = vmul.f32 %v2792, %v1948
  %v2795 = vmul.f32 %v2793, %v1948
  %v2796 = vsel %vm76, %v2794, 0.0
  %2797 = vadd.xlane.f32.xlu0 %v2796
  %v2798 = vpop.xlane.xlu0 %2797
  %v2799 = vsel %vm76, %v2795, 0.0
  %2800 = vadd.xlane.f32.xlu0 %v2799
  %v2801 = vpop.xlane.xlu0 %2800
  %v2804 = vlaneseq
  %v2805 = vshrl.u32 %v2804, 7
  %v2806 = vsub.s32 %v2257, %v2805
  %v2807 = vrot.slane %v2798, %v2806
  %v2808 = vlaneseq
  %v2809 = vshrl.u32 %v2808, 7
  %v2810 = vsub.s32 %v2257, %v2809
  %v2811 = vrot.slane %v2801, %v2810
  %v2812 = vsel %vm2266, %v2811, %v2807
  %v2814 = vsel %vm2269, %v2812, -inf
  %2815 = vmax.xlane.f32.xlu0 %v2814
  %v2816 = vpop.xlane.xlu0 %2815
  %v2818 = vlaneseq
  %v2819 = vshrl.u32 %v2818, 7
  %v2820 = vsub.s32 0, %v2819
  %v2821 = vrot.slane %v2816, %v2820
  %v2822 = vlaneseq
  %v2823 = vshrl.u32 %v2822, 7
  %v2824 = vsub.s32 1, %v2823
  %v2825 = vrot.slane %v2816, %v2824
  %v2828 = vsub.f32 %v2798, %v2821
  %v2829 = vsub.f32 %v2801, %v2825
  %v2830 = vmul.f32 %v2828, 1.442695
  %v2831 = vpow.pop %v2830
  %v2832 = vmul.f32 %v2829, 1.442695
  %v2833 = vpow.pop %v2832
  %2836 = vset.pattern.permute.xlu0 0
  %2837 = vperm.xlu0 %2836, %v2831
  %v2838 = vpop.permute.xlu0 %2837
  %2839 = vset.pattern.permute.xlu0 0
  %2840 = vperm.xlu0 %2839, %v2833
  %v2841 = vpop.permute.xlu0 %2840
  %v2842 = vlaneseq
  %v2843 = vshrl.u32 %v2842, 7
  %v2844 = vsub.s32 %v2257, %v2843
  %v2845 = vrot.slane %v2838, %v2844
  %v2846 = vlaneseq
  %v2847 = vshrl.u32 %v2846, 7
  %v2848 = vsub.s32 %v2257, %v2847
  %v2849 = vrot.slane %v2841, %v2848
  %v2850 = vsel %vm2266, %v2849, %v2845
  %v2852 = vsel %vm2269, %v2850, 0.0
  %2853 = vadd.xlane.f32.xlu0 %v2852
  %v2854 = vpop.xlane.xlu0 %2853
  %v2855 = vrcp.pop %v2854
  %v2857 = vlaneseq
  %v2858 = vshrl.u32 %v2857, 7
  %v2859 = vsub.s32 0, %v2858
  %v2860 = vrot.slane %v2855, %v2859
  %v2861 = vlaneseq
  %v2862 = vshrl.u32 %v2861, 7
  %v2863 = vsub.s32 1, %v2862
  %v2864 = vrot.slane %v2855, %v2863
  %v2867 = vmul.f32 %v2831, %v2860
  %v2868 = vmul.f32 %v2833, %v2864
  %v2869 = vmul.f32 %v2867, %v2331
  %v2870 = vmul.f32 %v2868, %v2338
  %2873 = vset.pattern.permute.xlu0 0
  %2874 = vperm.xlu0 %2873, %v2869
  %v2875 = vpop.permute.xlu0 %2874
  %2876 = vset.pattern.permute.xlu0 0
  %2877 = vperm.xlu0 %2876, %v2870
  %v2878 = vpop.permute.xlu0 %2877
  %v2879 = vlaneseq
  %v2880 = vshrl.u32 %v2879, 7
  %v2881 = vsub.s32 %v2257, %v2880
  %v2882 = vrot.slane %v2875, %v2881
  %v2883 = vlaneseq
  %v2884 = vshrl.u32 %v2883, 7
  %v2885 = vsub.s32 %v2257, %v2884
  %v2886 = vrot.slane %v2878, %v2885
  %v2887 = vsel %vm2266, %v2886, %v2882
  %v2889 = vsel %vm2269, %v2887, 0.0
  %2890 = vadd.xlane.f32.xlu0 %v2889
  %v2891 = vpop.xlane.xlu0 %2890
  %v2892 = vrcp.pop %v2891
  %v2894 = vlaneseq
  %v2895 = vshrl.u32 %v2894, 7
  %v2896 = vsub.s32 0, %v2895
  %v2897 = vrot.slane %v2892, %v2896
  %v2898 = vlaneseq
  %v2899 = vshrl.u32 %v2898, 7
  %v2900 = vsub.s32 1, %v2899
  %v2901 = vrot.slane %v2892, %v2900
  %v2904 = vmul.f32 %v2869, %v2897
  %v2905 = vmul.f32 %v2870, %v2901
  %2907 = vset.pattern.permute.xlu0 0
  %2908 = vperm.xlu0 %2907, %v2904
  %v2909 = vpop.permute.xlu0 %2908
  %2912 = vset.pattern.permute.xlu0 0
  %2913 = vperm.xlu0 %2912, %v2905
  %v2914 = vpop.permute.xlu0 %2913
  %v2916 = vmul.f32 %v2909, %v1852
  %v2917 = vmul.f32 %v2914, %v1853
  %v2918 = vsel %vm76, %v2916, 0.0
  %v2919 = vrot.slane %v2918, 4
  %v2920 = vadd.f32 %v2918, %v2919
  %v2921 = vrot.slane %v2920, 2
  %v2922 = vadd.f32 %v2920, %v2921
  %v2923 = vrot.slane %v2922, 1
  %v2924 = vadd.f32 %v2922, %v2923
  %v2925 = vsel %vm76, %v2917, 0.0
  %v2926 = vrot.slane %v2925, 4
  %v2927 = vadd.f32 %v2925, %v2926
  %v2928 = vrot.slane %v2927, 2
  %v2929 = vadd.f32 %v2927, %v2928
  %v2930 = vrot.slane %v2929, 1
  %v2931 = vadd.f32 %v2929, %v2930
  %v2933 = vlaneseq
  %v2934 = vshrl.u32 %v2933, 7
  %v2935 = vsub.s32 0, %v2934
  %v2936 = vrot.slane %v2454, %v2935
  %2938 = vbcast.lane.b32.xlu0 %v2936, 256
  %v2939 = vpop.permute.xlu0 %2938
  %v2940 = vlaneseq
  %v2941 = vshrl.u32 %v2940, 7
  %v2942 = vsub.s32 1, %v2941
  %v2943 = vrot.slane %v2454, %v2942
  %2945 = vbcast.lane.b32.xlu0 %v2943, 256
  %v2946 = vpop.permute.xlu0 %2945
  %v2949 = vmin.f32 %v2904, %v2939
  %v2950 = vmin.f32 %v2905, %v2946
  %2953 = vset.pattern.permute.xlu0 0
  %2954 = vperm.xlu0 %2953, %v2949
  %v2955 = vpop.permute.xlu0 %2954
  %2956 = vset.pattern.permute.xlu0 0
  %2957 = vperm.xlu0 %2956, %v2950
  %v2958 = vpop.permute.xlu0 %2957
  %v2959 = vlaneseq
  %v2960 = vshrl.u32 %v2959, 7
  %v2961 = vsub.s32 %v2257, %v2960
  %v2962 = vrot.slane %v2955, %v2961
  %v2963 = vlaneseq
  %v2964 = vshrl.u32 %v2963, 7
  %v2965 = vsub.s32 %v2257, %v2964
  %v2966 = vrot.slane %v2958, %v2965
  %v2967 = vsel %vm2266, %v2966, %v2962
  %v2969 = vsel %vm2269, %v2967, 0.0
  %2970 = vadd.xlane.f32.xlu0 %v2969
  %v2971 = vpop.xlane.xlu0 %2970
  %v2972 = vlaneseq
  %v2973 = vshrl.u32 %v2972, 7
  %v2974 = vsub.s32 %v2257, %v2973
  %v2975 = vrot.slane %v2909, %v2974
  %v2976 = vlaneseq
  %v2977 = vshrl.u32 %v2976, 7
  %v2978 = vsub.s32 %v2257, %v2977
  %v2979 = vrot.slane %v2914, %v2978
  %v2980 = vsel %vm2266, %v2979, %v2975
  %v2982 = vadd.f32 %v2454, %v2980
  %v2985 = vsel %vm2266, %v2931, %v2924
  %2986 = vrot.lane.b32.xlu0 %v2985, 32
  %v2987 = vpop.permute.xlu0 %2986
  %v2989 = vsel %vm205, %v2663, %v2987
  %v2991 = vsel %vm2011, %v2989, 0
  %2993 = vmatprep.subr.mxu0 0.0
  %2994 = vmatpush1.msra.mxu0 %v1991
  %2995 = vmatprep.subr.mxu0 0.0
  %2996 = vmatpush1.msra.mxu0 %v1992
  %2997 = vmatprep.subr.mxu0 0.0
  %2998 = vmatpush1.msra.mxu0 %v1993
  %2999 = vmatprep.subr.mxu0 0.0
  %3000 = vmatpush1.msra.mxu0 %v1994
  %3001 = vmatprep.subr.mxu0 0.0
  %3002 = vmatpush1.msra.mxu0 %v1995
  %3003 = vmatprep.subr.mxu0 0.0
  %3004 = vmatpush1.msra.mxu0 %v1996
  %3005 = vmatprep.subr.mxu0 0.0
  %3006 = vmatpush1.msra.mxu0 %v1997
  %3007 = vmatprep.subr.mxu0 0.0
  %3008 = vmatpush1.msra.mxu0 %v1998
  %3009 = vmatprep.subr.mxu0 0.0
  %3010 = vmatpush1.msra.mxu0 %v1999
  %3011 = vmatprep.subr.mxu0 0.0
  %3012 = vmatpush1.msra.mxu0 %v2000
  %3013 = vmatprep.subr.mxu0 0.0
  %3014 = vmatpush1.msra.mxu0 %v2001
  %3015 = vmatprep.subr.mxu0 0.0
  %3016 = vmatpush1.msra.mxu0 %v2002
  %3017 = vmatprep.subr.mxu0 0.0
  %3018 = vmatpush1.msra.mxu0 0.0
  %3019 = vmatprep.subr.mxu0 0.0
  %3020 = vmatpush1.msra.mxu0 0.0
  %3021 = vmatprep.subr.mxu0 0.0
  %3022 = vmatpush1.msra.mxu0 0.0
  %3023 = vmatprep.subr.mxu0 0.0
  %3024 = vmatpush1.msra.mxu0 0.0
  %3025 = vmatprep.subr.mxu0 0.0
  %3026 = vmatpush1.msra.mxu0 0.0
  %3027 = vmatprep.subr.mxu0 0.0
  %3028 = vmatpush1.msra.mxu0 0.0
  %3029 = vmatprep.subr.mxu0 0.0
  %3030 = vmatpush1.msra.mxu0 0.0
  %3031 = vmatprep.subr.mxu0 0.0
  %3032 = vmatpush1.msra.mxu0 0.0
  %3033 = vmatprep.subr.mxu0 0.0
  %3034 = vmatpush1.msra.mxu0 0.0
  %3035 = vmatprep.subr.mxu0 0.0
  %3036 = vmatpush1.msra.mxu0 0.0
  %3037 = vmatprep.subr.mxu0 0.0
  %3038 = vmatpush1.msra.mxu0 0.0
  %3039 = vmatprep.subr.mxu0 0.0
  %3040 = vmatpush1.msra.mxu0 0.0
  %3041 = vmatprep.subr.mxu0 0.0
  %3042 = vmatpush1.msra.mxu0 0.0
  %3043 = vmatprep.subr.mxu0 0.0
  %3044 = vmatpush1.msra.mxu0 0.0
  %3045 = vmatprep.subr.mxu0 0.0
  %3046 = vmatpush1.msra.mxu0 0.0
  %3047 = vmatprep.subr.mxu0 0.0
  %3048 = vmatpush1.msra.mxu0 0.0
  %3049 = vmatprep.subr.mxu0 0.0
  %3050 = vmatpush1.msra.mxu0 0.0
  %3051 = vmatprep.subr.mxu0 0.0
  %3052 = vmatpush1.msra.mxu0 0.0
  %3053 = vmatprep.subr.mxu0 0.0
  %3054 = vmatpush1.msra.mxu0 0.0
  %3055 = vmatprep.subr.mxu0 0.0
  %3056 = vmatpush1.msra.mxu0 0.0
  %3057 = vmatprep.mubr.f32.mxu0 0.0
  %3058 = vmatmul.mubr.f32.gmra.mrb[0].mxu0 %v2991
  %v3059 = vpop.f32.mrb[0].mxu0
  %v3060 = vadd.f32 %v1969, %v3059
  %v3061 = vpop.f32.mrb[0].mxu0
  %3062 = vdwg.mxu0
  %v3063 = vsel %vm1761, %v3060, -inf
  %3064 = vmax.xlane.f32.xlu0 %v3063
  %v3065 = vpop.xlane.xlu0 %3064
  %v3066 = vsub.f32 %v3060, %v3065
  %v3067 = vmul.f32 %v3066, 1.442695
  %v3068 = vpow.pop %v3067
  %v3069 = vsel %vm1761, %v3068, 0.0
  %3070 = vadd.xlane.f32.xlu0 %v3069
  %v3071 = vpop.xlane.xlu0 %3070
  %v3072 = vlog2.pop %v3071
  %v3073 = vmul.f32 %v3072, 0.6931472
  %v3074 = vadd.f32 %v3065, %v3073
  %s3075 = scalar_lea.vmem %s15, 2
  %v3076 = vld [vmem:[%s3075] sm:$0x3]
  %v3077 = vmul.f32 %v3060, %v3076
  %v3078 = vsel %vm1761, %v3077, 0.0
  %3079 = vadd.xlane.f32.xlu0 %v3078
  %v3080 = vpop.xlane.xlu0 %3079
  %v3081 = vsub.f32 %v3074, %v3080
  %v3082 = vmul.f32 %v3081, %v2003
  %3084 = vrot.lane.b32.xlu0 %v3082, 127
  %v3085 = vpop.permute.xlu0 %3084
  %v3087 = vadd.f32 %v2554, %v3085
  %v3088 = vmul.f32 %v2971, %v2003
  %3090 = vrot.lane.b32.xlu0 %v3088, 127
  %v3091 = vpop.permute.xlu0 %3090
  %v3093 = vadd.f32 %v2556, %v3091
  %3095 = vrot.lane.b32.xlu0 %v2660, 96
  %v3096 = vpop.permute.xlu0 %3095
  %v3098 = vsel %vm76, %v2985, %v3096
  %s3099 = scalar_lea.vmem %s7, 4
  %v3100 = vld [vmem:[%s3099] sm:$0x3]
  %v3102 = vsel %vm2011, %v3098, 0
  %3104 = vmatprep.subr.mxu0 0.0
  %3105 = vmatpush1.msra.mxu0 %v1971
  %3106 = vmatprep.subr.mxu0 0.0
  %3107 = vmatpush1.msra.mxu0 %v1972
  %3108 = vmatprep.subr.mxu0 0.0
  %3109 = vmatpush1.msra.mxu0 %v1973
  %3110 = vmatprep.subr.mxu0 0.0
  %3111 = vmatpush1.msra.mxu0 %v1974
  %3112 = vmatprep.subr.mxu0 0.0
  %3113 = vmatpush1.msra.mxu0 %v1975
  %3114 = vmatprep.subr.mxu0 0.0
  %3115 = vmatpush1.msra.mxu0 %v1976
  %3116 = vmatprep.subr.mxu0 0.0
  %3117 = vmatpush1.msra.mxu0 %v1977
  %3118 = vmatprep.subr.mxu0 0.0
  %3119 = vmatpush1.msra.mxu0 %v1978
  %3120 = vmatprep.subr.mxu0 0.0
  %3121 = vmatpush1.msra.mxu0 %v1979
  %3122 = vmatprep.subr.mxu0 0.0
  %3123 = vmatpush1.msra.mxu0 %v1980
  %3124 = vmatprep.subr.mxu0 0.0
  %3125 = vmatpush1.msra.mxu0 %v1981
  %3126 = vmatprep.subr.mxu0 0.0
  %3127 = vmatpush1.msra.mxu0 %v1982
  %3128 = vmatprep.subr.mxu0 0.0
  %3129 = vmatpush1.msra.mxu0 0.0
  %3130 = vmatprep.subr.mxu0 0.0
  %3131 = vmatpush1.msra.mxu0 0.0
  %3132 = vmatprep.subr.mxu0 0.0
  %3133 = vmatpush1.msra.mxu0 0.0
  %3134 = vmatprep.subr.mxu0 0.0
  %3135 = vmatpush1.msra.mxu0 0.0
  %3136 = vmatprep.subr.mxu0 0.0
  %3137 = vmatpush1.msra.mxu0 0.0
  %3138 = vmatprep.subr.mxu0 0.0
  %3139 = vmatpush1.msra.mxu0 0.0
  %3140 = vmatprep.subr.mxu0 0.0
  %3141 = vmatpush1.msra.mxu0 0.0
  %3142 = vmatprep.subr.mxu0 0.0
  %3143 = vmatpush1.msra.mxu0 0.0
  %3144 = vmatprep.subr.mxu0 0.0
  %3145 = vmatpush1.msra.mxu0 0.0
  %3146 = vmatprep.subr.mxu0 0.0
  %3147 = vmatpush1.msra.mxu0 0.0
  %3148 = vmatprep.subr.mxu0 0.0
  %3149 = vmatpush1.msra.mxu0 0.0
  %3150 = vmatprep.subr.mxu0 0.0
  %3151 = vmatpush1.msra.mxu0 0.0
  %3152 = vmatprep.subr.mxu0 0.0
  %3153 = vmatpush1.msra.mxu0 0.0
  %3154 = vmatprep.subr.mxu0 0.0
  %3155 = vmatpush1.msra.mxu0 0.0
  %3156 = vmatprep.subr.mxu0 0.0
  %3157 = vmatpush1.msra.mxu0 0.0
  %3158 = vmatprep.subr.mxu0 0.0
  %3159 = vmatpush1.msra.mxu0 0.0
  %3160 = vmatprep.subr.mxu0 0.0
  %3161 = vmatpush1.msra.mxu0 0.0
  %3162 = vmatprep.subr.mxu0 0.0
  %3163 = vmatpush1.msra.mxu0 0.0
  %3164 = vmatprep.subr.mxu0 0.0
  %3165 = vmatpush1.msra.mxu0 0.0
  %3166 = vmatprep.subr.mxu0 0.0
  %3167 = vmatpush1.msra.mxu0 0.0
  %3168 = vmatprep.mubr.f32.mxu0 0.0
  %3169 = vmatmul.mubr.f32.gmra.mrb[0].mxu0 %v3102
  %v3170 = vpop.f32.mrb[0].mxu0
  %v3171 = vadd.f32 %v3100, %v3170
  %v3172 = vpop.f32.mrb[0].mxu0
  %3173 = vdwg.mxu0
  %v3174 = vxor.u32 %v3171, 2147483648
  %v3175 = vmul.f32 %v3174, 1.442695
  %v3176 = vpow.pop %v3175
  %v3177 = vadd.f32 %v3176, 1.0
  %v3178 = vrcp.pop %v3177
  %v3179 = vmul.f32 1.0, %v3178
  %v3180 = vtanh.pop %v3171
  %v3181 = vmul.f32 %v3179, %v2654
  %3183 = vrot.lane.b32.xlu0 %v3180, 64
  %v3184 = vpop.permute.xlu0 %3183
  %v3186 = vmul.f32 %v3179, %v3184
  %3188 = vrot.lane.b32.xlu0 %v3186, 32
  %v3189 = vpop.permute.xlu0 %3188
  %v3191 = vadd.f32 %v3181, %v3189
  %v3192 = vtanh.pop %v3191
  %3194 = vrot.lane.b32.xlu0 %v3192, 64
  %v3195 = vpop.permute.xlu0 %3194
  %v3197 = vmul.f32 %v3179, %v3195
  %3199 = vrot.lane.b32.xlu0 %v3197, 32
  %v3200 = vpop.permute.xlu0 %3199
  %v3202 = vsel %vm205, %v3200, %v3191
  %v3204 = vsel %vm76, %v3202, 0
  %3206 = vmatprep.subr.mxu0 0.0
  %3207 = vmatpush1.msra.mxu0 %v1983
  %3208 = vmatprep.subr.mxu0 0.0
  %3209 = vmatpush1.msra.mxu0 %v1984
  %3210 = vmatprep.subr.mxu0 0.0
  %3211 = vmatpush1.msra.mxu0 %v1985
  %3212 = vmatprep.subr.mxu0 0.0
  %3213 = vmatpush1.msra.mxu0 %v1986
  %3214 = vmatprep.subr.mxu0 0.0
  %3215 = vmatpush1.msra.mxu0 %v1987
  %3216 = vmatprep.subr.mxu0 0.0
  %3217 = vmatpush1.msra.mxu0 %v1988
  %3218 = vmatprep.subr.mxu0 0.0
  %3219 = vmatpush1.msra.mxu0 %v1989
  %3220 = vmatprep.subr.mxu0 0.0
  %3221 = vmatpush1.msra.mxu0 %v1990
  %3222 = vmatprep.subr.mxu0 0.0
  %3223 = vmatpush1.msra.mxu0 0.0
  %3224 = vmatprep.subr.mxu0 0.0
  %3225 = vmatpush1.msra.mxu0 0.0
  %3226 = vmatprep.subr.mxu0 0.0
  %3227 = vmatpush1.msra.mxu0 0.0
  %3228 = vmatprep.subr.mxu0 0.0
  %3229 = vmatpush1.msra.mxu0 0.0
  %3230 = vmatprep.subr.mxu0 0.0
  %3231 = vmatpush1.msra.mxu0 0.0
  %3232 = vmatprep.subr.mxu0 0.0
  %3233 = vmatpush1.msra.mxu0 0.0
  %3234 = vmatprep.subr.mxu0 0.0
  %3235 = vmatpush1.msra.mxu0 0.0
  %3236 = vmatprep.subr.mxu0 0.0
  %3237 = vmatpush1.msra.mxu0 0.0
  %3238 = vmatprep.subr.mxu0 0.0
  %3239 = vmatpush1.msra.mxu0 0.0
  %3240 = vmatprep.subr.mxu0 0.0
  %3241 = vmatpush1.msra.mxu0 0.0
  %3242 = vmatprep.subr.mxu0 0.0
  %3243 = vmatpush1.msra.mxu0 0.0
  %3244 = vmatprep.subr.mxu0 0.0
  %3245 = vmatpush1.msra.mxu0 0.0
  %3246 = vmatprep.subr.mxu0 0.0
  %3247 = vmatpush1.msra.mxu0 0.0
  %3248 = vmatprep.subr.mxu0 0.0
  %3249 = vmatpush1.msra.mxu0 0.0
  %3250 = vmatprep.subr.mxu0 0.0
  %3251 = vmatpush1.msra.mxu0 0.0
  %3252 = vmatprep.subr.mxu0 0.0
  %3253 = vmatpush1.msra.mxu0 0.0
  %3254 = vmatprep.subr.mxu0 0.0
  %3255 = vmatpush1.msra.mxu0 0.0
  %3256 = vmatprep.subr.mxu0 0.0
  %3257 = vmatpush1.msra.mxu0 0.0
  %3258 = vmatprep.subr.mxu0 0.0
  %3259 = vmatpush1.msra.mxu0 0.0
  %3260 = vmatprep.subr.mxu0 0.0
  %3261 = vmatpush1.msra.mxu0 0.0
  %3262 = vmatprep.subr.mxu0 0.0
  %3263 = vmatpush1.msra.mxu0 0.0
  %3264 = vmatprep.subr.mxu0 0.0
  %3265 = vmatpush1.msra.mxu0 0.0
  %3266 = vmatprep.subr.mxu0 0.0
  %3267 = vmatpush1.msra.mxu0 0.0
  %3268 = vmatprep.subr.mxu0 0.0
  %3269 = vmatpush1.msra.mxu0 0.0
  %3270 = vmatprep.mubr.f32.mxu0 0.0
  %3271 = vmatmul.mubr.f32.gmra.mrb[0].mxu0 %v3204
  %v3272 = vpop.f32.mrb[0].mxu0
  %v3273 = vadd.f32 %v1962, %v3272
  %v3274 = vpop.f32.mrb[0].mxu0
  %3275 = vdwg.mxu0
  %v3278 = vunpack.c.l.s4 1966171168
  %v3279 = vunpack.c.0.s8 %v3278
  %v3280 = vlaneseq
  %v3281 = vshrl.u32 %v3280, 7
  %v3282 = vsub.s32 %v3279, %v3281
  %v3283 = vrot.slane %v3273, %v3282
  %v3284 = vcombine.high %v3283, %v3283
  %v3286 = vunpack.c.l.s4 1966171168
  %v3287 = vunpack.c.0.s8 %v3286
  %v3288 = vlaneseq
  %v3289 = vshrl.u32 %v3288, 7
  %v3290 = vsub.s32 %v3287, %v3289
  %v3291 = vrot.slane %v3283, %v3290
  %v3293 = vunpack.c.l.s4 1966171168
  %v3294 = vunpack.c.0.s8 %v3293
  %v3295 = vlaneseq
  %v3296 = vshrl.u32 %v3295, 7
  %v3297 = vsub.s32 %v3294, %v3296
  %v3298 = vrot.slane %v3284, %v3297
  %v3299 = vlaneseq
  %v3300 = vshrl.u32 %v3299, 7
  %v3301 = vsub.s32 0, %v3300
  %v3302 = vrot.slane %v3291, %v3301
  %v3303 = vlaneseq
  %v3304 = vshrl.u32 %v3303, 7
  %v3305 = vsub.s32 0, %v3304
  %v3306 = vrot.slane %v3298, %v3305
  %v3309 = vadd.f32 %v1935, %v3302
  %v3310 = vadd.f32 %v1940, %v3306
  %v3311 = vlaneseq
  %v3312 = vshrl.u32 %v3311, 7
  %v3313 = vsub.s32 0, %v3312
  %v3314 = vrot.slane %v2982, %v3313
  %3316 = vbcast.lane.b32.xlu0 %v3314, 256
  %v3317 = vpop.permute.xlu0 %3316
  %v3318 = vlaneseq
  %v3319 = vshrl.u32 %v3318, 7
  %v3320 = vsub.s32 1, %v3319
  %v3321 = vrot.slane %v2982, %v3320
  %3323 = vbcast.lane.b32.xlu0 %v3321, 256
  %v3324 = vpop.permute.xlu0 %3323
  %v3325 = vmul.f32 %v3317, %v1955
  %v3326 = vmul.f32 %v3324, %v1955
  %v3327 = vadd.f32 %v3309, %v3325
  %v3328 = vadd.f32 %v3310, %v3326
  %v3329 = vtanh.pop %v3327
  %v3330 = vtanh.pop %v3328
  %v3331 = vmul.f32 %v3329, %v1948
  %v3332 = vmul.f32 %v3330, %v1948
  %v3333 = vsel %vm76, %v3331, 0.0
  %3334 = vadd.xlane.f32.xlu0 %v3333
  %v3335 = vpop.xlane.xlu0 %3334
  %v3336 = vsel %vm76, %v3332, 0.0
  %3337 = vadd.xlane.f32.xlu0 %v3336
  %v3338 = vpop.xlane.xlu0 %3337
  %v3341 = vlaneseq
  %v3342 = vshrl.u32 %v3341, 7
  %v3343 = vsub.s32 %v2257, %v3342
  %v3344 = vrot.slane %v3335, %v3343
  %v3345 = vlaneseq
  %v3346 = vshrl.u32 %v3345, 7
  %v3347 = vsub.s32 %v2257, %v3346
  %v3348 = vrot.slane %v3338, %v3347
  %v3349 = vsel %vm2266, %v3348, %v3344
  %v3351 = vsel %vm2269, %v3349, -inf
  %3352 = vmax.xlane.f32.xlu0 %v3351
  %v3353 = vpop.xlane.xlu0 %3352
  %v3355 = vlaneseq
  %v3356 = vshrl.u32 %v3355, 7
  %v3357 = vsub.s32 0, %v3356
  %v3358 = vrot.slane %v3353, %v3357
  %v3359 = vlaneseq
  %v3360 = vshrl.u32 %v3359, 7
  %v3361 = vsub.s32 1, %v3360
  %v3362 = vrot.slane %v3353, %v3361
  %v3365 = vsub.f32 %v3335, %v3358
  %v3366 = vsub.f32 %v3338, %v3362
  %v3367 = vmul.f32 %v3365, 1.442695
  %v3368 = vpow.pop %v3367
  %v3369 = vmul.f32 %v3366, 1.442695
  %v3370 = vpow.pop %v3369
  %3373 = vset.pattern.permute.xlu0 0
  %3374 = vperm.xlu0 %3373, %v3368
  %v3375 = vpop.permute.xlu0 %3374
  %3376 = vset.pattern.permute.xlu0 0
  %3377 = vperm.xlu0 %3376, %v3370
  %v3378 = vpop.permute.xlu0 %3377
  %v3379 = vlaneseq
  %v3380 = vshrl.u32 %v3379, 7
  %v3381 = vsub.s32 %v2257, %v3380
  %v3382 = vrot.slane %v3375, %v3381
  %v3383 = vlaneseq
  %v3384 = vshrl.u32 %v3383, 7
  %v3385 = vsub.s32 %v2257, %v3384
  %v3386 = vrot.slane %v3378, %v3385
  %v3387 = vsel %vm2266, %v3386, %v3382
  %v3389 = vsel %vm2269, %v3387, 0.0
  %3390 = vadd.xlane.f32.xlu0 %v3389
  %v3391 = vpop.xlane.xlu0 %3390
  %v3392 = vrcp.pop %v3391
  %v3394 = vlaneseq
  %v3395 = vshrl.u32 %v3394, 7
  %v3396 = vsub.s32 0, %v3395
  %v3397 = vrot.slane %v3392, %v3396
  %v3398 = vlaneseq
  %v3399 = vshrl.u32 %v3398, 7
  %v3400 = vsub.s32 1, %v3399
  %v3401 = vrot.slane %v3392, %v3400
  %v3404 = vmul.f32 %v3368, %v3397
  %v3405 = vmul.f32 %v3370, %v3401
  %v3406 = vmul.f32 %v3404, %v2331
  %v3407 = vmul.f32 %v3405, %v2338
  %3410 = vset.pattern.permute.xlu0 0
  %3411 = vperm.xlu0 %3410, %v3406
  %v3412 = vpop.permute.xlu0 %3411
  %3413 = vset.pattern.permute.xlu0 0
  %3414 = vperm.xlu0 %3413, %v3407
  %v3415 = vpop.permute.xlu0 %3414
  %v3416 = vlaneseq
  %v3417 = vshrl.u32 %v3416, 7
  %v3418 = vsub.s32 %v2257, %v3417
  %v3419 = vrot.slane %v3412, %v3418
  %v3420 = vlaneseq
  %v3421 = vshrl.u32 %v3420, 7
  %v3422 = vsub.s32 %v2257, %v3421
  %v3423 = vrot.slane %v3415, %v3422
  %v3424 = vsel %vm2266, %v3423, %v3419
  %v3426 = vsel %vm2269, %v3424, 0.0
  %3427 = vadd.xlane.f32.xlu0 %v3426
  %v3428 = vpop.xlane.xlu0 %3427
  %v3429 = vrcp.pop %v3428
  %v3431 = vlaneseq
  %v3432 = vshrl.u32 %v3431, 7
  %v3433 = vsub.s32 0, %v3432
  %v3434 = vrot.slane %v3429, %v3433
  %v3435 = vlaneseq
  %v3436 = vshrl.u32 %v3435, 7
  %v3437 = vsub.s32 1, %v3436
  %v3438 = vrot.slane %v3429, %v3437
  %v3441 = vmul.f32 %v3406, %v3434
  %v3442 = vmul.f32 %v3407, %v3438
  %3444 = vset.pattern.permute.xlu0 0
  %3445 = vperm.xlu0 %3444, %v3441
  %v3446 = vpop.permute.xlu0 %3445
  %3449 = vset.pattern.permute.xlu0 0
  %3450 = vperm.xlu0 %3449, %v3442
  %v3451 = vpop.permute.xlu0 %3450
  %v3453 = vmul.f32 %v3446, %v1852
  %v3454 = vmul.f32 %v3451, %v1853
  %v3455 = vsel %vm76, %v3453, 0.0
  %v3456 = vrot.slane %v3455, 4
  %v3457 = vadd.f32 %v3455, %v3456
  %v3458 = vrot.slane %v3457, 2
  %v3459 = vadd.f32 %v3457, %v3458
  %v3460 = vrot.slane %v3459, 1
  %v3461 = vadd.f32 %v3459, %v3460
  %v3462 = vsel %vm76, %v3454, 0.0
  %v3463 = vrot.slane %v3462, 4
  %v3464 = vadd.f32 %v3462, %v3463
  %v3465 = vrot.slane %v3464, 2
  %v3466 = vadd.f32 %v3464, %v3465
  %v3467 = vrot.slane %v3466, 1
  %v3468 = vadd.f32 %v3466, %v3467
  %v3470 = vlaneseq
  %v3471 = vshrl.u32 %v3470, 7
  %v3472 = vsub.s32 0, %v3471
  %v3473 = vrot.slane %v2982, %v3472
  %3475 = vbcast.lane.b32.xlu0 %v3473, 256
  %v3476 = vpop.permute.xlu0 %3475
  %v3477 = vlaneseq
  %v3478 = vshrl.u32 %v3477, 7
  %v3479 = vsub.s32 1, %v3478
  %v3480 = vrot.slane %v2982, %v3479
  %3482 = vbcast.lane.b32.xlu0 %v3480, 256
  %v3483 = vpop.permute.xlu0 %3482
  %v3486 = vmin.f32 %v3441, %v3476
  %v3487 = vmin.f32 %v3442, %v3483
  %3490 = vset.pattern.permute.xlu0 0
  %3491 = vperm.xlu0 %3490, %v3486
  %v3492 = vpop.permute.xlu0 %3491
  %3493 = vset.pattern.permute.xlu0 0
  %3494 = vperm.xlu0 %3493, %v3487
  %v3495 = vpop.permute.xlu0 %3494
  %v3496 = vlaneseq
  %v3497 = vshrl.u32 %v3496, 7
  %v3498 = vsub.s32 %v2257, %v3497
  %v3499 = vrot.slane %v3492, %v3498
  %v3500 = vlaneseq
  %v3501 = vshrl.u32 %v3500, 7
  %v3502 = vsub.s32 %v2257, %v3501
  %v3503 = vrot.slane %v3495, %v3502
  %v3504 = vsel %vm2266, %v3503, %v3499
  %v3506 = vsel %vm2269, %v3504, 0.0
  %3507 = vadd.xlane.f32.xlu0 %v3506
  %v3508 = vpop.xlane.xlu0 %3507
  %v3509 = vlaneseq
  %v3510 = vshrl.u32 %v3509, 7
  %v3511 = vsub.s32 %v2257, %v3510
  %v3512 = vrot.slane %v3446, %v3511
  %v3513 = vlaneseq
  %v3514 = vshrl.u32 %v3513, 7
  %v3515 = vsub.s32 %v2257, %v3514
  %v3516 = vrot.slane %v3451, %v3515
  %v3517 = vsel %vm2266, %v3516, %v3512
  %v3519 = vadd.f32 %v2982, %v3517
  %v3522 = vsel %vm2266, %v3468, %v3461
  %3523 = vrot.lane.b32.xlu0 %v3522, 32
  %v3524 = vpop.permute.xlu0 %3523
  %v3526 = vsel %vm205, %v3200, %v3524
  %v3528 = vsel %vm2011, %v3526, 0
  %3530 = vmatprep.subr.mxu0 0.0
  %3531 = vmatpush1.msra.mxu0 %v1991
  %3532 = vmatprep.subr.mxu0 0.0
  %3533 = vmatpush1.msra.mxu0 %v1992
  %3534 = vmatprep.subr.mxu0 0.0
  %3535 = vmatpush1.msra.mxu0 %v1993
  %3536 = vmatprep.subr.mxu0 0.0
  %3537 = vmatpush1.msra.mxu0 %v1994
  %3538 = vmatprep.subr.mxu0 0.0
  %3539 = vmatpush1.msra.mxu0 %v1995
  %3540 = vmatprep.subr.mxu0 0.0
  %3541 = vmatpush1.msra.mxu0 %v1996
  %3542 = vmatprep.subr.mxu0 0.0
  %3543 = vmatpush1.msra.mxu0 %v1997
  %3544 = vmatprep.subr.mxu0 0.0
  %3545 = vmatpush1.msra.mxu0 %v1998
  %3546 = vmatprep.subr.mxu0 0.0
  %3547 = vmatpush1.msra.mxu0 %v1999
  %3548 = vmatprep.subr.mxu0 0.0
  %3549 = vmatpush1.msra.mxu0 %v2000
  %3550 = vmatprep.subr.mxu0 0.0
  %3551 = vmatpush1.msra.mxu0 %v2001
  %3552 = vmatprep.subr.mxu0 0.0
  %3553 = vmatpush1.msra.mxu0 %v2002
  %3554 = vmatprep.subr.mxu0 0.0
  %3555 = vmatpush1.msra.mxu0 0.0
  %3556 = vmatprep.subr.mxu0 0.0
  %3557 = vmatpush1.msra.mxu0 0.0
  %3558 = vmatprep.subr.mxu0 0.0
  %3559 = vmatpush1.msra.mxu0 0.0
  %3560 = vmatprep.subr.mxu0 0.0
  %3561 = vmatpush1.msra.mxu0 0.0
  %3562 = vmatprep.subr.mxu0 0.0
  %3563 = vmatpush1.msra.mxu0 0.0
  %3564 = vmatprep.subr.mxu0 0.0
  %3565 = vmatpush1.msra.mxu0 0.0
  %3566 = vmatprep.subr.mxu0 0.0
  %3567 = vmatpush1.msra.mxu0 0.0
  %3568 = vmatprep.subr.mxu0 0.0
  %3569 = vmatpush1.msra.mxu0 0.0
  %3570 = vmatprep.subr.mxu0 0.0
  %3571 = vmatpush1.msra.mxu0 0.0
  %3572 = vmatprep.subr.mxu0 0.0
  %3573 = vmatpush1.msra.mxu0 0.0
  %3574 = vmatprep.subr.mxu0 0.0
  %3575 = vmatpush1.msra.mxu0 0.0
  %3576 = vmatprep.subr.mxu0 0.0
  %3577 = vmatpush1.msra.mxu0 0.0
  %3578 = vmatprep.subr.mxu0 0.0
  %3579 = vmatpush1.msra.mxu0 0.0
  %3580 = vmatprep.subr.mxu0 0.0
  %3581 = vmatpush1.msra.mxu0 0.0
  %3582 = vmatprep.subr.mxu0 0.0
  %3583 = vmatpush1.msra.mxu0 0.0
  %3584 = vmatprep.subr.mxu0 0.0
  %3585 = vmatpush1.msra.mxu0 0.0
  %3586 = vmatprep.subr.mxu0 0.0
  %3587 = vmatpush1.msra.mxu0 0.0
  %3588 = vmatprep.subr.mxu0 0.0
  %3589 = vmatpush1.msra.mxu0 0.0
  %3590 = vmatprep.subr.mxu0 0.0
  %3591 = vmatpush1.msra.mxu0 0.0
  %3592 = vmatprep.subr.mxu0 0.0
  %3593 = vmatpush1.msra.mxu0 0.0
  %3594 = vmatprep.mubr.f32.mxu0 0.0
  %3595 = vmatmul.mubr.f32.gmra.mrb[0].mxu0 %v3528
  %v3596 = vpop.f32.mrb[0].mxu0
  %v3597 = vadd.f32 %v1969, %v3596
  %v3598 = vpop.f32.mrb[0].mxu0
  %3599 = vdwg.mxu0
  %v3600 = vsel %vm1761, %v3597, -inf
  %3601 = vmax.xlane.f32.xlu0 %v3600
  %v3602 = vpop.xlane.xlu0 %3601
  %v3603 = vsub.f32 %v3597, %v3602
  %v3604 = vmul.f32 %v3603, 1.442695
  %v3605 = vpow.pop %v3604
  %v3606 = vsel %vm1761, %v3605, 0.0
  %3607 = vadd.xlane.f32.xlu0 %v3606
  %v3608 = vpop.xlane.xlu0 %3607
  %v3609 = vlog2.pop %v3608
  %v3610 = vmul.f32 %v3609, 0.6931472
  %v3611 = vadd.f32 %v3602, %v3610
  %s3612 = scalar_lea.vmem %s15, 4
  %v3613 = vld [vmem:[%s3612] sm:$0x3]
  %v3614 = vmul.f32 %v3597, %v3613
  %v3615 = vsel %vm1761, %v3614, 0.0
  %3616 = vadd.xlane.f32.xlu0 %v3615
  %v3617 = vpop.xlane.xlu0 %3616
  %v3618 = vsub.f32 %v3611, %v3617
  %v3619 = vmul.f32 %v3618, %v2003
  %3621 = vrot.lane.b32.xlu0 %v3619, 126
  %v3622 = vpop.permute.xlu0 %3621
  %v3624 = vadd.f32 %v3087, %v3622
  %v3625 = vmul.f32 %v3508, %v2003
  %3627 = vrot.lane.b32.xlu0 %v3625, 126
  %v3628 = vpop.permute.xlu0 %3627
  %v3630 = vadd.f32 %v3093, %v3628
  %3632 = vrot.lane.b32.xlu0 %v3197, 96
  %v3633 = vpop.permute.xlu0 %3632
  %v3635 = vsel %vm76, %v3522, %v3633
  %s3636 = scalar_lea.vmem %s7, 6
  %v3637 = vld [vmem:[%s3636] sm:$0x3]
  %v3639 = vsel %vm2011, %v3635, 0
  %3641 = vmatprep.subr.mxu0 0.0
  %3642 = vmatpush1.msra.mxu0 %v1971
  %3643 = vmatprep.subr.mxu0 0.0
  %3644 = vmatpush1.msra.mxu0 %v1972
  %3645 = vmatprep.subr.mxu0 0.0
  %3646 = vmatpush1.msra.mxu0 %v1973
  %3647 = vmatprep.subr.mxu0 0.0
  %3648 = vmatpush1.msra.mxu0 %v1974
  %3649 = vmatprep.subr.mxu0 0.0
  %3650 = vmatpush1.msra.mxu0 %v1975
  %3651 = vmatprep.subr.mxu0 0.0
  %3652 = vmatpush1.msra.mxu0 %v1976
  %3653 = vmatprep.subr.mxu0 0.0
  %3654 = vmatpush1.msra.mxu0 %v1977
  %3655 = vmatprep.subr.mxu0 0.0
  %3656 = vmatpush1.msra.mxu0 %v1978
  %3657 = vmatprep.subr.mxu0 0.0
  %3658 = vmatpush1.msra.mxu0 %v1979
  %3659 = vmatprep.subr.mxu0 0.0
  %3660 = vmatpush1.msra.mxu0 %v1980
  %3661 = vmatprep.subr.mxu0 0.0
  %3662 = vmatpush1.msra.mxu0 %v1981
  %3663 = vmatprep.subr.mxu0 0.0
  %3664 = vmatpush1.msra.mxu0 %v1982
  %3665 = vmatprep.subr.mxu0 0.0
  %3666 = vmatpush1.msra.mxu0 0.0
  %3667 = vmatprep.subr.mxu0 0.0
  %3668 = vmatpush1.msra.mxu0 0.0
  %3669 = vmatprep.subr.mxu0 0.0
  %3670 = vmatpush1.msra.mxu0 0.0
  %3671 = vmatprep.subr.mxu0 0.0
  %3672 = vmatpush1.msra.mxu0 0.0
  %3673 = vmatprep.subr.mxu0 0.0
  %3674 = vmatpush1.msra.mxu0 0.0
  %3675 = vmatprep.subr.mxu0 0.0
  %3676 = vmatpush1.msra.mxu0 0.0
  %3677 = vmatprep.subr.mxu0 0.0
  %3678 = vmatpush1.msra.mxu0 0.0
  %3679 = vmatprep.subr.mxu0 0.0
  %3680 = vmatpush1.msra.mxu0 0.0
  %3681 = vmatprep.subr.mxu0 0.0
  %3682 = vmatpush1.msra.mxu0 0.0
  %3683 = vmatprep.subr.mxu0 0.0
  %3684 = vmatpush1.msra.mxu0 0.0
  %3685 = vmatprep.subr.mxu0 0.0
  %3686 = vmatpush1.msra.mxu0 0.0
  %3687 = vmatprep.subr.mxu0 0.0
  %3688 = vmatpush1.msra.mxu0 0.0
  %3689 = vmatprep.subr.mxu0 0.0
  %3690 = vmatpush1.msra.mxu0 0.0
  %3691 = vmatprep.subr.mxu0 0.0
  %3692 = vmatpush1.msra.mxu0 0.0
  %3693 = vmatprep.subr.mxu0 0.0
  %3694 = vmatpush1.msra.mxu0 0.0
  %3695 = vmatprep.subr.mxu0 0.0
  %3696 = vmatpush1.msra.mxu0 0.0
  %3697 = vmatprep.subr.mxu0 0.0
  %3698 = vmatpush1.msra.mxu0 0.0
  %3699 = vmatprep.subr.mxu0 0.0
  %3700 = vmatpush1.msra.mxu0 0.0
  %3701 = vmatprep.subr.mxu0 0.0
  %3702 = vmatpush1.msra.mxu0 0.0
  %3703 = vmatprep.subr.mxu0 0.0
  %3704 = vmatpush1.msra.mxu0 0.0
  %3705 = vmatprep.mubr.f32.mxu0 0.0
  %3706 = vmatmul.mubr.f32.gmra.mrb[0].mxu0 %v3639
  %v3707 = vpop.f32.mrb[0].mxu0
  %v3708 = vadd.f32 %v3637, %v3707
  %v3709 = vpop.f32.mrb[0].mxu0
  %3710 = vdwg.mxu0
  %v3711 = vxor.u32 %v3708, 2147483648
  %v3712 = vmul.f32 %v3711, 1.442695
  %v3713 = vpow.pop %v3712
  %v3714 = vadd.f32 %v3713, 1.0
  %v3715 = vrcp.pop %v3714
  %v3716 = vmul.f32 1.0, %v3715
  %v3717 = vtanh.pop %v3708
  %v3718 = vmul.f32 %v3716, %v3191
  %3720 = vrot.lane.b32.xlu0 %v3717, 64
  %v3721 = vpop.permute.xlu0 %3720
  %v3723 = vmul.f32 %v3716, %v3721
  %3725 = vrot.lane.b32.xlu0 %v3723, 32
  %v3726 = vpop.permute.xlu0 %3725
  %v3728 = vadd.f32 %v3718, %v3726
  %v3729 = vtanh.pop %v3728
  %3731 = vrot.lane.b32.xlu0 %v3729, 64
  %v3732 = vpop.permute.xlu0 %3731
  %v3734 = vmul.f32 %v3716, %v3732
  %3736 = vrot.lane.b32.xlu0 %v3734, 32
  %v3737 = vpop.permute.xlu0 %3736
  %v3739 = vsel %vm205, %v3737, %v3728
  %v3741 = vsel %vm76, %v3739, 0
  %3743 = vmatprep.subr.mxu0 0.0
  %3744 = vmatpush1.msra.mxu0 %v1983
  %3745 = vmatprep.subr.mxu0 0.0
  %3746 = vmatpush1.msra.mxu0 %v1984
  %3747 = vmatprep.subr.mxu0 0.0
  %3748 = vmatpush1.msra.mxu0 %v1985
  %3749 = vmatprep.subr.mxu0 0.0
  %3750 = vmatpush1.msra.mxu0 %v1986
  %3751 = vmatprep.subr.mxu0 0.0
  %3752 = vmatpush1.msra.mxu0 %v1987
  %3753 = vmatprep.subr.mxu0 0.0
  %3754 = vmatpush1.msra.mxu0 %v1988
  %3755 = vmatprep.subr.mxu0 0.0
  %3756 = vmatpush1.msra.mxu0 %v1989
  %3757 = vmatprep.subr.mxu0 0.0
  %3758 = vmatpush1.msra.mxu0 %v1990
  %3759 = vmatprep.subr.mxu0 0.0
  %3760 = vmatpush1.msra.mxu0 0.0
  %3761 = vmatprep.subr.mxu0 0.0
  %3762 = vmatpush1.msra.mxu0 0.0
  %3763 = vmatprep.subr.mxu0 0.0
  %3764 = vmatpush1.msra.mxu0 0.0
  %3765 = vmatprep.subr.mxu0 0.0
  %3766 = vmatpush1.msra.mxu0 0.0
  %3767 = vmatprep.subr.mxu0 0.0
  %3768 = vmatpush1.msra.mxu0 0.0
  %3769 = vmatprep.subr.mxu0 0.0
  %3770 = vmatpush1.msra.mxu0 0.0
  %3771 = vmatprep.subr.mxu0 0.0
  %3772 = vmatpush1.msra.mxu0 0.0
  %3773 = vmatprep.subr.mxu0 0.0
  %3774 = vmatpush1.msra.mxu0 0.0
  %3775 = vmatprep.subr.mxu0 0.0
  %3776 = vmatpush1.msra.mxu0 0.0
  %3777 = vmatprep.subr.mxu0 0.0
  %3778 = vmatpush1.msra.mxu0 0.0
  %3779 = vmatprep.subr.mxu0 0.0
  %3780 = vmatpush1.msra.mxu0 0.0
  %3781 = vmatprep.subr.mxu0 0.0
  %3782 = vmatpush1.msra.mxu0 0.0
  %3783 = vmatprep.subr.mxu0 0.0
  %3784 = vmatpush1.msra.mxu0 0.0
  %3785 = vmatprep.subr.mxu0 0.0
  %3786 = vmatpush1.msra.mxu0 0.0
  %3787 = vmatprep.subr.mxu0 0.0
  %3788 = vmatpush1.msra.mxu0 0.0
  %3789 = vmatprep.subr.mxu0 0.0
  %3790 = vmatpush1.msra.mxu0 0.0
  %3791 = vmatprep.subr.mxu0 0.0
  %3792 = vmatpush1.msra.mxu0 0.0
  %3793 = vmatprep.subr.mxu0 0.0
  %3794 = vmatpush1.msra.mxu0 0.0
  %3795 = vmatprep.subr.mxu0 0.0
  %3796 = vmatpush1.msra.mxu0 0.0
  %3797 = vmatprep.subr.mxu0 0.0
  %3798 = vmatpush1.msra.mxu0 0.0
  %3799 = vmatprep.subr.mxu0 0.0
  %3800 = vmatpush1.msra.mxu0 0.0
  %3801 = vmatprep.subr.mxu0 0.0
  %3802 = vmatpush1.msra.mxu0 0.0
  %3803 = vmatprep.subr.mxu0 0.0
  %3804 = vmatpush1.msra.mxu0 0.0
  %3805 = vmatprep.subr.mxu0 0.0
  %3806 = vmatpush1.msra.mxu0 0.0
  %3807 = vmatprep.mubr.f32.mxu0 0.0
  %3808 = vmatmul.mubr.f32.gmra.mrb[0].mxu0 %v3741
  %v3809 = vpop.f32.mrb[0].mxu0
  %v3810 = vadd.f32 %v1962, %v3809
  %v3811 = vpop.f32.mrb[0].mxu0
  %3812 = vdwg.mxu0
  %v3815 = vunpack.c.l.s4 1966171168
  %v3816 = vunpack.c.0.s8 %v3815
  %v3817 = vlaneseq
  %v3818 = vshrl.u32 %v3817, 7
  %v3819 = vsub.s32 %v3816, %v3818
  %v3820 = vrot.slane %v3810, %v3819
  %v3821 = vcombine.high %v3820, %v3820
  %v3823 = vunpack.c.l.s4 1966171168
  %v3824 = vunpack.c.0.s8 %v3823
  %v3825 = vlaneseq
  %v3826 = vshrl.u32 %v3825, 7
  %v3827 = vsub.s32 %v3824, %v3826
  %v3828 = vrot.slane %v3820, %v3827
  %v3830 = vunpack.c.l.s4 1966171168
  %v3831 = vunpack.c.0.s8 %v3830
  %v3832 = vlaneseq
  %v3833 = vshrl.u32 %v3832, 7
  %v3834 = vsub.s32 %v3831, %v3833
  %v3835 = vrot.slane %v3821, %v3834
  %v3836 = vlaneseq
  %v3837 = vshrl.u32 %v3836, 7
  %v3838 = vsub.s32 0, %v3837
  %v3839 = vrot.slane %v3828, %v3838
  %v3840 = vlaneseq
  %v3841 = vshrl.u32 %v3840, 7
  %v3842 = vsub.s32 0, %v3841
  %v3843 = vrot.slane %v3835, %v3842
  %v3846 = vadd.f32 %v1935, %v3839
  %v3847 = vadd.f32 %v1940, %v3843
  %v3848 = vlaneseq
  %v3849 = vshrl.u32 %v3848, 7
  %v3850 = vsub.s32 0, %v3849
  %v3851 = vrot.slane %v3519, %v3850
  %3853 = vbcast.lane.b32.xlu0 %v3851, 256
  %v3854 = vpop.permute.xlu0 %3853
  %v3855 = vlaneseq
  %v3856 = vshrl.u32 %v3855, 7
  %v3857 = vsub.s32 1, %v3856
  %v3858 = vrot.slane %v3519, %v3857
  %3860 = vbcast.lane.b32.xlu0 %v3858, 256
  %v3861 = vpop.permute.xlu0 %3860
  %v3862 = vmul.f32 %v3854, %v1955
  %v3863 = vmul.f32 %v3861, %v1955
  %v3864 = vadd.f32 %v3846, %v3862
  %v3865 = vadd.f32 %v3847, %v3863
  %v3866 = vtanh.pop %v3864
  %v3867 = vtanh.pop %v3865
  %v3868 = vmul.f32 %v3866, %v1948
  %v3869 = vmul.f32 %v3867, %v1948
  %v3870 = vsel %vm76, %v3868, 0.0
  %3871 = vadd.xlane.f32.xlu0 %v3870
  %v3872 = vpop.xlane.xlu0 %3871
  %v3873 = vsel %vm76, %v3869, 0.0
  %3874 = vadd.xlane.f32.xlu0 %v3873
  %v3875 = vpop.xlane.xlu0 %3874
  %v3878 = vlaneseq
  %v3879 = vshrl.u32 %v3878, 7
  %v3880 = vsub.s32 %v2257, %v3879
  %v3881 = vrot.slane %v3872, %v3880
  %v3882 = vlaneseq
  %v3883 = vshrl.u32 %v3882, 7
  %v3884 = vsub.s32 %v2257, %v3883
  %v3885 = vrot.slane %v3875, %v3884
  %v3886 = vsel %vm2266, %v3885, %v3881
  %v3888 = vsel %vm2269, %v3886, -inf
  %3889 = vmax.xlane.f32.xlu0 %v3888
  %v3890 = vpop.xlane.xlu0 %3889
  %v3892 = vlaneseq
  %v3893 = vshrl.u32 %v3892, 7
  %v3894 = vsub.s32 0, %v3893
  %v3895 = vrot.slane %v3890, %v3894
  %v3896 = vlaneseq
  %v3897 = vshrl.u32 %v3896, 7
  %v3898 = vsub.s32 1, %v3897
  %v3899 = vrot.slane %v3890, %v3898
  %v3902 = vsub.f32 %v3872, %v3895
  %v3903 = vsub.f32 %v3875, %v3899
  %v3904 = vmul.f32 %v3902, 1.442695
  %v3905 = vpow.pop %v3904
  %v3906 = vmul.f32 %v3903, 1.442695
  %v3907 = vpow.pop %v3906
  %3910 = vset.pattern.permute.xlu0 0
  %3911 = vperm.xlu0 %3910, %v3905
  %v3912 = vpop.permute.xlu0 %3911
  %3913 = vset.pattern.permute.xlu0 0
  %3914 = vperm.xlu0 %3913, %v3907
  %v3915 = vpop.permute.xlu0 %3914
  %v3916 = vlaneseq
  %v3917 = vshrl.u32 %v3916, 7
  %v3918 = vsub.s32 %v2257, %v3917
  %v3919 = vrot.slane %v3912, %v3918
  %v3920 = vlaneseq
  %v3921 = vshrl.u32 %v3920, 7
  %v3922 = vsub.s32 %v2257, %v3921
  %v3923 = vrot.slane %v3915, %v3922
  %v3924 = vsel %vm2266, %v3923, %v3919
  %v3926 = vsel %vm2269, %v3924, 0.0
  %3927 = vadd.xlane.f32.xlu0 %v3926
  %v3928 = vpop.xlane.xlu0 %3927
  %v3929 = vrcp.pop %v3928
  %v3931 = vlaneseq
  %v3932 = vshrl.u32 %v3931, 7
  %v3933 = vsub.s32 0, %v3932
  %v3934 = vrot.slane %v3929, %v3933
  %v3935 = vlaneseq
  %v3936 = vshrl.u32 %v3935, 7
  %v3937 = vsub.s32 1, %v3936
  %v3938 = vrot.slane %v3929, %v3937
  %v3941 = vmul.f32 %v3905, %v3934
  %v3942 = vmul.f32 %v3907, %v3938
  %v3943 = vmul.f32 %v3941, %v2331
  %v3944 = vmul.f32 %v3942, %v2338
  %3947 = vset.pattern.permute.xlu0 0
  %3948 = vperm.xlu0 %3947, %v3943
  %v3949 = vpop.permute.xlu0 %3948
  %3950 = vset.pattern.permute.xlu0 0
  %3951 = vperm.xlu0 %3950, %v3944
  %v3952 = vpop.permute.xlu0 %3951
  %v3953 = vlaneseq
  %v3954 = vshrl.u32 %v3953, 7
  %v3955 = vsub.s32 %v2257, %v3954
  %v3956 = vrot.slane %v3949, %v3955
  %v3957 = vlaneseq
  %v3958 = vshrl.u32 %v3957, 7
  %v3959 = vsub.s32 %v2257, %v3958
  %v3960 = vrot.slane %v3952, %v3959
  %v3961 = vsel %vm2266, %v3960, %v3956
  %v3963 = vsel %vm2269, %v3961, 0.0
  %3964 = vadd.xlane.f32.xlu0 %v3963
  %v3965 = vpop.xlane.xlu0 %3964
  %v3966 = vrcp.pop %v3965
  %v3968 = vlaneseq
  %v3969 = vshrl.u32 %v3968, 7
  %v3970 = vsub.s32 0, %v3969
  %v3971 = vrot.slane %v3966, %v3970
  %v3972 = vlaneseq
  %v3973 = vshrl.u32 %v3972, 7
  %v3974 = vsub.s32 1, %v3973
  %v3975 = vrot.slane %v3966, %v3974
  %v3978 = vmul.f32 %v3943, %v3971
  %v3979 = vmul.f32 %v3944, %v3975
  %3981 = vset.pattern.permute.xlu0 0
  %3982 = vperm.xlu0 %3981, %v3978
  %v3983 = vpop.permute.xlu0 %3982
  %3986 = vset.pattern.permute.xlu0 0
  %3987 = vperm.xlu0 %3986, %v3979
  %v3988 = vpop.permute.xlu0 %3987
  %v3990 = vmul.f32 %v3983, %v1852
  %v3991 = vmul.f32 %v3988, %v1853
  %v3992 = vsel %vm76, %v3990, 0.0
  %v3993 = vrot.slane %v3992, 4
  %v3994 = vadd.f32 %v3992, %v3993
  %v3995 = vrot.slane %v3994, 2
  %v3996 = vadd.f32 %v3994, %v3995
  %v3997 = vrot.slane %v3996, 1
  %v3998 = vadd.f32 %v3996, %v3997
  %v3999 = vsel %vm76, %v3991, 0.0
  %v4000 = vrot.slane %v3999, 4
  %v4001 = vadd.f32 %v3999, %v4000
  %v4002 = vrot.slane %v4001, 2
  %v4003 = vadd.f32 %v4001, %v4002
  %v4004 = vrot.slane %v4003, 1
  %v4005 = vadd.f32 %v4003, %v4004
  %v4007 = vlaneseq
  %v4008 = vshrl.u32 %v4007, 7
  %v4009 = vsub.s32 0, %v4008
  %v4010 = vrot.slane %v3519, %v4009
  %4012 = vbcast.lane.b32.xlu0 %v4010, 256
  %v4013 = vpop.permute.xlu0 %4012
  %v4014 = vlaneseq
  %v4015 = vshrl.u32 %v4014, 7
  %v4016 = vsub.s32 1, %v4015
  %v4017 = vrot.slane %v3519, %v4016
  %4019 = vbcast.lane.b32.xlu0 %v4017, 256
  %v4020 = vpop.permute.xlu0 %4019
  %v4023 = vmin.f32 %v3978, %v4013
  %v4024 = vmin.f32 %v3979, %v4020
  %4027 = vset.pattern.permute.xlu0 0
  %4028 = vperm.xlu0 %4027, %v4023
  %v4029 = vpop.permute.xlu0 %4028
  %4030 = vset.pattern.permute.xlu0 0
  %4031 = vperm.xlu0 %4030, %v4024
  %v4032 = vpop.permute.xlu0 %4031
  %v4033 = vlaneseq
  %v4034 = vshrl.u32 %v4033, 7
  %v4035 = vsub.s32 %v2257, %v4034
  %v4036 = vrot.slane %v4029, %v4035
  %v4037 = vlaneseq
  %v4038 = vshrl.u32 %v4037, 7
  %v4039 = vsub.s32 %v2257, %v4038
  %v4040 = vrot.slane %v4032, %v4039
  %v4041 = vsel %vm2266, %v4040, %v4036
  %v4043 = vsel %vm2269, %v4041, 0.0
  %4044 = vadd.xlane.f32.xlu0 %v4043
  %v4045 = vpop.xlane.xlu0 %4044
  %v4046 = vlaneseq
  %v4047 = vshrl.u32 %v4046, 7
  %v4048 = vsub.s32 %v2257, %v4047
  %v4049 = vrot.slane %v3983, %v4048
  %v4050 = vlaneseq
  %v4051 = vshrl.u32 %v4050, 7
  %v4052 = vsub.s32 %v2257, %v4051
  %v4053 = vrot.slane %v3988, %v4052
  %v4054 = vsel %vm2266, %v4053, %v4049
  %v4056 = vadd.f32 %v3519, %v4054
  %v4059 = vsel %vm2266, %v4005, %v3998
  %4060 = vrot.lane.b32.xlu0 %v4059, 32
  %v4061 = vpop.permute.xlu0 %4060
  %v4063 = vsel %vm205, %v3737, %v4061
  %v4065 = vsel %vm2011, %v4063, 0
  %4067 = vmatprep.subr.mxu0 0.0
  %4068 = vmatpush1.msra.mxu0 %v1991
  %4069 = vmatprep.subr.mxu0 0.0
  %4070 = vmatpush1.msra.mxu0 %v1992
  %4071 = vmatprep.subr.mxu0 0.0
  %4072 = vmatpush1.msra.mxu0 %v1993
  %4073 = vmatprep.subr.mxu0 0.0
  %4074 = vmatpush1.msra.mxu0 %v1994
  %4075 = vmatprep.subr.mxu0 0.0
  %4076 = vmatpush1.msra.mxu0 %v1995
  %4077 = vmatprep.subr.mxu0 0.0
  %4078 = vmatpush1.msra.mxu0 %v1996
  %4079 = vmatprep.subr.mxu0 0.0
  %4080 = vmatpush1.msra.mxu0 %v1997
  %4081 = vmatprep.subr.mxu0 0.0
  %4082 = vmatpush1.msra.mxu0 %v1998
  %4083 = vmatprep.subr.mxu0 0.0
  %4084 = vmatpush1.msra.mxu0 %v1999
  %4085 = vmatprep.subr.mxu0 0.0
  %4086 = vmatpush1.msra.mxu0 %v2000
  %4087 = vmatprep.subr.mxu0 0.0
  %4088 = vmatpush1.msra.mxu0 %v2001
  %4089 = vmatprep.subr.mxu0 0.0
  %4090 = vmatpush1.msra.mxu0 %v2002
  %4091 = vmatprep.subr.mxu0 0.0
  %4092 = vmatpush1.msra.mxu0 0.0
  %4093 = vmatprep.subr.mxu0 0.0
  %4094 = vmatpush1.msra.mxu0 0.0
  %4095 = vmatprep.subr.mxu0 0.0
  %4096 = vmatpush1.msra.mxu0 0.0
  %4097 = vmatprep.subr.mxu0 0.0
  %4098 = vmatpush1.msra.mxu0 0.0
  %4099 = vmatprep.subr.mxu0 0.0
  %4100 = vmatpush1.msra.mxu0 0.0
  %4101 = vmatprep.subr.mxu0 0.0
  %4102 = vmatpush1.msra.mxu0 0.0
  %4103 = vmatprep.subr.mxu0 0.0
  %4104 = vmatpush1.msra.mxu0 0.0
  %4105 = vmatprep.subr.mxu0 0.0
  %4106 = vmatpush1.msra.mxu0 0.0
  %4107 = vmatprep.subr.mxu0 0.0
  %4108 = vmatpush1.msra.mxu0 0.0
  %4109 = vmatprep.subr.mxu0 0.0
  %4110 = vmatpush1.msra.mxu0 0.0
  %4111 = vmatprep.subr.mxu0 0.0
  %4112 = vmatpush1.msra.mxu0 0.0
  %4113 = vmatprep.subr.mxu0 0.0
  %4114 = vmatpush1.msra.mxu0 0.0
  %4115 = vmatprep.subr.mxu0 0.0
  %4116 = vmatpush1.msra.mxu0 0.0
  %4117 = vmatprep.subr.mxu0 0.0
  %4118 = vmatpush1.msra.mxu0 0.0
  %4119 = vmatprep.subr.mxu0 0.0
  %4120 = vmatpush1.msra.mxu0 0.0
  %4121 = vmatprep.subr.mxu0 0.0
  %4122 = vmatpush1.msra.mxu0 0.0
  %4123 = vmatprep.subr.mxu0 0.0
  %4124 = vmatpush1.msra.mxu0 0.0
  %4125 = vmatprep.subr.mxu0 0.0
  %4126 = vmatpush1.msra.mxu0 0.0
  %4127 = vmatprep.subr.mxu0 0.0
  %4128 = vmatpush1.msra.mxu0 0.0
  %4129 = vmatprep.subr.mxu0 0.0
  %4130 = vmatpush1.msra.mxu0 0.0
  %4131 = vmatprep.mubr.f32.mxu0 0.0
  %4132 = vmatmul.mubr.f32.gmra.mrb[0].mxu0 %v4065
  %v4133 = vpop.f32.mrb[0].mxu0
  %v4134 = vadd.f32 %v1969, %v4133
  %v4135 = vpop.f32.mrb[0].mxu0
  %4136 = vdwg.mxu0
  %v4137 = vsel %vm1761, %v4134, -inf
  %4138 = vmax.xlane.f32.xlu0 %v4137
  %v4139 = vpop.xlane.xlu0 %4138
  %v4140 = vsub.f32 %v4134, %v4139
  %v4141 = vmul.f32 %v4140, 1.442695
  %v4142 = vpow.pop %v4141
  %v4143 = vsel %vm1761, %v4142, 0.0
  %4144 = vadd.xlane.f32.xlu0 %v4143
  %v4145 = vpop.xlane.xlu0 %4144
  %v4146 = vlog2.pop %v4145
  %v4147 = vmul.f32 %v4146, 0.6931472
  %v4148 = vadd.f32 %v4139, %v4147
  %s4149 = scalar_lea.vmem %s15, 6
  %v4150 = vld [vmem:[%s4149] sm:$0x3]
  %v4151 = vmul.f32 %v4134, %v4150
  %v4152 = vsel %vm1761, %v4151, 0.0
  %4153 = vadd.xlane.f32.xlu0 %v4152
  %v4154 = vpop.xlane.xlu0 %4153
  %v4155 = vsub.f32 %v4148, %v4154
  %v4156 = vmul.f32 %v4155, %v2003
  %4158 = vrot.lane.b32.xlu0 %v4156, 125
  %v4159 = vpop.permute.xlu0 %4158
  %v4161 = vadd.f32 %v3624, %v4159
  %v4162 = vmul.f32 %v4045, %v2003
  %4164 = vrot.lane.b32.xlu0 %v4162, 125
  %v4165 = vpop.permute.xlu0 %4164
  %v4167 = vadd.f32 %v3630, %v4165
  %4169 = vrot.lane.b32.xlu0 %v3734, 96
  %v4170 = vpop.permute.xlu0 %4169
  %v4172 = vsel %vm76, %v4059, %v4170
  %s4173 = scalar_lea.vmem %s7, 8
  %v4174 = vld [vmem:[%s4173] sm:$0x3]
  %v4176 = vsel %vm2011, %v4172, 0
  %4178 = vmatprep.subr.mxu0 0.0
  %4179 = vmatpush1.msra.mxu0 %v1971
  %4180 = vmatprep.subr.mxu0 0.0
  %4181 = vmatpush1.msra.mxu0 %v1972
  %4182 = vmatprep.subr.mxu0 0.0
  %4183 = vmatpush1.msra.mxu0 %v1973
  %4184 = vmatprep.subr.mxu0 0.0
  %4185 = vmatpush1.msra.mxu0 %v1974
  %4186 = vmatprep.subr.mxu0 0.0
  %4187 = vmatpush1.msra.mxu0 %v1975
  %4188 = vmatprep.subr.mxu0 0.0
  %4189 = vmatpush1.msra.mxu0 %v1976
  %4190 = vmatprep.subr.mxu0 0.0
  %4191 = vmatpush1.msra.mxu0 %v1977
  %4192 = vmatprep.subr.mxu0 0.0
  %4193 = vmatpush1.msra.mxu0 %v1978
  %4194 = vmatprep.subr.mxu0 0.0
  %4195 = vmatpush1.msra.mxu0 %v1979
  %4196 = vmatprep.subr.mxu0 0.0
  %4197 = vmatpush1.msra.mxu0 %v1980
  %4198 = vmatprep.subr.mxu0 0.0
  %4199 = vmatpush1.msra.mxu0 %v1981
  %4200 = vmatprep.subr.mxu0 0.0
  %4201 = vmatpush1.msra.mxu0 %v1982
  %4202 = vmatprep.subr.mxu0 0.0
  %4203 = vmatpush1.msra.mxu0 0.0
  %4204 = vmatprep.subr.mxu0 0.0
  %4205 = vmatpush1.msra.mxu0 0.0
  %4206 = vmatprep.subr.mxu0 0.0
  %4207 = vmatpush1.msra.mxu0 0.0
  %4208 = vmatprep.subr.mxu0 0.0
  %4209 = vmatpush1.msra.mxu0 0.0
  %4210 = vmatprep.subr.mxu0 0.0
  %4211 = vmatpush1.msra.mxu0 0.0
  %4212 = vmatprep.subr.mxu0 0.0
  %4213 = vmatpush1.msra.mxu0 0.0
  %4214 = vmatprep.subr.mxu0 0.0
  %4215 = vmatpush1.msra.mxu0 0.0
  %4216 = vmatprep.subr.mxu0 0.0
  %4217 = vmatpush1.msra.mxu0 0.0
  %4218 = vmatprep.subr.mxu0 0.0
  %4219 = vmatpush1.msra.mxu0 0.0
  %4220 = vmatprep.subr.mxu0 0.0
  %4221 = vmatpush1.msra.mxu0 0.0
  %4222 = vmatprep.subr.mxu0 0.0
  %4223 = vmatpush1.msra.mxu0 0.0
  %4224 = vmatprep.subr.mxu0 0.0
  %4225 = vmatpush1.msra.mxu0 0.0
  %4226 = vmatprep.subr.mxu0 0.0
  %4227 = vmatpush1.msra.mxu0 0.0
  %4228 = vmatprep.subr.mxu0 0.0
  %4229 = vmatpush1.msra.mxu0 0.0
  %4230 = vmatprep.subr.mxu0 0.0
  %4231 = vmatpush1.msra.mxu0 0.0
  %4232 = vmatprep.subr.mxu0 0.0
  %4233 = vmatpush1.msra.mxu0 0.0
  %4234 = vmatprep.subr.mxu0 0.0
  %4235 = vmatpush1.msra.mxu0 0.0
  %4236 = vmatprep.subr.mxu0 0.0
  %4237 = vmatpush1.msra.mxu0 0.0
  %4238 = vmatprep.subr.mxu0 0.0
  %4239 = vmatpush1.msra.mxu0 0.0
  %4240 = vmatprep.subr.mxu0 0.0
  %4241 = vmatpush1.msra.mxu0 0.0
  %4242 = vmatprep.mubr.f32.mxu0 0.0
  %4243 = vmatmul.mubr.f32.gmra.mrb[0].mxu0 %v4176
  %v4244 = vpop.f32.mrb[0].mxu0
  %v4245 = vadd.f32 %v4174, %v4244
  %v4246 = vpop.f32.mrb[0].mxu0
  %4247 = vdwg.mxu0
  %v4248 = vxor.u32 %v4245, 2147483648
  %v4249 = vmul.f32 %v4248, 1.442695
  %v4250 = vpow.pop %v4249
  %v4251 = vadd.f32 %v4250, 1.0
  %v4252 = vrcp.pop %v4251
  %v4253 = vmul.f32 1.0, %v4252
  %v4254 = vtanh.pop %v4245
  %v4255 = vmul.f32 %v4253, %v3728
  %4257 = vrot.lane.b32.xlu0 %v4254, 64
  %v4258 = vpop.permute.xlu0 %4257
  %v4260 = vmul.f32 %v4253, %v4258
  %4262 = vrot.lane.b32.xlu0 %v4260, 32
  %v4263 = vpop.permute.xlu0 %4262
  %v4265 = vadd.f32 %v4255, %v4263
  %v4266 = vtanh.pop %v4265
  %4268 = vrot.lane.b32.xlu0 %v4266, 64
  %v4269 = vpop.permute.xlu0 %4268
  %v4271 = vmul.f32 %v4253, %v4269
  %4273 = vrot.lane.b32.xlu0 %v4271, 32
  %v4274 = vpop.permute.xlu0 %4273
  %v4276 = vsel %vm205, %v4274, %v4265
  %v4278 = vsel %vm76, %v4276, 0
  %4280 = vmatprep.subr.mxu0 0.0
  %4281 = vmatpush1.msra.mxu0 %v1983
  %4282 = vmatprep.subr.mxu0 0.0
  %4283 = vmatpush1.msra.mxu0 %v1984
  %4284 = vmatprep.subr.mxu0 0.0
  %4285 = vmatpush1.msra.mxu0 %v1985
  %4286 = vmatprep.subr.mxu0 0.0
  %4287 = vmatpush1.msra.mxu0 %v1986
  %4288 = vmatprep.subr.mxu0 0.0
  %4289 = vmatpush1.msra.mxu0 %v1987
  %4290 = vmatprep.subr.mxu0 0.0
  %4291 = vmatpush1.msra.mxu0 %v1988
  %4292 = vmatprep.subr.mxu0 0.0
  %4293 = vmatpush1.msra.mxu0 %v1989
  %4294 = vmatprep.subr.mxu0 0.0
  %4295 = vmatpush1.msra.mxu0 %v1990
  %4296 = vmatprep.subr.mxu0 0.0
  %4297 = vmatpush1.msra.mxu0 0.0
  %4298 = vmatprep.subr.mxu0 0.0
  %4299 = vmatpush1.msra.mxu0 0.0
  %4300 = vmatprep.subr.mxu0 0.0
  %4301 = vmatpush1.msra.mxu0 0.0
  %4302 = vmatprep.subr.mxu0 0.0
  %4303 = vmatpush1.msra.mxu0 0.0
  %4304 = vmatprep.subr.mxu0 0.0
  %4305 = vmatpush1.msra.mxu0 0.0
  %4306 = vmatprep.subr.mxu0 0.0
  %4307 = vmatpush1.msra.mxu0 0.0
  %4308 = vmatprep.subr.mxu0 0.0
  %4309 = vmatpush1.msra.mxu0 0.0
  %4310 = vmatprep.subr.mxu0 0.0
  %4311 = vmatpush1.msra.mxu0 0.0
  %4312 = vmatprep.subr.mxu0 0.0
  %4313 = vmatpush1.msra.mxu0 0.0
  %4314 = vmatprep.subr.mxu0 0.0
  %4315 = vmatpush1.msra.mxu0 0.0
  %4316 = vmatprep.subr.mxu0 0.0
  %4317 = vmatpush1.msra.mxu0 0.0
  %4318 = vmatprep.subr.mxu0 0.0
  %4319 = vmatpush1.msra.mxu0 0.0
  %4320 = vmatprep.subr.mxu0 0.0
  %4321 = vmatpush1.msra.mxu0 0.0
  %4322 = vmatprep.subr.mxu0 0.0
  %4323 = vmatpush1.msra.mxu0 0.0
  %4324 = vmatprep.subr.mxu0 0.0
  %4325 = vmatpush1.msra.mxu0 0.0
  %4326 = vmatprep.subr.mxu0 0.0
  %4327 = vmatpush1.msra.mxu0 0.0
  %4328 = vmatprep.subr.mxu0 0.0
  %4329 = vmatpush1.msra.mxu0 0.0
  %4330 = vmatprep.subr.mxu0 0.0
  %4331 = vmatpush1.msra.mxu0 0.0
  %4332 = vmatprep.subr.mxu0 0.0
  %4333 = vmatpush1.msra.mxu0 0.0
  %4334 = vmatprep.subr.mxu0 0.0
  %4335 = vmatpush1.msra.mxu0 0.0
  %4336 = vmatprep.subr.mxu0 0.0
  %4337 = vmatpush1.msra.mxu0 0.0
  %4338 = vmatprep.subr.mxu0 0.0
  %4339 = vmatpush1.msra.mxu0 0.0
  %4340 = vmatprep.subr.mxu0 0.0
  %4341 = vmatpush1.msra.mxu0 0.0
  %4342 = vmatprep.subr.mxu0 0.0
  %4343 = vmatpush1.msra.mxu0 0.0
  %4344 = vmatprep.mubr.f32.mxu0 0.0
  %4345 = vmatmul.mubr.f32.gmra.mrb[0].mxu0 %v4278
  %v4346 = vpop.f32.mrb[0].mxu0
  %v4347 = vadd.f32 %v1962, %v4346
  %v4348 = vpop.f32.mrb[0].mxu0
  %4349 = vdwg.mxu0
  %v4352 = vunpack.c.l.s4 1966171168
  %v4353 = vunpack.c.0.s8 %v4352
  %v4354 = vlaneseq
  %v4355 = vshrl.u32 %v4354, 7
  %v4356 = vsub.s32 %v4353, %v4355
  %v4357 = vrot.slane %v4347, %v4356
  %v4358 = vcombine.high %v4357, %v4357
  %v4360 = vunpack.c.l.s4 1966171168
  %v4361 = vunpack.c.0.s8 %v4360
  %v4362 = vlaneseq
  %v4363 = vshrl.u32 %v4362, 7
  %v4364 = vsub.s32 %v4361, %v4363
  %v4365 = vrot.slane %v4357, %v4364
  %v4367 = vunpack.c.l.s4 1966171168
  %v4368 = vunpack.c.0.s8 %v4367
  %v4369 = vlaneseq
  %v4370 = vshrl.u32 %v4369, 7
  %v4371 = vsub.s32 %v4368, %v4370
  %v4372 = vrot.slane %v4358, %v4371
  %v4373 = vlaneseq
  %v4374 = vshrl.u32 %v4373, 7
  %v4375 = vsub.s32 0, %v4374
  %v4376 = vrot.slane %v4365, %v4375
  %v4377 = vlaneseq
  %v4378 = vshrl.u32 %v4377, 7
  %v4379 = vsub.s32 0, %v4378
  %v4380 = vrot.slane %v4372, %v4379
  %v4383 = vadd.f32 %v1935, %v4376
  %v4384 = vadd.f32 %v1940, %v4380
  %v4385 = vlaneseq
  %v4386 = vshrl.u32 %v4385, 7
  %v4387 = vsub.s32 0, %v4386
  %v4388 = vrot.slane %v4056, %v4387
  %4390 = vbcast.lane.b32.xlu0 %v4388, 256
  %v4391 = vpop.permute.xlu0 %4390
  %v4392 = vlaneseq
  %v4393 = vshrl.u32 %v4392, 7
  %v4394 = vsub.s32 1, %v4393
  %v4395 = vrot.slane %v4056, %v4394
  %4397 = vbcast.lane.b32.xlu0 %v4395, 256
  %v4398 = vpop.permute.xlu0 %4397
  %v4399 = vmul.f32 %v4391, %v1955
  %v4400 = vmul.f32 %v4398, %v1955
  %v4401 = vadd.f32 %v4383, %v4399
  %v4402 = vadd.f32 %v4384, %v4400
  %v4403 = vtanh.pop %v4401
  %v4404 = vtanh.pop %v4402
  %v4405 = vmul.f32 %v4403, %v1948
  %v4406 = vmul.f32 %v4404, %v1948
  %v4407 = vsel %vm76, %v4405, 0.0
  %4408 = vadd.xlane.f32.xlu0 %v4407
  %v4409 = vpop.xlane.xlu0 %4408
  %v4410 = vsel %vm76, %v4406, 0.0
  %4411 = vadd.xlane.f32.xlu0 %v4410
  %v4412 = vpop.xlane.xlu0 %4411
  %v4415 = vlaneseq
  %v4416 = vshrl.u32 %v4415, 7
  %v4417 = vsub.s32 %v2257, %v4416
  %v4418 = vrot.slane %v4409, %v4417
  %v4419 = vlaneseq
  %v4420 = vshrl.u32 %v4419, 7
  %v4421 = vsub.s32 %v2257, %v4420
  %v4422 = vrot.slane %v4412, %v4421
  %v4423 = vsel %vm2266, %v4422, %v4418
  %v4425 = vsel %vm2269, %v4423, -inf
  %4426 = vmax.xlane.f32.xlu0 %v4425
  %v4427 = vpop.xlane.xlu0 %4426
  %v4429 = vlaneseq
  %v4430 = vshrl.u32 %v4429, 7
  %v4431 = vsub.s32 0, %v4430
  %v4432 = vrot.slane %v4427, %v4431
  %v4433 = vlaneseq
  %v4434 = vshrl.u32 %v4433, 7
  %v4435 = vsub.s32 1, %v4434
  %v4436 = vrot.slane %v4427, %v4435
  %v4439 = vsub.f32 %v4409, %v4432
  %v4440 = vsub.f32 %v4412, %v4436
  %v4441 = vmul.f32 %v4439, 1.442695
  %v4442 = vpow.pop %v4441
  %v4443 = vmul.f32 %v4440, 1.442695
  %v4444 = vpow.pop %v4443
  %4447 = vset.pattern.permute.xlu0 0
  %4448 = vperm.xlu0 %4447, %v4442
  %v4449 = vpop.permute.xlu0 %4448
  %4450 = vset.pattern.permute.xlu0 0
  %4451 = vperm.xlu0 %4450, %v4444
  %v4452 = vpop.permute.xlu0 %4451
  %v4453 = vlaneseq
  %v4454 = vshrl.u32 %v4453, 7
  %v4455 = vsub.s32 %v2257, %v4454
  %v4456 = vrot.slane %v4449, %v4455
  %v4457 = vlaneseq
  %v4458 = vshrl.u32 %v4457, 7
  %v4459 = vsub.s32 %v2257, %v4458
  %v4460 = vrot.slane %v4452, %v4459
  %v4461 = vsel %vm2266, %v4460, %v4456
  %v4463 = vsel %vm2269, %v4461, 0.0
  %4464 = vadd.xlane.f32.xlu0 %v4463
  %v4465 = vpop.xlane.xlu0 %4464
  %v4466 = vrcp.pop %v4465
  %v4468 = vlaneseq
  %v4469 = vshrl.u32 %v4468, 7
  %v4470 = vsub.s32 0, %v4469
  %v4471 = vrot.slane %v4466, %v4470
  %v4472 = vlaneseq
  %v4473 = vshrl.u32 %v4472, 7
  %v4474 = vsub.s32 1, %v4473
  %v4475 = vrot.slane %v4466, %v4474
  %v4478 = vmul.f32 %v4442, %v4471
  %v4479 = vmul.f32 %v4444, %v4475
  %v4480 = vmul.f32 %v4478, %v2331
  %v4481 = vmul.f32 %v4479, %v2338
  %4484 = vset.pattern.permute.xlu0 0
  %4485 = vperm.xlu0 %4484, %v4480
  %v4486 = vpop.permute.xlu0 %4485
  %4487 = vset.pattern.permute.xlu0 0
  %4488 = vperm.xlu0 %4487, %v4481
  %v4489 = vpop.permute.xlu0 %4488
  %v4490 = vlaneseq
  %v4491 = vshrl.u32 %v4490, 7
  %v4492 = vsub.s32 %v2257, %v4491
  %v4493 = vrot.slane %v4486, %v4492
  %v4494 = vlaneseq
  %v4495 = vshrl.u32 %v4494, 7
  %v4496 = vsub.s32 %v2257, %v4495
  %v4497 = vrot.slane %v4489, %v4496
  %v4498 = vsel %vm2266, %v4497, %v4493
  %v4500 = vsel %vm2269, %v4498, 0.0
  %4501 = vadd.xlane.f32.xlu0 %v4500
  %v4502 = vpop.xlane.xlu0 %4501
  %v4503 = vrcp.pop %v4502
  %v4505 = vlaneseq
  %v4506 = vshrl.u32 %v4505, 7
  %v4507 = vsub.s32 0, %v4506
  %v4508 = vrot.slane %v4503, %v4507
  %v4509 = vlaneseq
  %v4510 = vshrl.u32 %v4509, 7
  %v4511 = vsub.s32 1, %v4510
  %v4512 = vrot.slane %v4503, %v4511
  %v4515 = vmul.f32 %v4480, %v4508
  %v4516 = vmul.f32 %v4481, %v4512
  %4518 = vset.pattern.permute.xlu0 0
  %4519 = vperm.xlu0 %4518, %v4515
  %v4520 = vpop.permute.xlu0 %4519
  %4523 = vset.pattern.permute.xlu0 0
  %4524 = vperm.xlu0 %4523, %v4516
  %v4525 = vpop.permute.xlu0 %4524
  %v4527 = vmul.f32 %v4520, %v1852
  %v4528 = vmul.f32 %v4525, %v1853
  %v4529 = vsel %vm76, %v4527, 0.0
  %v4530 = vrot.slane %v4529, 4
  %v4531 = vadd.f32 %v4529, %v4530
  %v4532 = vrot.slane %v4531, 2
  %v4533 = vadd.f32 %v4531, %v4532
  %v4534 = vrot.slane %v4533, 1
  %v4535 = vadd.f32 %v4533, %v4534
  %v4536 = vsel %vm76, %v4528, 0.0
  %v4537 = vrot.slane %v4536, 4
  %v4538 = vadd.f32 %v4536, %v4537
  %v4539 = vrot.slane %v4538, 2
  %v4540 = vadd.f32 %v4538, %v4539
  %v4541 = vrot.slane %v4540, 1
  %v4542 = vadd.f32 %v4540, %v4541
  %v4544 = vlaneseq
  %v4545 = vshrl.u32 %v4544, 7
  %v4546 = vsub.s32 0, %v4545
  %v4547 = vrot.slane %v4056, %v4546
  %4549 = vbcast.lane.b32.xlu0 %v4547, 256
  %v4550 = vpop.permute.xlu0 %4549
  %v4551 = vlaneseq
  %v4552 = vshrl.u32 %v4551, 7
  %v4553 = vsub.s32 1, %v4552
  %v4554 = vrot.slane %v4056, %v4553
  %4556 = vbcast.lane.b32.xlu0 %v4554, 256
  %v4557 = vpop.permute.xlu0 %4556
  %v4560 = vmin.f32 %v4515, %v4550
  %v4561 = vmin.f32 %v4516, %v4557
  %4564 = vset.pattern.permute.xlu0 0
  %4565 = vperm.xlu0 %4564, %v4560
  %v4566 = vpop.permute.xlu0 %4565
  %4567 = vset.pattern.permute.xlu0 0
  %4568 = vperm.xlu0 %4567, %v4561
  %v4569 = vpop.permute.xlu0 %4568
  %v4570 = vlaneseq
  %v4571 = vshrl.u32 %v4570, 7
  %v4572 = vsub.s32 %v2257, %v4571
  %v4573 = vrot.slane %v4566, %v4572
  %v4574 = vlaneseq
  %v4575 = vshrl.u32 %v4574, 7
  %v4576 = vsub.s32 %v2257, %v4575
  %v4577 = vrot.slane %v4569, %v4576
  %v4578 = vsel %vm2266, %v4577, %v4573
  %v4580 = vsel %vm2269, %v4578, 0.0
  %4581 = vadd.xlane.f32.xlu0 %v4580
  %v4582 = vpop.xlane.xlu0 %4581
  %v4583 = vlaneseq
  %v4584 = vshrl.u32 %v4583, 7
  %v4585 = vsub.s32 %v2257, %v4584
  %v4586 = vrot.slane %v4520, %v4585
  %v4587 = vlaneseq
  %v4588 = vshrl.u32 %v4587, 7
  %v4589 = vsub.s32 %v2257, %v4588
  %v4590 = vrot.slane %v4525, %v4589
  %v4591 = vsel %vm2266, %v4590, %v4586
  %v4593 = vadd.f32 %v4056, %v4591
  %v4596 = vsel %vm2266, %v4542, %v4535
  %4597 = vrot.lane.b32.xlu0 %v4596, 32
  %v4598 = vpop.permute.xlu0 %4597
  %v4600 = vsel %vm205, %v4274, %v4598
  %v4602 = vsel %vm2011, %v4600, 0
  %4604 = vmatprep.subr.mxu0 0.0
  %4605 = vmatpush1.msra.mxu0 %v1991
  %4606 = vmatprep.subr.mxu0 0.0
  %4607 = vmatpush1.msra.mxu0 %v1992
  %4608 = vmatprep.subr.mxu0 0.0
  %4609 = vmatpush1.msra.mxu0 %v1993
  %4610 = vmatprep.subr.mxu0 0.0
  %4611 = vmatpush1.msra.mxu0 %v1994
  %4612 = vmatprep.subr.mxu0 0.0
  %4613 = vmatpush1.msra.mxu0 %v1995
  %4614 = vmatprep.subr.mxu0 0.0
  %4615 = vmatpush1.msra.mxu0 %v1996
  %4616 = vmatprep.subr.mxu0 0.0
  %4617 = vmatpush1.msra.mxu0 %v1997
  %4618 = vmatprep.subr.mxu0 0.0
  %4619 = vmatpush1.msra.mxu0 %v1998
  %4620 = vmatprep.subr.mxu0 0.0
  %4621 = vmatpush1.msra.mxu0 %v1999
  %4622 = vmatprep.subr.mxu0 0.0
  %4623 = vmatpush1.msra.mxu0 %v2000
  %4624 = vmatprep.subr.mxu0 0.0
  %4625 = vmatpush1.msra.mxu0 %v2001
  %4626 = vmatprep.subr.mxu0 0.0
  %4627 = vmatpush1.msra.mxu0 %v2002
  %4628 = vmatprep.subr.mxu0 0.0
  %4629 = vmatpush1.msra.mxu0 0.0
  %4630 = vmatprep.subr.mxu0 0.0
  %4631 = vmatpush1.msra.mxu0 0.0
  %4632 = vmatprep.subr.mxu0 0.0
  %4633 = vmatpush1.msra.mxu0 0.0
  %4634 = vmatprep.subr.mxu0 0.0
  %4635 = vmatpush1.msra.mxu0 0.0
  %4636 = vmatprep.subr.mxu0 0.0
  %4637 = vmatpush1.msra.mxu0 0.0
  %4638 = vmatprep.subr.mxu0 0.0
  %4639 = vmatpush1.msra.mxu0 0.0
  %4640 = vmatprep.subr.mxu0 0.0
  %4641 = vmatpush1.msra.mxu0 0.0
  %4642 = vmatprep.subr.mxu0 0.0
  %4643 = vmatpush1.msra.mxu0 0.0
  %4644 = vmatprep.subr.mxu0 0.0
  %4645 = vmatpush1.msra.mxu0 0.0
  %4646 = vmatprep.subr.mxu0 0.0
  %4647 = vmatpush1.msra.mxu0 0.0
  %4648 = vmatprep.subr.mxu0 0.0
  %4649 = vmatpush1.msra.mxu0 0.0
  %4650 = vmatprep.subr.mxu0 0.0
  %4651 = vmatpush1.msra.mxu0 0.0
  %4652 = vmatprep.subr.mxu0 0.0
  %4653 = vmatpush1.msra.mxu0 0.0
  %4654 = vmatprep.subr.mxu0 0.0
  %4655 = vmatpush1.msra.mxu0 0.0
  %4656 = vmatprep.subr.mxu0 0.0
  %4657 = vmatpush1.msra.mxu0 0.0
  %4658 = vmatprep.subr.mxu0 0.0
  %4659 = vmatpush1.msra.mxu0 0.0
  %4660 = vmatprep.subr.mxu0 0.0
  %4661 = vmatpush1.msra.mxu0 0.0
  %4662 = vmatprep.subr.mxu0 0.0
  %4663 = vmatpush1.msra.mxu0 0.0
  %4664 = vmatprep.subr.mxu0 0.0
  %4665 = vmatpush1.msra.mxu0 0.0
  %4666 = vmatprep.subr.mxu0 0.0
  %4667 = vmatpush1.msra.mxu0 0.0
  %4668 = vmatprep.mubr.f32.mxu0 0.0
  %4669 = vmatmul.mubr.f32.gmra.mrb[0].mxu0 %v4602
  %v4670 = vpop.f32.mrb[0].mxu0
  %v4671 = vadd.f32 %v1969, %v4670
  %v4672 = vpop.f32.mrb[0].mxu0
  %4673 = vdwg.mxu0
  %v4674 = vsel %vm1761, %v4671, -inf
  %4675 = vmax.xlane.f32.xlu0 %v4674
  %v4676 = vpop.xlane.xlu0 %4675
  %v4677 = vsub.f32 %v4671, %v4676
  %v4678 = vmul.f32 %v4677, 1.442695
  %v4679 = vpow.pop %v4678
  %v4680 = vsel %vm1761, %v4679, 0.0
  %4681 = vadd.xlane.f32.xlu0 %v4680
  %v4682 = vpop.xlane.xlu0 %4681
  %v4683 = vlog2.pop %v4682
  %v4684 = vmul.f32 %v4683, 0.6931472
  %v4685 = vadd.f32 %v4676, %v4684
  %s4686 = scalar_lea.vmem %s15, 8
  %v4687 = vld [vmem:[%s4686] sm:$0x3]
  %v4688 = vmul.f32 %v4671, %v4687
  %v4689 = vsel %vm1761, %v4688, 0.0
  %4690 = vadd.xlane.f32.xlu0 %v4689
  %v4691 = vpop.xlane.xlu0 %4690
  %v4692 = vsub.f32 %v4685, %v4691
  %v4693 = vmul.f32 %v4692, %v2003
  %4695 = vrot.lane.b32.xlu0 %v4693, 124
  %v4696 = vpop.permute.xlu0 %4695
  %v4698 = vadd.f32 %v4161, %v4696
  %v4699 = vmul.f32 %v4582, %v2003
  %4701 = vrot.lane.b32.xlu0 %v4699, 124
  %v4702 = vpop.permute.xlu0 %4701
  %v4704 = vadd.f32 %v4167, %v4702
  %4706 = vrot.lane.b32.xlu0 %v4271, 96
  %v4707 = vpop.permute.xlu0 %4706
  %v4709 = vsel %vm76, %v4596, %v4707
  %s4710 = scalar_lea.vmem %s7, 10
  %v4711 = vld [vmem:[%s4710] sm:$0x3]
  %v4713 = vsel %vm2011, %v4709, 0
  %4715 = vmatprep.subr.mxu0 0.0
  %4716 = vmatpush1.msra.mxu0 %v1971
  %4717 = vmatprep.subr.mxu0 0.0
  %4718 = vmatpush1.msra.mxu0 %v1972
  %4719 = vmatprep.subr.mxu0 0.0
  %4720 = vmatpush1.msra.mxu0 %v1973
  %4721 = vmatprep.subr.mxu0 0.0
  %4722 = vmatpush1.msra.mxu0 %v1974
  %4723 = vmatprep.subr.mxu0 0.0
  %4724 = vmatpush1.msra.mxu0 %v1975
  %4725 = vmatprep.subr.mxu0 0.0
  %4726 = vmatpush1.msra.mxu0 %v1976
  %4727 = vmatprep.subr.mxu0 0.0
  %4728 = vmatpush1.msra.mxu0 %v1977
  %4729 = vmatprep.subr.mxu0 0.0
  %4730 = vmatpush1.msra.mxu0 %v1978
  %4731 = vmatprep.subr.mxu0 0.0
  %4732 = vmatpush1.msra.mxu0 %v1979
  %4733 = vmatprep.subr.mxu0 0.0
  %4734 = vmatpush1.msra.mxu0 %v1980
  %4735 = vmatprep.subr.mxu0 0.0
  %4736 = vmatpush1.msra.mxu0 %v1981
  %4737 = vmatprep.subr.mxu0 0.0
  %4738 = vmatpush1.msra.mxu0 %v1982
  %4739 = vmatprep.subr.mxu0 0.0
  %4740 = vmatpush1.msra.mxu0 0.0
  %4741 = vmatprep.subr.mxu0 0.0
  %4742 = vmatpush1.msra.mxu0 0.0
  %4743 = vmatprep.subr.mxu0 0.0
  %4744 = vmatpush1.msra.mxu0 0.0
  %4745 = vmatprep.subr.mxu0 0.0
  %4746 = vmatpush1.msra.mxu0 0.0
  %4747 = vmatprep.subr.mxu0 0.0
  %4748 = vmatpush1.msra.mxu0 0.0
  %4749 = vmatprep.subr.mxu0 0.0
  %4750 = vmatpush1.msra.mxu0 0.0
  %4751 = vmatprep.subr.mxu0 0.0
  %4752 = vmatpush1.msra.mxu0 0.0
  %4753 = vmatprep.subr.mxu0 0.0
  %4754 = vmatpush1.msra.mxu0 0.0
  %4755 = vmatprep.subr.mxu0 0.0
  %4756 = vmatpush1.msra.mxu0 0.0
  %4757 = vmatprep.subr.mxu0 0.0
  %4758 = vmatpush1.msra.mxu0 0.0
  %4759 = vmatprep.subr.mxu0 0.0
  %4760 = vmatpush1.msra.mxu0 0.0
  %4761 = vmatprep.subr.mxu0 0.0
  %4762 = vmatpush1.msra.mxu0 0.0
  %4763 = vmatprep.subr.mxu0 0.0
  %4764 = vmatpush1.msra.mxu0 0.0
  %4765 = vmatprep.subr.mxu0 0.0
  %4766 = vmatpush1.msra.mxu0 0.0
  %4767 = vmatprep.subr.mxu0 0.0
  %4768 = vmatpush1.msra.mxu0 0.0
  %4769 = vmatprep.subr.mxu0 0.0
  %4770 = vmatpush1.msra.mxu0 0.0
  %4771 = vmatprep.subr.mxu0 0.0
  %4772 = vmatpush1.msra.mxu0 0.0
  %4773 = vmatprep.subr.mxu0 0.0
  %4774 = vmatpush1.msra.mxu0 0.0
  %4775 = vmatprep.subr.mxu0 0.0
  %4776 = vmatpush1.msra.mxu0 0.0
  %4777 = vmatprep.subr.mxu0 0.0
  %4778 = vmatpush1.msra.mxu0 0.0
  %4779 = vmatprep.mubr.f32.mxu0 0.0
  %4780 = vmatmul.mubr.f32.gmra.mrb[0].mxu0 %v4713
  %v4781 = vpop.f32.mrb[0].mxu0
  %v4782 = vadd.f32 %v4711, %v4781
  %v4783 = vpop.f32.mrb[0].mxu0
  %4784 = vdwg.mxu0
  %v4785 = vxor.u32 %v4782, 2147483648
  %v4786 = vmul.f32 %v4785, 1.442695
  %v4787 = vpow.pop %v4786
  %v4788 = vadd.f32 %v4787, 1.0
  %v4789 = vrcp.pop %v4788
  %v4790 = vmul.f32 1.0, %v4789
  %v4791 = vtanh.pop %v4782
  %v4792 = vmul.f32 %v4790, %v4265
  %4794 = vrot.lane.b32.xlu0 %v4791, 64
  %v4795 = vpop.permute.xlu0 %4794
  %v4797 = vmul.f32 %v4790, %v4795
  %4799 = vrot.lane.b32.xlu0 %v4797, 32
  %v4800 = vpop.permute.xlu0 %4799
  %v4802 = vadd.f32 %v4792, %v4800
  %v4803 = vtanh.pop %v4802
  %4805 = vrot.lane.b32.xlu0 %v4803, 64
  %v4806 = vpop.permute.xlu0 %4805
  %v4808 = vmul.f32 %v4790, %v4806
  %4810 = vrot.lane.b32.xlu0 %v4808, 32
  %v4811 = vpop.permute.xlu0 %4810
  %v4813 = vsel %vm205, %v4811, %v4802
  %v4815 = vsel %vm76, %v4813, 0
  %4817 = vmatprep.subr.mxu0 0.0
  %4818 = vmatpush1.msra.mxu0 %v1983
  %4819 = vmatprep.subr.mxu0 0.0
  %4820 = vmatpush1.msra.mxu0 %v1984
  %4821 = vmatprep.subr.mxu0 0.0
  %4822 = vmatpush1.msra.mxu0 %v1985
  %4823 = vmatprep.subr.mxu0 0.0
  %4824 = vmatpush1.msra.mxu0 %v1986
  %4825 = vmatprep.subr.mxu0 0.0
  %4826 = vmatpush1.msra.mxu0 %v1987
  %4827 = vmatprep.subr.mxu0 0.0
  %4828 = vmatpush1.msra.mxu0 %v1988
  %4829 = vmatprep.subr.mxu0 0.0
  %4830 = vmatpush1.msra.mxu0 %v1989
  %4831 = vmatprep.subr.mxu0 0.0
  %4832 = vmatpush1.msra.mxu0 %v1990
  %4833 = vmatprep.subr.mxu0 0.0
  %4834 = vmatpush1.msra.mxu0 0.0
  %4835 = vmatprep.subr.mxu0 0.0
  %4836 = vmatpush1.msra.mxu0 0.0
  %4837 = vmatprep.subr.mxu0 0.0
  %4838 = vmatpush1.msra.mxu0 0.0
  %4839 = vmatprep.subr.mxu0 0.0
  %4840 = vmatpush1.msra.mxu0 0.0
  %4841 = vmatprep.subr.mxu0 0.0
  %4842 = vmatpush1.msra.mxu0 0.0
  %4843 = vmatprep.subr.mxu0 0.0
  %4844 = vmatpush1.msra.mxu0 0.0
  %4845 = vmatprep.subr.mxu0 0.0
  %4846 = vmatpush1.msra.mxu0 0.0
  %4847 = vmatprep.subr.mxu0 0.0
  %4848 = vmatpush1.msra.mxu0 0.0
  %4849 = vmatprep.subr.mxu0 0.0
  %4850 = vmatpush1.msra.mxu0 0.0
  %4851 = vmatprep.subr.mxu0 0.0
  %4852 = vmatpush1.msra.mxu0 0.0
  %4853 = vmatprep.subr.mxu0 0.0
  %4854 = vmatpush1.msra.mxu0 0.0
  %4855 = vmatprep.subr.mxu0 0.0
  %4856 = vmatpush1.msra.mxu0 0.0
  %4857 = vmatprep.subr.mxu0 0.0
  %4858 = vmatpush1.msra.mxu0 0.0
  %4859 = vmatprep.subr.mxu0 0.0
  %4860 = vmatpush1.msra.mxu0 0.0
  %4861 = vmatprep.subr.mxu0 0.0
  %4862 = vmatpush1.msra.mxu0 0.0
  %4863 = vmatprep.subr.mxu0 0.0
  %4864 = vmatpush1.msra.mxu0 0.0
  %4865 = vmatprep.subr.mxu0 0.0
  %4866 = vmatpush1.msra.mxu0 0.0
  %4867 = vmatprep.subr.mxu0 0.0
  %4868 = vmatpush1.msra.mxu0 0.0
  %4869 = vmatprep.subr.mxu0 0.0
  %4870 = vmatpush1.msra.mxu0 0.0
  %4871 = vmatprep.subr.mxu0 0.0
  %4872 = vmatpush1.msra.mxu0 0.0
  %4873 = vmatprep.subr.mxu0 0.0
  %4874 = vmatpush1.msra.mxu0 0.0
  %4875 = vmatprep.subr.mxu0 0.0
  %4876 = vmatpush1.msra.mxu0 0.0
  %4877 = vmatprep.subr.mxu0 0.0
  %4878 = vmatpush1.msra.mxu0 0.0
  %4879 = vmatprep.subr.mxu0 0.0
  %4880 = vmatpush1.msra.mxu0 0.0
  %4881 = vmatprep.mubr.f32.mxu0 0.0
  %4882 = vmatmul.mubr.f32.gmra.mrb[0].mxu0 %v4815
  %v4883 = vpop.f32.mrb[0].mxu0
  %v4884 = vadd.f32 %v1962, %v4883
  %v4885 = vpop.f32.mrb[0].mxu0
  %4886 = vdwg.mxu0
  %v4889 = vunpack.c.l.s4 1966171168
  %v4890 = vunpack.c.0.s8 %v4889
  %v4891 = vlaneseq
  %v4892 = vshrl.u32 %v4891, 7
  %v4893 = vsub.s32 %v4890, %v4892
  %v4894 = vrot.slane %v4884, %v4893
  %v4895 = vcombine.high %v4894, %v4894
  %v4897 = vunpack.c.l.s4 1966171168
  %v4898 = vunpack.c.0.s8 %v4897
  %v4899 = vlaneseq
  %v4900 = vshrl.u32 %v4899, 7
  %v4901 = vsub.s32 %v4898, %v4900
  %v4902 = vrot.slane %v4894, %v4901
  %v4904 = vunpack.c.l.s4 1966171168
  %v4905 = vunpack.c.0.s8 %v4904
  %v4906 = vlaneseq
  %v4907 = vshrl.u32 %v4906, 7
  %v4908 = vsub.s32 %v4905, %v4907
  %v4909 = vrot.slane %v4895, %v4908
  %v4910 = vlaneseq
  %v4911 = vshrl.u32 %v4910, 7
  %v4912 = vsub.s32 0, %v4911
  %v4913 = vrot.slane %v4902, %v4912
  %v4914 = vlaneseq
  %v4915 = vshrl.u32 %v4914, 7
  %v4916 = vsub.s32 0, %v4915
  %v4917 = vrot.slane %v4909, %v4916
  %v4920 = vadd.f32 %v1935, %v4913
  %v4921 = vadd.f32 %v1940, %v4917
  %v4922 = vlaneseq
  %v4923 = vshrl.u32 %v4922, 7
  %v4924 = vsub.s32 0, %v4923
  %v4925 = vrot.slane %v4593, %v4924
  %4927 = vbcast.lane.b32.xlu0 %v4925, 256
  %v4928 = vpop.permute.xlu0 %4927
  %v4929 = vlaneseq
  %v4930 = vshrl.u32 %v4929, 7
  %v4931 = vsub.s32 1, %v4930
  %v4932 = vrot.slane %v4593, %v4931
  %4934 = vbcast.lane.b32.xlu0 %v4932, 256
  %v4935 = vpop.permute.xlu0 %4934
  %v4936 = vmul.f32 %v4928, %v1955
  %v4937 = vmul.f32 %v4935, %v1955
  %v4938 = vadd.f32 %v4920, %v4936
  %v4939 = vadd.f32 %v4921, %v4937
  %v4940 = vtanh.pop %v4938
  %v4941 = vtanh.pop %v4939
  %v4942 = vmul.f32 %v4940, %v1948
  %v4943 = vmul.f32 %v4941, %v1948
  %v4944 = vsel %vm76, %v4942, 0.0
  %4945 = vadd.xlane.f32.xlu0 %v4944
  %v4946 = vpop.xlane.xlu0 %4945
  %v4947 = vsel %vm76, %v4943, 0.0
  %4948 = vadd.xlane.f32.xlu0 %v4947
  %v4949 = vpop.xlane.xlu0 %4948
  %v4952 = vlaneseq
  %v4953 = vshrl.u32 %v4952, 7
  %v4954 = vsub.s32 %v2257, %v4953
  %v4955 = vrot.slane %v4946, %v4954
  %v4956 = vlaneseq
  %v4957 = vshrl.u32 %v4956, 7
  %v4958 = vsub.s32 %v2257, %v4957
  %v4959 = vrot.slane %v4949, %v4958
  %v4960 = vsel %vm2266, %v4959, %v4955
  %v4962 = vsel %vm2269, %v4960, -inf
  %4963 = vmax.xlane.f32.xlu0 %v4962
  %v4964 = vpop.xlane.xlu0 %4963
  %v4966 = vlaneseq
  %v4967 = vshrl.u32 %v4966, 7
  %v4968 = vsub.s32 0, %v4967
  %v4969 = vrot.slane %v4964, %v4968
  %v4970 = vlaneseq
  %v4971 = vshrl.u32 %v4970, 7
  %v4972 = vsub.s32 1, %v4971
  %v4973 = vrot.slane %v4964, %v4972
  %v4976 = vsub.f32 %v4946, %v4969
  %v4977 = vsub.f32 %v4949, %v4973
  %v4978 = vmul.f32 %v4976, 1.442695
  %v4979 = vpow.pop %v4978
  %v4980 = vmul.f32 %v4977, 1.442695
  %v4981 = vpow.pop %v4980
  %4984 = vset.pattern.permute.xlu0 0
  %4985 = vperm.xlu0 %4984, %v4979
  %v4986 = vpop.permute.xlu0 %4985
  %4987 = vset.pattern.permute.xlu0 0
  %4988 = vperm.xlu0 %4987, %v4981
  %v4989 = vpop.permute.xlu0 %4988
  %v4990 = vlaneseq
  %v4991 = vshrl.u32 %v4990, 7
  %v4992 = vsub.s32 %v2257, %v4991
  %v4993 = vrot.slane %v4986, %v4992
  %v4994 = vlaneseq
  %v4995 = vshrl.u32 %v4994, 7
  %v4996 = vsub.s32 %v2257, %v4995
  %v4997 = vrot.slane %v4989, %v4996
  %v4998 = vsel %vm2266, %v4997, %v4993
  %v5000 = vsel %vm2269, %v4998, 0.0
  %5001 = vadd.xlane.f32.xlu0 %v5000
  %v5002 = vpop.xlane.xlu0 %5001
  %v5003 = vrcp.pop %v5002
  %v5005 = vlaneseq
  %v5006 = vshrl.u32 %v5005, 7
  %v5007 = vsub.s32 0, %v5006
  %v5008 = vrot.slane %v5003, %v5007
  %v5009 = vlaneseq
  %v5010 = vshrl.u32 %v5009, 7
  %v5011 = vsub.s32 1, %v5010
  %v5012 = vrot.slane %v5003, %v5011
  %v5015 = vmul.f32 %v4979, %v5008
  %v5016 = vmul.f32 %v4981, %v5012
  %v5017 = vmul.f32 %v5015, %v2331
  %v5018 = vmul.f32 %v5016, %v2338
  %5021 = vset.pattern.permute.xlu0 0
  %5022 = vperm.xlu0 %5021, %v5017
  %v5023 = vpop.permute.xlu0 %5022
  %5024 = vset.pattern.permute.xlu0 0
  %5025 = vperm.xlu0 %5024, %v5018
  %v5026 = vpop.permute.xlu0 %5025
  %v5027 = vlaneseq
  %v5028 = vshrl.u32 %v5027, 7
  %v5029 = vsub.s32 %v2257, %v5028
  %v5030 = vrot.slane %v5023, %v5029
  %v5031 = vlaneseq
  %v5032 = vshrl.u32 %v5031, 7
  %v5033 = vsub.s32 %v2257, %v5032
  %v5034 = vrot.slane %v5026, %v5033
  %v5035 = vsel %vm2266, %v5034, %v5030
  %v5037 = vsel %vm2269, %v5035, 0.0
  %5038 = vadd.xlane.f32.xlu0 %v5037
  %v5039 = vpop.xlane.xlu0 %5038
  %v5040 = vrcp.pop %v5039
  %v5042 = vlaneseq
  %v5043 = vshrl.u32 %v5042, 7
  %v5044 = vsub.s32 0, %v5043
  %v5045 = vrot.slane %v5040, %v5044
  %v5046 = vlaneseq
  %v5047 = vshrl.u32 %v5046, 7
  %v5048 = vsub.s32 1, %v5047
  %v5049 = vrot.slane %v5040, %v5048
  %v5052 = vmul.f32 %v5017, %v5045
  %v5053 = vmul.f32 %v5018, %v5049
  %5055 = vset.pattern.permute.xlu0 0
  %5056 = vperm.xlu0 %5055, %v5052
  %v5057 = vpop.permute.xlu0 %5056
  %5060 = vset.pattern.permute.xlu0 0
  %5061 = vperm.xlu0 %5060, %v5053
  %v5062 = vpop.permute.xlu0 %5061
  %v5064 = vmul.f32 %v5057, %v1852
  %v5065 = vmul.f32 %v5062, %v1853
  %v5066 = vsel %vm76, %v5064, 0.0
  %v5067 = vrot.slane %v5066, 4
  %v5068 = vadd.f32 %v5066, %v5067
  %v5069 = vrot.slane %v5068, 2
  %v5070 = vadd.f32 %v5068, %v5069
  %v5071 = vrot.slane %v5070, 1
  %v5072 = vadd.f32 %v5070, %v5071
  %v5073 = vsel %vm76, %v5065, 0.0
  %v5074 = vrot.slane %v5073, 4
  %v5075 = vadd.f32 %v5073, %v5074
  %v5076 = vrot.slane %v5075, 2
  %v5077 = vadd.f32 %v5075, %v5076
  %v5078 = vrot.slane %v5077, 1
  %v5079 = vadd.f32 %v5077, %v5078
  %v5081 = vlaneseq
  %v5082 = vshrl.u32 %v5081, 7
  %v5083 = vsub.s32 0, %v5082
  %v5084 = vrot.slane %v4593, %v5083
  %5086 = vbcast.lane.b32.xlu0 %v5084, 256
  %v5087 = vpop.permute.xlu0 %5086
  %v5088 = vlaneseq
  %v5089 = vshrl.u32 %v5088, 7
  %v5090 = vsub.s32 1, %v5089
  %v5091 = vrot.slane %v4593, %v5090
  %5093 = vbcast.lane.b32.xlu0 %v5091, 256
  %v5094 = vpop.permute.xlu0 %5093
  %v5097 = vmin.f32 %v5052, %v5087
  %v5098 = vmin.f32 %v5053, %v5094
  %5101 = vset.pattern.permute.xlu0 0
  %5102 = vperm.xlu0 %5101, %v5097
  %v5103 = vpop.permute.xlu0 %5102
  %5104 = vset.pattern.permute.xlu0 0
  %5105 = vperm.xlu0 %5104, %v5098
  %v5106 = vpop.permute.xlu0 %5105
  %v5107 = vlaneseq
  %v5108 = vshrl.u32 %v5107, 7
  %v5109 = vsub.s32 %v2257, %v5108
  %v5110 = vrot.slane %v5103, %v5109
  %v5111 = vlaneseq
  %v5112 = vshrl.u32 %v5111, 7
  %v5113 = vsub.s32 %v2257, %v5112
  %v5114 = vrot.slane %v5106, %v5113
  %v5115 = vsel %vm2266, %v5114, %v5110
  %v5117 = vsel %vm2269, %v5115, 0.0
  %5118 = vadd.xlane.f32.xlu0 %v5117
  %v5119 = vpop.xlane.xlu0 %5118
  %v5120 = vlaneseq
  %v5121 = vshrl.u32 %v5120, 7
  %v5122 = vsub.s32 %v2257, %v5121
  %v5123 = vrot.slane %v5057, %v5122
  %v5124 = vlaneseq
  %v5125 = vshrl.u32 %v5124, 7
  %v5126 = vsub.s32 %v2257, %v5125
  %v5127 = vrot.slane %v5062, %v5126
  %v5128 = vsel %vm2266, %v5127, %v5123
  %v5130 = vadd.f32 %v4593, %v5128
  %v5133 = vsel %vm2266, %v5079, %v5072
  %5134 = vrot.lane.b32.xlu0 %v5133, 32
  %v5135 = vpop.permute.xlu0 %5134
  %v5137 = vsel %vm205, %v4811, %v5135
  %v5139 = vsel %vm2011, %v5137, 0
  %5141 = vmatprep.subr.mxu0 0.0
  %5142 = vmatpush1.msra.mxu0 %v1991
  %5143 = vmatprep.subr.mxu0 0.0
  %5144 = vmatpush1.msra.mxu0 %v1992
  %5145 = vmatprep.subr.mxu0 0.0
  %5146 = vmatpush1.msra.mxu0 %v1993
  %5147 = vmatprep.subr.mxu0 0.0
  %5148 = vmatpush1.msra.mxu0 %v1994
  %5149 = vmatprep.subr.mxu0 0.0
  %5150 = vmatpush1.msra.mxu0 %v1995
  %5151 = vmatprep.subr.mxu0 0.0
  %5152 = vmatpush1.msra.mxu0 %v1996
  %5153 = vmatprep.subr.mxu0 0.0
  %5154 = vmatpush1.msra.mxu0 %v1997
  %5155 = vmatprep.subr.mxu0 0.0
  %5156 = vmatpush1.msra.mxu0 %v1998
  %5157 = vmatprep.subr.mxu0 0.0
  %5158 = vmatpush1.msra.mxu0 %v1999
  %5159 = vmatprep.subr.mxu0 0.0
  %5160 = vmatpush1.msra.mxu0 %v2000
  %5161 = vmatprep.subr.mxu0 0.0
  %5162 = vmatpush1.msra.mxu0 %v2001
  %5163 = vmatprep.subr.mxu0 0.0
  %5164 = vmatpush1.msra.mxu0 %v2002
  %5165 = vmatprep.subr.mxu0 0.0
  %5166 = vmatpush1.msra.mxu0 0.0
  %5167 = vmatprep.subr.mxu0 0.0
  %5168 = vmatpush1.msra.mxu0 0.0
  %5169 = vmatprep.subr.mxu0 0.0
  %5170 = vmatpush1.msra.mxu0 0.0
  %5171 = vmatprep.subr.mxu0 0.0
  %5172 = vmatpush1.msra.mxu0 0.0
  %5173 = vmatprep.subr.mxu0 0.0
  %5174 = vmatpush1.msra.mxu0 0.0
  %5175 = vmatprep.subr.mxu0 0.0
  %5176 = vmatpush1.msra.mxu0 0.0
  %5177 = vmatprep.subr.mxu0 0.0
  %5178 = vmatpush1.msra.mxu0 0.0
  %5179 = vmatprep.subr.mxu0 0.0
  %5180 = vmatpush1.msra.mxu0 0.0
  %5181 = vmatprep.subr.mxu0 0.0
  %5182 = vmatpush1.msra.mxu0 0.0
  %5183 = vmatprep.subr.mxu0 0.0
  %5184 = vmatpush1.msra.mxu0 0.0
  %5185 = vmatprep.subr.mxu0 0.0
  %5186 = vmatpush1.msra.mxu0 0.0
  %5187 = vmatprep.subr.mxu0 0.0
  %5188 = vmatpush1.msra.mxu0 0.0
  %5189 = vmatprep.subr.mxu0 0.0
  %5190 = vmatpush1.msra.mxu0 0.0
  %5191 = vmatprep.subr.mxu0 0.0
  %5192 = vmatpush1.msra.mxu0 0.0
  %5193 = vmatprep.subr.mxu0 0.0
  %5194 = vmatpush1.msra.mxu0 0.0
  %5195 = vmatprep.subr.mxu0 0.0
  %5196 = vmatpush1.msra.mxu0 0.0
  %5197 = vmatprep.subr.mxu0 0.0
  %5198 = vmatpush1.msra.mxu0 0.0
  %5199 = vmatprep.subr.mxu0 0.0
  %5200 = vmatpush1.msra.mxu0 0.0
  %5201 = vmatprep.subr.mxu0 0.0
  %5202 = vmatpush1.msra.mxu0 0.0
  %5203 = vmatprep.subr.mxu0 0.0
  %5204 = vmatpush1.msra.mxu0 0.0
  %5205 = vmatprep.mubr.f32.mxu0 0.0
  %5206 = vmatmul.mubr.f32.gmra.mrb[0].mxu0 %v5139
  %v5207 = vpop.f32.mrb[0].mxu0
  %v5208 = vadd.f32 %v1969, %v5207
  %v5209 = vpop.f32.mrb[0].mxu0
  %5210 = vdwg.mxu0
  %v5211 = vsel %vm1761, %v5208, -inf
  %5212 = vmax.xlane.f32.xlu0 %v5211
  %v5213 = vpop.xlane.xlu0 %5212
  %v5214 = vsub.f32 %v5208, %v5213
  %v5215 = vmul.f32 %v5214, 1.442695
  %v5216 = vpow.pop %v5215
  %v5217 = vsel %vm1761, %v5216, 0.0
  %5218 = vadd.xlane.f32.xlu0 %v5217
  %v5219 = vpop.xlane.xlu0 %5218
  %v5220 = vlog2.pop %v5219
  %v5221 = vmul.f32 %v5220, 0.6931472
  %v5222 = vadd.f32 %v5213, %v5221
  %s5223 = scalar_lea.vmem %s15, 10
  %v5224 = vld [vmem:[%s5223] sm:$0x3]
  %v5225 = vmul.f32 %v5208, %v5224
  %v5226 = vsel %vm1761, %v5225, 0.0
  %5227 = vadd.xlane.f32.xlu0 %v5226
  %v5228 = vpop.xlane.xlu0 %5227
  %v5229 = vsub.f32 %v5222, %v5228
  %v5230 = vmul.f32 %v5229, %v2003
  %5232 = vrot.lane.b32.xlu0 %v5230, 123
  %v5233 = vpop.permute.xlu0 %5232
  %v5235 = vadd.f32 %v4698, %v5233
  %v5236 = vmul.f32 %v5119, %v2003
  %5238 = vrot.lane.b32.xlu0 %v5236, 123
  %v5239 = vpop.permute.xlu0 %5238
  %v5241 = vadd.f32 %v4704, %v5239
  %5243 = vrot.lane.b32.xlu0 %v4808, 96
  %v5244 = vpop.permute.xlu0 %5243
  %v5246 = vsel %vm76, %v5133, %v5244
  %s5247 = scalar_lea.vmem %s7, 12
  %v5248 = vld [vmem:[%s5247] sm:$0x3]
  %v5250 = vsel %vm2011, %v5246, 0
  %5252 = vmatprep.subr.mxu0 0.0
  %5253 = vmatpush1.msra.mxu0 %v1971
  %5254 = vmatprep.subr.mxu0 0.0
  %5255 = vmatpush1.msra.mxu0 %v1972
  %5256 = vmatprep.subr.mxu0 0.0
  %5257 = vmatpush1.msra.mxu0 %v1973
  %5258 = vmatprep.subr.mxu0 0.0
  %5259 = vmatpush1.msra.mxu0 %v1974
  %5260 = vmatprep.subr.mxu0 0.0
  %5261 = vmatpush1.msra.mxu0 %v1975
  %5262 = vmatprep.subr.mxu0 0.0
  %5263 = vmatpush1.msra.mxu0 %v1976
  %5264 = vmatprep.subr.mxu0 0.0
  %5265 = vmatpush1.msra.mxu0 %v1977
  %5266 = vmatprep.subr.mxu0 0.0
  %5267 = vmatpush1.msra.mxu0 %v1978
  %5268 = vmatprep.subr.mxu0 0.0
  %5269 = vmatpush1.msra.mxu0 %v1979
  %5270 = vmatprep.subr.mxu0 0.0
  %5271 = vmatpush1.msra.mxu0 %v1980
  %5272 = vmatprep.subr.mxu0 0.0
  %5273 = vmatpush1.msra.mxu0 %v1981
  %5274 = vmatprep.subr.mxu0 0.0
  %5275 = vmatpush1.msra.mxu0 %v1982
  %5276 = vmatprep.subr.mxu0 0.0
  %5277 = vmatpush1.msra.mxu0 0.0
  %5278 = vmatprep.subr.mxu0 0.0
  %5279 = vmatpush1.msra.mxu0 0.0
  %5280 = vmatprep.subr.mxu0 0.0
  %5281 = vmatpush1.msra.mxu0 0.0
  %5282 = vmatprep.subr.mxu0 0.0
  %5283 = vmatpush1.msra.mxu0 0.0
  %5284 = vmatprep.subr.mxu0 0.0
  %5285 = vmatpush1.msra.mxu0 0.0
  %5286 = vmatprep.subr.mxu0 0.0
  %5287 = vmatpush1.msra.mxu0 0.0
  %5288 = vmatprep.subr.mxu0 0.0
  %5289 = vmatpush1.msra.mxu0 0.0
  %5290 = vmatprep.subr.mxu0 0.0
  %5291 = vmatpush1.msra.mxu0 0.0
  %5292 = vmatprep.subr.mxu0 0.0
  %5293 = vmatpush1.msra.mxu0 0.0
  %5294 = vmatprep.subr.mxu0 0.0
  %5295 = vmatpush1.msra.mxu0 0.0
  %5296 = vmatprep.subr.mxu0 0.0
  %5297 = vmatpush1.msra.mxu0 0.0
  %5298 = vmatprep.subr.mxu0 0.0
  %5299 = vmatpush1.msra.mxu0 0.0
  %5300 = vmatprep.subr.mxu0 0.0
  %5301 = vmatpush1.msra.mxu0 0.0
  %5302 = vmatprep.subr.mxu0 0.0
  %5303 = vmatpush1.msra.mxu0 0.0
  %5304 = vmatprep.subr.mxu0 0.0
  %5305 = vmatpush1.msra.mxu0 0.0
  %5306 = vmatprep.subr.mxu0 0.0
  %5307 = vmatpush1.msra.mxu0 0.0
  %5308 = vmatprep.subr.mxu0 0.0
  %5309 = vmatpush1.msra.mxu0 0.0
  %5310 = vmatprep.subr.mxu0 0.0
  %5311 = vmatpush1.msra.mxu0 0.0
  %5312 = vmatprep.subr.mxu0 0.0
  %5313 = vmatpush1.msra.mxu0 0.0
  %5314 = vmatprep.subr.mxu0 0.0
  %5315 = vmatpush1.msra.mxu0 0.0
  %5316 = vmatprep.mubr.f32.mxu0 0.0
  %5317 = vmatmul.mubr.f32.gmra.mrb[0].mxu0 %v5250
  %v5318 = vpop.f32.mrb[0].mxu0
  %v5319 = vadd.f32 %v5248, %v5318
  %v5320 = vpop.f32.mrb[0].mxu0
  %5321 = vdwg.mxu0
  %v5322 = vxor.u32 %v5319, 2147483648
  %v5323 = vmul.f32 %v5322, 1.442695
  %v5324 = vpow.pop %v5323
  %v5325 = vadd.f32 %v5324, 1.0
  %v5326 = vrcp.pop %v5325
  %v5327 = vmul.f32 1.0, %v5326
  %v5328 = vtanh.pop %v5319
  %v5329 = vmul.f32 %v5327, %v4802
  %5331 = vrot.lane.b32.xlu0 %v5328, 64
  %v5332 = vpop.permute.xlu0 %5331
  %v5334 = vmul.f32 %v5327, %v5332
  %5336 = vrot.lane.b32.xlu0 %v5334, 32
  %v5337 = vpop.permute.xlu0 %5336
  %v5339 = vadd.f32 %v5329, %v5337
  %v5340 = vtanh.pop %v5339
  %5342 = vrot.lane.b32.xlu0 %v5340, 64
  %v5343 = vpop.permute.xlu0 %5342
  %v5345 = vmul.f32 %v5327, %v5343
  %5347 = vrot.lane.b32.xlu0 %v5345, 32
  %v5348 = vpop.permute.xlu0 %5347
  %v5350 = vsel %vm205, %v5348, %v5339
  %v5352 = vsel %vm76, %v5350, 0
  %5354 = vmatprep.subr.mxu0 0.0
  %5355 = vmatpush1.msra.mxu0 %v1983
  %5356 = vmatprep.subr.mxu0 0.0
  %5357 = vmatpush1.msra.mxu0 %v1984
  %5358 = vmatprep.subr.mxu0 0.0
  %5359 = vmatpush1.msra.mxu0 %v1985
  %5360 = vmatprep.subr.mxu0 0.0
  %5361 = vmatpush1.msra.mxu0 %v1986
  %5362 = vmatprep.subr.mxu0 0.0
  %5363 = vmatpush1.msra.mxu0 %v1987
  %5364 = vmatprep.subr.mxu0 0.0
  %5365 = vmatpush1.msra.mxu0 %v1988
  %5366 = vmatprep.subr.mxu0 0.0
  %5367 = vmatpush1.msra.mxu0 %v1989
  %5368 = vmatprep.subr.mxu0 0.0
  %5369 = vmatpush1.msra.mxu0 %v1990
  %5370 = vmatprep.subr.mxu0 0.0
  %5371 = vmatpush1.msra.mxu0 0.0
  %5372 = vmatprep.subr.mxu0 0.0
  %5373 = vmatpush1.msra.mxu0 0.0
  %5374 = vmatprep.subr.mxu0 0.0
  %5375 = vmatpush1.msra.mxu0 0.0
  %5376 = vmatprep.subr.mxu0 0.0
  %5377 = vmatpush1.msra.mxu0 0.0
  %5378 = vmatprep.subr.mxu0 0.0
  %5379 = vmatpush1.msra.mxu0 0.0
  %5380 = vmatprep.subr.mxu0 0.0
  %5381 = vmatpush1.msra.mxu0 0.0
  %5382 = vmatprep.subr.mxu0 0.0
  %5383 = vmatpush1.msra.mxu0 0.0
  %5384 = vmatprep.subr.mxu0 0.0
  %5385 = vmatpush1.msra.mxu0 0.0
  %5386 = vmatprep.subr.mxu0 0.0
  %5387 = vmatpush1.msra.mxu0 0.0
  %5388 = vmatprep.subr.mxu0 0.0
  %5389 = vmatpush1.msra.mxu0 0.0
  %5390 = vmatprep.subr.mxu0 0.0
  %5391 = vmatpush1.msra.mxu0 0.0
  %5392 = vmatprep.subr.mxu0 0.0
  %5393 = vmatpush1.msra.mxu0 0.0
  %5394 = vmatprep.subr.mxu0 0.0
  %5395 = vmatpush1.msra.mxu0 0.0
  %5396 = vmatprep.subr.mxu0 0.0
  %5397 = vmatpush1.msra.mxu0 0.0
  %5398 = vmatprep.subr.mxu0 0.0
  %5399 = vmatpush1.msra.mxu0 0.0
  %5400 = vmatprep.subr.mxu0 0.0
  %5401 = vmatpush1.msra.mxu0 0.0
  %5402 = vmatprep.subr.mxu0 0.0
  %5403 = vmatpush1.msra.mxu0 0.0
  %5404 = vmatprep.subr.mxu0 0.0
  %5405 = vmatpush1.msra.mxu0 0.0
  %5406 = vmatprep.subr.mxu0 0.0
  %5407 = vmatpush1.msra.mxu0 0.0
  %5408 = vmatprep.subr.mxu0 0.0
  %5409 = vmatpush1.msra.mxu0 0.0
  %5410 = vmatprep.subr.mxu0 0.0
  %5411 = vmatpush1.msra.mxu0 0.0
  %5412 = vmatprep.subr.mxu0 0.0
  %5413 = vmatpush1.msra.mxu0 0.0
  %5414 = vmatprep.subr.mxu0 0.0
  %5415 = vmatpush1.msra.mxu0 0.0
  %5416 = vmatprep.subr.mxu0 0.0
  %5417 = vmatpush1.msra.mxu0 0.0
  %5418 = vmatprep.mubr.f32.mxu0 0.0
  %5419 = vmatmul.mubr.f32.gmra.mrb[0].mxu0 %v5352
  %v5420 = vpop.f32.mrb[0].mxu0
  %v5421 = vadd.f32 %v1962, %v5420
  %v5422 = vpop.f32.mrb[0].mxu0
  %5423 = vdwg.mxu0
  %v5426 = vunpack.c.l.s4 1966171168
  %v5427 = vunpack.c.0.s8 %v5426
  %v5428 = vlaneseq
  %v5429 = vshrl.u32 %v5428, 7
  %v5430 = vsub.s32 %v5427, %v5429
  %v5431 = vrot.slane %v5421, %v5430
  %v5432 = vcombine.high %v5431, %v5431
  %v5434 = vunpack.c.l.s4 1966171168
  %v5435 = vunpack.c.0.s8 %v5434
  %v5436 = vlaneseq
  %v5437 = vshrl.u32 %v5436, 7
  %v5438 = vsub.s32 %v5435, %v5437
  %v5439 = vrot.slane %v5431, %v5438
  %v5441 = vunpack.c.l.s4 1966171168
  %v5442 = vunpack.c.0.s8 %v5441
  %v5443 = vlaneseq
  %v5444 = vshrl.u32 %v5443, 7
  %v5445 = vsub.s32 %v5442, %v5444
  %v5446 = vrot.slane %v5432, %v5445
  %v5447 = vlaneseq
  %v5448 = vshrl.u32 %v5447, 7
  %v5449 = vsub.s32 0, %v5448
  %v5450 = vrot.slane %v5439, %v5449
  %v5451 = vlaneseq
  %v5452 = vshrl.u32 %v5451, 7
  %v5453 = vsub.s32 0, %v5452
  %v5454 = vrot.slane %v5446, %v5453
  %v5457 = vadd.f32 %v1935, %v5450
  %v5458 = vadd.f32 %v1940, %v5454
  %v5459 = vlaneseq
  %v5460 = vshrl.u32 %v5459, 7
  %v5461 = vsub.s32 0, %v5460
  %v5462 = vrot.slane %v5130, %v5461
  %5464 = vbcast.lane.b32.xlu0 %v5462, 256
  %v5465 = vpop.permute.xlu0 %5464
  %v5466 = vlaneseq
  %v5467 = vshrl.u32 %v5466, 7
  %v5468 = vsub.s32 1, %v5467
  %v5469 = vrot.slane %v5130, %v5468
  %5471 = vbcast.lane.b32.xlu0 %v5469, 256
  %v5472 = vpop.permute.xlu0 %5471
  %v5473 = vmul.f32 %v5465, %v1955
  %v5474 = vmul.f32 %v5472, %v1955
  %v5475 = vadd.f32 %v5457, %v5473
  %v5476 = vadd.f32 %v5458, %v5474
  %v5477 = vtanh.pop %v5475
  %v5478 = vtanh.pop %v5476
  %v5479 = vmul.f32 %v5477, %v1948
  %v5480 = vmul.f32 %v5478, %v1948
  %v5481 = vsel %vm76, %v5479, 0.0
  %5482 = vadd.xlane.f32.xlu0 %v5481
  %v5483 = vpop.xlane.xlu0 %5482
  %v5484 = vsel %vm76, %v5480, 0.0
  %5485 = vadd.xlane.f32.xlu0 %v5484
  %v5486 = vpop.xlane.xlu0 %5485
  %v5489 = vlaneseq
  %v5490 = vshrl.u32 %v5489, 7
  %v5491 = vsub.s32 %v2257, %v5490
  %v5492 = vrot.slane %v5483, %v5491
  %v5493 = vlaneseq
  %v5494 = vshrl.u32 %v5493, 7
  %v5495 = vsub.s32 %v2257, %v5494
  %v5496 = vrot.slane %v5486, %v5495
  %v5497 = vsel %vm2266, %v5496, %v5492
  %v5499 = vsel %vm2269, %v5497, -inf
  %5500 = vmax.xlane.f32.xlu0 %v5499
  %v5501 = vpop.xlane.xlu0 %5500
  %v5503 = vlaneseq
  %v5504 = vshrl.u32 %v5503, 7
  %v5505 = vsub.s32 0, %v5504
  %v5506 = vrot.slane %v5501, %v5505
  %v5507 = vlaneseq
  %v5508 = vshrl.u32 %v5507, 7
  %v5509 = vsub.s32 1, %v5508
  %v5510 = vrot.slane %v5501, %v5509
  %v5513 = vsub.f32 %v5483, %v5506
  %v5514 = vsub.f32 %v5486, %v5510
  %v5515 = vmul.f32 %v5513, 1.442695
  %v5516 = vpow.pop %v5515
  %v5517 = vmul.f32 %v5514, 1.442695
  %v5518 = vpow.pop %v5517
  %5521 = vset.pattern.permute.xlu0 0
  %5522 = vperm.xlu0 %5521, %v5516
  %v5523 = vpop.permute.xlu0 %5522
  %5524 = vset.pattern.permute.xlu0 0
  %5525 = vperm.xlu0 %5524, %v5518
  %v5526 = vpop.permute.xlu0 %5525
  %v5527 = vlaneseq
  %v5528 = vshrl.u32 %v5527, 7
  %v5529 = vsub.s32 %v2257, %v5528
  %v5530 = vrot.slane %v5523, %v5529
  %v5531 = vlaneseq
  %v5532 = vshrl.u32 %v5531, 7
  %v5533 = vsub.s32 %v2257, %v5532
  %v5534 = vrot.slane %v5526, %v5533
  %v5535 = vsel %vm2266, %v5534, %v5530
  %v5537 = vsel %vm2269, %v5535, 0.0
  %5538 = vadd.xlane.f32.xlu0 %v5537
  %v5539 = vpop.xlane.xlu0 %5538
  %v5540 = vrcp.pop %v5539
  %v5542 = vlaneseq
  %v5543 = vshrl.u32 %v5542, 7
  %v5544 = vsub.s32 0, %v5543
  %v5545 = vrot.slane %v5540, %v5544
  %v5546 = vlaneseq
  %v5547 = vshrl.u32 %v5546, 7
  %v5548 = vsub.s32 1, %v5547
  %v5549 = vrot.slane %v5540, %v5548
  %v5552 = vmul.f32 %v5516, %v5545
  %v5553 = vmul.f32 %v5518, %v5549
  %v5554 = vmul.f32 %v5552, %v2331
  %v5555 = vmul.f32 %v5553, %v2338
  %5558 = vset.pattern.permute.xlu0 0
  %5559 = vperm.xlu0 %5558, %v5554
  %v5560 = vpop.permute.xlu0 %5559
  %5561 = vset.pattern.permute.xlu0 0
  %5562 = vperm.xlu0 %5561, %v5555
  %v5563 = vpop.permute.xlu0 %5562
  %v5564 = vlaneseq
  %v5565 = vshrl.u32 %v5564, 7
  %v5566 = vsub.s32 %v2257, %v5565
  %v5567 = vrot.slane %v5560, %v5566
  %v5568 = vlaneseq
  %v5569 = vshrl.u32 %v5568, 7
  %v5570 = vsub.s32 %v2257, %v5569
  %v5571 = vrot.slane %v5563, %v5570
  %v5572 = vsel %vm2266, %v5571, %v5567
  %v5574 = vsel %vm2269, %v5572, 0.0
  %5575 = vadd.xlane.f32.xlu0 %v5574
  %v5576 = vpop.xlane.xlu0 %5575
  %v5577 = vrcp.pop %v5576
  %v5579 = vlaneseq
  %v5580 = vshrl.u32 %v5579, 7
  %v5581 = vsub.s32 0, %v5580
  %v5582 = vrot.slane %v5577, %v5581
  %v5583 = vlaneseq
  %v5584 = vshrl.u32 %v5583, 7
  %v5585 = vsub.s32 1, %v5584
  %v5586 = vrot.slane %v5577, %v5585
  %v5589 = vmul.f32 %v5554, %v5582
  %v5590 = vmul.f32 %v5555, %v5586
  %5592 = vset.pattern.permute.xlu0 0
  %5593 = vperm.xlu0 %5592, %v5589
  %v5594 = vpop.permute.xlu0 %5593
  %5597 = vset.pattern.permute.xlu0 0
  %5598 = vperm.xlu0 %5597, %v5590
  %v5599 = vpop.permute.xlu0 %5598
  %v5601 = vmul.f32 %v5594, %v1852
  %v5602 = vmul.f32 %v5599, %v1853
  %v5603 = vsel %vm76, %v5601, 0.0
  %v5604 = vrot.slane %v5603, 4
  %v5605 = vadd.f32 %v5603, %v5604
  %v5606 = vrot.slane %v5605, 2
  %v5607 = vadd.f32 %v5605, %v5606
  %v5608 = vrot.slane %v5607, 1
  %v5609 = vadd.f32 %v5607, %v5608
  %v5610 = vsel %vm76, %v5602, 0.0
  %v5611 = vrot.slane %v5610, 4
  %v5612 = vadd.f32 %v5610, %v5611
  %v5613 = vrot.slane %v5612, 2
  %v5614 = vadd.f32 %v5612, %v5613
  %v5615 = vrot.slane %v5614, 1
  %v5616 = vadd.f32 %v5614, %v5615
  %v5618 = vlaneseq
  %v5619 = vshrl.u32 %v5618, 7
  %v5620 = vsub.s32 0, %v5619
  %v5621 = vrot.slane %v5130, %v5620
  %5623 = vbcast.lane.b32.xlu0 %v5621, 256
  %v5624 = vpop.permute.xlu0 %5623
  %v5625 = vlaneseq
  %v5626 = vshrl.u32 %v5625, 7
  %v5627 = vsub.s32 1, %v5626
  %v5628 = vrot.slane %v5130, %v5627
  %5630 = vbcast.lane.b32.xlu0 %v5628, 256
  %v5631 = vpop.permute.xlu0 %5630
  %v5634 = vmin.f32 %v5589, %v5624
  %v5635 = vmin.f32 %v5590, %v5631
  %5638 = vset.pattern.permute.xlu0 0
  %5639 = vperm.xlu0 %5638, %v5634
  %v5640 = vpop.permute.xlu0 %5639
  %5641 = vset.pattern.permute.xlu0 0
  %5642 = vperm.xlu0 %5641, %v5635
  %v5643 = vpop.permute.xlu0 %5642
  %v5644 = vlaneseq
  %v5645 = vshrl.u32 %v5644, 7
  %v5646 = vsub.s32 %v2257, %v5645
  %v5647 = vrot.slane %v5640, %v5646
  %v5648 = vlaneseq
  %v5649 = vshrl.u32 %v5648, 7
  %v5650 = vsub.s32 %v2257, %v5649
  %v5651 = vrot.slane %v5643, %v5650
  %v5652 = vsel %vm2266, %v5651, %v5647
  %v5654 = vsel %vm2269, %v5652, 0.0
  %5655 = vadd.xlane.f32.xlu0 %v5654
  %v5656 = vpop.xlane.xlu0 %5655
  %v5657 = vlaneseq
  %v5658 = vshrl.u32 %v5657, 7
  %v5659 = vsub.s32 %v2257, %v5658
  %v5660 = vrot.slane %v5594, %v5659
  %v5661 = vlaneseq
  %v5662 = vshrl.u32 %v5661, 7
  %v5663 = vsub.s32 %v2257, %v5662
  %v5664 = vrot.slane %v5599, %v5663
  %v5665 = vsel %vm2266, %v5664, %v5660
  %v5667 = vadd.f32 %v5130, %v5665
  %v5670 = vsel %vm2266, %v5616, %v5609
  %5671 = vrot.lane.b32.xlu0 %v5670, 32
  %v5672 = vpop.permute.xlu0 %5671
  %v5674 = vsel %vm205, %v5348, %v5672
  %v5676 = vsel %vm2011, %v5674, 0
  %5678 = vmatprep.subr.mxu0 0.0
  %5679 = vmatpush1.msra.mxu0 %v1991
  %5680 = vmatprep.subr.mxu0 0.0
  %5681 = vmatpush1.msra.mxu0 %v1992
  %5682 = vmatprep.subr.mxu0 0.0
  %5683 = vmatpush1.msra.mxu0 %v1993
  %5684 = vmatprep.subr.mxu0 0.0
  %5685 = vmatpush1.msra.mxu0 %v1994
  %5686 = vmatprep.subr.mxu0 0.0
  %5687 = vmatpush1.msra.mxu0 %v1995
  %5688 = vmatprep.subr.mxu0 0.0
  %5689 = vmatpush1.msra.mxu0 %v1996
  %5690 = vmatprep.subr.mxu0 0.0
  %5691 = vmatpush1.msra.mxu0 %v1997
  %5692 = vmatprep.subr.mxu0 0.0
  %5693 = vmatpush1.msra.mxu0 %v1998
  %5694 = vmatprep.subr.mxu0 0.0
  %5695 = vmatpush1.msra.mxu0 %v1999
  %5696 = vmatprep.subr.mxu0 0.0
  %5697 = vmatpush1.msra.mxu0 %v2000
  %5698 = vmatprep.subr.mxu0 0.0
  %5699 = vmatpush1.msra.mxu0 %v2001
  %5700 = vmatprep.subr.mxu0 0.0
  %5701 = vmatpush1.msra.mxu0 %v2002
  %5702 = vmatprep.subr.mxu0 0.0
  %5703 = vmatpush1.msra.mxu0 0.0
  %5704 = vmatprep.subr.mxu0 0.0
  %5705 = vmatpush1.msra.mxu0 0.0
  %5706 = vmatprep.subr.mxu0 0.0
  %5707 = vmatpush1.msra.mxu0 0.0
  %5708 = vmatprep.subr.mxu0 0.0
  %5709 = vmatpush1.msra.mxu0 0.0
  %5710 = vmatprep.subr.mxu0 0.0
  %5711 = vmatpush1.msra.mxu0 0.0
  %5712 = vmatprep.subr.mxu0 0.0
  %5713 = vmatpush1.msra.mxu0 0.0
  %5714 = vmatprep.subr.mxu0 0.0
  %5715 = vmatpush1.msra.mxu0 0.0
  %5716 = vmatprep.subr.mxu0 0.0
  %5717 = vmatpush1.msra.mxu0 0.0
  %5718 = vmatprep.subr.mxu0 0.0
  %5719 = vmatpush1.msra.mxu0 0.0
  %5720 = vmatprep.subr.mxu0 0.0
  %5721 = vmatpush1.msra.mxu0 0.0
  %5722 = vmatprep.subr.mxu0 0.0
  %5723 = vmatpush1.msra.mxu0 0.0
  %5724 = vmatprep.subr.mxu0 0.0
  %5725 = vmatpush1.msra.mxu0 0.0
  %5726 = vmatprep.subr.mxu0 0.0
  %5727 = vmatpush1.msra.mxu0 0.0
  %5728 = vmatprep.subr.mxu0 0.0
  %5729 = vmatpush1.msra.mxu0 0.0
  %5730 = vmatprep.subr.mxu0 0.0
  %5731 = vmatpush1.msra.mxu0 0.0
  %5732 = vmatprep.subr.mxu0 0.0
  %5733 = vmatpush1.msra.mxu0 0.0
  %5734 = vmatprep.subr.mxu0 0.0
  %5735 = vmatpush1.msra.mxu0 0.0
  %5736 = vmatprep.subr.mxu0 0.0
  %5737 = vmatpush1.msra.mxu0 0.0
  %5738 = vmatprep.subr.mxu0 0.0
  %5739 = vmatpush1.msra.mxu0 0.0
  %5740 = vmatprep.subr.mxu0 0.0
  %5741 = vmatpush1.msra.mxu0 0.0
  %5742 = vmatprep.mubr.f32.mxu0 0.0
  %5743 = vmatmul.mubr.f32.gmra.mrb[0].mxu0 %v5676
  %v5744 = vpop.f32.mrb[0].mxu0
  %v5745 = vadd.f32 %v1969, %v5744
  %v5746 = vpop.f32.mrb[0].mxu0
  %5747 = vdwg.mxu0
  %v5748 = vsel %vm1761, %v5745, -inf
  %5749 = vmax.xlane.f32.xlu0 %v5748
  %v5750 = vpop.xlane.xlu0 %5749
  %v5751 = vsub.f32 %v5745, %v5750
  %v5752 = vmul.f32 %v5751, 1.442695
  %v5753 = vpow.pop %v5752
  %v5754 = vsel %vm1761, %v5753, 0.0
  %5755 = vadd.xlane.f32.xlu0 %v5754
  %v5756 = vpop.xlane.xlu0 %5755
  %v5757 = vlog2.pop %v5756
  %v5758 = vmul.f32 %v5757, 0.6931472
  %v5759 = vadd.f32 %v5750, %v5758
  %s5760 = scalar_lea.vmem %s15, 12
  %v5761 = vld [vmem:[%s5760] sm:$0x3]
  %v5762 = vmul.f32 %v5745, %v5761
  %v5763 = vsel %vm1761, %v5762, 0.0
  %5764 = vadd.xlane.f32.xlu0 %v5763
  %v5765 = vpop.xlane.xlu0 %5764
  %v5766 = vsub.f32 %v5759, %v5765
  %v5767 = vmul.f32 %v5766, %v2003
  %5769 = vrot.lane.b32.xlu0 %v5767, 122
  %v5770 = vpop.permute.xlu0 %5769
  %v5772 = vadd.f32 %v5235, %v5770
  %v5773 = vmul.f32 %v5656, %v2003
  %5775 = vrot.lane.b32.xlu0 %v5773, 122
  %v5776 = vpop.permute.xlu0 %5775
  %v5778 = vadd.f32 %v5241, %v5776
  %5780 = vrot.lane.b32.xlu0 %v5345, 96
  %v5781 = vpop.permute.xlu0 %5780
  %v5783 = vsel %vm76, %v5670, %v5781
  %s5784 = scalar_lea.vmem %s7, 14
  %v5785 = vld [vmem:[%s5784] sm:$0x3]
  %v5787 = vsel %vm2011, %v5783, 0
  %5789 = vmatprep.subr.mxu0 0.0
  %5790 = vmatpush1.msra.mxu0 %v1971
  %5791 = vmatprep.subr.mxu0 0.0
  %5792 = vmatpush1.msra.mxu0 %v1972
  %5793 = vmatprep.subr.mxu0 0.0
  %5794 = vmatpush1.msra.mxu0 %v1973
  %5795 = vmatprep.subr.mxu0 0.0
  %5796 = vmatpush1.msra.mxu0 %v1974
  %5797 = vmatprep.subr.mxu0 0.0
  %5798 = vmatpush1.msra.mxu0 %v1975
  %5799 = vmatprep.subr.mxu0 0.0
  %5800 = vmatpush1.msra.mxu0 %v1976
  %5801 = vmatprep.subr.mxu0 0.0
  %5802 = vmatpush1.msra.mxu0 %v1977
  %5803 = vmatprep.subr.mxu0 0.0
  %5804 = vmatpush1.msra.mxu0 %v1978
  %5805 = vmatprep.subr.mxu0 0.0
  %5806 = vmatpush1.msra.mxu0 %v1979
  %5807 = vmatprep.subr.mxu0 0.0
  %5808 = vmatpush1.msra.mxu0 %v1980
  %5809 = vmatprep.subr.mxu0 0.0
  %5810 = vmatpush1.msra.mxu0 %v1981
  %5811 = vmatprep.subr.mxu0 0.0
  %5812 = vmatpush1.msra.mxu0 %v1982
  %5813 = vmatprep.subr.mxu0 0.0
  %5814 = vmatpush1.msra.mxu0 0.0
  %5815 = vmatprep.subr.mxu0 0.0
  %5816 = vmatpush1.msra.mxu0 0.0
  %5817 = vmatprep.subr.mxu0 0.0
  %5818 = vmatpush1.msra.mxu0 0.0
  %5819 = vmatprep.subr.mxu0 0.0
  %5820 = vmatpush1.msra.mxu0 0.0
  %5821 = vmatprep.subr.mxu0 0.0
  %5822 = vmatpush1.msra.mxu0 0.0
  %5823 = vmatprep.subr.mxu0 0.0
  %5824 = vmatpush1.msra.mxu0 0.0
  %5825 = vmatprep.subr.mxu0 0.0
  %5826 = vmatpush1.msra.mxu0 0.0
  %5827 = vmatprep.subr.mxu0 0.0
  %5828 = vmatpush1.msra.mxu0 0.0
  %5829 = vmatprep.subr.mxu0 0.0
  %5830 = vmatpush1.msra.mxu0 0.0
  %5831 = vmatprep.subr.mxu0 0.0
  %5832 = vmatpush1.msra.mxu0 0.0
  %5833 = vmatprep.subr.mxu0 0.0
  %5834 = vmatpush1.msra.mxu0 0.0
  %5835 = vmatprep.subr.mxu0 0.0
  %5836 = vmatpush1.msra.mxu0 0.0
  %5837 = vmatprep.subr.mxu0 0.0
  %5838 = vmatpush1.msra.mxu0 0.0
  %5839 = vmatprep.subr.mxu0 0.0
  %5840 = vmatpush1.msra.mxu0 0.0
  %5841 = vmatprep.subr.mxu0 0.0
  %5842 = vmatpush1.msra.mxu0 0.0
  %5843 = vmatprep.subr.mxu0 0.0
  %5844 = vmatpush1.msra.mxu0 0.0
  %5845 = vmatprep.subr.mxu0 0.0
  %5846 = vmatpush1.msra.mxu0 0.0
  %5847 = vmatprep.subr.mxu0 0.0
  %5848 = vmatpush1.msra.mxu0 0.0
  %5849 = vmatprep.subr.mxu0 0.0
  %5850 = vmatpush1.msra.mxu0 0.0
  %5851 = vmatprep.subr.mxu0 0.0
  %5852 = vmatpush1.msra.mxu0 0.0
  %5853 = vmatprep.mubr.f32.mxu0 0.0
  %5854 = vmatmul.mubr.f32.gmra.mrb[0].mxu0 %v5787
  %v5855 = vpop.f32.mrb[0].mxu0
  %v5856 = vadd.f32 %v5785, %v5855
  %v5857 = vpop.f32.mrb[0].mxu0
  %5858 = vdwg.mxu0
  %v5859 = vxor.u32 %v5856, 2147483648
  %v5860 = vmul.f32 %v5859, 1.442695
  %v5861 = vpow.pop %v5860
  %v5862 = vadd.f32 %v5861, 1.0
  %v5863 = vrcp.pop %v5862
  %v5864 = vmul.f32 1.0, %v5863
  %v5865 = vtanh.pop %v5856
  %v5866 = vmul.f32 %v5864, %v5339
  %5868 = vrot.lane.b32.xlu0 %v5865, 64
  %v5869 = vpop.permute.xlu0 %5868
  %v5871 = vmul.f32 %v5864, %v5869
  %5873 = vrot.lane.b32.xlu0 %v5871, 32
  %v5874 = vpop.permute.xlu0 %5873
  %v5876 = vadd.f32 %v5866, %v5874
  %v5877 = vtanh.pop %v5876
  %5879 = vrot.lane.b32.xlu0 %v5877, 64
  %v5880 = vpop.permute.xlu0 %5879
  %v5882 = vmul.f32 %v5864, %v5880
  %5884 = vrot.lane.b32.xlu0 %v5882, 32
  %v5885 = vpop.permute.xlu0 %5884
  %v5887 = vsel %vm205, %v5885, %v5876
  %v5889 = vsel %vm76, %v5887, 0
  %5891 = vmatprep.subr.mxu0 0.0
  %5892 = vmatpush1.msra.mxu0 %v1983
  %5893 = vmatprep.subr.mxu0 0.0
  %5894 = vmatpush1.msra.mxu0 %v1984
  %5895 = vmatprep.subr.mxu0 0.0
  %5896 = vmatpush1.msra.mxu0 %v1985
  %5897 = vmatprep.subr.mxu0 0.0
  %5898 = vmatpush1.msra.mxu0 %v1986
  %5899 = vmatprep.subr.mxu0 0.0
  %5900 = vmatpush1.msra.mxu0 %v1987
  %5901 = vmatprep.subr.mxu0 0.0
  %5902 = vmatpush1.msra.mxu0 %v1988
  %5903 = vmatprep.subr.mxu0 0.0
  %5904 = vmatpush1.msra.mxu0 %v1989
  %5905 = vmatprep.subr.mxu0 0.0
  %5906 = vmatpush1.msra.mxu0 %v1990
  %5907 = vmatprep.subr.mxu0 0.0
  %5908 = vmatpush1.msra.mxu0 0.0
  %5909 = vmatprep.subr.mxu0 0.0
  %5910 = vmatpush1.msra.mxu0 0.0
  %5911 = vmatprep.subr.mxu0 0.0
  %5912 = vmatpush1.msra.mxu0 0.0
  %5913 = vmatprep.subr.mxu0 0.0
  %5914 = vmatpush1.msra.mxu0 0.0
  %5915 = vmatprep.subr.mxu0 0.0
  %5916 = vmatpush1.msra.mxu0 0.0
  %5917 = vmatprep.subr.mxu0 0.0
  %5918 = vmatpush1.msra.mxu0 0.0
  %5919 = vmatprep.subr.mxu0 0.0
  %5920 = vmatpush1.msra.mxu0 0.0
  %5921 = vmatprep.subr.mxu0 0.0
  %5922 = vmatpush1.msra.mxu0 0.0
  %5923 = vmatprep.subr.mxu0 0.0
  %5924 = vmatpush1.msra.mxu0 0.0
  %5925 = vmatprep.subr.mxu0 0.0
  %5926 = vmatpush1.msra.mxu0 0.0
  %5927 = vmatprep.subr.mxu0 0.0
  %5928 = vmatpush1.msra.mxu0 0.0
  %5929 = vmatprep.subr.mxu0 0.0
  %5930 = vmatpush1.msra.mxu0 0.0
  %5931 = vmatprep.subr.mxu0 0.0
  %5932 = vmatpush1.msra.mxu0 0.0
  %5933 = vmatprep.subr.mxu0 0.0
  %5934 = vmatpush1.msra.mxu0 0.0
  %5935 = vmatprep.subr.mxu0 0.0
  %5936 = vmatpush1.msra.mxu0 0.0
  %5937 = vmatprep.subr.mxu0 0.0
  %5938 = vmatpush1.msra.mxu0 0.0
  %5939 = vmatprep.subr.mxu0 0.0
  %5940 = vmatpush1.msra.mxu0 0.0
  %5941 = vmatprep.subr.mxu0 0.0
  %5942 = vmatpush1.msra.mxu0 0.0
  %5943 = vmatprep.subr.mxu0 0.0
  %5944 = vmatpush1.msra.mxu0 0.0
  %5945 = vmatprep.subr.mxu0 0.0
  %5946 = vmatpush1.msra.mxu0 0.0
  %5947 = vmatprep.subr.mxu0 0.0
  %5948 = vmatpush1.msra.mxu0 0.0
  %5949 = vmatprep.subr.mxu0 0.0
  %5950 = vmatpush1.msra.mxu0 0.0
  %5951 = vmatprep.subr.mxu0 0.0
  %5952 = vmatpush1.msra.mxu0 0.0
  %5953 = vmatprep.subr.mxu0 0.0
  %5954 = vmatpush1.msra.mxu0 0.0
  %5955 = vmatprep.mubr.f32.mxu0 0.0
  %5956 = vmatmul.mubr.f32.gmra.mrb[0].mxu0 %v5889
  %v5957 = vpop.f32.mrb[0].mxu0
  %v5958 = vadd.f32 %v1962, %v5957
  %v5959 = vpop.f32.mrb[0].mxu0
  %5960 = vdwg.mxu0
  %v5963 = vunpack.c.l.s4 1966171168
  %v5964 = vunpack.c.0.s8 %v5963
  %v5965 = vlaneseq
  %v5966 = vshrl.u32 %v5965, 7
  %v5967 = vsub.s32 %v5964, %v5966
  %v5968 = vrot.slane %v5958, %v5967
  %v5969 = vcombine.high %v5968, %v5968
  %v5971 = vunpack.c.l.s4 1966171168
  %v5972 = vunpack.c.0.s8 %v5971
  %v5973 = vlaneseq
  %v5974 = vshrl.u32 %v5973, 7
  %v5975 = vsub.s32 %v5972, %v5974
  %v5976 = vrot.slane %v5968, %v5975
  %v5978 = vunpack.c.l.s4 1966171168
  %v5979 = vunpack.c.0.s8 %v5978
  %v5980 = vlaneseq
  %v5981 = vshrl.u32 %v5980, 7
  %v5982 = vsub.s32 %v5979, %v5981
  %v5983 = vrot.slane %v5969, %v5982
  %v5984 = vlaneseq
  %v5985 = vshrl.u32 %v5984, 7
  %v5986 = vsub.s32 0, %v5985
  %v5987 = vrot.slane %v5976, %v5986
  %v5988 = vlaneseq
  %v5989 = vshrl.u32 %v5988, 7
  %v5990 = vsub.s32 0, %v5989
  %v5991 = vrot.slane %v5983, %v5990
  %v5994 = vadd.f32 %v1935, %v5987
  %v5995 = vadd.f32 %v1940, %v5991
  %v5996 = vlaneseq
  %v5997 = vshrl.u32 %v5996, 7
  %v5998 = vsub.s32 0, %v5997
  %v5999 = vrot.slane %v5667, %v5998
  %6001 = vbcast.lane.b32.xlu0 %v5999, 256
  %v6002 = vpop.permute.xlu0 %6001
  %v6003 = vlaneseq
  %v6004 = vshrl.u32 %v6003, 7
  %v6005 = vsub.s32 1, %v6004
  %v6006 = vrot.slane %v5667, %v6005
  %6008 = vbcast.lane.b32.xlu0 %v6006, 256
  %v6009 = vpop.permute.xlu0 %6008
  %v6010 = vmul.f32 %v6002, %v1955
  %v6011 = vmul.f32 %v6009, %v1955
  %v6012 = vadd.f32 %v5994, %v6010
  %v6013 = vadd.f32 %v5995, %v6011
  %v6014 = vtanh.pop %v6012
  %v6015 = vtanh.pop %v6013
  %v6016 = vmul.f32 %v6014, %v1948
  %v6017 = vmul.f32 %v6015, %v1948
  %v6018 = vsel %vm76, %v6016, 0.0
  %6019 = vadd.xlane.f32.xlu0 %v6018
  %v6020 = vpop.xlane.xlu0 %6019
  %v6021 = vsel %vm76, %v6017, 0.0
  %6022 = vadd.xlane.f32.xlu0 %v6021
  %v6023 = vpop.xlane.xlu0 %6022
  %v6026 = vlaneseq
  %v6027 = vshrl.u32 %v6026, 7
  %v6028 = vsub.s32 %v2257, %v6027
  %v6029 = vrot.slane %v6020, %v6028
  %v6030 = vlaneseq
  %v6031 = vshrl.u32 %v6030, 7
  %v6032 = vsub.s32 %v2257, %v6031
  %v6033 = vrot.slane %v6023, %v6032
  %v6034 = vsel %vm2266, %v6033, %v6029
  %v6036 = vsel %vm2269, %v6034, -inf
  %6037 = vmax.xlane.f32.xlu0 %v6036
  %v6038 = vpop.xlane.xlu0 %6037
  %v6040 = vlaneseq
  %v6041 = vshrl.u32 %v6040, 7
  %v6042 = vsub.s32 0, %v6041
  %v6043 = vrot.slane %v6038, %v6042
  %v6044 = vlaneseq
  %v6045 = vshrl.u32 %v6044, 7
  %v6046 = vsub.s32 1, %v6045
  %v6047 = vrot.slane %v6038, %v6046
  %v6050 = vsub.f32 %v6020, %v6043
  %v6051 = vsub.f32 %v6023, %v6047
  %v6052 = vmul.f32 %v6050, 1.442695
  %v6053 = vpow.pop %v6052
  %v6054 = vmul.f32 %v6051, 1.442695
  %v6055 = vpow.pop %v6054
  %6058 = vset.pattern.permute.xlu0 0
  %6059 = vperm.xlu0 %6058, %v6053
  %v6060 = vpop.permute.xlu0 %6059
  %6061 = vset.pattern.permute.xlu0 0
  %6062 = vperm.xlu0 %6061, %v6055
  %v6063 = vpop.permute.xlu0 %6062
  %v6064 = vlaneseq
  %v6065 = vshrl.u32 %v6064, 7
  %v6066 = vsub.s32 %v2257, %v6065
  %v6067 = vrot.slane %v6060, %v6066
  %v6068 = vlaneseq
  %v6069 = vshrl.u32 %v6068, 7
  %v6070 = vsub.s32 %v2257, %v6069
  %v6071 = vrot.slane %v6063, %v6070
  %v6072 = vsel %vm2266, %v6071, %v6067
  %v6074 = vsel %vm2269, %v6072, 0.0
  %6075 = vadd.xlane.f32.xlu0 %v6074
  %v6076 = vpop.xlane.xlu0 %6075
  %v6077 = vrcp.pop %v6076
  %v6079 = vlaneseq
  %v6080 = vshrl.u32 %v6079, 7
  %v6081 = vsub.s32 0, %v6080
  %v6082 = vrot.slane %v6077, %v6081
  %v6083 = vlaneseq
  %v6084 = vshrl.u32 %v6083, 7
  %v6085 = vsub.s32 1, %v6084
  %v6086 = vrot.slane %v6077, %v6085
  %v6089 = vmul.f32 %v6053, %v6082
  %v6090 = vmul.f32 %v6055, %v6086
  %v6091 = vmul.f32 %v6089, %v2331
  %v6092 = vmul.f32 %v6090, %v2338
  %6095 = vset.pattern.permute.xlu0 0
  %6096 = vperm.xlu0 %6095, %v6091
  %v6097 = vpop.permute.xlu0 %6096
  %6098 = vset.pattern.permute.xlu0 0
  %6099 = vperm.xlu0 %6098, %v6092
  %v6100 = vpop.permute.xlu0 %6099
  %v6101 = vlaneseq
  %v6102 = vshrl.u32 %v6101, 7
  %v6103 = vsub.s32 %v2257, %v6102
  %v6104 = vrot.slane %v6097, %v6103
  %v6105 = vlaneseq
  %v6106 = vshrl.u32 %v6105, 7
  %v6107 = vsub.s32 %v2257, %v6106
  %v6108 = vrot.slane %v6100, %v6107
  %v6109 = vsel %vm2266, %v6108, %v6104
  %v6111 = vsel %vm2269, %v6109, 0.0
  %6112 = vadd.xlane.f32.xlu0 %v6111
  %v6113 = vpop.xlane.xlu0 %6112
  %v6114 = vrcp.pop %v6113
  %v6116 = vlaneseq
  %v6117 = vshrl.u32 %v6116, 7
  %v6118 = vsub.s32 0, %v6117
  %v6119 = vrot.slane %v6114, %v6118
  %v6120 = vlaneseq
  %v6121 = vshrl.u32 %v6120, 7
  %v6122 = vsub.s32 1, %v6121
  %v6123 = vrot.slane %v6114, %v6122
  %v6126 = vmul.f32 %v6091, %v6119
  %v6127 = vmul.f32 %v6092, %v6123
  %6129 = vset.pattern.permute.xlu0 0
  %6130 = vperm.xlu0 %6129, %v6126
  %v6131 = vpop.permute.xlu0 %6130
  %6134 = vset.pattern.permute.xlu0 0
  %6135 = vperm.xlu0 %6134, %v6127
  %v6136 = vpop.permute.xlu0 %6135
  %v6138 = vmul.f32 %v6131, %v1852
  %v6139 = vmul.f32 %v6136, %v1853
  %v6140 = vsel %vm76, %v6138, 0.0
  %v6141 = vrot.slane %v6140, 4
  %v6142 = vadd.f32 %v6140, %v6141
  %v6143 = vrot.slane %v6142, 2
  %v6144 = vadd.f32 %v6142, %v6143
  %v6145 = vrot.slane %v6144, 1
  %v6146 = vadd.f32 %v6144, %v6145
  %v6147 = vsel %vm76, %v6139, 0.0
  %v6148 = vrot.slane %v6147, 4
  %v6149 = vadd.f32 %v6147, %v6148
  %v6150 = vrot.slane %v6149, 2
  %v6151 = vadd.f32 %v6149, %v6150
  %v6152 = vrot.slane %v6151, 1
  %v6153 = vadd.f32 %v6151, %v6152
  %v6155 = vlaneseq
  %v6156 = vshrl.u32 %v6155, 7
  %v6157 = vsub.s32 0, %v6156
  %v6158 = vrot.slane %v5667, %v6157
  %6160 = vbcast.lane.b32.xlu0 %v6158, 256
  %v6161 = vpop.permute.xlu0 %6160
  %v6162 = vlaneseq
  %v6163 = vshrl.u32 %v6162, 7
  %v6164 = vsub.s32 1, %v6163
  %v6165 = vrot.slane %v5667, %v6164
  %6167 = vbcast.lane.b32.xlu0 %v6165, 256
  %v6168 = vpop.permute.xlu0 %6167
  %v6171 = vmin.f32 %v6126, %v6161
  %v6172 = vmin.f32 %v6127, %v6168
  %6175 = vset.pattern.permute.xlu0 0
  %6176 = vperm.xlu0 %6175, %v6171
  %v6177 = vpop.permute.xlu0 %6176
  %6178 = vset.pattern.permute.xlu0 0
  %6179 = vperm.xlu0 %6178, %v6172
  %v6180 = vpop.permute.xlu0 %6179
  %v6181 = vlaneseq
  %v6182 = vshrl.u32 %v6181, 7
  %v6183 = vsub.s32 %v2257, %v6182
  %v6184 = vrot.slane %v6177, %v6183
  %v6185 = vlaneseq
  %v6186 = vshrl.u32 %v6185, 7
  %v6187 = vsub.s32 %v2257, %v6186
  %v6188 = vrot.slane %v6180, %v6187
  %v6189 = vsel %vm2266, %v6188, %v6184
  %v6191 = vsel %vm2269, %v6189, 0.0
  %6192 = vadd.xlane.f32.xlu0 %v6191
  %v6193 = vpop.xlane.xlu0 %6192
  %v6196 = vsel %vm2266, %v6153, %v6146
  %6197 = vrot.lane.b32.xlu0 %v6196, 32
  %v6198 = vpop.permute.xlu0 %6197
  %v6200 = vsel %vm205, %v5885, %v6198
  %v6202 = vsel %vm2011, %v6200, 0
  %6204 = vmatprep.subr.mxu0 0.0
  %6205 = vmatpush1.msra.mxu0 %v1991
  %6206 = vmatprep.subr.mxu0 0.0
  %6207 = vmatpush1.msra.mxu0 %v1992
  %6208 = vmatprep.subr.mxu0 0.0
  %6209 = vmatpush1.msra.mxu0 %v1993
  %6210 = vmatprep.subr.mxu0 0.0
  %6211 = vmatpush1.msra.mxu0 %v1994
  %6212 = vmatprep.subr.mxu0 0.0
  %6213 = vmatpush1.msra.mxu0 %v1995
  %6214 = vmatprep.subr.mxu0 0.0
  %6215 = vmatpush1.msra.mxu0 %v1996
  %6216 = vmatprep.subr.mxu0 0.0
  %6217 = vmatpush1.msra.mxu0 %v1997
  %6218 = vmatprep.subr.mxu0 0.0
  %6219 = vmatpush1.msra.mxu0 %v1998
  %6220 = vmatprep.subr.mxu0 0.0
  %6221 = vmatpush1.msra.mxu0 %v1999
  %6222 = vmatprep.subr.mxu0 0.0
  %6223 = vmatpush1.msra.mxu0 %v2000
  %6224 = vmatprep.subr.mxu0 0.0
  %6225 = vmatpush1.msra.mxu0 %v2001
  %6226 = vmatprep.subr.mxu0 0.0
  %6227 = vmatpush1.msra.mxu0 %v2002
  %6228 = vmatprep.subr.mxu0 0.0
  %6229 = vmatpush1.msra.mxu0 0.0
  %6230 = vmatprep.subr.mxu0 0.0
  %6231 = vmatpush1.msra.mxu0 0.0
  %6232 = vmatprep.subr.mxu0 0.0
  %6233 = vmatpush1.msra.mxu0 0.0
  %6234 = vmatprep.subr.mxu0 0.0
  %6235 = vmatpush1.msra.mxu0 0.0
  %6236 = vmatprep.subr.mxu0 0.0
  %6237 = vmatpush1.msra.mxu0 0.0
  %6238 = vmatprep.subr.mxu0 0.0
  %6239 = vmatpush1.msra.mxu0 0.0
  %6240 = vmatprep.subr.mxu0 0.0
  %6241 = vmatpush1.msra.mxu0 0.0
  %6242 = vmatprep.subr.mxu0 0.0
  %6243 = vmatpush1.msra.mxu0 0.0
  %6244 = vmatprep.subr.mxu0 0.0
  %6245 = vmatpush1.msra.mxu0 0.0
  %6246 = vmatprep.subr.mxu0 0.0
  %6247 = vmatpush1.msra.mxu0 0.0
  %6248 = vmatprep.subr.mxu0 0.0
  %6249 = vmatpush1.msra.mxu0 0.0
  %6250 = vmatprep.subr.mxu0 0.0
  %6251 = vmatpush1.msra.mxu0 0.0
  %6252 = vmatprep.subr.mxu0 0.0
  %6253 = vmatpush1.msra.mxu0 0.0
  %6254 = vmatprep.subr.mxu0 0.0
  %6255 = vmatpush1.msra.mxu0 0.0
  %6256 = vmatprep.subr.mxu0 0.0
  %6257 = vmatpush1.msra.mxu0 0.0
  %6258 = vmatprep.subr.mxu0 0.0
  %6259 = vmatpush1.msra.mxu0 0.0
  %6260 = vmatprep.subr.mxu0 0.0
  %6261 = vmatpush1.msra.mxu0 0.0
  %6262 = vmatprep.subr.mxu0 0.0
  %6263 = vmatpush1.msra.mxu0 0.0
  %6264 = vmatprep.subr.mxu0 0.0
  %6265 = vmatpush1.msra.mxu0 0.0
  %6266 = vmatprep.subr.mxu0 0.0
  %6267 = vmatpush1.msra.mxu0 0.0
  %6268 = vmatprep.mubr.f32.mxu0 0.0
  %6269 = vmatmul.mubr.f32.gmra.mrb[0].mxu0 %v6202
  %v6270 = vpop.f32.mrb[0].mxu0
  %v6271 = vadd.f32 %v1969, %v6270
  %v6272 = vpop.f32.mrb[0].mxu0
  %6273 = vdwg.mxu0
  %v6274 = vsel %vm1761, %v6271, -inf
  %6275 = vmax.xlane.f32.xlu0 %v6274
  %v6276 = vpop.xlane.xlu0 %6275
  %v6277 = vsub.f32 %v6271, %v6276
  %v6278 = vmul.f32 %v6277, 1.442695
  %v6279 = vpow.pop %v6278
  %v6280 = vsel %vm1761, %v6279, 0.0
  %6281 = vadd.xlane.f32.xlu0 %v6280
  %v6282 = vpop.xlane.xlu0 %6281
  %v6283 = vlog2.pop %v6282
  %v6284 = vmul.f32 %v6283, 0.6931472
  %v6285 = vadd.f32 %v6276, %v6284
  %s6286 = scalar_lea.vmem %s15, 14
  %v6287 = vld [vmem:[%s6286] sm:$0x3]
  %v6288 = vmul.f32 %v6271, %v6287
  %v6289 = vsel %vm1761, %v6288, 0.0
  %6290 = vadd.xlane.f32.xlu0 %v6289
  %v6291 = vpop.xlane.xlu0 %6290
  %v6292 = vsub.f32 %v6285, %v6291
  %v6293 = vmul.f32 %v6292, %v2003
  %6295 = vrot.lane.b32.xlu0 %v6293, 121
  %v6296 = vpop.permute.xlu0 %6295
  %v6298 = vadd.f32 %v5772, %v6296
  %v6299 = vmul.f32 %v6193, %v2003
  %6301 = vrot.lane.b32.xlu0 %v6299, 121
  %v6302 = vpop.permute.xlu0 %6301
  %v6304 = vadd.f32 %v5778, %v6302
  %vm6305 = vcmask 1024
  %6306 = vst.msk [vmem:[%s17] sm:$0x3] %vm6305, %v6298
  %6307 = vst.msk [vmem:[%s18] sm:$0x3] %vm6305, %v6304
  // Predicated region
  $region70: #{seq2seq_forward.1} parent=0 // pred_check
    _
  $region71: #{seq2seq_forward.1} parent=0 // pred_check_branch
    %6309 = sbr.rel (0) target = $region73
  $region72: #{seq2seq_forward.1} parent=0 // pred_region
    _
  $region73: #{seq2seq_forward.1} parent=0 // pred_fallthru
    _
  // Predicated region
  $region74: #{seq2seq_forward.1} parent=0 // pred_check
    _
  $region75: #{seq2seq_forward.1} parent=0 // pred_check_branch
    %6311 = sbr.rel (0) target = $region77
  $region76: #{seq2seq_forward.1} parent=0 // pred_region
    _
  $region77: #{seq2seq_forward.1} parent=0 // pred_fallthru
    _
  // Predicated region
  $region78: #{seq2seq_forward.1} parent=0 // pred_check
    _
  $region79: #{seq2seq_forward.1} parent=0 // pred_check_branch
    %6313 = sbr.rel (0) target = $region81
  $region80: #{seq2seq_forward.1} parent=0 // pred_region
    _
  $region81: #{seq2seq_forward.1} parent=0 // pred_fallthru
    _
  // Predicated region
  $region82: #{seq2seq_forward.1} parent=0 // pred_check
    _
  $region83: #{seq2seq_forward.1} parent=0 // pred_check_branch
    %6315 = sbr.rel (0) target = $region85
  $region84: #{seq2seq_forward.1} parent=0 // pred_region
    _
  $region85: #{seq2seq_forward.1} parent=0 // pred_fallthru
    _

</llo_original>
